<compile_context>
chip_gen: v5e
topology: v5e:2x2
jax: 0.10.0
libtpu: 0.0.40
codegen_flags: <defaults>
</compile_context>

<pallas_src>
import functools
import math

import jax
import jax.numpy as jnp
from jax.experimental import pallas as pl
from jax.experimental.pallas import tpu as pltpu

BN_EPS = 1e-5
LN_EPS = 1e-5
NEG_INF = -1e9


# ---------------- parameter packing (one DMA per packed array) ----------------

class _Packer:
    """Packs many small 2-D parameter blocks into a single (rows, 128) array.

    Row offsets are plain Python ints recorded at init time, so the kernel can
    slice the packed VMEM ref with static slices.  Every block starts at a row
    offset aligned to the dtype's sublane tile (8 for f32, 16 for bf16), so
    multi-row loads never straddle tiles with an offset."""

    def __init__(self, dtype, row_align, lanes=128):
        self.dtype, self.row_align, self.lanes = dtype, row_align, lanes
        self.blocks, self.offsets, self.rows = [], {}, 0

    def add(self, name, arr):
        arr = jnp.asarray(arr, jnp.float32)
        if arr.ndim == 1:
            arr = arr.reshape(1, -1)
        r, c = arr.shape
        assert c <= self.lanes, name
        self.offsets[name] = (self.rows, r, c)
        self.blocks.append(jnp.pad(arr, ((0, 0), (0, self.lanes - c))))
        self.rows += r
        pad = (-self.rows) % self.row_align
        if pad:
            self.blocks.append(jnp.zeros((pad, self.lanes), jnp.float32))
            self.rows += pad

    def pack(self):
        return jnp.concatenate(self.blocks, axis=0).astype(self.dtype)


# ---------------------- in-kernel building blocks ----------------------
# These operate on VALUES loaded from VMEM refs, so every layer stays inside
# the single fused kernel (no extra pallas_calls).

def _matmul(x, w_bf16, b_f32, act="none"):
    """x (rows, in) f32 @ w (in, out) bf16 -> f32 accum; +bias, optional act."""
    y = jnp.dot(x.astype(w_bf16.dtype), w_bf16,
                preferred_element_type=jnp.float32) + b_f32
    if act == "relu":
        y = jnp.maximum(y, 0.0)
    elif act == "gelu":
        # TODO(synk): tanh-approx GELU; PyTorch/HF BERT default is exact erf GELU.
        y = jax.nn.gelu(y, approximate=True)
    return y


def _layer_norm(x, g, b):
    mu = jnp.mean(x, axis=-1, keepdims=True)
    var = jnp.mean(jnp.square(x - mu), axis=-1, keepdims=True)
    return (x - mu) * jax.lax.rsqrt(var + LN_EPS) * g + b


def _softmax_last(s):
    s = s - jnp.max(s, axis=-1, keepdims=True)
    p = jnp.exp(s)
    return p * pl.reciprocal(jnp.sum(p, axis=-1, keepdims=True), approx=True)


def _mha(x, wq, wk, wv, wo, bq, bk, bv, bo, num_heads, key_bias=None):
    """Multi-head self-attention on one (S, E) sequence (eval mode).

    Head-batched einsums (no per-head loop, no lane-slicing of a fused QKV)."""
    S, E = x.shape
    hd = E // num_heads
    scale = 1.0 / math.sqrt(hd)
    xb = x.astype(wq.dtype)
    q = (jnp.dot(xb, wq, preferred_element_type=jnp.float32) + bq).reshape(S, num_heads, hd)
    k = (jnp.dot(xb, wk, preferred_element_type=jnp.float32) + bk).reshape(S, num_heads, hd)
    v = (jnp.dot(xb, wv, preferred_element_type=jnp.float32) + bv).reshape(S, num_heads, hd)
    s = jnp.einsum("qhd,khd->hqk", q.astype(jnp.bfloat16), k.astype(jnp.bfloat16),
                   preferred_element_type=jnp.float32) * scale
    if key_bias is not None:                      # (1, Sk) additive key mask
        s = s + key_bias
    p = _softmax_last(s)                          # softmax in f32
    ctx = jnp.einsum("hqk,khd->qhd", p.astype(jnp.bfloat16), v.astype(jnp.bfloat16),
                     preferred_element_type=jnp.float32).reshape(S, E)
    return jnp.dot(ctx.astype(wo.dtype), wo, preferred_element_type=jnp.float32) + bo


def _avg_max_pool(x):
    """apply_multiple: concat(mean over seq, max over seq) -> (1, 2H)."""
    return jnp.concatenate([jnp.mean(x, axis=0, keepdims=True),
                            jnp.max(x, axis=0, keepdims=True)], axis=-1)


# ---------------------------- fused kernel ----------------------------

def _fused_forward_kernel(speech_ref, temb_ref, mask_ref, vec_ref, w_ref, out_ref,
                          *, num_heads, voffs, woffs):
    def V(name):                                   # f32 bias/LN/BN block
        r0, nr, nc = voffs[name]
        return vec_ref[r0:r0 + nr, :nc]

    def W(name):                                   # bf16 weight block
        r0, nr, nc = woffs[name]
        return w_ref[r0:r0 + nr, :nc]

    SH = speech_ref.shape[1]

    # hoist parameters reused in several stages (JAX does not CSE broadcasts)
    bn_sp_s, bn_sp_o = V("bn_speech_scale"), V("bn_speech_shift")
    bn_tx_s, bn_tx_o = V("bn_text_scale"), V("bn_text_shift")
    ln_g, ln_b = V("ln_g"), V("ln_b")

    def mha(x, pfx, key_bias=None):
        return _mha(x, W(pfx + "_wq"), W(pfx + "_wk"), W(pfx + "_wv"), W(pfx + "_wo"),
                    V(pfx + "_bq"), V(pfx + "_bk"), V(pfx + "_bv"), V(pfx + "_bo"),
                    num_heads, key_bias=key_bias)

    # ---------------- speech branch ----------------
    se = _matmul(speech_ref[0], W("speech_emb_w"), V("speech_emb_b"), act="relu")
    se = se * bn_sp_s + bn_sp_o                    # eval BN (channel=SH); dropout=id
    speech_enc = _layer_norm(se + mha(se, "sp"), ln_g, ln_b)

    # ---------------- text branch: deterministic 1-layer mini-BERT ----------------
    emb = _layer_norm(temb_ref[0], V("bert_emb_ln_g"), V("bert_emb_ln_b"))
    key_bias = (1.0 - mask_ref[0]) * NEG_INF       # (1, ST) additive key mask
    h1 = _layer_norm(emb + mha(emb, "bt", key_bias=key_bias),
                     V("bert_ln1_g"), V("bert_ln1_b"))
    ff = _matmul(h1, W("bt_ff1_w"), V("bt_ff1_b"), act="gelu")
    ff = _matmul(ff, W("bt_ff2_w"), V("bt_ff2_b"))
    text_embedding = _layer_norm(h1 + ff, V("bert_ln2_g"), V("bert_ln2_b"))
    # text_enc = x + BN(x)   (eval BN, channel = ST); dropout = identity
    text_enc = text_embedding + (text_embedding * bn_tx_s + bn_tx_o)

    # ---------------- local inference (ESIM alignment) ----------------
    sp16, tx16 = speech_enc.astype(jnp.bfloat16), text_enc.astype(jnp.bfloat16)
    attn = jnp.einsum("sh,th->st", sp16, tx16, preferred_element_type=jnp.float32)
    x1_align = jnp.einsum("st,th->sh", _softmax_last(attn).astype(jnp.bfloat16), tx16,
                          preferred_element_type=jnp.float32)
    # recompute the transposed score matrix with a 2nd tiny matmul (MXU idle)
    attn_t = jnp.einsum("th,sh->ts", tx16, sp16, preferred_element_type=jnp.float32)
    x2_align = jnp.einsum("ts,sh->th", _softmax_last(attn_t).astype(jnp.bfloat16), sp16,
                          preferred_element_type=jnp.float32)

    x1_cat = jnp.concatenate([speech_enc, x1_align, speech_enc - x1_align,
                              speech_enc * x1_align], axis=-1)   # (SH, 4H) = 128 lanes
    x2_cat = jnp.concatenate([text_enc, x2_align, text_enc - x2_align,
                              text_enc * x2_align], axis=-1)     # (ST, 4H)

    # shared combined_linear: one fused pass over both row slabs
    xc = jnp.concatenate([x1_cat, x2_cat], axis=0)               # (SH+ST, 4H)
    yc = _matmul(xc, W("cl1_w"), V("cl1_b"), act="relu")
    yc = _matmul(yc, W("cl2_w"), V("cl2_b"), act="relu")
    speechs_combined, text_combined = yc[:SH], yc[SH:]

    # ---------------- composition + avg/max pooling ----------------
    sc = speechs_combined * bn_sp_s + bn_sp_o                    # speechs_batchnorm again
    sc_out = _layer_norm(sc + mha(sc, "cs"), ln_g, ln_b)
    speech_attention = _avg_max_pool(sc_out)                     # (1, 2H)

    tc = text_combined * bn_tx_s + bn_tx_o                       # text_batchnorm again
    tc_out = _layer_norm(tc + mha(tc, "ct"), ln_g, ln_b)
    text_attention = _avg_max_pool(tc_out)                       # (1, 2H)

    # ---------------- classifier head ----------------
    cat = jnp.concatenate([speech_attention, text_attention], axis=-1)   # (1, 4H) = 128
    y = _matmul(cat, W("fc1_w"), V("fc1_b"), act="relu")                 # dropout = id
    logits = _matmul(y, W("fc2_w"), V("fc2_b"))                          # (1, 128) zero-padded
    out_ref[...] = logits.reshape(1, 1, 128).astype(out_ref.dtype)


# ----------------------------- parameters -----------------------------

def _dense(key, shape, scale=0.05):
    return scale * jax.random.normal(key, shape, dtype=jnp.float32)


def init_params(key, cfg):
    E, H, FF = cfg["embed_dim"], cfg["hidden_size"], cfg["ffn_size"]
    SH, ST, NC = cfg["speech_h"], cfg["max_sequence_length"], cfg["n_classes"]
    assert E == H, "local_inference_layer requires embed_dim == hidden_size"
    assert E % cfg["num_heads"] == 0
    ks = iter(jax.random.split(key, 32))

    wp = _Packer(jnp.bfloat16, row_align=16)   # matmul weights (MXU operands)
    vp = _Packer(jnp.float32, row_align=8)     # biases / LN / BN params (VPU operands)

    wp.add("speech_emb_w", _dense(next(ks), (cfg["speech_w"], E)))
    vp.add("speech_emb_b", jnp.zeros((1, E)))

    # 4 MHAs: speech (sp), mini-BERT (bt), composition-speech (cs), composition-text (ct)
    for pfx in ("sp", "bt", "cs", "ct"):
        for nm in ("wq", "wk", "wv", "wo"):
            wp.add(pfx + "_" + nm, _dense(next(ks), (E, E)))
        for nm in ("bq", "bk", "bv", "bo"):
            vp.add(pfx + "_" + nm, jnp.zeros((1, E)))

    vp.add("ln_g", jnp.ones((1, E)));          vp.add("ln_b", jnp.zeros((1, E)))
    vp.add("bert_emb_ln_g", jnp.ones((1, H))); vp.add("bert_emb_ln_b", jnp.zeros((1, H)))
    vp.add("bert_ln1_g", jnp.ones((1, H)));    vp.add("bert_ln1_b", jnp.zeros((1, H)))
    vp.add("bert_ln2_g", jnp.ones((1, H)));    vp.add("bert_ln2_b", jnp.zeros((1, H)))

    wp.add("bt_ff1_w", _dense(next(ks), (H, FF)));      vp.add("bt_ff1_b", jnp.zeros((1, FF)))
    wp.add("bt_ff2_w", _dense(next(ks), (FF, H)));      vp.add("bt_ff2_b", jnp.zeros((1, H)))
    wp.add("cl1_w", _dense(next(ks), (4 * H, 2 * H)));  vp.add("cl1_b", jnp.zeros((1, 2 * H)))
    wp.add("cl2_w", _dense(next(ks), (2 * H, H)));      vp.add("cl2_b", jnp.zeros((1, H)))
    wp.add("fc1_w", _dense(next(ks), (4 * H, H)));      vp.add("fc1_b", jnp.zeros((1, H)))
    # fc2 padded to 128 output lanes -> lane-dense final store; extra cols are zero
    fc2_w = jnp.zeros((H, 128), jnp.float32).at[:, :NC].set(_dense(next(ks), (H, NC)))
    wp.add("fc2_w", fc2_w)
    vp.add("fc2_b", jnp.zeros((1, 128)))

    # eval-mode BatchNorm1d folded to a per-channel affine, pre-broadcast to (C, E)
    bnsc = 1.0 / math.sqrt(1.0 + BN_EPS)
    vp.add("bn_speech_scale", jnp.full((SH, E), bnsc, jnp.float32))
    vp.add("bn_speech_shift", jnp.zeros((SH, E)))
    vp.add("bn_text_scale", jnp.full((ST, H), bnsc, jnp.float32))
    vp.add("bn_text_shift", jnp.zeros((ST, H)))

    params = {
        "weights": wp.pack(),                   # one bf16 (R, 128) operand
        "vecs": vp.pack(),                      # one f32  (R, 128) operand
        # TODO(synk): pretrained BertModel/RobertaModel replaced by a deterministic
        # 1-layer mini-BERT encoder computed inside the fused kernel.
        "bert_word_emb": _dense(next(ks), (cfg["vocab_size"], H)),
        "bert_pos_emb": _dense(next(ks), (ST, H)),
    }
    meta = {"woffs": wp.offsets, "voffs": vp.offsets}   # static Python offsets
    return params, meta


# ----------------------------- model forward -----------------------------

def forward(params, speechs, input_ids, attention_mask, *, cfg, meta):
    B, SH, SW = speechs.shape
    ST = input_ids.shape[1]
    H, FF, NC, NH = cfg["hidden_size"], cfg["ffn_size"], cfg["n_classes"], cfg["num_heads"]

    # glue: BERT token-embedding gather stays in plain JAX (data-dependent gather)
    temb = (jnp.take(params["bert_word_emb"], input_ids, axis=0)
            + params["bert_pos_emb"][None, :, :])
    mask = attention_mask.astype(jnp.float32).reshape(B, 1, ST)
    vecs, weights = params["vecs"], params["weights"]

    kernel = functools.partial(_fused_forward_kernel, num_heads=NH,
                               voffs=meta["voffs"], woffs=meta["woffs"])

    mha_macs = lambda S: 4 * S * H * H + 2 * S * S * H
    macs = (SH * SW * H + 2 * mha_macs(SH) + 2 * mha_macs(ST)
            + 2 * ST * H * FF + 4 * SH * ST * H
            + (SH + ST) * (4 * H * 2 * H + 2 * H * H) + 4 * H * H + H * 128)
    cost = pl.CostEstimate(
        flops=2 * B * macs,
        transcendentals=B * (NH * 2 * (SH * SH + ST * ST) + 2 * SH * ST + ST * FF),
        bytes_accessed=(speechs.size * 4 + temb.size * 4 + mask.size * 4
                        + vecs.size * 4 + weights.size * 2 + B * 128 * 4))

    # One fused call; grid over batch so v7x can shard the two rows across its
    # two TensorCores ("parallel"); on v5e/v6e this is a cheap sequential loop.
    out = pl.pallas_call(
        kernel,
        out_shape=jax.ShapeDtypeStruct((B, 1, 128), jnp.float32),
        grid=(B,),
        in_specs=[
            pl.BlockSpec((1, SH, SW), lambda b: (b, 0, 0)),
            pl.BlockSpec((1, ST, H), lambda b: (b, 0, 0)),
            pl.BlockSpec((1, 1, ST), lambda b: (b, 0, 0)),
            pl.BlockSpec(vecs.shape, lambda b: (0, 0)),       # resident across steps
            pl.BlockSpec(weights.shape, lambda b: (0, 0)),    # resident across steps
        ],
        out_specs=pl.BlockSpec((1, 1, 128), lambda b: (b, 0, 0)),
        compiler_params=pltpu.CompilerParams(
            dimension_semantics=("parallel",),
            vmem_limit_bytes=32 * 1024 * 1024),
        cost_estimate=cost,
    )(speechs, temb, mask, vecs, weights)
    return out[:, 0, :NC]


# ----------------------------- main -----------------------------

if __name__ == "__main__":
    cfg = dict(speech_h=8, speech_w=16, embed_dim=32, hidden_size=32, num_heads=4,
               max_sequence_length=8, n_classes=4, vocab_size=50, ffn_size=64,
               dropout_rate=0.1)
    B = 2
    key = jax.random.PRNGKey(0)
    kp, ksp, kid = jax.random.split(key, 3)
    params, meta = init_params(kp, cfg)

    speechs = jax.random.normal(ksp, (B, cfg["speech_h"], cfg["speech_w"]), jnp.float32)
    input_ids = jax.random.randint(kid, (B, cfg["max_sequence_length"]), 0,
                                   cfg["vocab_size"], dtype=jnp.int32)
    attention_mask = jnp.array([[1, 1, 1, 1, 1, 1, 0, 0],
                                [1, 1, 1, 1, 1, 1, 1, 1]], jnp.float32)

    fwd = jax.jit(functools.partial(forward, cfg=cfg, meta=meta))
    out = fwd(params, speechs, input_ids, attention_mask)
    jax.block_until_ready(out)
    assert out.shape == (B, cfg["n_classes"]) and out.dtype == jnp.float32
    print("KERNEL_OK")
</pallas_src>

<mosaic_0001>
module attributes {stable_mosaic.version = 11 : i64} {
  func.func @_fused_forward_kernel(%arg0: i32, %arg1: memref<1x8x16xf32, #tpu.memory_space<vmem>>, %arg2: memref<1x8x32xf32, #tpu.memory_space<vmem>>, %arg3: memref<1x1x8xf32, #tpu.memory_space<vmem>>, %arg4: memref<280x128xf32, #tpu.memory_space<vmem>>, %arg5: memref<976x128xbf16, #tpu.memory_space<vmem>>, %arg6: memref<1x1x128xf32, #tpu.memory_space<vmem>>) attributes {dimension_semantics = [#tpu.dimension_semantics<parallel>], iteration_bounds = array<i64: 2>, scalar_prefetch = 0 : i64, scratch_operands = 0 : i64, tpu.core_type = #tpu.core_type<tc>, window_params = [{transform_indices = @transform_0, window_bounds = array<i64: 1, 8, 16>}, {transform_indices = @transform_1, window_bounds = array<i64: 1, 8, 32>}, {transform_indices = @transform_2, window_bounds = array<i64: 1, 1, 8>}, {pipeline_mode = #tpu.pipeline_mode<synchronous>, transform_indices = @transform_3, window_bounds = array<i64: 280, 128>}, {pipeline_mode = #tpu.pipeline_mode<synchronous>, transform_indices = @transform_4, window_bounds = array<i64: 976, 128>}, {transform_indices = @transform_5, window_bounds = array<i64: 1, 1, 128>}]} {
    %c248 = arith.constant 248 : index
    %c0 = arith.constant 0 : index
    %0 = vector.load %arg4[%c248, %c0] : memref<280x128xf32, #tpu.memory_space<vmem>>, vector<8x32xf32>
    %c256 = arith.constant 256 : index
    %c0_0 = arith.constant 0 : index
    %1 = vector.load %arg4[%c256, %c0_0] : memref<280x128xf32, #tpu.memory_space<vmem>>, vector<8x32xf32>
    %c264 = arith.constant 264 : index
    %c0_1 = arith.constant 0 : index
    %2 = vector.load %arg4[%c264, %c0_1] : memref<280x128xf32, #tpu.memory_space<vmem>>, vector<8x32xf32>
    %c272 = arith.constant 272 : index
    %c0_2 = arith.constant 0 : index
    %3 = vector.load %arg4[%c272, %c0_2] : memref<280x128xf32, #tpu.memory_space<vmem>>, vector<8x32xf32>
    %c136 = arith.constant 136 : index
    %c0_3 = arith.constant 0 : index
    %4 = vector.load %arg4[%c136, %c0_3] : memref<280x128xf32, #tpu.memory_space<vmem>>, vector<1x32xf32>
    %c144 = arith.constant 144 : index
    %c0_4 = arith.constant 0 : index
    %5 = vector.load %arg4[%c144, %c0_4] : memref<280x128xf32, #tpu.memory_space<vmem>>, vector<1x32xf32>
    %c0_5 = arith.constant 0 : index
    %c0_6 = arith.constant 0 : index
    %c0_7 = arith.constant 0 : index
    %6 = vector.load %arg1[%c0_5, %c0_6, %c0_7] : memref<1x8x16xf32, #tpu.memory_space<vmem>>, vector<1x8x16xf32>
    %7 = vector.shape_cast %6 : vector<1x8x16xf32> to vector<8x16xf32>
    %c0_8 = arith.constant 0 : index
    %c0_9 = arith.constant 0 : index
    %8 = vector.load %arg5[%c0_8, %c0_9] : memref<976x128xbf16, #tpu.memory_space<vmem>>, vector<16x32xbf16>
    %c0_10 = arith.constant 0 : index
    %c0_11 = arith.constant 0 : index
    %9 = vector.load %arg4[%c0_10, %c0_11] : memref<280x128xf32, #tpu.memory_space<vmem>>, vector<1x32xf32>
    %10 = arith.truncf %7 : vector<8x16xf32> to vector<8x16xbf16>
    %cst = arith.constant dense<0.000000e+00> : vector<8x32xf32>
    %11 = tpu.matmul %10, %8, %cst {dimension_numbers = #tpu.dot_dimension_numbers<[1], [0], [0], [1], [0, 0, 1, 1], [], []>} : vector<8x16xbf16>, vector<16x32xbf16>, vector<8x32xf32> -> vector<8x32xf32>
    %12 = vector.broadcast %9 : vector<1x32xf32> to vector<8x32xf32>
    %13 = arith.addf %11, %12 : vector<8x32xf32>
    %cst_12 = arith.constant 0.000000e+00 : f32
    %14 = vector.broadcast %cst_12 : f32 to vector<8x32xf32>
    %15 = arith.maximumf %13, %14 : vector<8x32xf32>
    %16 = arith.mulf %15, %0 : vector<8x32xf32>
    %17 = arith.addf %16, %1 : vector<8x32xf32>
    %c16 = arith.constant 16 : index
    %c0_13 = arith.constant 0 : index
    %18 = vector.load %arg5[%c16, %c0_13] : memref<976x128xbf16, #tpu.memory_space<vmem>>, vector<32x32xbf16>
    %c48 = arith.constant 48 : index
    %c0_14 = arith.constant 0 : index
    %19 = vector.load %arg5[%c48, %c0_14] : memref<976x128xbf16, #tpu.memory_space<vmem>>, vector<32x32xbf16>
    %c80 = arith.constant 80 : index
    %c0_15 = arith.constant 0 : index
    %20 = vector.load %arg5[%c80, %c0_15] : memref<976x128xbf16, #tpu.memory_space<vmem>>, vector<32x32xbf16>
    %c112 = arith.constant 112 : index
    %c0_16 = arith.constant 0 : index
    %21 = vector.load %arg5[%c112, %c0_16] : memref<976x128xbf16, #tpu.memory_space<vmem>>, vector<32x32xbf16>
    %c8 = arith.constant 8 : index
    %c0_17 = arith.constant 0 : index
    %22 = vector.load %arg4[%c8, %c0_17] : memref<280x128xf32, #tpu.memory_space<vmem>>, vector<1x32xf32>
    %c16_18 = arith.constant 16 : index
    %c0_19 = arith.constant 0 : index
    %23 = vector.load %arg4[%c16_18, %c0_19] : memref<280x128xf32, #tpu.memory_space<vmem>>, vector<1x32xf32>
    %c24 = arith.constant 24 : index
    %c0_20 = arith.constant 0 : index
    %24 = vector.load %arg4[%c24, %c0_20] : memref<280x128xf32, #tpu.memory_space<vmem>>, vector<1x32xf32>
    %c32 = arith.constant 32 : index
    %c0_21 = arith.constant 0 : index
    %25 = vector.load %arg4[%c32, %c0_21] : memref<280x128xf32, #tpu.memory_space<vmem>>, vector<1x32xf32>
    %26 = arith.truncf %17 : vector<8x32xf32> to vector<8x32xbf16>
    %cst_22 = arith.constant dense<0.000000e+00> : vector<8x32xf32>
    %27 = tpu.matmul %26, %18, %cst_22 {dimension_numbers = #tpu.dot_dimension_numbers<[1], [0], [0], [1], [0, 0, 1, 1], [], []>} : vector<8x32xbf16>, vector<32x32xbf16>, vector<8x32xf32> -> vector<8x32xf32>
    %28 = vector.broadcast %22 : vector<1x32xf32> to vector<8x32xf32>
    %29 = arith.addf %27, %28 : vector<8x32xf32>
    %30 = vector.shape_cast %29 : vector<8x32xf32> to vector<8x4x8xf32>
    %cst_23 = arith.constant dense<0.000000e+00> : vector<8x32xf32>
    %31 = tpu.matmul %26, %19, %cst_23 {dimension_numbers = #tpu.dot_dimension_numbers<[1], [0], [0], [1], [0, 0, 1, 1], [], []>} : vector<8x32xbf16>, vector<32x32xbf16>, vector<8x32xf32> -> vector<8x32xf32>
    %32 = vector.broadcast %23 : vector<1x32xf32> to vector<8x32xf32>
    %33 = arith.addf %31, %32 : vector<8x32xf32>
    %34 = vector.shape_cast %33 : vector<8x32xf32> to vector<8x4x8xf32>
    %cst_24 = arith.constant dense<0.000000e+00> : vector<8x32xf32>
    %35 = tpu.matmul %26, %20, %cst_24 {dimension_numbers = #tpu.dot_dimension_numbers<[1], [0], [0], [1], [0, 0, 1, 1], [], []>} : vector<8x32xbf16>, vector<32x32xbf16>, vector<8x32xf32> -> vector<8x32xf32>
    %36 = vector.broadcast %24 : vector<1x32xf32> to vector<8x32xf32>
    %37 = arith.addf %35, %36 : vector<8x32xf32>
    %38 = vector.shape_cast %37 : vector<8x32xf32> to vector<8x4x8xf32>
    %39 = arith.truncf %30 : vector<8x4x8xf32> to vector<8x4x8xbf16>
    %40 = arith.truncf %34 : vector<8x4x8xf32> to vector<8x4x8xbf16>
    "tpu.trace_start"() <{level = 10 : i32, message = "qhd,khd->hqk"}> : () -> ()
    %cst_25 = arith.constant dense<0.000000e+00> : vector<4x8x8xf32>
    %41 = tpu.matmul %39, %40, %cst_25 {dimension_numbers = #tpu.dot_dimension_numbers<[2], [2], [0], [0], [0, 1, 0, 0, 1, 0], [1], [1]>} : vector<8x4x8xbf16>, vector<8x4x8xbf16>, vector<4x8x8xf32> -> vector<4x8x8xf32>
    "tpu.trace_stop"() : () -> ()
    %cst_26 = arith.constant 0.353553385 : f32
    %42 = vector.broadcast %cst_26 : f32 to vector<4x8x8xf32>
    %43 = arith.mulf %41, %42 : vector<4x8x8xf32>
    %cst_27 = arith.constant dense<0xFF800000> : vector<4x8xf32>
    %44 = vector.multi_reduction <maximumf>, %43, %cst_27 [2] : vector<4x8x8xf32> to vector<4x8xf32>
    %45 = vector.shape_cast %44 : vector<4x8xf32> to vector<4x8x1xf32>
    %46 = vector.broadcast %45 : vector<4x8x1xf32> to vector<4x8x8xf32>
    %47 = arith.subf %43, %46 : vector<4x8x8xf32>
    %48 = math.exp %47 : vector<4x8x8xf32>
    %cst_28 = arith.constant dense<0.000000e+00> : vector<4x8xf32>
    %49 = vector.multi_reduction <add>, %48, %cst_28 [2] : vector<4x8x8xf32> to vector<4x8xf32>
    %50 = vector.shape_cast %49 : vector<4x8xf32> to vector<4x8x1xf32>
    %51 = tpu.reciprocal %50 {approx = true} : vector<4x8x1xf32> -> vector<4x8x1xf32>
    %52 = vector.broadcast %51 : vector<4x8x1xf32> to vector<4x8x8xf32>
    %53 = arith.mulf %48, %52 : vector<4x8x8xf32>
    %54 = arith.truncf %53 : vector<4x8x8xf32> to vector<4x8x8xbf16>
    %55 = arith.truncf %38 : vector<8x4x8xf32> to vector<8x4x8xbf16>
    "tpu.trace_start"() <{level = 10 : i32, message = "hqk,khd->qhd"}> : () -> ()
    %cst_29 = arith.constant dense<0.000000e+00> : vector<4x8x8xf32>
    %56 = tpu.matmul %55, %54, %cst_29 {dimension_numbers = #tpu.dot_dimension_numbers<[0], [2], [2], [1], [0, 1, 0, 2, 1, 1], [1], [0]>} : vector<8x4x8xbf16>, vector<4x8x8xbf16>, vector<4x8x8xf32> -> vector<4x8x8xf32>
    %57 = tpu.transpose %56, [2, 0, 1] : vector<4x8x8xf32> -> vector<8x4x8xf32>
    "tpu.trace_stop"() : () -> ()
    %58 = vector.shape_cast %57 : vector<8x4x8xf32> to vector<8x32xf32>
    %59 = arith.truncf %58 : vector<8x32xf32> to vector<8x32xbf16>
    %cst_30 = arith.constant dense<0.000000e+00> : vector<8x32xf32>
    %60 = tpu.matmul %59, %21, %cst_30 {dimension_numbers = #tpu.dot_dimension_numbers<[1], [0], [0], [1], [0, 0, 1, 1], [], []>} : vector<8x32xbf16>, vector<32x32xbf16>, vector<8x32xf32> -> vector<8x32xf32>
    %61 = vector.broadcast %25 : vector<1x32xf32> to vector<8x32xf32>
    %62 = arith.addf %60, %61 : vector<8x32xf32>
    %63 = arith.addf %17, %62 : vector<8x32xf32>
    %cst_31 = arith.constant dense<0.000000e+00> : vector<8xf32>
    %64 = vector.multi_reduction <add>, %63, %cst_31 [1] : vector<8x32xf32> to vector<8xf32>
    %65 = vector.shape_cast %64 : vector<8xf32> to vector<8x1xf32>
    %cst_32 = arith.constant 3.200000e+01 : f32
    %66 = vector.broadcast %cst_32 : f32 to vector<8x1xf32>
    %67 = arith.divf %65, %66 : vector<8x1xf32>
    %68 = vector.broadcast %67 : vector<8x1xf32> to vector<8x32xf32>
    %69 = arith.subf %63, %68 : vector<8x32xf32>
    %70 = arith.mulf %69, %69 : vector<8x32xf32>
    %cst_33 = arith.constant dense<0.000000e+00> : vector<8xf32>
    %71 = vector.multi_reduction <add>, %70, %cst_33 [1] : vector<8x32xf32> to vector<8xf32>
    %72 = vector.shape_cast %71 : vector<8xf32> to vector<8x1xf32>
    %cst_34 = arith.constant 3.200000e+01 : f32
    %73 = vector.broadcast %cst_34 : f32 to vector<8x1xf32>
    %74 = arith.divf %72, %73 : vector<8x1xf32>
    %75 = vector.broadcast %67 : vector<8x1xf32> to vector<8x32xf32>
    %76 = arith.subf %63, %75 : vector<8x32xf32>
    %cst_35 = arith.constant 9.99999974E-6 : f32
    %77 = vector.broadcast %cst_35 : f32 to vector<8x1xf32>
    %78 = arith.addf %74, %77 : vector<8x1xf32>
    %79 = math.rsqrt %78 : vector<8x1xf32>
    %80 = vector.broadcast %79 : vector<8x1xf32> to vector<8x32xf32>
    %81 = arith.mulf %76, %80 : vector<8x32xf32>
    %82 = vector.broadcast %4 : vector<1x32xf32> to vector<8x32xf32>
    %83 = arith.mulf %81, %82 : vector<8x32xf32>
    %84 = vector.broadcast %5 : vector<1x32xf32> to vector<8x32xf32>
    %85 = arith.addf %83, %84 : vector<8x32xf32>
    %c0_36 = arith.constant 0 : index
    %c0_37 = arith.constant 0 : index
    %c0_38 = arith.constant 0 : index
    %86 = vector.load %arg2[%c0_36, %c0_37, %c0_38] : memref<1x8x32xf32, #tpu.memory_space<vmem>>, vector<1x8x32xf32>
    %87 = vector.shape_cast %86 : vector<1x8x32xf32> to vector<8x32xf32>
    %c152 = arith.constant 152 : index
    %c0_39 = arith.constant 0 : index
    %88 = vector.load %arg4[%c152, %c0_39] : memref<280x128xf32, #tpu.memory_space<vmem>>, vector<1x32xf32>
    %c160 = arith.constant 160 : index
    %c0_40 = arith.constant 0 : index
    %89 = vector.load %arg4[%c160, %c0_40] : memref<280x128xf32, #tpu.memory_space<vmem>>, vector<1x32xf32>
    %cst_41 = arith.constant dense<0.000000e+00> : vector<8xf32>
    %90 = vector.multi_reduction <add>, %87, %cst_41 [1] : vector<8x32xf32> to vector<8xf32>
    %91 = vector.shape_cast %90 : vector<8xf32> to vector<8x1xf32>
    %cst_42 = arith.constant 3.200000e+01 : f32
    %92 = vector.broadcast %cst_42 : f32 to vector<8x1xf32>
    %93 = arith.divf %91, %92 : vector<8x1xf32>
    %94 = vector.broadcast %93 : vector<8x1xf32> to vector<8x32xf32>
    %95 = arith.subf %87, %94 : vector<8x32xf32>
    %96 = arith.mulf %95, %95 : vector<8x32xf32>
    %cst_43 = arith.constant dense<0.000000e+00> : vector<8xf32>
    %97 = vector.multi_reduction <add>, %96, %cst_43 [1] : vector<8x32xf32> to vector<8xf32>
    %98 = vector.shape_cast %97 : vector<8xf32> to vector<8x1xf32>
    %cst_44 = arith.constant 3.200000e+01 : f32
    %99 = vector.broadcast %cst_44 : f32 to vector<8x1xf32>
    %100 = arith.divf %98, %99 : vector<8x1xf32>
    %101 = vector.broadcast %93 : vector<8x1xf32> to vector<8x32xf32>
    %102 = arith.subf %87, %101 : vector<8x32xf32>
    %cst_45 = arith.constant 9.99999974E-6 : f32
    %103 = vector.broadcast %cst_45 : f32 to vector<8x1xf32>
    %104 = arith.addf %100, %103 : vector<8x1xf32>
    %105 = math.rsqrt %104 : vector<8x1xf32>
    %106 = vector.broadcast %105 : vector<8x1xf32> to vector<8x32xf32>
    %107 = arith.mulf %102, %106 : vector<8x32xf32>
    %108 = vector.broadcast %88 : vector<1x32xf32> to vector<8x32xf32>
    %109 = arith.mulf %107, %108 : vector<8x32xf32>
    %110 = vector.broadcast %89 : vector<1x32xf32> to vector<8x32xf32>
    %111 = arith.addf %109, %110 : vector<8x32xf32>
    %c0_46 = arith.constant 0 : index
    %c0_47 = arith.constant 0 : index
    %c0_48 = arith.constant 0 : index
    %112 = vector.load %arg3[%c0_46, %c0_47, %c0_48] : memref<1x1x8xf32, #tpu.memory_space<vmem>>, vector<1x1x8xf32>
    %113 = vector.shape_cast %112 : vector<1x1x8xf32> to vector<1x8xf32>
    %cst_49 = arith.constant 1.000000e+00 : f32
    %114 = vector.broadcast %cst_49 : f32 to vector<1x8xf32>
    %115 = arith.subf %114, %113 : vector<1x8xf32>
    %cst_50 = arith.constant -1.000000e+09 : f32
    %116 = vector.broadcast %cst_50 : f32 to vector<1x8xf32>
    %117 = arith.mulf %115, %116 : vector<1x8xf32>
    %c144_51 = arith.constant 144 : index
    %c0_52 = arith.constant 0 : index
    %118 = vector.load %arg5[%c144_51, %c0_52] : memref<976x128xbf16, #tpu.memory_space<vmem>>, vector<32x32xbf16>
    %c176 = arith.constant 176 : index
    %c0_53 = arith.constant 0 : index
    %119 = vector.load %arg5[%c176, %c0_53] : memref<976x128xbf16, #tpu.memory_space<vmem>>, vector<32x32xbf16>
    %c208 = arith.constant 208 : index
    %c0_54 = arith.constant 0 : index
    %120 = vector.load %arg5[%c208, %c0_54] : memref<976x128xbf16, #tpu.memory_space<vmem>>, vector<32x32xbf16>
    %c240 = arith.constant 240 : index
    %c0_55 = arith.constant 0 : index
    %121 = vector.load %arg5[%c240, %c0_55] : memref<976x128xbf16, #tpu.memory_space<vmem>>, vector<32x32xbf16>
    %c40 = arith.constant 40 : index
    %c0_56 = arith.constant 0 : index
    %122 = vector.load %arg4[%c40, %c0_56] : memref<280x128xf32, #tpu.memory_space<vmem>>, vector<1x32xf32>
    %c48_57 = arith.constant 48 : index
    %c0_58 = arith.constant 0 : index
    %123 = vector.load %arg4[%c48_57, %c0_58] : memref<280x128xf32, #tpu.memory_space<vmem>>, vector<1x32xf32>
    %c56 = arith.constant 56 : index
    %c0_59 = arith.constant 0 : index
    %124 = vector.load %arg4[%c56, %c0_59] : memref<280x128xf32, #tpu.memory_space<vmem>>, vector<1x32xf32>
    %c64 = arith.constant 64 : index
    %c0_60 = arith.constant 0 : index
    %125 = vector.load %arg4[%c64, %c0_60] : memref<280x128xf32, #tpu.memory_space<vmem>>, vector<1x32xf32>
    %126 = arith.truncf %111 : vector<8x32xf32> to vector<8x32xbf16>
    %cst_61 = arith.constant dense<0.000000e+00> : vector<8x32xf32>
    %127 = tpu.matmul %126, %118, %cst_61 {dimension_numbers = #tpu.dot_dimension_numbers<[1], [0], [0], [1], [0, 0, 1, 1], [], []>} : vector<8x32xbf16>, vector<32x32xbf16>, vector<8x32xf32> -> vector<8x32xf32>
    %128 = vector.broadcast %122 : vector<1x32xf32> to vector<8x32xf32>
    %129 = arith.addf %127, %128 : vector<8x32xf32>
    %130 = vector.shape_cast %129 : vector<8x32xf32> to vector<8x4x8xf32>
    %cst_62 = arith.constant dense<0.000000e+00> : vector<8x32xf32>
    %131 = tpu.matmul %126, %119, %cst_62 {dimension_numbers = #tpu.dot_dimension_numbers<[1], [0], [0], [1], [0, 0, 1, 1], [], []>} : vector<8x32xbf16>, vector<32x32xbf16>, vector<8x32xf32> -> vector<8x32xf32>
    %132 = vector.broadcast %123 : vector<1x32xf32> to vector<8x32xf32>
    %133 = arith.addf %131, %132 : vector<8x32xf32>
    %134 = vector.shape_cast %133 : vector<8x32xf32> to vector<8x4x8xf32>
    %cst_63 = arith.constant dense<0.000000e+00> : vector<8x32xf32>
    %135 = tpu.matmul %126, %120, %cst_63 {dimension_numbers = #tpu.dot_dimension_numbers<[1], [0], [0], [1], [0, 0, 1, 1], [], []>} : vector<8x32xbf16>, vector<32x32xbf16>, vector<8x32xf32> -> vector<8x32xf32>
    %136 = vector.broadcast %124 : vector<1x32xf32> to vector<8x32xf32>
    %137 = arith.addf %135, %136 : vector<8x32xf32>
    %138 = vector.shape_cast %137 : vector<8x32xf32> to vector<8x4x8xf32>
    %139 = arith.truncf %130 : vector<8x4x8xf32> to vector<8x4x8xbf16>
    %140 = arith.truncf %134 : vector<8x4x8xf32> to vector<8x4x8xbf16>
    "tpu.trace_start"() <{level = 10 : i32, message = "qhd,khd->hqk"}> : () -> ()
    %cst_64 = arith.constant dense<0.000000e+00> : vector<4x8x8xf32>
    %141 = tpu.matmul %139, %140, %cst_64 {dimension_numbers = #tpu.dot_dimension_numbers<[2], [2], [0], [0], [0, 1, 0, 0, 1, 0], [1], [1]>} : vector<8x4x8xbf16>, vector<8x4x8xbf16>, vector<4x8x8xf32> -> vector<4x8x8xf32>
    "tpu.trace_stop"() : () -> ()
    %cst_65 = arith.constant 0.353553385 : f32
    %142 = vector.broadcast %cst_65 : f32 to vector<4x8x8xf32>
    %143 = arith.mulf %141, %142 : vector<4x8x8xf32>
    %144 = vector.shape_cast %117 : vector<1x8xf32> to vector<1x1x8xf32>
    %145 = vector.broadcast %144 : vector<1x1x8xf32> to vector<4x8x8xf32>
    %146 = arith.addf %143, %145 : vector<4x8x8xf32>
    %cst_66 = arith.constant dense<0xFF800000> : vector<4x8xf32>
    %147 = vector.multi_reduction <maximumf>, %146, %cst_66 [2] : vector<4x8x8xf32> to vector<4x8xf32>
    %148 = vector.shape_cast %147 : vector<4x8xf32> to vector<4x8x1xf32>
    %149 = vector.broadcast %148 : vector<4x8x1xf32> to vector<4x8x8xf32>
    %150 = arith.subf %146, %149 : vector<4x8x8xf32>
    %151 = math.exp %150 : vector<4x8x8xf32>
    %cst_67 = arith.constant dense<0.000000e+00> : vector<4x8xf32>
    %152 = vector.multi_reduction <add>, %151, %cst_67 [2] : vector<4x8x8xf32> to vector<4x8xf32>
    %153 = vector.shape_cast %152 : vector<4x8xf32> to vector<4x8x1xf32>
    %154 = tpu.reciprocal %153 {approx = true} : vector<4x8x1xf32> -> vector<4x8x1xf32>
    %155 = vector.broadcast %154 : vector<4x8x1xf32> to vector<4x8x8xf32>
    %156 = arith.mulf %151, %155 : vector<4x8x8xf32>
    %157 = arith.truncf %156 : vector<4x8x8xf32> to vector<4x8x8xbf16>
    %158 = arith.truncf %138 : vector<8x4x8xf32> to vector<8x4x8xbf16>
    "tpu.trace_start"() <{level = 10 : i32, message = "hqk,khd->qhd"}> : () -> ()
    %cst_68 = arith.constant dense<0.000000e+00> : vector<4x8x8xf32>
    %159 = tpu.matmul %158, %157, %cst_68 {dimension_numbers = #tpu.dot_dimension_numbers<[0], [2], [2], [1], [0, 1, 0, 2, 1, 1], [1], [0]>} : vector<8x4x8xbf16>, vector<4x8x8xbf16>, vector<4x8x8xf32> -> vector<4x8x8xf32>
    %160 = tpu.transpose %159, [2, 0, 1] : vector<4x8x8xf32> -> vector<8x4x8xf32>
    "tpu.trace_stop"() : () -> ()
    %161 = vector.shape_cast %160 : vector<8x4x8xf32> to vector<8x32xf32>
    %162 = arith.truncf %161 : vector<8x32xf32> to vector<8x32xbf16>
    %cst_69 = arith.constant dense<0.000000e+00> : vector<8x32xf32>
    %163 = tpu.matmul %162, %121, %cst_69 {dimension_numbers = #tpu.dot_dimension_numbers<[1], [0], [0], [1], [0, 0, 1, 1], [], []>} : vector<8x32xbf16>, vector<32x32xbf16>, vector<8x32xf32> -> vector<8x32xf32>
    %164 = vector.broadcast %125 : vector<1x32xf32> to vector<8x32xf32>
    %165 = arith.addf %163, %164 : vector<8x32xf32>
    %166 = arith.addf %111, %165 : vector<8x32xf32>
    %c168 = arith.constant 168 : index
    %c0_70 = arith.constant 0 : index
    %167 = vector.load %arg4[%c168, %c0_70] : memref<280x128xf32, #tpu.memory_space<vmem>>, vector<1x32xf32>
    %c176_71 = arith.constant 176 : index
    %c0_72 = arith.constant 0 : index
    %168 = vector.load %arg4[%c176_71, %c0_72] : memref<280x128xf32, #tpu.memory_space<vmem>>, vector<1x32xf32>
    %cst_73 = arith.constant dense<0.000000e+00> : vector<8xf32>
    %169 = vector.multi_reduction <add>, %166, %cst_73 [1] : vector<8x32xf32> to vector<8xf32>
    %170 = vector.shape_cast %169 : vector<8xf32> to vector<8x1xf32>
    %cst_74 = arith.constant 3.200000e+01 : f32
    %171 = vector.broadcast %cst_74 : f32 to vector<8x1xf32>
    %172 = arith.divf %170, %171 : vector<8x1xf32>
    %173 = vector.broadcast %172 : vector<8x1xf32> to vector<8x32xf32>
    %174 = arith.subf %166, %173 : vector<8x32xf32>
    %175 = arith.mulf %174, %174 : vector<8x32xf32>
    %cst_75 = arith.constant dense<0.000000e+00> : vector<8xf32>
    %176 = vector.multi_reduction <add>, %175, %cst_75 [1] : vector<8x32xf32> to vector<8xf32>
    %177 = vector.shape_cast %176 : vector<8xf32> to vector<8x1xf32>
    %cst_76 = arith.constant 3.200000e+01 : f32
    %178 = vector.broadcast %cst_76 : f32 to vector<8x1xf32>
    %179 = arith.divf %177, %178 : vector<8x1xf32>
    %180 = vector.broadcast %172 : vector<8x1xf32> to vector<8x32xf32>
    %181 = arith.subf %166, %180 : vector<8x32xf32>
    %cst_77 = arith.constant 9.99999974E-6 : f32
    %182 = vector.broadcast %cst_77 : f32 to vector<8x1xf32>
    %183 = arith.addf %179, %182 : vector<8x1xf32>
    %184 = math.rsqrt %183 : vector<8x1xf32>
    %185 = vector.broadcast %184 : vector<8x1xf32> to vector<8x32xf32>
    %186 = arith.mulf %181, %185 : vector<8x32xf32>
    %187 = vector.broadcast %167 : vector<1x32xf32> to vector<8x32xf32>
    %188 = arith.mulf %186, %187 : vector<8x32xf32>
    %189 = vector.broadcast %168 : vector<1x32xf32> to vector<8x32xf32>
    %190 = arith.addf %188, %189 : vector<8x32xf32>
    %c528 = arith.constant 528 : index
    %c0_78 = arith.constant 0 : index
    %191 = vector.load %arg5[%c528, %c0_78] : memref<976x128xbf16, #tpu.memory_space<vmem>>, vector<32x64xbf16>
    %c200 = arith.constant 200 : index
    %c0_79 = arith.constant 0 : index
    %192 = vector.load %arg4[%c200, %c0_79] : memref<280x128xf32, #tpu.memory_space<vmem>>, vector<1x64xf32>
    %193 = arith.truncf %190 : vector<8x32xf32> to vector<8x32xbf16>
    %cst_80 = arith.constant dense<0.000000e+00> : vector<8x64xf32>
    %194 = tpu.matmul %193, %191, %cst_80 {dimension_numbers = #tpu.dot_dimension_numbers<[1], [0], [0], [1], [0, 0, 1, 1], [], []>} : vector<8x32xbf16>, vector<32x64xbf16>, vector<8x64xf32> -> vector<8x64xf32>
    %195 = vector.broadcast %192 : vector<1x64xf32> to vector<8x64xf32>
    %196 = arith.addf %194, %195 : vector<8x64xf32>
    %197 = arith.mulf %196, %196 : vector<8x64xf32>
    %198 = arith.mulf %196, %197 : vector<8x64xf32>
    %cst_81 = arith.constant 4.471500e-02 : f32
    %199 = vector.broadcast %cst_81 : f32 to vector<8x64xf32>
    %200 = arith.mulf %199, %198 : vector<8x64xf32>
    %201 = arith.addf %196, %200 : vector<8x64xf32>
    %cst_82 = arith.constant 0.797884583 : f32
    %202 = vector.broadcast %cst_82 : f32 to vector<8x64xf32>
    %203 = arith.mulf %202, %201 : vector<8x64xf32>
    %204 = math.tanh %203 : vector<8x64xf32>
    %cst_83 = arith.constant 1.000000e+00 : f32
    %205 = vector.broadcast %cst_83 : f32 to vector<8x64xf32>
    %206 = arith.addf %205, %204 : vector<8x64xf32>
    %cst_84 = arith.constant 5.000000e-01 : f32
    %207 = vector.broadcast %cst_84 : f32 to vector<8x64xf32>
    %208 = arith.mulf %207, %206 : vector<8x64xf32>
    %209 = arith.mulf %196, %208 : vector<8x64xf32>
    %c560 = arith.constant 560 : index
    %c0_85 = arith.constant 0 : index
    %210 = vector.load %arg5[%c560, %c0_85] : memref<976x128xbf16, #tpu.memory_space<vmem>>, vector<64x32xbf16>
    %c208_86 = arith.constant 208 : index
    %c0_87 = arith.constant 0 : index
    %211 = vector.load %arg4[%c208_86, %c0_87] : memref<280x128xf32, #tpu.memory_space<vmem>>, vector<1x32xf32>
    %212 = arith.truncf %209 : vector<8x64xf32> to vector<8x64xbf16>
    %cst_88 = arith.constant dense<0.000000e+00> : vector<8x32xf32>
    %213 = tpu.matmul %212, %210, %cst_88 {dimension_numbers = #tpu.dot_dimension_numbers<[1], [0], [0], [1], [0, 0, 1, 1], [], []>} : vector<8x64xbf16>, vector<64x32xbf16>, vector<8x32xf32> -> vector<8x32xf32>
    %214 = vector.broadcast %211 : vector<1x32xf32> to vector<8x32xf32>
    %215 = arith.addf %213, %214 : vector<8x32xf32>
    %216 = arith.addf %190, %215 : vector<8x32xf32>
    %c184 = arith.constant 184 : index
    %c0_89 = arith.constant 0 : index
    %217 = vector.load %arg4[%c184, %c0_89] : memref<280x128xf32, #tpu.memory_space<vmem>>, vector<1x32xf32>
    %c192 = arith.constant 192 : index
    %c0_90 = arith.constant 0 : index
    %218 = vector.load %arg4[%c192, %c0_90] : memref<280x128xf32, #tpu.memory_space<vmem>>, vector<1x32xf32>
    %cst_91 = arith.constant dense<0.000000e+00> : vector<8xf32>
    %219 = vector.multi_reduction <add>, %216, %cst_91 [1] : vector<8x32xf32> to vector<8xf32>
    %220 = vector.shape_cast %219 : vector<8xf32> to vector<8x1xf32>
    %cst_92 = arith.constant 3.200000e+01 : f32
    %221 = vector.broadcast %cst_92 : f32 to vector<8x1xf32>
    %222 = arith.divf %220, %221 : vector<8x1xf32>
    %223 = vector.broadcast %222 : vector<8x1xf32> to vector<8x32xf32>
    %224 = arith.subf %216, %223 : vector<8x32xf32>
    %225 = arith.mulf %224, %224 : vector<8x32xf32>
    %cst_93 = arith.constant dense<0.000000e+00> : vector<8xf32>
    %226 = vector.multi_reduction <add>, %225, %cst_93 [1] : vector<8x32xf32> to vector<8xf32>
    %227 = vector.shape_cast %226 : vector<8xf32> to vector<8x1xf32>
    %cst_94 = arith.constant 3.200000e+01 : f32
    %228 = vector.broadcast %cst_94 : f32 to vector<8x1xf32>
    %229 = arith.divf %227, %228 : vector<8x1xf32>
    %230 = vector.broadcast %222 : vector<8x1xf32> to vector<8x32xf32>
    %231 = arith.subf %216, %230 : vector<8x32xf32>
    %cst_95 = arith.constant 9.99999974E-6 : f32
    %232 = vector.broadcast %cst_95 : f32 to vector<8x1xf32>
    %233 = arith.addf %229, %232 : vector<8x1xf32>
    %234 = math.rsqrt %233 : vector<8x1xf32>
    %235 = vector.broadcast %234 : vector<8x1xf32> to vector<8x32xf32>
    %236 = arith.mulf %231, %235 : vector<8x32xf32>
    %237 = vector.broadcast %217 : vector<1x32xf32> to vector<8x32xf32>
    %238 = arith.mulf %236, %237 : vector<8x32xf32>
    %239 = vector.broadcast %218 : vector<1x32xf32> to vector<8x32xf32>
    %240 = arith.addf %238, %239 : vector<8x32xf32>
    %241 = arith.mulf %240, %2 : vector<8x32xf32>
    %242 = arith.addf %241, %3 : vector<8x32xf32>
    %243 = arith.addf %240, %242 : vector<8x32xf32>
    %244 = arith.truncf %85 : vector<8x32xf32> to vector<8x32xbf16>
    %245 = arith.truncf %243 : vector<8x32xf32> to vector<8x32xbf16>
    "tpu.trace_start"() <{level = 10 : i32, message = "sh,th->st"}> : () -> ()
    %cst_96 = arith.constant dense<0.000000e+00> : vector<8x8xf32>
    %246 = tpu.matmul %244, %245, %cst_96 {dimension_numbers = #tpu.dot_dimension_numbers<[1], [1], [0], [0], [0, 0, 1, 0], [], []>} : vector<8x32xbf16>, vector<8x32xbf16>, vector<8x8xf32> -> vector<8x8xf32>
    "tpu.trace_stop"() : () -> ()
    %cst_97 = arith.constant dense<0xFF800000> : vector<8xf32>
    %247 = vector.multi_reduction <maximumf>, %246, %cst_97 [1] : vector<8x8xf32> to vector<8xf32>
    %248 = vector.shape_cast %247 : vector<8xf32> to vector<8x1xf32>
    %249 = vector.broadcast %248 : vector<8x1xf32> to vector<8x8xf32>
    %250 = arith.subf %246, %249 : vector<8x8xf32>
    %251 = math.exp %250 : vector<8x8xf32>
    %cst_98 = arith.constant dense<0.000000e+00> : vector<8xf32>
    %252 = vector.multi_reduction <add>, %251, %cst_98 [1] : vector<8x8xf32> to vector<8xf32>
    %253 = vector.shape_cast %252 : vector<8xf32> to vector<8x1xf32>
    %254 = tpu.reciprocal %253 {approx = true} : vector<8x1xf32> -> vector<8x1xf32>
    %255 = vector.broadcast %254 : vector<8x1xf32> to vector<8x8xf32>
    %256 = arith.mulf %251, %255 : vector<8x8xf32>
    %257 = arith.truncf %256 : vector<8x8xf32> to vector<8x8xbf16>
    "tpu.trace_start"() <{level = 10 : i32, message = "st,th->sh"}> : () -> ()
    %cst_99 = arith.constant dense<0.000000e+00> : vector<8x32xf32>
    %258 = tpu.matmul %257, %245, %cst_99 {dimension_numbers = #tpu.dot_dimension_numbers<[1], [0], [0], [1], [0, 0, 1, 1], [], []>} : vector<8x8xbf16>, vector<8x32xbf16>, vector<8x32xf32> -> vector<8x32xf32>
    "tpu.trace_stop"() : () -> ()
    "tpu.trace_start"() <{level = 10 : i32, message = "th,sh->ts"}> : () -> ()
    %cst_100 = arith.constant dense<0.000000e+00> : vector<8x8xf32>
    %259 = tpu.matmul %245, %244, %cst_100 {dimension_numbers = #tpu.dot_dimension_numbers<[1], [1], [0], [0], [0, 0, 1, 0], [], []>} : vector<8x32xbf16>, vector<8x32xbf16>, vector<8x8xf32> -> vector<8x8xf32>
    "tpu.trace_stop"() : () -> ()
    %cst_101 = arith.constant dense<0xFF800000> : vector<8xf32>
    %260 = vector.multi_reduction <maximumf>, %259, %cst_101 [1] : vector<8x8xf32> to vector<8xf32>
    %261 = vector.shape_cast %260 : vector<8xf32> to vector<8x1xf32>
    %262 = vector.broadcast %261 : vector<8x1xf32> to vector<8x8xf32>
    %263 = arith.subf %259, %262 : vector<8x8xf32>
    %264 = math.exp %263 : vector<8x8xf32>
    %cst_102 = arith.constant dense<0.000000e+00> : vector<8xf32>
    %265 = vector.multi_reduction <add>, %264, %cst_102 [1] : vector<8x8xf32> to vector<8xf32>
    %266 = vector.shape_cast %265 : vector<8xf32> to vector<8x1xf32>
    %267 = tpu.reciprocal %266 {approx = true} : vector<8x1xf32> -> vector<8x1xf32>
    %268 = vector.broadcast %267 : vector<8x1xf32> to vector<8x8xf32>
    %269 = arith.mulf %264, %268 : vector<8x8xf32>
    %270 = arith.truncf %269 : vector<8x8xf32> to vector<8x8xbf16>
    "tpu.trace_start"() <{level = 10 : i32, message = "ts,sh->th"}> : () -> ()
    %cst_103 = arith.constant dense<0.000000e+00> : vector<8x32xf32>
    %271 = tpu.matmul %270, %244, %cst_103 {dimension_numbers = #tpu.dot_dimension_numbers<[1], [0], [0], [1], [0, 0, 1, 1], [], []>} : vector<8x8xbf16>, vector<8x32xbf16>, vector<8x32xf32> -> vector<8x32xf32>
    "tpu.trace_stop"() : () -> ()
    %272 = arith.subf %85, %258 : vector<8x32xf32>
    %273 = arith.mulf %85, %258 : vector<8x32xf32>
    %274 = tpu.concatenate %85, %258, %272, %273 in 1 : vector<8x32xf32>, vector<8x32xf32>, vector<8x32xf32>, vector<8x32xf32> -> vector<8x128xf32>
    %275 = arith.subf %243, %271 : vector<8x32xf32>
    %276 = arith.mulf %243, %271 : vector<8x32xf32>
    %277 = tpu.concatenate %243, %271, %275, %276 in 1 : vector<8x32xf32>, vector<8x32xf32>, vector<8x32xf32>, vector<8x32xf32> -> vector<8x128xf32>
    %278 = tpu.concatenate %274, %277 in 0 : vector<8x128xf32>, vector<8x128xf32> -> vector<16x128xf32>
    %c624 = arith.constant 624 : index
    %c0_104 = arith.constant 0 : index
    %279 = vector.load %arg5[%c624, %c0_104] : memref<976x128xbf16, #tpu.memory_space<vmem>>, vector<128x64xbf16>
    %c216 = arith.constant 216 : index
    %c0_105 = arith.constant 0 : index
    %280 = vector.load %arg4[%c216, %c0_105] : memref<280x128xf32, #tpu.memory_space<vmem>>, vector<1x64xf32>
    %281 = arith.truncf %278 : vector<16x128xf32> to vector<16x128xbf16>
    %cst_106 = arith.constant dense<0.000000e+00> : vector<16x64xf32>
    %282 = tpu.matmul %281, %279, %cst_106 {dimension_numbers = #tpu.dot_dimension_numbers<[1], [0], [0], [1], [0, 0, 1, 1], [], []>} : vector<16x128xbf16>, vector<128x64xbf16>, vector<16x64xf32> -> vector<16x64xf32>
    %283 = vector.broadcast %280 : vector<1x64xf32> to vector<16x64xf32>
    %284 = arith.addf %282, %283 : vector<16x64xf32>
    %cst_107 = arith.constant 0.000000e+00 : f32
    %285 = vector.broadcast %cst_107 : f32 to vector<16x64xf32>
    %286 = arith.maximumf %284, %285 : vector<16x64xf32>
    %c752 = arith.constant 752 : index
    %c0_108 = arith.constant 0 : index
    %287 = vector.load %arg5[%c752, %c0_108] : memref<976x128xbf16, #tpu.memory_space<vmem>>, vector<64x32xbf16>
    %c224 = arith.constant 224 : index
    %c0_109 = arith.constant 0 : index
    %288 = vector.load %arg4[%c224, %c0_109] : memref<280x128xf32, #tpu.memory_space<vmem>>, vector<1x32xf32>
    %289 = arith.truncf %286 : vector<16x64xf32> to vector<16x64xbf16>
    %cst_110 = arith.constant dense<0.000000e+00> : vector<16x32xf32>
    %290 = tpu.matmul %289, %287, %cst_110 {dimension_numbers = #tpu.dot_dimension_numbers<[1], [0], [0], [1], [0, 0, 1, 1], [], []>} : vector<16x64xbf16>, vector<64x32xbf16>, vector<16x32xf32> -> vector<16x32xf32>
    %291 = vector.broadcast %288 : vector<1x32xf32> to vector<16x32xf32>
    %292 = arith.addf %290, %291 : vector<16x32xf32>
    %cst_111 = arith.constant 0.000000e+00 : f32
    %293 = vector.broadcast %cst_111 : f32 to vector<16x32xf32>
    %294 = arith.maximumf %292, %293 : vector<16x32xf32>
    %295 = vector.extract_strided_slice %294 {offsets = [0, 0], sizes = [8, 32], strides = [1, 1]} : vector<16x32xf32> to vector<8x32xf32>
    %296 = vector.extract_strided_slice %294 {offsets = [8, 0], sizes = [8, 32], strides = [1, 1]} : vector<16x32xf32> to vector<8x32xf32>
    %297 = arith.mulf %295, %0 : vector<8x32xf32>
    %298 = arith.addf %297, %1 : vector<8x32xf32>
    %c272_112 = arith.constant 272 : index
    %c0_113 = arith.constant 0 : index
    %299 = vector.load %arg5[%c272_112, %c0_113] : memref<976x128xbf16, #tpu.memory_space<vmem>>, vector<32x32xbf16>
    %c304 = arith.constant 304 : index
    %c0_114 = arith.constant 0 : index
    %300 = vector.load %arg5[%c304, %c0_114] : memref<976x128xbf16, #tpu.memory_space<vmem>>, vector<32x32xbf16>
    %c336 = arith.constant 336 : index
    %c0_115 = arith.constant 0 : index
    %301 = vector.load %arg5[%c336, %c0_115] : memref<976x128xbf16, #tpu.memory_space<vmem>>, vector<32x32xbf16>
    %c368 = arith.constant 368 : index
    %c0_116 = arith.constant 0 : index
    %302 = vector.load %arg5[%c368, %c0_116] : memref<976x128xbf16, #tpu.memory_space<vmem>>, vector<32x32xbf16>
    %c72 = arith.constant 72 : index
    %c0_117 = arith.constant 0 : index
    %303 = vector.load %arg4[%c72, %c0_117] : memref<280x128xf32, #tpu.memory_space<vmem>>, vector<1x32xf32>
    %c80_118 = arith.constant 80 : index
    %c0_119 = arith.constant 0 : index
    %304 = vector.load %arg4[%c80_118, %c0_119] : memref<280x128xf32, #tpu.memory_space<vmem>>, vector<1x32xf32>
    %c88 = arith.constant 88 : index
    %c0_120 = arith.constant 0 : index
    %305 = vector.load %arg4[%c88, %c0_120] : memref<280x128xf32, #tpu.memory_space<vmem>>, vector<1x32xf32>
    %c96 = arith.constant 96 : index
    %c0_121 = arith.constant 0 : index
    %306 = vector.load %arg4[%c96, %c0_121] : memref<280x128xf32, #tpu.memory_space<vmem>>, vector<1x32xf32>
    %307 = arith.truncf %298 : vector<8x32xf32> to vector<8x32xbf16>
    %cst_122 = arith.constant dense<0.000000e+00> : vector<8x32xf32>
    %308 = tpu.matmul %307, %299, %cst_122 {dimension_numbers = #tpu.dot_dimension_numbers<[1], [0], [0], [1], [0, 0, 1, 1], [], []>} : vector<8x32xbf16>, vector<32x32xbf16>, vector<8x32xf32> -> vector<8x32xf32>
    %309 = vector.broadcast %303 : vector<1x32xf32> to vector<8x32xf32>
    %310 = arith.addf %308, %309 : vector<8x32xf32>
    %311 = vector.shape_cast %310 : vector<8x32xf32> to vector<8x4x8xf32>
    %cst_123 = arith.constant dense<0.000000e+00> : vector<8x32xf32>
    %312 = tpu.matmul %307, %300, %cst_123 {dimension_numbers = #tpu.dot_dimension_numbers<[1], [0], [0], [1], [0, 0, 1, 1], [], []>} : vector<8x32xbf16>, vector<32x32xbf16>, vector<8x32xf32> -> vector<8x32xf32>
    %313 = vector.broadcast %304 : vector<1x32xf32> to vector<8x32xf32>
    %314 = arith.addf %312, %313 : vector<8x32xf32>
    %315 = vector.shape_cast %314 : vector<8x32xf32> to vector<8x4x8xf32>
    %cst_124 = arith.constant dense<0.000000e+00> : vector<8x32xf32>
    %316 = tpu.matmul %307, %301, %cst_124 {dimension_numbers = #tpu.dot_dimension_numbers<[1], [0], [0], [1], [0, 0, 1, 1], [], []>} : vector<8x32xbf16>, vector<32x32xbf16>, vector<8x32xf32> -> vector<8x32xf32>
    %317 = vector.broadcast %305 : vector<1x32xf32> to vector<8x32xf32>
    %318 = arith.addf %316, %317 : vector<8x32xf32>
    %319 = vector.shape_cast %318 : vector<8x32xf32> to vector<8x4x8xf32>
    %320 = arith.truncf %311 : vector<8x4x8xf32> to vector<8x4x8xbf16>
    %321 = arith.truncf %315 : vector<8x4x8xf32> to vector<8x4x8xbf16>
    "tpu.trace_start"() <{level = 10 : i32, message = "qhd,khd->hqk"}> : () -> ()
    %cst_125 = arith.constant dense<0.000000e+00> : vector<4x8x8xf32>
    %322 = tpu.matmul %320, %321, %cst_125 {dimension_numbers = #tpu.dot_dimension_numbers<[2], [2], [0], [0], [0, 1, 0, 0, 1, 0], [1], [1]>} : vector<8x4x8xbf16>, vector<8x4x8xbf16>, vector<4x8x8xf32> -> vector<4x8x8xf32>
    "tpu.trace_stop"() : () -> ()
    %cst_126 = arith.constant 0.353553385 : f32
    %323 = vector.broadcast %cst_126 : f32 to vector<4x8x8xf32>
    %324 = arith.mulf %322, %323 : vector<4x8x8xf32>
    %cst_127 = arith.constant dense<0xFF800000> : vector<4x8xf32>
    %325 = vector.multi_reduction <maximumf>, %324, %cst_127 [2] : vector<4x8x8xf32> to vector<4x8xf32>
    %326 = vector.shape_cast %325 : vector<4x8xf32> to vector<4x8x1xf32>
    %327 = vector.broadcast %326 : vector<4x8x1xf32> to vector<4x8x8xf32>
    %328 = arith.subf %324, %327 : vector<4x8x8xf32>
    %329 = math.exp %328 : vector<4x8x8xf32>
    %cst_128 = arith.constant dense<0.000000e+00> : vector<4x8xf32>
    %330 = vector.multi_reduction <add>, %329, %cst_128 [2] : vector<4x8x8xf32> to vector<4x8xf32>
    %331 = vector.shape_cast %330 : vector<4x8xf32> to vector<4x8x1xf32>
    %332 = tpu.reciprocal %331 {approx = true} : vector<4x8x1xf32> -> vector<4x8x1xf32>
    %333 = vector.broadcast %332 : vector<4x8x1xf32> to vector<4x8x8xf32>
    %334 = arith.mulf %329, %333 : vector<4x8x8xf32>
    %335 = arith.truncf %334 : vector<4x8x8xf32> to vector<4x8x8xbf16>
    %336 = arith.truncf %319 : vector<8x4x8xf32> to vector<8x4x8xbf16>
    "tpu.trace_start"() <{level = 10 : i32, message = "hqk,khd->qhd"}> : () -> ()
    %cst_129 = arith.constant dense<0.000000e+00> : vector<4x8x8xf32>
    %337 = tpu.matmul %336, %335, %cst_129 {dimension_numbers = #tpu.dot_dimension_numbers<[0], [2], [2], [1], [0, 1, 0, 2, 1, 1], [1], [0]>} : vector<8x4x8xbf16>, vector<4x8x8xbf16>, vector<4x8x8xf32> -> vector<4x8x8xf32>
    %338 = tpu.transpose %337, [2, 0, 1] : vector<4x8x8xf32> -> vector<8x4x8xf32>
    "tpu.trace_stop"() : () -> ()
    %339 = vector.shape_cast %338 : vector<8x4x8xf32> to vector<8x32xf32>
    %340 = arith.truncf %339 : vector<8x32xf32> to vector<8x32xbf16>
    %cst_130 = arith.constant dense<0.000000e+00> : vector<8x32xf32>
    %341 = tpu.matmul %340, %302, %cst_130 {dimension_numbers = #tpu.dot_dimension_numbers<[1], [0], [0], [1], [0, 0, 1, 1], [], []>} : vector<8x32xbf16>, vector<32x32xbf16>, vector<8x32xf32> -> vector<8x32xf32>
    %342 = vector.broadcast %306 : vector<1x32xf32> to vector<8x32xf32>
    %343 = arith.addf %341, %342 : vector<8x32xf32>
    %344 = arith.addf %298, %343 : vector<8x32xf32>
    %cst_131 = arith.constant dense<0.000000e+00> : vector<8xf32>
    %345 = vector.multi_reduction <add>, %344, %cst_131 [1] : vector<8x32xf32> to vector<8xf32>
    %346 = vector.shape_cast %345 : vector<8xf32> to vector<8x1xf32>
    %cst_132 = arith.constant 3.200000e+01 : f32
    %347 = vector.broadcast %cst_132 : f32 to vector<8x1xf32>
    %348 = arith.divf %346, %347 : vector<8x1xf32>
    %349 = vector.broadcast %348 : vector<8x1xf32> to vector<8x32xf32>
    %350 = arith.subf %344, %349 : vector<8x32xf32>
    %351 = arith.mulf %350, %350 : vector<8x32xf32>
    %cst_133 = arith.constant dense<0.000000e+00> : vector<8xf32>
    %352 = vector.multi_reduction <add>, %351, %cst_133 [1] : vector<8x32xf32> to vector<8xf32>
    %353 = vector.shape_cast %352 : vector<8xf32> to vector<8x1xf32>
    %cst_134 = arith.constant 3.200000e+01 : f32
    %354 = vector.broadcast %cst_134 : f32 to vector<8x1xf32>
    %355 = arith.divf %353, %354 : vector<8x1xf32>
    %356 = vector.broadcast %348 : vector<8x1xf32> to vector<8x32xf32>
    %357 = arith.subf %344, %356 : vector<8x32xf32>
    %cst_135 = arith.constant 9.99999974E-6 : f32
    %358 = vector.broadcast %cst_135 : f32 to vector<8x1xf32>
    %359 = arith.addf %355, %358 : vector<8x1xf32>
    %360 = math.rsqrt %359 : vector<8x1xf32>
    %361 = vector.broadcast %360 : vector<8x1xf32> to vector<8x32xf32>
    %362 = arith.mulf %357, %361 : vector<8x32xf32>
    %363 = vector.broadcast %4 : vector<1x32xf32> to vector<8x32xf32>
    %364 = arith.mulf %362, %363 : vector<8x32xf32>
    %365 = vector.broadcast %5 : vector<1x32xf32> to vector<8x32xf32>
    %366 = arith.addf %364, %365 : vector<8x32xf32>
    %cst_136 = arith.constant dense<0.000000e+00> : vector<32xf32>
    %367 = vector.multi_reduction <add>, %366, %cst_136 [0] : vector<8x32xf32> to vector<32xf32>
    %368 = vector.shape_cast %367 : vector<32xf32> to vector<1x32xf32>
    %cst_137 = arith.constant 8.000000e+00 : f32
    %369 = vector.broadcast %cst_137 : f32 to vector<1x32xf32>
    %370 = arith.divf %368, %369 : vector<1x32xf32>
    %cst_138 = arith.constant dense<0xFF800000> : vector<32xf32>
    %371 = vector.multi_reduction <maximumf>, %366, %cst_138 [0] : vector<8x32xf32> to vector<32xf32>
    %372 = vector.shape_cast %371 : vector<32xf32> to vector<1x32xf32>
    %373 = tpu.concatenate %370, %372 in 1 : vector<1x32xf32>, vector<1x32xf32> -> vector<1x64xf32>
    %374 = arith.mulf %296, %2 : vector<8x32xf32>
    %375 = arith.addf %374, %3 : vector<8x32xf32>
    %c400 = arith.constant 400 : index
    %c0_139 = arith.constant 0 : index
    %376 = vector.load %arg5[%c400, %c0_139] : memref<976x128xbf16, #tpu.memory_space<vmem>>, vector<32x32xbf16>
    %c432 = arith.constant 432 : index
    %c0_140 = arith.constant 0 : index
    %377 = vector.load %arg5[%c432, %c0_140] : memref<976x128xbf16, #tpu.memory_space<vmem>>, vector<32x32xbf16>
    %c464 = arith.constant 464 : index
    %c0_141 = arith.constant 0 : index
    %378 = vector.load %arg5[%c464, %c0_141] : memref<976x128xbf16, #tpu.memory_space<vmem>>, vector<32x32xbf16>
    %c496 = arith.constant 496 : index
    %c0_142 = arith.constant 0 : index
    %379 = vector.load %arg5[%c496, %c0_142] : memref<976x128xbf16, #tpu.memory_space<vmem>>, vector<32x32xbf16>
    %c104 = arith.constant 104 : index
    %c0_143 = arith.constant 0 : index
    %380 = vector.load %arg4[%c104, %c0_143] : memref<280x128xf32, #tpu.memory_space<vmem>>, vector<1x32xf32>
    %c112_144 = arith.constant 112 : index
    %c0_145 = arith.constant 0 : index
    %381 = vector.load %arg4[%c112_144, %c0_145] : memref<280x128xf32, #tpu.memory_space<vmem>>, vector<1x32xf32>
    %c120 = arith.constant 120 : index
    %c0_146 = arith.constant 0 : index
    %382 = vector.load %arg4[%c120, %c0_146] : memref<280x128xf32, #tpu.memory_space<vmem>>, vector<1x32xf32>
    %c128 = arith.constant 128 : index
    %c0_147 = arith.constant 0 : index
    %383 = vector.load %arg4[%c128, %c0_147] : memref<280x128xf32, #tpu.memory_space<vmem>>, vector<1x32xf32>
    %384 = arith.truncf %375 : vector<8x32xf32> to vector<8x32xbf16>
    %cst_148 = arith.constant dense<0.000000e+00> : vector<8x32xf32>
    %385 = tpu.matmul %384, %376, %cst_148 {dimension_numbers = #tpu.dot_dimension_numbers<[1], [0], [0], [1], [0, 0, 1, 1], [], []>} : vector<8x32xbf16>, vector<32x32xbf16>, vector<8x32xf32> -> vector<8x32xf32>
    %386 = vector.broadcast %380 : vector<1x32xf32> to vector<8x32xf32>
    %387 = arith.addf %385, %386 : vector<8x32xf32>
    %388 = vector.shape_cast %387 : vector<8x32xf32> to vector<8x4x8xf32>
    %cst_149 = arith.constant dense<0.000000e+00> : vector<8x32xf32>
    %389 = tpu.matmul %384, %377, %cst_149 {dimension_numbers = #tpu.dot_dimension_numbers<[1], [0], [0], [1], [0, 0, 1, 1], [], []>} : vector<8x32xbf16>, vector<32x32xbf16>, vector<8x32xf32> -> vector<8x32xf32>
    %390 = vector.broadcast %381 : vector<1x32xf32> to vector<8x32xf32>
    %391 = arith.addf %389, %390 : vector<8x32xf32>
    %392 = vector.shape_cast %391 : vector<8x32xf32> to vector<8x4x8xf32>
    %cst_150 = arith.constant dense<0.000000e+00> : vector<8x32xf32>
    %393 = tpu.matmul %384, %378, %cst_150 {dimension_numbers = #tpu.dot_dimension_numbers<[1], [0], [0], [1], [0, 0, 1, 1], [], []>} : vector<8x32xbf16>, vector<32x32xbf16>, vector<8x32xf32> -> vector<8x32xf32>
    %394 = vector.broadcast %382 : vector<1x32xf32> to vector<8x32xf32>
    %395 = arith.addf %393, %394 : vector<8x32xf32>
    %396 = vector.shape_cast %395 : vector<8x32xf32> to vector<8x4x8xf32>
    %397 = arith.truncf %388 : vector<8x4x8xf32> to vector<8x4x8xbf16>
    %398 = arith.truncf %392 : vector<8x4x8xf32> to vector<8x4x8xbf16>
    "tpu.trace_start"() <{level = 10 : i32, message = "qhd,khd->hqk"}> : () -> ()
    %cst_151 = arith.constant dense<0.000000e+00> : vector<4x8x8xf32>
    %399 = tpu.matmul %397, %398, %cst_151 {dimension_numbers = #tpu.dot_dimension_numbers<[2], [2], [0], [0], [0, 1, 0, 0, 1, 0], [1], [1]>} : vector<8x4x8xbf16>, vector<8x4x8xbf16>, vector<4x8x8xf32> -> vector<4x8x8xf32>
    "tpu.trace_stop"() : () -> ()
    %cst_152 = arith.constant 0.353553385 : f32
    %400 = vector.broadcast %cst_152 : f32 to vector<4x8x8xf32>
    %401 = arith.mulf %399, %400 : vector<4x8x8xf32>
    %cst_153 = arith.constant dense<0xFF800000> : vector<4x8xf32>
    %402 = vector.multi_reduction <maximumf>, %401, %cst_153 [2] : vector<4x8x8xf32> to vector<4x8xf32>
    %403 = vector.shape_cast %402 : vector<4x8xf32> to vector<4x8x1xf32>
    %404 = vector.broadcast %403 : vector<4x8x1xf32> to vector<4x8x8xf32>
    %405 = arith.subf %401, %404 : vector<4x8x8xf32>
    %406 = math.exp %405 : vector<4x8x8xf32>
    %cst_154 = arith.constant dense<0.000000e+00> : vector<4x8xf32>
    %407 = vector.multi_reduction <add>, %406, %cst_154 [2] : vector<4x8x8xf32> to vector<4x8xf32>
    %408 = vector.shape_cast %407 : vector<4x8xf32> to vector<4x8x1xf32>
    %409 = tpu.reciprocal %408 {approx = true} : vector<4x8x1xf32> -> vector<4x8x1xf32>
    %410 = vector.broadcast %409 : vector<4x8x1xf32> to vector<4x8x8xf32>
    %411 = arith.mulf %406, %410 : vector<4x8x8xf32>
    %412 = arith.truncf %411 : vector<4x8x8xf32> to vector<4x8x8xbf16>
    %413 = arith.truncf %396 : vector<8x4x8xf32> to vector<8x4x8xbf16>
    "tpu.trace_start"() <{level = 10 : i32, message = "hqk,khd->qhd"}> : () -> ()
    %cst_155 = arith.constant dense<0.000000e+00> : vector<4x8x8xf32>
    %414 = tpu.matmul %413, %412, %cst_155 {dimension_numbers = #tpu.dot_dimension_numbers<[0], [2], [2], [1], [0, 1, 0, 2, 1, 1], [1], [0]>} : vector<8x4x8xbf16>, vector<4x8x8xbf16>, vector<4x8x8xf32> -> vector<4x8x8xf32>
    %415 = tpu.transpose %414, [2, 0, 1] : vector<4x8x8xf32> -> vector<8x4x8xf32>
    "tpu.trace_stop"() : () -> ()
    %416 = vector.shape_cast %415 : vector<8x4x8xf32> to vector<8x32xf32>
    %417 = arith.truncf %416 : vector<8x32xf32> to vector<8x32xbf16>
    %cst_156 = arith.constant dense<0.000000e+00> : vector<8x32xf32>
    %418 = tpu.matmul %417, %379, %cst_156 {dimension_numbers = #tpu.dot_dimension_numbers<[1], [0], [0], [1], [0, 0, 1, 1], [], []>} : vector<8x32xbf16>, vector<32x32xbf16>, vector<8x32xf32> -> vector<8x32xf32>
    %419 = vector.broadcast %383 : vector<1x32xf32> to vector<8x32xf32>
    %420 = arith.addf %418, %419 : vector<8x32xf32>
    %421 = arith.addf %375, %420 : vector<8x32xf32>
    %cst_157 = arith.constant dense<0.000000e+00> : vector<8xf32>
    %422 = vector.multi_reduction <add>, %421, %cst_157 [1] : vector<8x32xf32> to vector<8xf32>
    %423 = vector.shape_cast %422 : vector<8xf32> to vector<8x1xf32>
    %cst_158 = arith.constant 3.200000e+01 : f32
    %424 = vector.broadcast %cst_158 : f32 to vector<8x1xf32>
    %425 = arith.divf %423, %424 : vector<8x1xf32>
    %426 = vector.broadcast %425 : vector<8x1xf32> to vector<8x32xf32>
    %427 = arith.subf %421, %426 : vector<8x32xf32>
    %428 = arith.mulf %427, %427 : vector<8x32xf32>
    %cst_159 = arith.constant dense<0.000000e+00> : vector<8xf32>
    %429 = vector.multi_reduction <add>, %428, %cst_159 [1] : vector<8x32xf32> to vector<8xf32>
    %430 = vector.shape_cast %429 : vector<8xf32> to vector<8x1xf32>
    %cst_160 = arith.constant 3.200000e+01 : f32
    %431 = vector.broadcast %cst_160 : f32 to vector<8x1xf32>
    %432 = arith.divf %430, %431 : vector<8x1xf32>
    %433 = vector.broadcast %425 : vector<8x1xf32> to vector<8x32xf32>
    %434 = arith.subf %421, %433 : vector<8x32xf32>
    %cst_161 = arith.constant 9.99999974E-6 : f32
    %435 = vector.broadcast %cst_161 : f32 to vector<8x1xf32>
    %436 = arith.addf %432, %435 : vector<8x1xf32>
    %437 = math.rsqrt %436 : vector<8x1xf32>
    %438 = vector.broadcast %437 : vector<8x1xf32> to vector<8x32xf32>
    %439 = arith.mulf %434, %438 : vector<8x32xf32>
    %440 = vector.broadcast %4 : vector<1x32xf32> to vector<8x32xf32>
    %441 = arith.mulf %439, %440 : vector<8x32xf32>
    %442 = vector.broadcast %5 : vector<1x32xf32> to vector<8x32xf32>
    %443 = arith.addf %441, %442 : vector<8x32xf32>
    %cst_162 = arith.constant dense<0.000000e+00> : vector<32xf32>
    %444 = vector.multi_reduction <add>, %443, %cst_162 [0] : vector<8x32xf32> to vector<32xf32>
    %445 = vector.shape_cast %444 : vector<32xf32> to vector<1x32xf32>
    %cst_163 = arith.constant 8.000000e+00 : f32
    %446 = vector.broadcast %cst_163 : f32 to vector<1x32xf32>
    %447 = arith.divf %445, %446 : vector<1x32xf32>
    %cst_164 = arith.constant dense<0xFF800000> : vector<32xf32>
    %448 = vector.multi_reduction <maximumf>, %443, %cst_164 [0] : vector<8x32xf32> to vector<32xf32>
    %449 = vector.shape_cast %448 : vector<32xf32> to vector<1x32xf32>
    %450 = tpu.concatenate %447, %449 in 1 : vector<1x32xf32>, vector<1x32xf32> -> vector<1x64xf32>
    %451 = tpu.concatenate %373, %450 in 1 : vector<1x64xf32>, vector<1x64xf32> -> vector<1x128xf32>
    %c816 = arith.constant 816 : index
    %c0_165 = arith.constant 0 : index
    %452 = vector.load %arg5[%c816, %c0_165] : memref<976x128xbf16, #tpu.memory_space<vmem>>, vector<128x32xbf16>
    %c232 = arith.constant 232 : index
    %c0_166 = arith.constant 0 : index
    %453 = vector.load %arg4[%c232, %c0_166] : memref<280x128xf32, #tpu.memory_space<vmem>>, vector<1x32xf32>
    %454 = arith.truncf %451 : vector<1x128xf32> to vector<1x128xbf16>
    %cst_167 = arith.constant dense<0.000000e+00> : vector<1x32xf32>
    %455 = tpu.matmul %454, %452, %cst_167 {dimension_numbers = #tpu.dot_dimension_numbers<[1], [0], [0], [1], [0, 0, 1, 1], [], []>} : vector<1x128xbf16>, vector<128x32xbf16>, vector<1x32xf32> -> vector<1x32xf32>
    %456 = arith.addf %455, %453 : vector<1x32xf32>
    %cst_168 = arith.constant 0.000000e+00 : f32
    %457 = vector.broadcast %cst_168 : f32 to vector<1x32xf32>
    %458 = arith.maximumf %456, %457 : vector<1x32xf32>
    %c944 = arith.constant 944 : index
    %c0_169 = arith.constant 0 : index
    %459 = vector.load %arg5[%c944, %c0_169] : memref<976x128xbf16, #tpu.memory_space<vmem>>, vector<32x128xbf16>
    %c240_170 = arith.constant 240 : index
    %c0_171 = arith.constant 0 : index
    %460 = vector.load %arg4[%c240_170, %c0_171] : memref<280x128xf32, #tpu.memory_space<vmem>>, vector<1x128xf32>
    %461 = arith.truncf %458 : vector<1x32xf32> to vector<1x32xbf16>
    %cst_172 = arith.constant dense<0.000000e+00> : vector<1x128xf32>
    %462 = tpu.matmul %461, %459, %cst_172 {dimension_numbers = #tpu.dot_dimension_numbers<[1], [0], [0], [1], [0, 0, 1, 1], [], []>} : vector<1x32xbf16>, vector<32x128xbf16>, vector<1x128xf32> -> vector<1x128xf32>
    %463 = arith.addf %462, %460 : vector<1x128xf32>
    %464 = vector.shape_cast %463 : vector<1x128xf32> to vector<1x1x128xf32>
    %c0_173 = arith.constant 0 : index
    %c0_174 = arith.constant 0 : index
    %c0_175 = arith.constant 0 : index
    %465 = vector.load %arg6[%c0_173, %c0_174, %c0_175] : memref<1x1x128xf32, #tpu.memory_space<vmem>>, vector<1x1x128xf32>
    tpu.vector_store %arg6[%c0_173, %c0_174, %c0_175], %464 {strides = array<i32>} : memref<1x1x128xf32, #tpu.memory_space<vmem>>, vector<1x1x128xf32>,
    return
  }
  func.func @transform_0(%arg0: i32) -> (i32, i32, i32) {
    %c0_i32 = arith.constant 0 : i32
    %c0_i32_0 = arith.constant 0 : i32
    %c0_i32_1 = arith.constant 0 : i32
    return %arg0, %c0_i32, %c0_i32_0 : i32, i32, i32
  }
  func.func @transform_1(%arg0: i32) -> (i32, i32, i32) {
    %c0_i32 = arith.constant 0 : i32
    %c0_i32_0 = arith.constant 0 : i32
    %c0_i32_1 = arith.constant 0 : i32
    return %arg0, %c0_i32, %c0_i32_0 : i32, i32, i32
  }
  func.func @transform_2(%arg0: i32) -> (i32, i32, i32) {
    %c0_i32 = arith.constant 0 : i32
    %c0_i32_0 = arith.constant 0 : i32
    %c0_i32_1 = arith.constant 0 : i32
    return %arg0, %c0_i32, %c0_i32_0 : i32, i32, i32
  }
  func.func @transform_3(%arg0: i32) -> (i32, i32) {
    %c0_i32 = arith.constant 0 : i32
    %c0_i32_0 = arith.constant 0 : i32
    %c0_i32_1 = arith.constant 0 : i32
    return %c0_i32, %c0_i32_0 : i32, i32
  }
  func.func @transform_4(%arg0: i32) -> (i32, i32) {
    %c0_i32 = arith.constant 0 : i32
    %c0_i32_0 = arith.constant 0 : i32
    %c0_i32_1 = arith.constant 0 : i32
    return %c0_i32, %c0_i32_0 : i32, i32
  }
  func.func @transform_5(%arg0: i32) -> (i32, i32, i32) {
    %c0_i32 = arith.constant 0 : i32
    %c0_i32_0 = arith.constant 0 : i32
    %c0_i32_1 = arith.constant 0 : i32
    return %arg0, %c0_i32, %c0_i32_0 : i32, i32, i32
  }
}

</mosaic_0001>

<llo_original>
// kernel: forward.1
$region0: #{forward.1}
  #allocation0 [shape = 'u32[]', space=smem, size = 0x4, offset = 0x4, fixed_abs, tag = 'smem constant byte address 0x4 - core index']
  #allocation1 [shape = 'u32[72,128]{1,0:T(1,128)}', space=vmem, size = 0x9000, scoped, tag = 'internal scratch']
  %s0 = inlined_call_operand.vmem [shape: f32[2,8,16], index: 0, kind: input, shape index: {}]
  %s1 = inlined_call_operand.vmem [shape: f32[2,8,32], index: 1, kind: input, shape index: {}]
  %s2 = inlined_call_operand.hbm [shape: f32[2,1,8], index: 2, kind: input, shape index: {}]
  %s3 = inlined_call_operand.vmem [shape: f32[280,128], index: 3, kind: input, shape index: {}]
  %s4 = inlined_call_operand.hbm [shape: bf16[976,128], index: 4, kind: input, shape index: {}]
  %s5 = inlined_call_operand.hbm [shape: f32[2,1,128], index: 5, kind: output, shape index: {}]
  %s6 = sld [smem:[#allocation0]]
  $region61: #{forward.1} parent=0
    _
  %s8 = ssub.s32 1, %s6
  %s9 = scalar_select 0, %s8, %s6
  $region1: #{forward.1} parent=0
    #allocation2 [shape = 'u8[1024]{0}', space=vmem, size = 0x400, scoped, tag = 'input window, operand 2']
    #allocation3 [shape = 's32[2]{0}', space=sflag, size = 0x8, scoped, tag = 'scoped memory for forward.1']
    #allocation4 [shape = 's32[2]{0}', space=sflag, size = 0x8, scoped, tag = 'scoped memory for forward.1']
    #allocation5 [shape = 'u8[249856]{0}', space=vmem, size = 0x3d000, scoped, tag = 'input window, operand 4, single buffered']
    #allocation6 [shape = 's32[1]{0}', space=sflag, size = 0x4, scoped, tag = 'scoped memory for forward.1']
    #allocation7 [shape = 'u8[1024]{0}', space=vmem, size = 0x400, scoped, tag = 'output window, operand 0']
    %10 = vsyncpa [#allocation3], 0
    %s11 = scalar_lea.sflag [#allocation3], 1
    %12 = vsyncpa %s11, 0
    %13 = vsyncpa [#allocation6], 0
    %14 = vsyncpa [#allocation4], 0
    %s15 = scalar_lea.sflag [#allocation4], 1
    %16 = vsyncpa %s15, 0
    loop: start=0, step=1, limit=4
    $region2: #{forward.1} parent=1 // loop_pre_header
      _
    $region3: #{forward.1} parent=1 // loop_header
      %s18 = sphi 0, %s22
      %p19 = scmp.ge.s32.totalorder %s18, 4
      %s28 = sphi 0, %s30
      %s31 = sphi 0, %s28
      %s32 = sphi 0, %s31
      %s48 = sphi 0, %s32
      %s54 = sphi 0, %s56
      %s57 = sphi 0, %s54
      %s58 = sphi 0, %s57
      %s74 = sphi 0, %s58
      %s80 = sphi 0, %s82
      %s83 = sphi 0, %s80
      %s84 = sphi 0, %s83
      %s100 = sphi 0, %s84
      %s104 = sphi 0, %s104
      %s106 = sphi 0, %s104
      %s107 = sphi 0, %s106
      %s121 = sphi 0, %s107
      %s125 = sphi 0, %s125
      %s127 = sphi 0, %s125
      %s128 = sphi 0, %s127
      %s142 = sphi 0, %s128
      %s148 = sphi 0, %s150
      %s151 = sphi 0, %s148
      %s152 = sphi 0, %s151
      %s168 = sphi 0, %s152
    $region4: #{forward.1} parent=1 // loop_header_branch
      %21 = sbr.rel (%p19) target = $region8
    $region5: #{forward.1} parent=1 // loop_body
      %s23 = ssub.s32 %s18, 1
      %s24 = ssub.s32 %s18, 2
      %s25 = sadd.s32 %s18, 1
      %s26 = ssub.s32 %s18, %s25
      %p27 = scmp.eq.s32.totalorder %s26, 0
      %s29 = sadd.s32 %s28, 1
      %s30 = scalar_select %p27, %s28, %s29
      %p33 = pneg %p27
      %p34 = scmp.eq.s32.totalorder %s18, 1
      %p35 = por %p33, %p34
      %p36 = scmp.ne.s32.totalorder %s28, %s31
      %p37 = scmp.eq.s32.totalorder %s18, 0
      %p38 = por %p36, %p37
      %p39 = scmp.ne.s32.totalorder %s28, %s31
      %p40 = scmp.eq.s32.totalorder %s23, 1
      %p41 = por %p39, %p40
      %p42 = scmp.ne.s32.totalorder %s31, %s32
      %p43 = scmp.eq.s32.totalorder %s23, 0
      %p44 = por %p42, %p43
      %p45 = scmp.ne.s32.totalorder %s31, %s32
      %p46 = scmp.eq.s32.totalorder %s24, 1
      %p47 = por %p45, %p46
      %p49 = scmp.ne.s32.totalorder %s32, %s48
      %p50 = scmp.eq.s32.totalorder %s24, 0
      %p51 = por %p49, %p50
      %s52 = ssub.s32 %s18, %s25
      %p53 = scmp.eq.s32.totalorder %s52, 0
      %s55 = sadd.s32 %s54, 1
      %s56 = scalar_select %p53, %s54, %s55
      %p59 = pneg %p53
      %p60 = scmp.eq.s32.totalorder %s18, 1
      %p61 = por %p59, %p60
      %p62 = scmp.ne.s32.totalorder %s54, %s57
      %p63 = scmp.eq.s32.totalorder %s18, 0
      %p64 = por %p62, %p63
      %p65 = scmp.ne.s32.totalorder %s54, %s57
      %p66 = scmp.eq.s32.totalorder %s23, 1
      %p67 = por %p65, %p66
      %p68 = scmp.ne.s32.totalorder %s57, %s58
      %p69 = scmp.eq.s32.totalorder %s23, 0
      %p70 = por %p68, %p69
      %p71 = scmp.ne.s32.totalorder %s57, %s58
      %p72 = scmp.eq.s32.totalorder %s24, 1
      %p73 = por %p71, %p72
      %p75 = scmp.ne.s32.totalorder %s58, %s74
      %p76 = scmp.eq.s32.totalorder %s24, 0
      %p77 = por %p75, %p76
      %s78 = ssub.s32 %s18, %s25
      %p79 = scmp.eq.s32.totalorder %s78, 0
      %s81 = sadd.s32 %s80, 1
      %s82 = scalar_select %p79, %s80, %s81
      %p85 = pneg %p79
      %p86 = scmp.eq.s32.totalorder %s18, 1
      %p87 = por %p85, %p86
      %p88 = scmp.ne.s32.totalorder %s80, %s83
      %p89 = scmp.eq.s32.totalorder %s18, 0
      %p90 = por %p88, %p89
      %p91 = scmp.ne.s32.totalorder %s80, %s83
      %p92 = scmp.eq.s32.totalorder %s23, 1
      %p93 = por %p91, %p92
      %p94 = scmp.ne.s32.totalorder %s83, %s84
      %p95 = scmp.eq.s32.totalorder %s23, 0
      %p96 = por %p94, %p95
      %p97 = scmp.ne.s32.totalorder %s83, %s84
      %p98 = scmp.eq.s32.totalorder %s24, 1
      %p99 = por %p97, %p98
      %p101 = scmp.ne.s32.totalorder %s84, %s100
      %p102 = scmp.eq.s32.totalorder %s24, 0
      %p103 = por %p101, %p102
      %s105 = sadd.s32 %s104, 1
      %p108 = scmp.eq.s32.totalorder %s18, 1
      %p109 = scmp.ne.s32.totalorder %s104, %s106
      %p110 = scmp.eq.s32.totalorder %s18, 0
      %p111 = por %p109, %p110
      %p112 = scmp.ne.s32.totalorder %s104, %s106
      %p113 = scmp.eq.s32.totalorder %s23, 1
      %p114 = por %p112, %p113
      %p115 = scmp.ne.s32.totalorder %s106, %s107
      %p116 = scmp.eq.s32.totalorder %s23, 0
      %p117 = por %p115, %p116
      %p118 = scmp.ne.s32.totalorder %s106, %s107
      %p119 = scmp.eq.s32.totalorder %s24, 1
      %p120 = por %p118, %p119
      %p122 = scmp.ne.s32.totalorder %s107, %s121
      %p123 = scmp.eq.s32.totalorder %s24, 0
      %p124 = por %p122, %p123
      %s126 = sadd.s32 %s125, 1
      %p129 = scmp.eq.s32.totalorder %s18, 1
      %p130 = scmp.ne.s32.totalorder %s125, %s127
      %p131 = scmp.eq.s32.totalorder %s18, 0
      %p132 = por %p130, %p131
      %p133 = scmp.ne.s32.totalorder %s125, %s127
      %p134 = scmp.eq.s32.totalorder %s23, 1
      %p135 = por %p133, %p134
      %p136 = scmp.ne.s32.totalorder %s127, %s128
      %p137 = scmp.eq.s32.totalorder %s23, 0
      %p138 = por %p136, %p137
      %p139 = scmp.ne.s32.totalorder %s127, %s128
      %p140 = scmp.eq.s32.totalorder %s24, 1
      %p141 = por %p139, %p140
      %p143 = scmp.ne.s32.totalorder %s128, %s142
      %p144 = scmp.eq.s32.totalorder %s24, 0
      %p145 = por %p143, %p144
      %s146 = ssub.s32 %s18, %s25
      %p147 = scmp.eq.s32.totalorder %s146, 0
      %s149 = sadd.s32 %s148, 1
      %s150 = scalar_select %p147, %s148, %s149
      %p153 = pneg %p147
      %p154 = scmp.eq.s32.totalorder %s18, 1
      %p155 = por %p153, %p154
      %p156 = scmp.ne.s32.totalorder %s148, %s151
      %p157 = scmp.eq.s32.totalorder %s18, 0
      %p158 = por %p156, %p157
      %p159 = scmp.ne.s32.totalorder %s148, %s151
      %p160 = scmp.eq.s32.totalorder %s23, 1
      %p161 = por %p159, %p160
      %p162 = scmp.ne.s32.totalorder %s151, %s152
      %p163 = scmp.eq.s32.totalorder %s23, 0
      %p164 = por %p162, %p163
      %p165 = scmp.ne.s32.totalorder %s151, %s152
      %p166 = scmp.eq.s32.totalorder %s24, 1
      %p167 = por %p165, %p166
      %p169 = scmp.ne.s32.totalorder %s152, %s168
      %p170 = scmp.eq.s32.totalorder %s24, 0
      %p171 = por %p169, %p170
      %p172 = scmp.le.s32.totalorder 1, %s18
      %p173 = scmp.lt.s32.totalorder %s18, 3
      %p174 = pnand %p172, %p173
      %p175 = pneg %p174
      // Predicated region
      $region9: #{forward.1} parent=5 // pred_check
        _
      $region10: #{forward.1} parent=5 // pred_check_branch
        %177 = sbr.rel (%p174) target = $region12
      $region11: #{forward.1} parent=5 // pred_region
        %s178 = ssub.s32 %s18, 1
        // Predicated region
        $region13: #{forward.1} parent=11 // pred_check
          %p179 = pneg %p117
        $region14: #{forward.1} parent=11 // pred_check_branch
          %181 = sbr.rel (%p179) target = $region16
        $region15: #{forward.1} parent=11 // pred_region
          _
        $region16: #{forward.1} parent=11 // pred_fallthru
          _
        // Predicated region
        $region17: #{forward.1} parent=11 // pred_check
          %p182 = pneg %p138
        $region18: #{forward.1} parent=11 // pred_check_branch
          %184 = sbr.rel (%p182) target = $region20
        $region19: #{forward.1} parent=11 // pred_region
          %186 = vsyncadd [#allocation6], 0
          %s187 = sshll.u32 %s4, 4
          %s188 = int_to_ptr.hbm [resolvable:$true] %s187
          %s189 = sshll.u32 [#allocation5], 4
          %s190 = int_to_ptr.vmem [resolvable:$true] %s189
          %195 = dma.hbm_to_vmem [thread:$0]  %s188, 7808, %s190, [#allocation6], 64, 64, 4
        $region20: #{forward.1} parent=11 // pred_fallthru
          _
      $region12: #{forward.1} parent=5 // pred_fallthru
        _
      %p196 = scmp.lt.s32.totalorder %s18, 2
      // Predicated region
      $region21: #{forward.1} parent=5 // pred_check
        %p197 = pneg %p196
      $region22: #{forward.1} parent=5 // pred_check_branch
        %199 = sbr.rel (%p197) target = $region24
      $region23: #{forward.1} parent=5 // pred_region
        // Predicated region
        $region25: #{forward.1} parent=23 // pred_check
          %p200 = pneg %p38
        $region26: #{forward.1} parent=23 // pred_check_branch
          %202 = sbr.rel (%p200) target = $region28
        $region27: #{forward.1} parent=23 // pred_region
          %p203 = scmp.lt.s32.totalorder %s18, 1
          %s204 = scalar_select %p203, %s18, 1
          %s205 = smul.addr %s204, 8
          %s206 = scalar_lea.vmem %s0, %s205
        $region28: #{forward.1} parent=23 // pred_fallthru
          _
        // Predicated region
        $region29: #{forward.1} parent=23 // pred_check
          %p207 = pneg %p64
        $region30: #{forward.1} parent=23 // pred_check_branch
          %209 = sbr.rel (%p207) target = $region32
        $region31: #{forward.1} parent=23 // pred_region
          %p210 = scmp.lt.s32.totalorder %s18, 1
          %s211 = scalar_select %p210, %s18, 1
          %s212 = smul.addr %s211, 8
          %s213 = scalar_lea.vmem %s1, %s212
        $region32: #{forward.1} parent=23 // pred_fallthru
          _
        // Predicated region
        $region33: #{forward.1} parent=23 // pred_check
          %p214 = pneg %p90
        $region34: #{forward.1} parent=23 // pred_check_branch
          %216 = sbr.rel (%p214) target = $region36
        $region35: #{forward.1} parent=23 // pred_region
          %s217 = sand.u32 %s80, 1
          %s218 = scalar_lea.sflag [#allocation3], %s217
          %s219 = sand.u32 %s80, 1
          %s220 = scalar_lea.vmem [#allocation2], %s219
          %222 = vsyncadd %s218, 0
          %s223 = scalar_lea.hbm %s2, %s18
          %s225 = sshll.u32 %s223, 4
          %s226 = int_to_ptr.hbm [resolvable:$true] %s225
          %s227 = sshll.u32 %s220, 4
          %s228 = int_to_ptr.vmem [resolvable:$true] %s227
          %230 = dma.hbm_to_vmem [thread:$0]  %s226, 16, %s228, %s218
        $region36: #{forward.1} parent=23 // pred_fallthru
          _
      $region24: #{forward.1} parent=5 // pred_fallthru
        _
      %p231 = scmp.le.s32.totalorder 1, %s18
      %p232 = scmp.lt.s32.totalorder %s18, 3
      %p233 = pnand %p231, %p232
      %p234 = pneg %p233
      // Predicated region
      $region37: #{forward.1} parent=5 // pred_check
        _
      $region38: #{forward.1} parent=5 // pred_check_branch
        %236 = sbr.rel (%p233) target = $region40
      $region39: #{forward.1} parent=5 // pred_region
        %s237 = ssub.s32 %s18, 1
        %s238 = sand.u32 %s83, 1
        %s239 = scalar_lea.sflag [#allocation3], %s238
        %s240 = sand.u32 %s83, 1
        %s241 = scalar_lea.vmem [#allocation2], %s240
        // Predicated region
        $region41: #{forward.1} parent=39 // pred_check
          %p242 = pneg %p96
        $region42: #{forward.1} parent=39 // pred_check_branch
          %244 = sbr.rel (%p242) target = $region44
        $region43: #{forward.1} parent=39 // pred_region
          %246 = dma.done %s239, 16
        $region44: #{forward.1} parent=39 // pred_fallthru
          _
        // Predicated region
        $region45: #{forward.1} parent=39 // pred_check
          %p247 = pneg %p138
        $region46: #{forward.1} parent=39 // pred_check_branch
          %249 = sbr.rel (%p247) target = $region48
        $region47: #{forward.1} parent=39 // pred_region
          %251 = dma.done [#allocation6], 7808
        $region48: #{forward.1} parent=39 // pred_fallthru
          _
        %p252 = scmp.lt.s32.totalorder %s23, 1
        %s253 = scalar_select %p252, %s23, 1
        %s254 = smul.addr %s253, 8
        %s255 = scalar_lea.vmem %s0, %s254
        %p256 = pneg %p44
        %p257 = pneg %p41
        %p258 = scmp.lt.s32.totalorder %s23, 1
        %s259 = scalar_select %p258, %s23, 1
        %s260 = smul.addr %s259, 8
        %s261 = scalar_lea.vmem %s1, %s260
        %p262 = pneg %p70
        %p263 = pneg %p67
        %s264 = sand.u32 %s83, 1
        %s265 = scalar_lea.sflag [#allocation3], %s264
        %s266 = sand.u32 %s83, 1
        %s267 = scalar_lea.vmem [#allocation2], %s266
        %p268 = pneg %p96
        %p269 = pneg %p93
        %p270 = pneg %p117
        %p271 = pneg %p114
        %p272 = pneg %p138
        %p273 = pneg %p135
        %p274 = pneg %p164
        %p275 = pneg %p161
        %s276 = sand.u32 %s151, 1
        %s277 = scalar_lea.sflag [#allocation4], %s276
        %s278 = sand.u32 %s151, 1
        %s279 = scalar_lea.vmem [#allocation7], %s278
        %p280 = scmp.lt.s32.totalorder %s23, 1
        %s281 = scalar_select %p280, %s23, 1
        %s282 = smul.addr %s281, 8
        %s283 = scalar_lea.vmem %s0, %s282
        %p284 = scmp.lt.s32.totalorder %s23, 1
        %s285 = scalar_select %p284, %s23, 1
        %s286 = smul.addr %s285, 8
        %s287 = scalar_lea.vmem %s1, %s286
        %v289 = vld [vmem:[%s3 + $0xf8] sm:$0xff]
        %v290 = vld [vmem:[%s3 + $0x100] sm:$0xff]
        %v291 = vld [vmem:[%s3 + $0x108] sm:$0xff]
        %v292 = vld [vmem:[%s3 + $0x110] sm:$0xff]
        %v293 = vld [vmem:[%s3 + $0x88] sm:$0x1]
        %v294 = vld [vmem:[%s3 + $0x90] sm:$0x1]
        %v295 = vld [vmem:[%s283] sm:$0xff]
        %v296 = vld [vmem:[#allocation5] sm:$0xf]
        %v297 = vld [vmem:[#allocation5 + $0x4] sm:$0xf]
        %v298 = vld [vmem:[%s3] sm:$0x1]
        %v299 = vpack.c.bf16 %v295, %v295
        %v300 = vperm.slane %v298, 0
        %v303 = vunpack.c.l.b16 %v296
        %v304 = vunpack.c.l.b16 %v297
        %v305 = vpack.c.b16 %v304, %v303
        %vm307 = vcmask 130048
        %v309 = vsel %vm307, %v299, 0
        %311 = vmatpush.bf16.msra.mxu0 0
        %312 = vmatpush.bf16.msra.mxu0 0
        %313 = vmatpush.bf16.msra.mxu0 0
        %314 = vmatpush.bf16.msra.mxu0 0
        %315 = vmatpush.bf16.msra.mxu0 0
        %316 = vmatpush.bf16.msra.mxu0 0
        %317 = vmatpush.bf16.msra.mxu0 0
        %318 = vmatpush.bf16.msra.mxu0 %v305
        %319 = vmatmul.bf16.gmra.mxu0 %v309
        %v320 = vpop.f32.mrf.mxu0
        %v321 = vadd.f32 %v300, %v320
        %v322 = vpop.f32.mrf.mxu0
        %323 = vdwg.mxu0
        %v324 = vmax.f32 %v321, 0.0
        %v325 = vmul.f32 %v324, %v289
        %v326 = vadd.f32 %v325, %v290
        %v327 = vld [vmem:[#allocation5 + $0x8] sm:$0xf]
        %v328 = vld [vmem:[#allocation5 + $0xc] sm:$0xf]
        %v329 = vld [vmem:[#allocation5 + $0x10] sm:$0xf]
        %v330 = vld [vmem:[#allocation5 + $0x14] sm:$0xf]
        %v331 = vld [vmem:[#allocation5 + $0x18] sm:$0xf]
        %v332 = vld [vmem:[#allocation5 + $0x1c] sm:$0xf]
        %v333 = vld [vmem:[#allocation5 + $0x20] sm:$0xf]
        %v334 = vld [vmem:[#allocation5 + $0x24] sm:$0xf]
        %v335 = vld [vmem:[#allocation5 + $0x28] sm:$0xf]
        %v336 = vld [vmem:[#allocation5 + $0x2c] sm:$0xf]
        %v337 = vld [vmem:[#allocation5 + $0x30] sm:$0xf]
        %v338 = vld [vmem:[#allocation5 + $0x34] sm:$0xf]
        %v339 = vld [vmem:[#allocation5 + $0x38] sm:$0xf]
        %v340 = vld [vmem:[#allocation5 + $0x3c] sm:$0xf]
        %v341 = vld [vmem:[#allocation5 + $0x40] sm:$0xf]
        %v342 = vld [vmem:[#allocation5 + $0x44] sm:$0xf]
        %v343 = vld [vmem:[%s3 + $0x8] sm:$0x1]
        %v344 = vld [vmem:[%s3 + $0x10] sm:$0x1]
        %v345 = vld [vmem:[%s3 + $0x18] sm:$0x1]
        %v346 = vld [vmem:[%s3 + $0x20] sm:$0x1]
        %v347 = vpack.c.bf16 %v326, %v326
        %v348 = vperm.slane %v343, 0
        %v353 = vunpack.c.l.b16 %v327
        %v354 = vunpack.c.l.b16 %v328
        %v355 = vunpack.c.l.b16 %v329
        %v356 = vunpack.c.l.b16 %v330
        %v357 = vpack.c.b16 %v354, %v353
        %v358 = vpack.c.b16 %v356, %v355
        %vm361 = vcmask 261120
        %v363 = vsel %vm361, %v347, 0
        %365 = vmatpush.bf16.msra.mxu0 0
        %366 = vmatpush.bf16.msra.mxu0 0
        %367 = vmatpush.bf16.msra.mxu0 0
        %368 = vmatpush.bf16.msra.mxu0 0
        %369 = vmatpush.bf16.msra.mxu0 0
        %370 = vmatpush.bf16.msra.mxu0 0
        %371 = vmatpush.bf16.msra.mxu0 %v358
        %372 = vmatpush.bf16.msra.mxu0 %v357
        %373 = vmatmul.bf16.gmra.mxu0 %v363
        %v374 = vpop.f32.mrf.mxu0
        %v375 = vadd.f32 %v348, %v374
        %v376 = vpop.f32.mrf.mxu0
        %377 = vdwg.mxu0
        %379 = vrot.lane.b32.xlu0 %v375, 120
        %v380 = vpop.permute.xlu0 %379
        %382 = vrot.lane.b32.xlu0 %v375, 112
        %v383 = vpop.permute.xlu0 %382
        %385 = vrot.lane.b32.xlu0 %v375, 104
        %v386 = vpop.permute.xlu0 %385
        %v388 = vrot.slane %v383, 4
        %vm389 = vcmask 1047556
        %v390 = vsel %vm389, %v388, %v375
        %v391 = vrot.slane %v375, 4
        %v392 = vsel %vm389, %v383, %v391
        %v394 = vunpack.c.l.s4 1983009808
        %v395 = vunpack.c.0.s8 %v394
        %v396 = vperm.slane %v390, %v395
        %v398 = vunpack.c.l.s4 1983009808
        %v399 = vunpack.c.0.s8 %v398
        %v400 = vperm.slane %v392, %v399
        %v401 = vrot.slane %v386, 4
        %v402 = vsel %vm389, %v401, %v380
        %v403 = vrot.slane %v380, 4
        %v404 = vsel %vm389, %v386, %v403
        %v406 = vunpack.c.l.s4 1983009808
        %v407 = vunpack.c.0.s8 %v406
        %v408 = vperm.slane %v402, %v407
        %v410 = vunpack.c.l.s4 1983009808
        %v411 = vunpack.c.0.s8 %v410
        %v412 = vperm.slane %v404, %v411
        %v413 = vrot.slane %v408, 4
        %v414 = vsel %vm389, %v413, %v396
        %v415 = vrot.slane %v396, 4
        %v416 = vsel %vm389, %v408, %v415
        %v418 = vunpack.c.l.s4 1934713408
        %v419 = vunpack.c.0.s8 %v418
        %v420 = vperm.slane %v414, %v419
        %v422 = vunpack.c.l.s4 1934713408
        %v423 = vunpack.c.0.s8 %v422
        %v424 = vperm.slane %v416, %v423
        %v425 = vrot.slane %v412, 4
        %v426 = vsel %vm389, %v425, %v400
        %v427 = vrot.slane %v400, 4
        %v428 = vsel %vm389, %v412, %v427
        %v430 = vunpack.c.l.s4 1934713408
        %v431 = vunpack.c.0.s8 %v430
        %v432 = vperm.slane %v426, %v431
        %v434 = vunpack.c.l.s4 1934713408
        %v435 = vunpack.c.0.s8 %v434
        %v436 = vperm.slane %v428, %v435
        %v437 = vrot.slane %v420, 4
        %v438 = vsel %vm389, 0.0, %v437
        %v439 = vrot.slane %v424, 4
        %v440 = vsel %vm389, 0.0, %v439
        %v441 = vrot.slane %v432, 4
        %v442 = vsel %vm389, 0.0, %v441
        %v443 = vrot.slane %v436, 4
        %v444 = vsel %vm389, 0.0, %v443
        %v445 = vperm.slane %v344, 0
        %v450 = vunpack.c.l.b16 %v331
        %v451 = vunpack.c.l.b16 %v332
        %v452 = vunpack.c.l.b16 %v333
        %v453 = vunpack.c.l.b16 %v334
        %v454 = vpack.c.b16 %v451, %v450
        %v455 = vpack.c.b16 %v453, %v452
        %458 = vmatpush.bf16.msra.mxu0 0
        %459 = vmatpush.bf16.msra.mxu0 0
        %460 = vmatpush.bf16.msra.mxu0 0
        %461 = vmatpush.bf16.msra.mxu0 0
        %462 = vmatpush.bf16.msra.mxu0 0
        %463 = vmatpush.bf16.msra.mxu0 0
        %464 = vmatpush.bf16.msra.mxu0 %v455
        %465 = vmatpush.bf16.msra.mxu0 %v454
        %466 = vmatmul.bf16.gmra.mxu0 %v363
        %v467 = vpop.f32.mrf.mxu0
        %v468 = vadd.f32 %v445, %v467
        %v469 = vpop.f32.mrf.mxu0
        %470 = vdwg.mxu0
        %472 = vrot.lane.b32.xlu0 %v468, 120
        %v473 = vpop.permute.xlu0 %472
        %475 = vrot.lane.b32.xlu0 %v468, 112
        %v476 = vpop.permute.xlu0 %475
        %478 = vrot.lane.b32.xlu0 %v468, 104
        %v479 = vpop.permute.xlu0 %478
        %v481 = vrot.slane %v476, 4
        %v482 = vsel %vm389, %v481, %v468
        %v483 = vrot.slane %v468, 4
        %v484 = vsel %vm389, %v476, %v483
        %v486 = vunpack.c.l.s4 1983009808
        %v487 = vunpack.c.0.s8 %v486
        %v488 = vperm.slane %v482, %v487
        %v490 = vunpack.c.l.s4 1983009808
        %v491 = vunpack.c.0.s8 %v490
        %v492 = vperm.slane %v484, %v491
        %v493 = vrot.slane %v479, 4
        %v494 = vsel %vm389, %v493, %v473
        %v495 = vrot.slane %v473, 4
        %v496 = vsel %vm389, %v479, %v495
        %v498 = vunpack.c.l.s4 1983009808
        %v499 = vunpack.c.0.s8 %v498
        %v500 = vperm.slane %v494, %v499
        %v502 = vunpack.c.l.s4 1983009808
        %v503 = vunpack.c.0.s8 %v502
        %v504 = vperm.slane %v496, %v503
        %v505 = vrot.slane %v500, 4
        %v506 = vsel %vm389, %v505, %v488
        %v507 = vrot.slane %v488, 4
        %v508 = vsel %vm389, %v500, %v507
        %v510 = vunpack.c.l.s4 1934713408
        %v511 = vunpack.c.0.s8 %v510
        %v512 = vperm.slane %v506, %v511
        %v514 = vunpack.c.l.s4 1934713408
        %v515 = vunpack.c.0.s8 %v514
        %v516 = vperm.slane %v508, %v515
        %v517 = vrot.slane %v504, 4
        %v518 = vsel %vm389, %v517, %v492
        %v519 = vrot.slane %v492, 4
        %v520 = vsel %vm389, %v504, %v519
        %v522 = vunpack.c.l.s4 1934713408
        %v523 = vunpack.c.0.s8 %v522
        %v524 = vperm.slane %v518, %v523
        %v526 = vunpack.c.l.s4 1934713408
        %v527 = vunpack.c.0.s8 %v526
        %v528 = vperm.slane %v520, %v527
        %v529 = vrot.slane %v512, 4
        %v530 = vsel %vm389, 0.0, %v529
        %v531 = vrot.slane %v516, 4
        %v532 = vsel %vm389, 0.0, %v531
        %v533 = vrot.slane %v524, 4
        %v534 = vsel %vm389, 0.0, %v533
        %v535 = vrot.slane %v528, 4
        %v536 = vsel %vm389, 0.0, %v535
        %v537 = vperm.slane %v345, 0
        %v542 = vunpack.c.l.b16 %v335
        %v543 = vunpack.c.l.b16 %v336
        %v544 = vunpack.c.l.b16 %v337
        %v545 = vunpack.c.l.b16 %v338
        %v546 = vpack.c.b16 %v543, %v542
        %v547 = vpack.c.b16 %v545, %v544
        %550 = vmatpush.bf16.msra.mxu0 0
        %551 = vmatpush.bf16.msra.mxu0 0
        %552 = vmatpush.bf16.msra.mxu0 0
        %553 = vmatpush.bf16.msra.mxu0 0
        %554 = vmatpush.bf16.msra.mxu0 0
        %555 = vmatpush.bf16.msra.mxu0 0
        %556 = vmatpush.bf16.msra.mxu0 %v547
        %557 = vmatpush.bf16.msra.mxu0 %v546
        %558 = vmatmul.bf16.gmra.mxu0 %v363
        %v559 = vpop.f32.mrf.mxu0
        %v560 = vadd.f32 %v537, %v559
        %v561 = vpop.f32.mrf.mxu0
        %562 = vdwg.mxu0
        %564 = vrot.lane.b32.xlu0 %v560, 120
        %v565 = vpop.permute.xlu0 %564
        %567 = vrot.lane.b32.xlu0 %v560, 112
        %v568 = vpop.permute.xlu0 %567
        %570 = vrot.lane.b32.xlu0 %v560, 104
        %v571 = vpop.permute.xlu0 %570
        %v573 = vrot.slane %v568, 4
        %v574 = vsel %vm389, %v573, %v560
        %v575 = vrot.slane %v560, 4
        %v576 = vsel %vm389, %v568, %v575
        %v578 = vunpack.c.l.s4 1983009808
        %v579 = vunpack.c.0.s8 %v578
        %v580 = vperm.slane %v574, %v579
        %v582 = vunpack.c.l.s4 1983009808
        %v583 = vunpack.c.0.s8 %v582
        %v584 = vperm.slane %v576, %v583
        %v585 = vrot.slane %v571, 4
        %v586 = vsel %vm389, %v585, %v565
        %v587 = vrot.slane %v565, 4
        %v588 = vsel %vm389, %v571, %v587
        %v590 = vunpack.c.l.s4 1983009808
        %v591 = vunpack.c.0.s8 %v590
        %v592 = vperm.slane %v586, %v591
        %v594 = vunpack.c.l.s4 1983009808
        %v595 = vunpack.c.0.s8 %v594
        %v596 = vperm.slane %v588, %v595
        %v597 = vrot.slane %v592, 4
        %v598 = vsel %vm389, %v597, %v580
        %v599 = vrot.slane %v580, 4
        %v600 = vsel %vm389, %v592, %v599
        %v602 = vunpack.c.l.s4 1934713408
        %v603 = vunpack.c.0.s8 %v602
        %v604 = vperm.slane %v598, %v603
        %v606 = vunpack.c.l.s4 1934713408
        %v607 = vunpack.c.0.s8 %v606
        %v608 = vperm.slane %v600, %v607
        %v609 = vrot.slane %v596, 4
        %v610 = vsel %vm389, %v609, %v584
        %v611 = vrot.slane %v584, 4
        %v612 = vsel %vm389, %v596, %v611
        %v614 = vunpack.c.l.s4 1934713408
        %v615 = vunpack.c.0.s8 %v614
        %v616 = vperm.slane %v610, %v615
        %v618 = vunpack.c.l.s4 1934713408
        %v619 = vunpack.c.0.s8 %v618
        %v620 = vperm.slane %v612, %v619
        %v621 = vrot.slane %v604, 4
        %v622 = vsel %vm389, 0.0, %v621
        %v623 = vrot.slane %v608, 4
        %v624 = vsel %vm389, 0.0, %v623
        %v625 = vrot.slane %v616, 4
        %v626 = vsel %vm389, 0.0, %v625
        %v627 = vrot.slane %v620, 4
        %v628 = vsel %vm389, 0.0, %v627
        %v629 = vpack.c.bf16 %v420, %v420
        %v630 = vpack.c.bf16 %v438, %v438
        %v631 = vpack.c.bf16 %v424, %v424
        %v632 = vpack.c.bf16 %v440, %v440
        %v633 = vpack.c.bf16 %v432, %v432
        %v634 = vpack.c.bf16 %v442, %v442
        %v635 = vpack.c.bf16 %v436, %v436
        %v636 = vpack.c.bf16 %v444, %v444
        %v637 = vpack.c.bf16 %v512, %v512
        %v638 = vpack.c.bf16 %v530, %v530
        %v639 = vpack.c.bf16 %v516, %v516
        %v640 = vpack.c.bf16 %v532, %v532
        %v641 = vpack.c.bf16 %v524, %v524
        %v642 = vpack.c.bf16 %v534, %v534
        %v643 = vpack.c.bf16 %v528, %v528
        %v644 = vpack.c.bf16 %v536, %v536
        %v645 = vrot.slane %v633, 4
        %vm646 = vcmask 1047556
        %v647 = vsel %vm646, %v645, %v629
        %v649 = vunpack.c.l.s4 1983009808
        %v650 = vunpack.c.0.s8 %v649
        %v651 = vperm.slane %v647, %v650
        %v652 = vrot.slane %v635, 4
        %v653 = vsel %vm646, %v652, %v631
        %v655 = vunpack.c.l.s4 1983009808
        %v656 = vunpack.c.0.s8 %v655
        %v657 = vperm.slane %v653, %v656
        %v658 = vrot.slane %v657, 4
        %v659 = vsel %vm646, %v658, %v651
        %v661 = vunpack.c.l.s4 1934713408
        %v662 = vunpack.c.0.s8 %v661
        %v663 = vperm.slane %v659, %v662
        %v664 = vrot.slane %v663, 4
        %v665 = vsel %vm646, 0, %v664
        %v666 = vrot.slane %v634, 4
        %v667 = vsel %vm646, %v666, %v630
        %v669 = vunpack.c.l.s4 1983009808
        %v670 = vunpack.c.0.s8 %v669
        %v671 = vperm.slane %v667, %v670
        %v672 = vrot.slane %v636, 4
        %v673 = vsel %vm646, %v672, %v632
        %v675 = vunpack.c.l.s4 1983009808
        %v676 = vunpack.c.0.s8 %v675
        %v677 = vperm.slane %v673, %v676
        %v678 = vrot.slane %v677, 4
        %v679 = vsel %vm646, %v678, %v671
        %v681 = vunpack.c.l.s4 1934713408
        %v682 = vunpack.c.0.s8 %v681
        %v683 = vperm.slane %v679, %v682
        %v684 = vrot.slane %v683, 4
        %v685 = vsel %vm646, 0, %v684
        %v688 = vpack.i.b16 %v683, %v663
        %v689 = vshrl.u32 %v663, 16
        %v690 = vshrl.u32 %v683, 16
        %v691 = vpack.i.b16 %v690, %v689
        %v694 = vpack.i.b16 %v685, %v665
        %v695 = vshrl.u32 %v665, 16
        %v696 = vshrl.u32 %v685, 16
        %v697 = vpack.i.b16 %v696, %v695
        %698 = vxpose.xlu0.c.b16.start [1/8] %v637, 128
        %699 = vxpose.xlu0.c.b16.cont [2/8] 0, 128
        %700 = vxpose.xlu0.c.b16.cont [3/8] 0, 128
        %701 = vxpose.xlu0.c.b16.cont [4/8] 0, 128
        %702 = vxpose.xlu0.c.b16.cont [5/8] 0, 128
        %703 = vxpose.xlu0.c.b16.cont [6/8] 0, 128
        %704 = vxpose.xlu0.c.b16.cont [7/8] 0, 128
        %705 = vxpose.xlu0.c.b16.end [8/8] 0, 128
        %v706 = vpop.trf.xlu0
        %v707 = vpop.trf.xlu0
        %v708 = vpop.trf.xlu0
        %v709 = vpop.trf.xlu0
        %v710 = vpop.trf.xlu0
        %v711 = vpop.trf.xlu0
        %v712 = vpop.trf.xlu0
        %v713 = vpop.trf.xlu0
        %714 = vxpose.xlu0.c.b16.start [1/8] %v638, 128
        %715 = vxpose.xlu0.c.b16.cont [2/8] 0, 128
        %716 = vxpose.xlu0.c.b16.cont [3/8] 0, 128
        %717 = vxpose.xlu0.c.b16.cont [4/8] 0, 128
        %718 = vxpose.xlu0.c.b16.cont [5/8] 0, 128
        %719 = vxpose.xlu0.c.b16.cont [6/8] 0, 128
        %720 = vxpose.xlu0.c.b16.cont [7/8] 0, 128
        %721 = vxpose.xlu0.c.b16.end [8/8] 0, 128
        %v722 = vpop.trf.xlu0
        %v723 = vpop.trf.xlu0
        %v724 = vpop.trf.xlu0
        %v725 = vpop.trf.xlu0
        %v726 = vpop.trf.xlu0
        %v727 = vpop.trf.xlu0
        %v728 = vpop.trf.xlu0
        %v729 = vpop.trf.xlu0
        %730 = vxpose.xlu0.c.b16.start [1/8] %v639, 128
        %731 = vxpose.xlu0.c.b16.cont [2/8] 0, 128
        %732 = vxpose.xlu0.c.b16.cont [3/8] 0, 128
        %733 = vxpose.xlu0.c.b16.cont [4/8] 0, 128
        %734 = vxpose.xlu0.c.b16.cont [5/8] 0, 128
        %735 = vxpose.xlu0.c.b16.cont [6/8] 0, 128
        %736 = vxpose.xlu0.c.b16.cont [7/8] 0, 128
        %737 = vxpose.xlu0.c.b16.end [8/8] 0, 128
        %v738 = vpop.trf.xlu0
        %v739 = vpop.trf.xlu0
        %v740 = vpop.trf.xlu0
        %v741 = vpop.trf.xlu0
        %v742 = vpop.trf.xlu0
        %v743 = vpop.trf.xlu0
        %v744 = vpop.trf.xlu0
        %v745 = vpop.trf.xlu0
        %746 = vxpose.xlu0.c.b16.start [1/8] %v640, 128
        %747 = vxpose.xlu0.c.b16.cont [2/8] 0, 128
        %748 = vxpose.xlu0.c.b16.cont [3/8] 0, 128
        %749 = vxpose.xlu0.c.b16.cont [4/8] 0, 128
        %750 = vxpose.xlu0.c.b16.cont [5/8] 0, 128
        %751 = vxpose.xlu0.c.b16.cont [6/8] 0, 128
        %752 = vxpose.xlu0.c.b16.cont [7/8] 0, 128
        %753 = vxpose.xlu0.c.b16.end [8/8] 0, 128
        %v754 = vpop.trf.xlu0
        %v755 = vpop.trf.xlu0
        %v756 = vpop.trf.xlu0
        %v757 = vpop.trf.xlu0
        %v758 = vpop.trf.xlu0
        %v759 = vpop.trf.xlu0
        %v760 = vpop.trf.xlu0
        %v761 = vpop.trf.xlu0
        %762 = vxpose.xlu0.c.b16.start [1/8] %v641, 128
        %763 = vxpose.xlu0.c.b16.cont [2/8] 0, 128
        %764 = vxpose.xlu0.c.b16.cont [3/8] 0, 128
        %765 = vxpose.xlu0.c.b16.cont [4/8] 0, 128
        %766 = vxpose.xlu0.c.b16.cont [5/8] 0, 128
        %767 = vxpose.xlu0.c.b16.cont [6/8] 0, 128
        %768 = vxpose.xlu0.c.b16.cont [7/8] 0, 128
        %769 = vxpose.xlu0.c.b16.end [8/8] 0, 128
        %v770 = vpop.trf.xlu0
        %v771 = vpop.trf.xlu0
        %v772 = vpop.trf.xlu0
        %v773 = vpop.trf.xlu0
        %v774 = vpop.trf.xlu0
        %v775 = vpop.trf.xlu0
        %v776 = vpop.trf.xlu0
        %v777 = vpop.trf.xlu0
        %778 = vxpose.xlu0.c.b16.start [1/8] %v642, 128
        %779 = vxpose.xlu0.c.b16.cont [2/8] 0, 128
        %780 = vxpose.xlu0.c.b16.cont [3/8] 0, 128
        %781 = vxpose.xlu0.c.b16.cont [4/8] 0, 128
        %782 = vxpose.xlu0.c.b16.cont [5/8] 0, 128
        %783 = vxpose.xlu0.c.b16.cont [6/8] 0, 128
        %784 = vxpose.xlu0.c.b16.cont [7/8] 0, 128
        %785 = vxpose.xlu0.c.b16.end [8/8] 0, 128
        %v786 = vpop.trf.xlu0
        %v787 = vpop.trf.xlu0
        %v788 = vpop.trf.xlu0
        %v789 = vpop.trf.xlu0
        %v790 = vpop.trf.xlu0
        %v791 = vpop.trf.xlu0
        %v792 = vpop.trf.xlu0
        %v793 = vpop.trf.xlu0
        %794 = vxpose.xlu0.c.b16.start [1/8] %v643, 128
        %795 = vxpose.xlu0.c.b16.cont [2/8] 0, 128
        %796 = vxpose.xlu0.c.b16.cont [3/8] 0, 128
        %797 = vxpose.xlu0.c.b16.cont [4/8] 0, 128
        %798 = vxpose.xlu0.c.b16.cont [5/8] 0, 128
        %799 = vxpose.xlu0.c.b16.cont [6/8] 0, 128
        %800 = vxpose.xlu0.c.b16.cont [7/8] 0, 128
        %801 = vxpose.xlu0.c.b16.end [8/8] 0, 128
        %v802 = vpop.trf.xlu0
        %v803 = vpop.trf.xlu0
        %v804 = vpop.trf.xlu0
        %v805 = vpop.trf.xlu0
        %v806 = vpop.trf.xlu0
        %v807 = vpop.trf.xlu0
        %v808 = vpop.trf.xlu0
        %v809 = vpop.trf.xlu0
        %810 = vxpose.xlu0.c.b16.start [1/8] %v644, 128
        %811 = vxpose.xlu0.c.b16.cont [2/8] 0, 128
        %812 = vxpose.xlu0.c.b16.cont [3/8] 0, 128
        %813 = vxpose.xlu0.c.b16.cont [4/8] 0, 128
        %814 = vxpose.xlu0.c.b16.cont [5/8] 0, 128
        %815 = vxpose.xlu0.c.b16.cont [6/8] 0, 128
        %816 = vxpose.xlu0.c.b16.cont [7/8] 0, 128
        %817 = vxpose.xlu0.c.b16.end [8/8] 0, 128
        %v818 = vpop.trf.xlu0
        %v819 = vpop.trf.xlu0
        %v820 = vpop.trf.xlu0
        %v821 = vpop.trf.xlu0
        %v822 = vpop.trf.xlu0
        %v823 = vpop.trf.xlu0
        %v824 = vpop.trf.xlu0
        %v825 = vpop.trf.xlu0
        %v826 = vrot.slane %v770, 4
        %v827 = vsel %vm646, %v826, %v706
        %v829 = vunpack.c.l.s4 1983009808
        %v830 = vunpack.c.0.s8 %v829
        %v831 = vperm.slane %v827, %v830
        %v832 = vrot.slane %v802, 4
        %v833 = vsel %vm646, %v832, %v738
        %v835 = vunpack.c.l.s4 1983009808
        %v836 = vunpack.c.0.s8 %v835
        %v837 = vperm.slane %v833, %v836
        %v838 = vrot.slane %v837, 4
        %v839 = vsel %vm646, %v838, %v831
        %v840 = vrot.slane %v831, 4
        %v841 = vsel %vm646, %v837, %v840
        %v843 = vunpack.c.l.s4 1934713408
        %v844 = vunpack.c.0.s8 %v843
        %v845 = vperm.slane %v839, %v844
        %v847 = vunpack.c.l.s4 1934713408
        %v848 = vunpack.c.0.s8 %v847
        %v849 = vperm.slane %v841, %v848
        %v850 = vrot.slane %v845, 4
        %v851 = vsel %vm646, 0, %v850
        %v852 = vrot.slane %v849, 4
        %v853 = vsel %vm646, 0, %v852
        %v854 = vrot.slane %v786, 4
        %v855 = vsel %vm646, %v854, %v722
        %v857 = vunpack.c.l.s4 1983009808
        %v858 = vunpack.c.0.s8 %v857
        %v859 = vperm.slane %v855, %v858
        %v860 = vrot.slane %v818, 4
        %v861 = vsel %vm646, %v860, %v754
        %v863 = vunpack.c.l.s4 1983009808
        %v864 = vunpack.c.0.s8 %v863
        %v865 = vperm.slane %v861, %v864
        %v866 = vrot.slane %v865, 4
        %v867 = vsel %vm646, %v866, %v859
        %v868 = vrot.slane %v859, 4
        %v869 = vsel %vm646, %v865, %v868
        %v871 = vunpack.c.l.s4 1934713408
        %v872 = vunpack.c.0.s8 %v871
        %v873 = vperm.slane %v867, %v872
        %v875 = vunpack.c.l.s4 1934713408
        %v876 = vunpack.c.0.s8 %v875
        %v877 = vperm.slane %v869, %v876
        %v878 = vrot.slane %v873, 4
        %v879 = vsel %vm646, 0, %v878
        %v880 = vrot.slane %v877, 4
        %v881 = vsel %vm646, 0, %v880
        %v884 = vpack.i.b16 %v873, %v845
        %v886 = vshrl.u32 %v845, 16
        %v887 = vshrl.u32 %v873, 16
        %v888 = vpack.i.b16 %v887, %v886
        %v892 = vpack.i.b16 %v879, %v851
        %v894 = vshrl.u32 %v851, 16
        %v895 = vshrl.u32 %v879, 16
        %v896 = vpack.i.b16 %v895, %v894
        %v900 = vpack.i.b16 %v877, %v849
        %v902 = vshrl.u32 %v849, 16
        %v903 = vshrl.u32 %v877, 16
        %v904 = vpack.i.b16 %v903, %v902
        %v908 = vpack.i.b16 %v881, %v853
        %v910 = vshrl.u32 %v853, 16
        %v911 = vshrl.u32 %v881, 16
        %v912 = vpack.i.b16 %v911, %v910
        %914 = vxpose.xlu0.c.b16.start [1/8] %v884, 128
        %915 = vxpose.xlu0.c.b16.cont [2/8] 0, 128
        %916 = vxpose.xlu0.c.b16.cont [3/8] 0, 128
        %917 = vxpose.xlu0.c.b16.cont [4/8] 0, 128
        %918 = vxpose.xlu0.c.b16.cont [5/8] 0, 128
        %919 = vxpose.xlu0.c.b16.cont [6/8] 0, 128
        %920 = vxpose.xlu0.c.b16.cont [7/8] 0, 128
        %921 = vxpose.xlu0.c.b16.end [8/8] 0, 128
        %v922 = vpop.trf.xlu0
        %v923 = vpop.trf.xlu0
        %v924 = vpop.trf.xlu0
        %v925 = vpop.trf.xlu0
        %v926 = vpop.trf.xlu0
        %v927 = vpop.trf.xlu0
        %v928 = vpop.trf.xlu0
        %v929 = vpop.trf.xlu0
        %930 = vxpose.xlu0.c.b16.start [1/8] %v888, 128
        %931 = vxpose.xlu0.c.b16.cont [2/8] 0, 128
        %932 = vxpose.xlu0.c.b16.cont [3/8] 0, 128
        %933 = vxpose.xlu0.c.b16.cont [4/8] 0, 128
        %934 = vxpose.xlu0.c.b16.cont [5/8] 0, 128
        %935 = vxpose.xlu0.c.b16.cont [6/8] 0, 128
        %936 = vxpose.xlu0.c.b16.cont [7/8] 0, 128
        %937 = vxpose.xlu0.c.b16.end [8/8] 0, 128
        %v938 = vpop.trf.xlu0
        %v939 = vpop.trf.xlu0
        %v940 = vpop.trf.xlu0
        %v941 = vpop.trf.xlu0
        %v942 = vpop.trf.xlu0
        %v943 = vpop.trf.xlu0
        %v944 = vpop.trf.xlu0
        %v945 = vpop.trf.xlu0
        %946 = vxpose.xlu0.c.b16.start [1/8] %v892, 128
        %947 = vxpose.xlu0.c.b16.cont [2/8] 0, 128
        %948 = vxpose.xlu0.c.b16.cont [3/8] 0, 128
        %949 = vxpose.xlu0.c.b16.cont [4/8] 0, 128
        %950 = vxpose.xlu0.c.b16.cont [5/8] 0, 128
        %951 = vxpose.xlu0.c.b16.cont [6/8] 0, 128
        %952 = vxpose.xlu0.c.b16.cont [7/8] 0, 128
        %953 = vxpose.xlu0.c.b16.end [8/8] 0, 128
        %v954 = vpop.trf.xlu0
        %v955 = vpop.trf.xlu0
        %v956 = vpop.trf.xlu0
        %v957 = vpop.trf.xlu0
        %v958 = vpop.trf.xlu0
        %v959 = vpop.trf.xlu0
        %v960 = vpop.trf.xlu0
        %v961 = vpop.trf.xlu0
        %962 = vxpose.xlu0.c.b16.start [1/8] %v896, 128
        %963 = vxpose.xlu0.c.b16.cont [2/8] 0, 128
        %964 = vxpose.xlu0.c.b16.cont [3/8] 0, 128
        %965 = vxpose.xlu0.c.b16.cont [4/8] 0, 128
        %966 = vxpose.xlu0.c.b16.cont [5/8] 0, 128
        %967 = vxpose.xlu0.c.b16.cont [6/8] 0, 128
        %968 = vxpose.xlu0.c.b16.cont [7/8] 0, 128
        %969 = vxpose.xlu0.c.b16.end [8/8] 0, 128
        %v970 = vpop.trf.xlu0
        %v971 = vpop.trf.xlu0
        %v972 = vpop.trf.xlu0
        %v973 = vpop.trf.xlu0
        %v974 = vpop.trf.xlu0
        %v975 = vpop.trf.xlu0
        %v976 = vpop.trf.xlu0
        %v977 = vpop.trf.xlu0
        %978 = vxpose.xlu0.c.b16.start [1/8] %v900, 128
        %979 = vxpose.xlu0.c.b16.cont [2/8] 0, 128
        %980 = vxpose.xlu0.c.b16.cont [3/8] 0, 128
        %981 = vxpose.xlu0.c.b16.cont [4/8] 0, 128
        %982 = vxpose.xlu0.c.b16.cont [5/8] 0, 128
        %983 = vxpose.xlu0.c.b16.cont [6/8] 0, 128
        %984 = vxpose.xlu0.c.b16.cont [7/8] 0, 128
        %985 = vxpose.xlu0.c.b16.end [8/8] 0, 128
        %v986 = vpop.trf.xlu0
        %v987 = vpop.trf.xlu0
        %v988 = vpop.trf.xlu0
        %v989 = vpop.trf.xlu0
        %v990 = vpop.trf.xlu0
        %v991 = vpop.trf.xlu0
        %v992 = vpop.trf.xlu0
        %v993 = vpop.trf.xlu0
        %994 = vxpose.xlu0.c.b16.start [1/8] %v904, 128
        %995 = vxpose.xlu0.c.b16.cont [2/8] 0, 128
        %996 = vxpose.xlu0.c.b16.cont [3/8] 0, 128
        %997 = vxpose.xlu0.c.b16.cont [4/8] 0, 128
        %998 = vxpose.xlu0.c.b16.cont [5/8] 0, 128
        %999 = vxpose.xlu0.c.b16.cont [6/8] 0, 128
        %1000 = vxpose.xlu0.c.b16.cont [7/8] 0, 128
        %1001 = vxpose.xlu0.c.b16.end [8/8] 0, 128
        %v1002 = vpop.trf.xlu0
        %v1003 = vpop.trf.xlu0
        %v1004 = vpop.trf.xlu0
        %v1005 = vpop.trf.xlu0
        %v1006 = vpop.trf.xlu0
        %v1007 = vpop.trf.xlu0
        %v1008 = vpop.trf.xlu0
        %v1009 = vpop.trf.xlu0
        %1010 = vxpose.xlu0.c.b16.start [1/8] %v908, 128
        %1011 = vxpose.xlu0.c.b16.cont [2/8] 0, 128
        %1012 = vxpose.xlu0.c.b16.cont [3/8] 0, 128
        %1013 = vxpose.xlu0.c.b16.cont [4/8] 0, 128
        %1014 = vxpose.xlu0.c.b16.cont [5/8] 0, 128
        %1015 = vxpose.xlu0.c.b16.cont [6/8] 0, 128
        %1016 = vxpose.xlu0.c.b16.cont [7/8] 0, 128
        %1017 = vxpose.xlu0.c.b16.end [8/8] 0, 128
        %v1018 = vpop.trf.xlu0
        %v1019 = vpop.trf.xlu0
        %v1020 = vpop.trf.xlu0
        %v1021 = vpop.trf.xlu0
        %v1022 = vpop.trf.xlu0
        %v1023 = vpop.trf.xlu0
        %v1024 = vpop.trf.xlu0
        %v1025 = vpop.trf.xlu0
        %1026 = vxpose.xlu0.c.b16.start [1/8] %v912, 128
        %1027 = vxpose.xlu0.c.b16.cont [2/8] 0, 128
        %1028 = vxpose.xlu0.c.b16.cont [3/8] 0, 128
        %1029 = vxpose.xlu0.c.b16.cont [4/8] 0, 128
        %1030 = vxpose.xlu0.c.b16.cont [5/8] 0, 128
        %1031 = vxpose.xlu0.c.b16.cont [6/8] 0, 128
        %1032 = vxpose.xlu0.c.b16.cont [7/8] 0, 128
        %1033 = vxpose.xlu0.c.b16.end [8/8] 0, 128
        %v1034 = vpop.trf.xlu0
        %v1035 = vpop.trf.xlu0
        %v1036 = vpop.trf.xlu0
        %v1037 = vpop.trf.xlu0
        %v1038 = vpop.trf.xlu0
        %v1039 = vpop.trf.xlu0
        %v1040 = vpop.trf.xlu0
        %v1041 = vpop.trf.xlu0
        %v1042 = vrot.slane %v986, 4
        %v1043 = vsel %vm646, %v1042, %v922
        %v1045 = vunpack.c.l.s4 1983009808
        %v1046 = vunpack.c.0.s8 %v1045
        %v1047 = vperm.slane %v1043, %v1046
        %v1048 = vrot.slane %v1018, 4
        %v1049 = vsel %vm646, %v1048, %v954
        %v1051 = vunpack.c.l.s4 1983009808
        %v1052 = vunpack.c.0.s8 %v1051
        %v1053 = vperm.slane %v1049, %v1052
        %v1054 = vrot.slane %v1053, 4
        %v1055 = vsel %vm646, %v1054, %v1047
        %v1057 = vunpack.c.l.s4 1934713408
        %v1058 = vunpack.c.0.s8 %v1057
        %v1059 = vperm.slane %v1055, %v1058
        %v1060 = vrot.slane %v1059, 4
        %v1061 = vsel %vm646, 0, %v1060
        %v1062 = vrot.slane %v1002, 4
        %v1063 = vsel %vm646, %v1062, %v938
        %v1065 = vunpack.c.l.s4 1983009808
        %v1066 = vunpack.c.0.s8 %v1065
        %v1067 = vperm.slane %v1063, %v1066
        %v1068 = vrot.slane %v1034, 4
        %v1069 = vsel %vm646, %v1068, %v970
        %v1071 = vunpack.c.l.s4 1983009808
        %v1072 = vunpack.c.0.s8 %v1071
        %v1073 = vperm.slane %v1069, %v1072
        %v1074 = vrot.slane %v1073, 4
        %v1075 = vsel %vm646, %v1074, %v1067
        %v1077 = vunpack.c.l.s4 1934713408
        %v1078 = vunpack.c.0.s8 %v1077
        %v1079 = vperm.slane %v1075, %v1078
        %v1080 = vrot.slane %v1079, 4
        %v1081 = vsel %vm646, 0, %v1080
        %v1084 = vpack.i.b16 %v1079, %v1059
        %v1085 = vshrl.u32 %v1059, 16
        %v1086 = vshrl.u32 %v1079, 16
        %v1087 = vpack.i.b16 %v1086, %v1085
        %v1090 = vpack.i.b16 %v1081, %v1061
        %v1091 = vshrl.u32 %v1061, 16
        %v1092 = vshrl.u32 %v1081, 16
        %v1093 = vpack.i.b16 %v1092, %v1091
        %vm1094 = vcmask 64512
        %v1096 = vsel %vm1094, %v688, 0
        %vm1098 = vcmask 1043456
        %v1100 = vsel %vm1098, %v1084, 0
        %1102 = vmatpush.bf16.msra.mxu0 0
        %1103 = vmatpush.bf16.msra.mxu0 0
        %1104 = vmatpush.bf16.msra.mxu0 0
        %1105 = vmatpush.bf16.msra.mxu0 0
        %1106 = vmatpush.bf16.msra.mxu0 0
        %1107 = vmatpush.bf16.msra.mxu0 0
        %1108 = vmatpush.bf16.msra.mxu0 0
        %1109 = vmatpush.bf16.msra.mxu0 %v1100
        %1110 = vmatmul.bf16.gmra.mxu0 %v1096
        %v1111 = vpop.f32.mrf.mxu0
        %v1112 = vadd.f32 0.0, %v1111
        %v1113 = vpop.f32.mrf.mxu0
        %1114 = vdwg.mxu0
        %v1116 = vsel %vm1094, %v691, 0
        %v1119 = vsel %vm1098, %v1087, 0
        %1121 = vmatpush.bf16.msra.mxu0 0
        %1122 = vmatpush.bf16.msra.mxu0 0
        %1123 = vmatpush.bf16.msra.mxu0 0
        %1124 = vmatpush.bf16.msra.mxu0 0
        %1125 = vmatpush.bf16.msra.mxu0 0
        %1126 = vmatpush.bf16.msra.mxu0 0
        %1127 = vmatpush.bf16.msra.mxu0 0
        %1128 = vmatpush.bf16.msra.mxu0 %v1119
        %1129 = vmatmul.bf16.gmra.mxu0 %v1116
        %v1130 = vpop.f32.mrf.mxu0
        %v1131 = vadd.f32 0.0, %v1130
        %v1132 = vpop.f32.mrf.mxu0
        %1133 = vdwg.mxu0
        %v1135 = vsel %vm1094, %v694, 0
        %v1138 = vsel %vm1098, %v1090, 0
        %1140 = vmatpush.bf16.msra.mxu0 0
        %1141 = vmatpush.bf16.msra.mxu0 0
        %1142 = vmatpush.bf16.msra.mxu0 0
        %1143 = vmatpush.bf16.msra.mxu0 0
        %1144 = vmatpush.bf16.msra.mxu0 0
        %1145 = vmatpush.bf16.msra.mxu0 0
        %1146 = vmatpush.bf16.msra.mxu0 0
        %1147 = vmatpush.bf16.msra.mxu0 %v1138
        %1148 = vmatmul.bf16.gmra.mxu0 %v1135
        %v1149 = vpop.f32.mrf.mxu0
        %v1150 = vadd.f32 0.0, %v1149
        %v1151 = vpop.f32.mrf.mxu0
        %1152 = vdwg.mxu0
        %v1154 = vsel %vm1094, %v697, 0
        %v1157 = vsel %vm1098, %v1093, 0
        %1159 = vmatpush.bf16.msra.mxu0 0
        %1160 = vmatpush.bf16.msra.mxu0 0
        %1161 = vmatpush.bf16.msra.mxu0 0
        %1162 = vmatpush.bf16.msra.mxu0 0
        %1163 = vmatpush.bf16.msra.mxu0 0
        %1164 = vmatpush.bf16.msra.mxu0 0
        %1165 = vmatpush.bf16.msra.mxu0 0
        %1166 = vmatpush.bf16.msra.mxu0 %v1157
        %1167 = vmatmul.bf16.gmra.mxu0 %v1154
        %v1168 = vpop.f32.mrf.mxu0
        %v1169 = vadd.f32 0.0, %v1168
        %v1170 = vpop.f32.mrf.mxu0
        %1171 = vdwg.mxu0
        %v1172 = vmul.f32 %v1112, 0.35355338
        %v1173 = vmul.f32 %v1131, 0.35355338
        %v1174 = vmul.f32 %v1150, 0.35355338
        %v1175 = vmul.f32 %v1169, 0.35355338
        %v1176 = vsel %vm1094, %v1172, -inf
        %1177 = vmax.xlane.f32.xlu0 %v1176
        %v1178 = vpop.xlane.xlu0 %1177
        %v1179 = vsel %vm1094, %v1173, -inf
        %1180 = vmax.xlane.f32.xlu0 %v1179
        %v1181 = vpop.xlane.xlu0 %1180
        %v1182 = vsel %vm1094, %v1174, -inf
        %1183 = vmax.xlane.f32.xlu0 %v1182
        %v1184 = vpop.xlane.xlu0 %1183
        %v1185 = vsel %vm1094, %v1175, -inf
        %1186 = vmax.xlane.f32.xlu0 %v1185
        %v1187 = vpop.xlane.xlu0 %1186
        %v1188 = vsub.f32 %v1172, %v1178
        %v1189 = vsub.f32 %v1173, %v1181
        %v1190 = vsub.f32 %v1174, %v1184
        %v1191 = vsub.f32 %v1175, %v1187
        %v1192 = vmul.f32 %v1188, 1.442695
        %v1193 = vpow.pop %v1192
        %v1194 = vmul.f32 %v1189, 1.442695
        %v1195 = vpow.pop %v1194
        %v1196 = vmul.f32 %v1190, 1.442695
        %v1197 = vpow.pop %v1196
        %v1198 = vmul.f32 %v1191, 1.442695
        %v1199 = vpow.pop %v1198
        %v1200 = vsel %vm1094, %v1193, 0.0
        %1201 = vadd.xlane.f32.xlu0 %v1200
        %v1202 = vpop.xlane.xlu0 %1201
        %v1203 = vsel %vm1094, %v1195, 0.0
        %1204 = vadd.xlane.f32.xlu0 %v1203
        %v1205 = vpop.xlane.xlu0 %1204
        %v1206 = vsel %vm1094, %v1197, 0.0
        %1207 = vadd.xlane.f32.xlu0 %v1206
        %v1208 = vpop.xlane.xlu0 %1207
        %v1209 = vsel %vm1094, %v1199, 0.0
        %1210 = vadd.xlane.f32.xlu0 %v1209
        %v1211 = vpop.xlane.xlu0 %1210
        %v1212 = vrcp.pop %v1202
        %v1213 = vrcp.pop %v1205
        %v1214 = vrcp.pop %v1208
        %v1215 = vrcp.pop %v1211
        %v1216 = vmul.f32 %v1193, %v1212
        %v1217 = vmul.f32 %v1195, %v1213
        %v1218 = vmul.f32 %v1197, %v1214
        %v1219 = vmul.f32 %v1199, %v1215
        %v1220 = vpack.c.bf16 %v1216, %v1216
        %v1221 = vpack.c.bf16 %v1217, %v1217
        %v1222 = vpack.c.bf16 %v1218, %v1218
        %v1223 = vpack.c.bf16 %v1219, %v1219
        %v1224 = vpack.c.bf16 %v604, %v604
        %v1225 = vpack.c.bf16 %v622, %v622
        %v1226 = vpack.c.bf16 %v608, %v608
        %v1227 = vpack.c.bf16 %v624, %v624
        %v1228 = vpack.c.bf16 %v616, %v616
        %v1229 = vpack.c.bf16 %v626, %v626
        %v1230 = vpack.c.bf16 %v620, %v620
        %v1231 = vpack.c.bf16 %v628, %v628
        %1232 = vxpose.xlu0.c.b16.start [1/8] %v1224, 128
        %1233 = vxpose.xlu0.c.b16.cont [2/8] 0, 128
        %1234 = vxpose.xlu0.c.b16.cont [3/8] 0, 128
        %1235 = vxpose.xlu0.c.b16.cont [4/8] 0, 128
        %1236 = vxpose.xlu0.c.b16.cont [5/8] 0, 128
        %1237 = vxpose.xlu0.c.b16.cont [6/8] 0, 128
        %1238 = vxpose.xlu0.c.b16.cont [7/8] 0, 128
        %1239 = vxpose.xlu0.c.b16.end [8/8] 0, 128
        %v1240 = vpop.trf.xlu0
        %v1241 = vpop.trf.xlu0
        %v1242 = vpop.trf.xlu0
        %v1243 = vpop.trf.xlu0
        %v1244 = vpop.trf.xlu0
        %v1245 = vpop.trf.xlu0
        %v1246 = vpop.trf.xlu0
        %v1247 = vpop.trf.xlu0
        %1248 = vxpose.xlu0.c.b16.start [1/8] %v1225, 128
        %1249 = vxpose.xlu0.c.b16.cont [2/8] 0, 128
        %1250 = vxpose.xlu0.c.b16.cont [3/8] 0, 128
        %1251 = vxpose.xlu0.c.b16.cont [4/8] 0, 128
        %1252 = vxpose.xlu0.c.b16.cont [5/8] 0, 128
        %1253 = vxpose.xlu0.c.b16.cont [6/8] 0, 128
        %1254 = vxpose.xlu0.c.b16.cont [7/8] 0, 128
        %1255 = vxpose.xlu0.c.b16.end [8/8] 0, 128
        %v1256 = vpop.trf.xlu0
        %v1257 = vpop.trf.xlu0
        %v1258 = vpop.trf.xlu0
        %v1259 = vpop.trf.xlu0
        %v1260 = vpop.trf.xlu0
        %v1261 = vpop.trf.xlu0
        %v1262 = vpop.trf.xlu0
        %v1263 = vpop.trf.xlu0
        %1264 = vxpose.xlu0.c.b16.start [1/8] %v1226, 128
        %1265 = vxpose.xlu0.c.b16.cont [2/8] 0, 128
        %1266 = vxpose.xlu0.c.b16.cont [3/8] 0, 128
        %1267 = vxpose.xlu0.c.b16.cont [4/8] 0, 128
        %1268 = vxpose.xlu0.c.b16.cont [5/8] 0, 128
        %1269 = vxpose.xlu0.c.b16.cont [6/8] 0, 128
        %1270 = vxpose.xlu0.c.b16.cont [7/8] 0, 128
        %1271 = vxpose.xlu0.c.b16.end [8/8] 0, 128
        %v1272 = vpop.trf.xlu0
        %v1273 = vpop.trf.xlu0
        %v1274 = vpop.trf.xlu0
        %v1275 = vpop.trf.xlu0
        %v1276 = vpop.trf.xlu0
        %v1277 = vpop.trf.xlu0
        %v1278 = vpop.trf.xlu0
        %v1279 = vpop.trf.xlu0
        %1280 = vxpose.xlu0.c.b16.start [1/8] %v1227, 128
        %1281 = vxpose.xlu0.c.b16.cont [2/8] 0, 128
        %1282 = vxpose.xlu0.c.b16.cont [3/8] 0, 128
        %1283 = vxpose.xlu0.c.b16.cont [4/8] 0, 128
        %1284 = vxpose.xlu0.c.b16.cont [5/8] 0, 128
        %1285 = vxpose.xlu0.c.b16.cont [6/8] 0, 128
        %1286 = vxpose.xlu0.c.b16.cont [7/8] 0, 128
        %1287 = vxpose.xlu0.c.b16.end [8/8] 0, 128
        %v1288 = vpop.trf.xlu0
        %v1289 = vpop.trf.xlu0
        %v1290 = vpop.trf.xlu0
        %v1291 = vpop.trf.xlu0
        %v1292 = vpop.trf.xlu0
        %v1293 = vpop.trf.xlu0
        %v1294 = vpop.trf.xlu0
        %v1295 = vpop.trf.xlu0
        %1296 = vxpose.xlu0.c.b16.start [1/8] %v1228, 128
        %1297 = vxpose.xlu0.c.b16.cont [2/8] 0, 128
        %1298 = vxpose.xlu0.c.b16.cont [3/8] 0, 128
        %1299 = vxpose.xlu0.c.b16.cont [4/8] 0, 128
        %1300 = vxpose.xlu0.c.b16.cont [5/8] 0, 128
        %1301 = vxpose.xlu0.c.b16.cont [6/8] 0, 128
        %1302 = vxpose.xlu0.c.b16.cont [7/8] 0, 128
        %1303 = vxpose.xlu0.c.b16.end [8/8] 0, 128
        %v1304 = vpop.trf.xlu0
        %v1305 = vpop.trf.xlu0
        %v1306 = vpop.trf.xlu0
        %v1307 = vpop.trf.xlu0
        %v1308 = vpop.trf.xlu0
        %v1309 = vpop.trf.xlu0
        %v1310 = vpop.trf.xlu0
        %v1311 = vpop.trf.xlu0
        %1312 = vxpose.xlu0.c.b16.start [1/8] %v1229, 128
        %1313 = vxpose.xlu0.c.b16.cont [2/8] 0, 128
        %1314 = vxpose.xlu0.c.b16.cont [3/8] 0, 128
        %1315 = vxpose.xlu0.c.b16.cont [4/8] 0, 128
        %1316 = vxpose.xlu0.c.b16.cont [5/8] 0, 128
        %1317 = vxpose.xlu0.c.b16.cont [6/8] 0, 128
        %1318 = vxpose.xlu0.c.b16.cont [7/8] 0, 128
        %1319 = vxpose.xlu0.c.b16.end [8/8] 0, 128
        %v1320 = vpop.trf.xlu0
        %v1321 = vpop.trf.xlu0
        %v1322 = vpop.trf.xlu0
        %v1323 = vpop.trf.xlu0
        %v1324 = vpop.trf.xlu0
        %v1325 = vpop.trf.xlu0
        %v1326 = vpop.trf.xlu0
        %v1327 = vpop.trf.xlu0
        %1328 = vxpose.xlu0.c.b16.start [1/8] %v1230, 128
        %1329 = vxpose.xlu0.c.b16.cont [2/8] 0, 128
        %1330 = vxpose.xlu0.c.b16.cont [3/8] 0, 128
        %1331 = vxpose.xlu0.c.b16.cont [4/8] 0, 128
        %1332 = vxpose.xlu0.c.b16.cont [5/8] 0, 128
        %1333 = vxpose.xlu0.c.b16.cont [6/8] 0, 128
        %1334 = vxpose.xlu0.c.b16.cont [7/8] 0, 128
        %1335 = vxpose.xlu0.c.b16.end [8/8] 0, 128
        %v1336 = vpop.trf.xlu0
        %v1337 = vpop.trf.xlu0
        %v1338 = vpop.trf.xlu0
        %v1339 = vpop.trf.xlu0
        %v1340 = vpop.trf.xlu0
        %v1341 = vpop.trf.xlu0
        %v1342 = vpop.trf.xlu0
        %v1343 = vpop.trf.xlu0
        %1344 = vxpose.xlu0.c.b16.start [1/8] %v1231, 128
        %1345 = vxpose.xlu0.c.b16.cont [2/8] 0, 128
        %1346 = vxpose.xlu0.c.b16.cont [3/8] 0, 128
        %1347 = vxpose.xlu0.c.b16.cont [4/8] 0, 128
        %1348 = vxpose.xlu0.c.b16.cont [5/8] 0, 128
        %1349 = vxpose.xlu0.c.b16.cont [6/8] 0, 128
        %1350 = vxpose.xlu0.c.b16.cont [7/8] 0, 128
        %1351 = vxpose.xlu0.c.b16.end [8/8] 0, 128
        %v1352 = vpop.trf.xlu0
        %v1353 = vpop.trf.xlu0
        %v1354 = vpop.trf.xlu0
        %v1355 = vpop.trf.xlu0
        %v1356 = vpop.trf.xlu0
        %v1357 = vpop.trf.xlu0
        %v1358 = vpop.trf.xlu0
        %v1359 = vpop.trf.xlu0
        %v1360 = vrot.slane %v1304, 4
        %v1361 = vsel %vm646, %v1360, %v1240
        %v1363 = vunpack.c.l.s4 1983009808
        %v1364 = vunpack.c.0.s8 %v1363
        %v1365 = vperm.slane %v1361, %v1364
        %v1366 = vrot.slane %v1336, 4
        %v1367 = vsel %vm646, %v1366, %v1272
        %v1369 = vunpack.c.l.s4 1983009808
        %v1370 = vunpack.c.0.s8 %v1369
        %v1371 = vperm.slane %v1367, %v1370
        %v1372 = vrot.slane %v1371, 4
        %v1373 = vsel %vm646, %v1372, %v1365
        %v1374 = vrot.slane %v1365, 4
        %v1375 = vsel %vm646, %v1371, %v1374
        %v1377 = vunpack.c.l.s4 1934713408
        %v1378 = vunpack.c.0.s8 %v1377
        %v1379 = vperm.slane %v1373, %v1378
        %v1381 = vunpack.c.l.s4 1934713408
        %v1382 = vunpack.c.0.s8 %v1381
        %v1383 = vperm.slane %v1375, %v1382
        %v1384 = vrot.slane %v1379, 4
        %v1385 = vsel %vm646, 0, %v1384
        %v1386 = vrot.slane %v1383, 4
        %v1387 = vsel %vm646, 0, %v1386
        %v1388 = vrot.slane %v1320, 4
        %v1389 = vsel %vm646, %v1388, %v1256
        %v1391 = vunpack.c.l.s4 1983009808
        %v1392 = vunpack.c.0.s8 %v1391
        %v1393 = vperm.slane %v1389, %v1392
        %v1394 = vrot.slane %v1352, 4
        %v1395 = vsel %vm646, %v1394, %v1288
        %v1397 = vunpack.c.l.s4 1983009808
        %v1398 = vunpack.c.0.s8 %v1397
        %v1399 = vperm.slane %v1395, %v1398
        %v1400 = vrot.slane %v1399, 4
        %v1401 = vsel %vm646, %v1400, %v1393
        %v1402 = vrot.slane %v1393, 4
        %v1403 = vsel %vm646, %v1399, %v1402
        %v1405 = vunpack.c.l.s4 1934713408
        %v1406 = vunpack.c.0.s8 %v1405
        %v1407 = vperm.slane %v1401, %v1406
        %v1409 = vunpack.c.l.s4 1934713408
        %v1410 = vunpack.c.0.s8 %v1409
        %v1411 = vperm.slane %v1403, %v1410
        %v1412 = vrot.slane %v1407, 4
        %v1413 = vsel %vm646, 0, %v1412
        %v1414 = vrot.slane %v1411, 4
        %v1415 = vsel %vm646, 0, %v1414
        %v1418 = vpack.i.b16 %v1407, %v1379
        %v1420 = vshrl.u32 %v1379, 16
        %v1421 = vshrl.u32 %v1407, 16
        %v1422 = vpack.i.b16 %v1421, %v1420
        %v1426 = vpack.i.b16 %v1413, %v1385
        %v1428 = vshrl.u32 %v1385, 16
        %v1429 = vshrl.u32 %v1413, 16
        %v1430 = vpack.i.b16 %v1429, %v1428
        %v1434 = vpack.i.b16 %v1411, %v1383
        %v1436 = vshrl.u32 %v1383, 16
        %v1437 = vshrl.u32 %v1411, 16
        %v1438 = vpack.i.b16 %v1437, %v1436
        %v1442 = vpack.i.b16 %v1415, %v1387
        %v1444 = vshrl.u32 %v1387, 16
        %v1445 = vshrl.u32 %v1415, 16
        %v1446 = vpack.i.b16 %v1445, %v1444
        %1448 = vxpose.xlu0.c.b16.start [1/8] %v1418, 128
        %1449 = vxpose.xlu0.c.b16.cont [2/8] 0, 128
        %1450 = vxpose.xlu0.c.b16.cont [3/8] 0, 128
        %1451 = vxpose.xlu0.c.b16.cont [4/8] 0, 128
        %1452 = vxpose.xlu0.c.b16.cont [5/8] 0, 128
        %1453 = vxpose.xlu0.c.b16.cont [6/8] 0, 128
        %1454 = vxpose.xlu0.c.b16.cont [7/8] 0, 128
        %1455 = vxpose.xlu0.c.b16.end [8/8] 0, 128
        %v1456 = vpop.trf.xlu0
        %v1457 = vpop.trf.xlu0
        %v1458 = vpop.trf.xlu0
        %v1459 = vpop.trf.xlu0
        %v1460 = vpop.trf.xlu0
        %v1461 = vpop.trf.xlu0
        %v1462 = vpop.trf.xlu0
        %v1463 = vpop.trf.xlu0
        %1464 = vxpose.xlu0.c.b16.start [1/8] %v1422, 128
        %1465 = vxpose.xlu0.c.b16.cont [2/8] 0, 128
        %1466 = vxpose.xlu0.c.b16.cont [3/8] 0, 128
        %1467 = vxpose.xlu0.c.b16.cont [4/8] 0, 128
        %1468 = vxpose.xlu0.c.b16.cont [5/8] 0, 128
        %1469 = vxpose.xlu0.c.b16.cont [6/8] 0, 128
        %1470 = vxpose.xlu0.c.b16.cont [7/8] 0, 128
        %1471 = vxpose.xlu0.c.b16.end [8/8] 0, 128
        %v1472 = vpop.trf.xlu0
        %v1473 = vpop.trf.xlu0
        %v1474 = vpop.trf.xlu0
        %v1475 = vpop.trf.xlu0
        %v1476 = vpop.trf.xlu0
        %v1477 = vpop.trf.xlu0
        %v1478 = vpop.trf.xlu0
        %v1479 = vpop.trf.xlu0
        %1480 = vxpose.xlu0.c.b16.start [1/8] %v1426, 128
        %1481 = vxpose.xlu0.c.b16.cont [2/8] 0, 128
        %1482 = vxpose.xlu0.c.b16.cont [3/8] 0, 128
        %1483 = vxpose.xlu0.c.b16.cont [4/8] 0, 128
        %1484 = vxpose.xlu0.c.b16.cont [5/8] 0, 128
        %1485 = vxpose.xlu0.c.b16.cont [6/8] 0, 128
        %1486 = vxpose.xlu0.c.b16.cont [7/8] 0, 128
        %1487 = vxpose.xlu0.c.b16.end [8/8] 0, 128
        %v1488 = vpop.trf.xlu0
        %v1489 = vpop.trf.xlu0
        %v1490 = vpop.trf.xlu0
        %v1491 = vpop.trf.xlu0
        %v1492 = vpop.trf.xlu0
        %v1493 = vpop.trf.xlu0
        %v1494 = vpop.trf.xlu0
        %v1495 = vpop.trf.xlu0
        %1496 = vxpose.xlu0.c.b16.start [1/8] %v1430, 128
        %1497 = vxpose.xlu0.c.b16.cont [2/8] 0, 128
        %1498 = vxpose.xlu0.c.b16.cont [3/8] 0, 128
        %1499 = vxpose.xlu0.c.b16.cont [4/8] 0, 128
        %1500 = vxpose.xlu0.c.b16.cont [5/8] 0, 128
        %1501 = vxpose.xlu0.c.b16.cont [6/8] 0, 128
        %1502 = vxpose.xlu0.c.b16.cont [7/8] 0, 128
        %1503 = vxpose.xlu0.c.b16.end [8/8] 0, 128
        %v1504 = vpop.trf.xlu0
        %v1505 = vpop.trf.xlu0
        %v1506 = vpop.trf.xlu0
        %v1507 = vpop.trf.xlu0
        %v1508 = vpop.trf.xlu0
        %v1509 = vpop.trf.xlu0
        %v1510 = vpop.trf.xlu0
        %v1511 = vpop.trf.xlu0
        %1512 = vxpose.xlu0.c.b16.start [1/8] %v1434, 128
        %1513 = vxpose.xlu0.c.b16.cont [2/8] 0, 128
        %1514 = vxpose.xlu0.c.b16.cont [3/8] 0, 128
        %1515 = vxpose.xlu0.c.b16.cont [4/8] 0, 128
        %1516 = vxpose.xlu0.c.b16.cont [5/8] 0, 128
        %1517 = vxpose.xlu0.c.b16.cont [6/8] 0, 128
        %1518 = vxpose.xlu0.c.b16.cont [7/8] 0, 128
        %1519 = vxpose.xlu0.c.b16.end [8/8] 0, 128
        %v1520 = vpop.trf.xlu0
        %v1521 = vpop.trf.xlu0
        %v1522 = vpop.trf.xlu0
        %v1523 = vpop.trf.xlu0
        %v1524 = vpop.trf.xlu0
        %v1525 = vpop.trf.xlu0
        %v1526 = vpop.trf.xlu0
        %v1527 = vpop.trf.xlu0
        %1528 = vxpose.xlu0.c.b16.start [1/8] %v1438, 128
        %1529 = vxpose.xlu0.c.b16.cont [2/8] 0, 128
        %1530 = vxpose.xlu0.c.b16.cont [3/8] 0, 128
        %1531 = vxpose.xlu0.c.b16.cont [4/8] 0, 128
        %1532 = vxpose.xlu0.c.b16.cont [5/8] 0, 128
        %1533 = vxpose.xlu0.c.b16.cont [6/8] 0, 128
        %1534 = vxpose.xlu0.c.b16.cont [7/8] 0, 128
        %1535 = vxpose.xlu0.c.b16.end [8/8] 0, 128
        %v1536 = vpop.trf.xlu0
        %v1537 = vpop.trf.xlu0
        %v1538 = vpop.trf.xlu0
        %v1539 = vpop.trf.xlu0
        %v1540 = vpop.trf.xlu0
        %v1541 = vpop.trf.xlu0
        %v1542 = vpop.trf.xlu0
        %v1543 = vpop.trf.xlu0
        %1544 = vxpose.xlu0.c.b16.start [1/8] %v1442, 128
        %1545 = vxpose.xlu0.c.b16.cont [2/8] 0, 128
        %1546 = vxpose.xlu0.c.b16.cont [3/8] 0, 128
        %1547 = vxpose.xlu0.c.b16.cont [4/8] 0, 128
        %1548 = vxpose.xlu0.c.b16.cont [5/8] 0, 128
        %1549 = vxpose.xlu0.c.b16.cont [6/8] 0, 128
        %1550 = vxpose.xlu0.c.b16.cont [7/8] 0, 128
        %1551 = vxpose.xlu0.c.b16.end [8/8] 0, 128
        %v1552 = vpop.trf.xlu0
        %v1553 = vpop.trf.xlu0
        %v1554 = vpop.trf.xlu0
        %v1555 = vpop.trf.xlu0
        %v1556 = vpop.trf.xlu0
        %v1557 = vpop.trf.xlu0
        %v1558 = vpop.trf.xlu0
        %v1559 = vpop.trf.xlu0
        %1560 = vxpose.xlu0.c.b16.start [1/8] %v1446, 128
        %1561 = vxpose.xlu0.c.b16.cont [2/8] 0, 128
        %1562 = vxpose.xlu0.c.b16.cont [3/8] 0, 128
        %1563 = vxpose.xlu0.c.b16.cont [4/8] 0, 128
        %1564 = vxpose.xlu0.c.b16.cont [5/8] 0, 128
        %1565 = vxpose.xlu0.c.b16.cont [6/8] 0, 128
        %1566 = vxpose.xlu0.c.b16.cont [7/8] 0, 128
        %1567 = vxpose.xlu0.c.b16.end [8/8] 0, 128
        %v1568 = vpop.trf.xlu0
        %v1569 = vpop.trf.xlu0
        %v1570 = vpop.trf.xlu0
        %v1571 = vpop.trf.xlu0
        %v1572 = vpop.trf.xlu0
        %v1573 = vpop.trf.xlu0
        %v1574 = vpop.trf.xlu0
        %v1575 = vpop.trf.xlu0
        %v1576 = vrot.slane %v1520, 4
        %v1577 = vsel %vm646, %v1576, %v1456
        %v1579 = vunpack.c.l.s4 1983009808
        %v1580 = vunpack.c.0.s8 %v1579
        %v1581 = vperm.slane %v1577, %v1580
        %v1582 = vrot.slane %v1552, 4
        %v1583 = vsel %vm646, %v1582, %v1488
        %v1585 = vunpack.c.l.s4 1983009808
        %v1586 = vunpack.c.0.s8 %v1585
        %v1587 = vperm.slane %v1583, %v1586
        %v1588 = vrot.slane %v1587, 4
        %v1589 = vsel %vm646, %v1588, %v1581
        %v1591 = vunpack.c.l.s4 1934713408
        %v1592 = vunpack.c.0.s8 %v1591
        %v1593 = vperm.slane %v1589, %v1592
        %v1594 = vrot.slane %v1593, 4
        %v1595 = vsel %vm646, 0, %v1594
        %v1596 = vrot.slane %v1536, 4
        %v1597 = vsel %vm646, %v1596, %v1472
        %v1599 = vunpack.c.l.s4 1983009808
        %v1600 = vunpack.c.0.s8 %v1599
        %v1601 = vperm.slane %v1597, %v1600
        %v1602 = vrot.slane %v1568, 4
        %v1603 = vsel %vm646, %v1602, %v1504
        %v1605 = vunpack.c.l.s4 1983009808
        %v1606 = vunpack.c.0.s8 %v1605
        %v1607 = vperm.slane %v1603, %v1606
        %v1608 = vrot.slane %v1607, 4
        %v1609 = vsel %vm646, %v1608, %v1601
        %v1611 = vunpack.c.l.s4 1934713408
        %v1612 = vunpack.c.0.s8 %v1611
        %v1613 = vperm.slane %v1609, %v1612
        %v1614 = vrot.slane %v1613, 4
        %v1615 = vsel %vm646, 0, %v1614
        %v1618 = vpack.i.b16 %v1613, %v1593
        %v1619 = vshrl.u32 %v1593, 16
        %v1620 = vshrl.u32 %v1613, 16
        %v1621 = vpack.i.b16 %v1620, %v1619
        %v1624 = vpack.i.b16 %v1615, %v1595
        %v1625 = vshrl.u32 %v1595, 16
        %v1626 = vshrl.u32 %v1615, 16
        %v1627 = vpack.i.b16 %v1626, %v1625
        %v1629 = vsel %vm1094, %v1618, 0
        %v1632 = vsel %vm1094, %v1220, 0
        %1634 = vmatpush.bf16.xpose.msra.mxu0 0
        %1635 = vmatpush.bf16.xpose.msra.mxu0 0
        %1636 = vmatpush.bf16.xpose.msra.mxu0 0
        %1637 = vmatpush.bf16.xpose.msra.mxu0 0
        %1638 = vmatpush.bf16.xpose.msra.mxu0 0
        %1639 = vmatpush.bf16.xpose.msra.mxu0 0
        %1640 = vmatpush.bf16.xpose.msra.mxu0 0
        %1641 = vmatpush.bf16.xpose.msra.mxu0 %v1632
        %1642 = vmatmul.bf16.gmra.mxu0 %v1629
        %v1643 = vpop.f32.mrf.mxu0
        %v1644 = vadd.f32 0.0, %v1643
        %v1645 = vpop.f32.mrf.mxu0
        %1646 = vdwg.mxu0
        %v1648 = vsel %vm1094, %v1621, 0
        %v1651 = vsel %vm1094, %v1221, 0
        %1653 = vmatpush.bf16.xpose.msra.mxu0 0
        %1654 = vmatpush.bf16.xpose.msra.mxu0 0
        %1655 = vmatpush.bf16.xpose.msra.mxu0 0
        %1656 = vmatpush.bf16.xpose.msra.mxu0 0
        %1657 = vmatpush.bf16.xpose.msra.mxu0 0
        %1658 = vmatpush.bf16.xpose.msra.mxu0 0
        %1659 = vmatpush.bf16.xpose.msra.mxu0 0
        %1660 = vmatpush.bf16.xpose.msra.mxu0 %v1651
        %1661 = vmatmul.bf16.gmra.mxu0 %v1648
        %v1662 = vpop.f32.mrf.mxu0
        %v1663 = vadd.f32 0.0, %v1662
        %v1664 = vpop.f32.mrf.mxu0
        %1665 = vdwg.mxu0
        %v1667 = vsel %vm1094, %v1624, 0
        %v1670 = vsel %vm1094, %v1222, 0
        %1672 = vmatpush.bf16.xpose.msra.mxu0 0
        %1673 = vmatpush.bf16.xpose.msra.mxu0 0
        %1674 = vmatpush.bf16.xpose.msra.mxu0 0
        %1675 = vmatpush.bf16.xpose.msra.mxu0 0
        %1676 = vmatpush.bf16.xpose.msra.mxu0 0
        %1677 = vmatpush.bf16.xpose.msra.mxu0 0
        %1678 = vmatpush.bf16.xpose.msra.mxu0 0
        %1679 = vmatpush.bf16.xpose.msra.mxu0 %v1670
        %1680 = vmatmul.bf16.gmra.mxu0 %v1667
        %v1681 = vpop.f32.mrf.mxu0
        %v1682 = vadd.f32 0.0, %v1681
        %v1683 = vpop.f32.mrf.mxu0
        %1684 = vdwg.mxu0
        %v1686 = vsel %vm1094, %v1627, 0
        %v1689 = vsel %vm1094, %v1223, 0
        %1691 = vmatpush.bf16.xpose.msra.mxu0 0
        %1692 = vmatpush.bf16.xpose.msra.mxu0 0
        %1693 = vmatpush.bf16.xpose.msra.mxu0 0
        %1694 = vmatpush.bf16.xpose.msra.mxu0 0
        %1695 = vmatpush.bf16.xpose.msra.mxu0 0
        %1696 = vmatpush.bf16.xpose.msra.mxu0 0
        %1697 = vmatpush.bf16.xpose.msra.mxu0 0
        %1698 = vmatpush.bf16.xpose.msra.mxu0 %v1689
        %1699 = vmatmul.bf16.gmra.mxu0 %v1686
        %v1700 = vpop.f32.mrf.mxu0
        %v1701 = vadd.f32 0.0, %v1700
        %v1702 = vpop.f32.mrf.mxu0
        %1703 = vdwg.mxu0
        %1704 = vxpose.xlu0.b32.start [1/16] %v1644, 128
        %1705 = vxpose.xlu0.b32.cont [2/16] 0.0, 128
        %1706 = vxpose.xlu0.b32.cont [3/16] 0.0, 128
        %1707 = vxpose.xlu0.b32.cont [4/16] 0.0, 128
        %1708 = vxpose.xlu0.b32.cont [5/16] 0.0, 128
        %1709 = vxpose.xlu0.b32.cont [6/16] 0.0, 128
        %1710 = vxpose.xlu0.b32.cont [7/16] 0.0, 128
        %1711 = vxpose.xlu0.b32.cont [8/16] 0.0, 128
        %1712 = vxpose.xlu0.b32.cont [9/16] 0.0, 128
        %1713 = vxpose.xlu0.b32.cont [10/16] 0.0, 128
        %1714 = vxpose.xlu0.b32.cont [11/16] 0.0, 128
        %1715 = vxpose.xlu0.b32.cont [12/16] 0.0, 128
        %1716 = vxpose.xlu0.b32.cont [13/16] 0.0, 128
        %1717 = vxpose.xlu0.b32.cont [14/16] 0.0, 128
        %1718 = vxpose.xlu0.b32.cont [15/16] 0.0, 128
        %1719 = vxpose.xlu0.b32.end [16/16] 0.0, 128
        %v1720 = vpop.trf.xlu0
        %v1721 = vpop.trf.xlu0
        %v1722 = vpop.trf.xlu0
        %v1723 = vpop.trf.xlu0
        %v1724 = vpop.trf.xlu0
        %v1725 = vpop.trf.xlu0
        %v1726 = vpop.trf.xlu0
        %v1727 = vpop.trf.xlu0
        %v1728 = vpop.trf.xlu0
        %v1729 = vpop.trf.xlu0
        %v1730 = vpop.trf.xlu0
        %v1731 = vpop.trf.xlu0
        %v1732 = vpop.trf.xlu0
        %v1733 = vpop.trf.xlu0
        %v1734 = vpop.trf.xlu0
        %v1735 = vpop.trf.xlu0
        %1736 = vxpose.xlu0.b32.start [1/16] %v1663, 128
        %1737 = vxpose.xlu0.b32.cont [2/16] 0.0, 128
        %1738 = vxpose.xlu0.b32.cont [3/16] 0.0, 128
        %1739 = vxpose.xlu0.b32.cont [4/16] 0.0, 128
        %1740 = vxpose.xlu0.b32.cont [5/16] 0.0, 128
        %1741 = vxpose.xlu0.b32.cont [6/16] 0.0, 128
        %1742 = vxpose.xlu0.b32.cont [7/16] 0.0, 128
        %1743 = vxpose.xlu0.b32.cont [8/16] 0.0, 128
        %1744 = vxpose.xlu0.b32.cont [9/16] 0.0, 128
        %1745 = vxpose.xlu0.b32.cont [10/16] 0.0, 128
        %1746 = vxpose.xlu0.b32.cont [11/16] 0.0, 128
        %1747 = vxpose.xlu0.b32.cont [12/16] 0.0, 128
        %1748 = vxpose.xlu0.b32.cont [13/16] 0.0, 128
        %1749 = vxpose.xlu0.b32.cont [14/16] 0.0, 128
        %1750 = vxpose.xlu0.b32.cont [15/16] 0.0, 128
        %1751 = vxpose.xlu0.b32.end [16/16] 0.0, 128
        %v1752 = vpop.trf.xlu0
        %v1753 = vpop.trf.xlu0
        %v1754 = vpop.trf.xlu0
        %v1755 = vpop.trf.xlu0
        %v1756 = vpop.trf.xlu0
        %v1757 = vpop.trf.xlu0
        %v1758 = vpop.trf.xlu0
        %v1759 = vpop.trf.xlu0
        %v1760 = vpop.trf.xlu0
        %v1761 = vpop.trf.xlu0
        %v1762 = vpop.trf.xlu0
        %v1763 = vpop.trf.xlu0
        %v1764 = vpop.trf.xlu0
        %v1765 = vpop.trf.xlu0
        %v1766 = vpop.trf.xlu0
        %v1767 = vpop.trf.xlu0
        %1768 = vxpose.xlu0.b32.start [1/16] %v1682, 128
        %1769 = vxpose.xlu0.b32.cont [2/16] 0.0, 128
        %1770 = vxpose.xlu0.b32.cont [3/16] 0.0, 128
        %1771 = vxpose.xlu0.b32.cont [4/16] 0.0, 128
        %1772 = vxpose.xlu0.b32.cont [5/16] 0.0, 128
        %1773 = vxpose.xlu0.b32.cont [6/16] 0.0, 128
        %1774 = vxpose.xlu0.b32.cont [7/16] 0.0, 128
        %1775 = vxpose.xlu0.b32.cont [8/16] 0.0, 128
        %1776 = vxpose.xlu0.b32.cont [9/16] 0.0, 128
        %1777 = vxpose.xlu0.b32.cont [10/16] 0.0, 128
        %1778 = vxpose.xlu0.b32.cont [11/16] 0.0, 128
        %1779 = vxpose.xlu0.b32.cont [12/16] 0.0, 128
        %1780 = vxpose.xlu0.b32.cont [13/16] 0.0, 128
        %1781 = vxpose.xlu0.b32.cont [14/16] 0.0, 128
        %1782 = vxpose.xlu0.b32.cont [15/16] 0.0, 128
        %1783 = vxpose.xlu0.b32.end [16/16] 0.0, 128
        %v1784 = vpop.trf.xlu0
        %v1785 = vpop.trf.xlu0
        %v1786 = vpop.trf.xlu0
        %v1787 = vpop.trf.xlu0
        %v1788 = vpop.trf.xlu0
        %v1789 = vpop.trf.xlu0
        %v1790 = vpop.trf.xlu0
        %v1791 = vpop.trf.xlu0
        %v1792 = vpop.trf.xlu0
        %v1793 = vpop.trf.xlu0
        %v1794 = vpop.trf.xlu0
        %v1795 = vpop.trf.xlu0
        %v1796 = vpop.trf.xlu0
        %v1797 = vpop.trf.xlu0
        %v1798 = vpop.trf.xlu0
        %v1799 = vpop.trf.xlu0
        %1800 = vxpose.xlu0.b32.start [1/16] %v1701, 128
        %1801 = vxpose.xlu0.b32.cont [2/16] 0.0, 128
        %1802 = vxpose.xlu0.b32.cont [3/16] 0.0, 128
        %1803 = vxpose.xlu0.b32.cont [4/16] 0.0, 128
        %1804 = vxpose.xlu0.b32.cont [5/16] 0.0, 128
        %1805 = vxpose.xlu0.b32.cont [6/16] 0.0, 128
        %1806 = vxpose.xlu0.b32.cont [7/16] 0.0, 128
        %1807 = vxpose.xlu0.b32.cont [8/16] 0.0, 128
        %1808 = vxpose.xlu0.b32.cont [9/16] 0.0, 128
        %1809 = vxpose.xlu0.b32.cont [10/16] 0.0, 128
        %1810 = vxpose.xlu0.b32.cont [11/16] 0.0, 128
        %1811 = vxpose.xlu0.b32.cont [12/16] 0.0, 128
        %1812 = vxpose.xlu0.b32.cont [13/16] 0.0, 128
        %1813 = vxpose.xlu0.b32.cont [14/16] 0.0, 128
        %1814 = vxpose.xlu0.b32.cont [15/16] 0.0, 128
        %1815 = vxpose.xlu0.b32.end [16/16] 0.0, 128
        %v1816 = vpop.trf.xlu0
        %v1817 = vpop.trf.xlu0
        %v1818 = vpop.trf.xlu0
        %v1819 = vpop.trf.xlu0
        %v1820 = vpop.trf.xlu0
        %v1821 = vpop.trf.xlu0
        %v1822 = vpop.trf.xlu0
        %v1823 = vpop.trf.xlu0
        %v1824 = vpop.trf.xlu0
        %v1825 = vpop.trf.xlu0
        %v1826 = vpop.trf.xlu0
        %v1827 = vpop.trf.xlu0
        %v1828 = vpop.trf.xlu0
        %v1829 = vpop.trf.xlu0
        %v1830 = vpop.trf.xlu0
        %v1831 = vpop.trf.xlu0
        %v1832 = vrot.slane %v1784, 4
        %v1833 = vsel %vm389, %v1832, %v1720
        %v1834 = vrot.slane %v1720, 4
        %v1835 = vsel %vm389, %v1784, %v1834
        %v1837 = vunpack.c.l.s4 1983009808
        %v1838 = vunpack.c.0.s8 %v1837
        %v1839 = vperm.slane %v1833, %v1838
        %v1841 = vunpack.c.l.s4 1983009808
        %v1842 = vunpack.c.0.s8 %v1841
        %v1843 = vperm.slane %v1835, %v1842
        %v1844 = vrot.slane %v1816, 4
        %v1845 = vsel %vm389, %v1844, %v1752
        %v1846 = vrot.slane %v1752, 4
        %v1847 = vsel %vm389, %v1816, %v1846
        %v1849 = vunpack.c.l.s4 1983009808
        %v1850 = vunpack.c.0.s8 %v1849
        %v1851 = vperm.slane %v1845, %v1850
        %v1853 = vunpack.c.l.s4 1983009808
        %v1854 = vunpack.c.0.s8 %v1853
        %v1855 = vperm.slane %v1847, %v1854
        %v1856 = vrot.slane %v1851, 4
        %v1857 = vsel %vm389, %v1856, %v1839
        %v1858 = vrot.slane %v1839, 4
        %v1859 = vsel %vm389, %v1851, %v1858
        %v1861 = vunpack.c.l.s4 1934713408
        %v1862 = vunpack.c.0.s8 %v1861
        %v1863 = vperm.slane %v1857, %v1862
        %v1865 = vunpack.c.l.s4 1934713408
        %v1866 = vunpack.c.0.s8 %v1865
        %v1867 = vperm.slane %v1859, %v1866
        %v1868 = vrot.slane %v1855, 4
        %v1869 = vsel %vm389, %v1868, %v1843
        %v1870 = vrot.slane %v1843, 4
        %v1871 = vsel %vm389, %v1855, %v1870
        %v1873 = vunpack.c.l.s4 1934713408
        %v1874 = vunpack.c.0.s8 %v1873
        %v1875 = vperm.slane %v1869, %v1874
        %v1877 = vunpack.c.l.s4 1934713408
        %v1878 = vunpack.c.0.s8 %v1877
        %v1879 = vperm.slane %v1871, %v1878
        %v1880 = vrot.slane %v1863, 4
        %v1881 = vsel %vm389, 0.0, %v1880
        %v1882 = vrot.slane %v1867, 4
        %v1883 = vsel %vm389, 0.0, %v1882
        %v1884 = vrot.slane %v1875, 4
        %v1885 = vsel %vm389, 0.0, %v1884
        %v1886 = vrot.slane %v1879, 4
        %v1887 = vsel %vm389, 0.0, %v1886
        %v1888 = vsel %vm389, %v1882, %v1863
        %v1890 = vunpack.c.l.s4 1983009808
        %v1891 = vunpack.c.0.s8 %v1890
        %v1892 = vperm.slane %v1888, %v1891
        %v1893 = vrot.slane %v1883, 4
        %v1894 = vsel %vm389, %v1893, %v1881
        %v1896 = vunpack.c.l.s4 1983009808
        %v1897 = vunpack.c.0.s8 %v1896
        %v1898 = vperm.slane %v1894, %v1897
        %v1899 = vsel %vm389, %v1886, %v1875
        %v1901 = vunpack.c.l.s4 1983009808
        %v1902 = vunpack.c.0.s8 %v1901
        %v1903 = vperm.slane %v1899, %v1902
        %v1904 = vrot.slane %v1887, 4
        %v1905 = vsel %vm389, %v1904, %v1885
        %v1907 = vunpack.c.l.s4 1983009808
        %v1908 = vunpack.c.0.s8 %v1907
        %v1909 = vperm.slane %v1905, %v1908
        %v1910 = vrot.slane %v1898, 4
        %v1911 = vsel %vm389, %v1910, %v1892
        %v1912 = vrot.slane %v1892, 4
        %v1913 = vsel %vm389, %v1898, %v1912
        %v1915 = vunpack.c.l.s4 1934713408
        %v1916 = vunpack.c.0.s8 %v1915
        %v1917 = vperm.slane %v1911, %v1916
        %v1919 = vunpack.c.l.s4 1934713408
        %v1920 = vunpack.c.0.s8 %v1919
        %v1921 = vperm.slane %v1913, %v1920
        %v1922 = vrot.slane %v1909, 4
        %v1923 = vsel %vm389, %v1922, %v1903
        %v1924 = vrot.slane %v1903, 4
        %v1925 = vsel %vm389, %v1909, %v1924
        %v1927 = vunpack.c.l.s4 1934713408
        %v1928 = vunpack.c.0.s8 %v1927
        %v1929 = vperm.slane %v1923, %v1928
        %v1931 = vunpack.c.l.s4 1934713408
        %v1932 = vunpack.c.0.s8 %v1931
        %v1933 = vperm.slane %v1925, %v1932
        %v1934 = vrot.slane %v1929, 4
        %v1935 = vsel %vm389, %v1934, %v1917
        %v1936 = vrot.slane %v1917, 4
        %v1937 = vsel %vm389, %v1929, %v1936
        %v1938 = vrot.slane %v1933, 4
        %v1939 = vsel %vm389, %v1938, %v1921
        %v1940 = vrot.slane %v1921, 4
        %v1941 = vsel %vm389, %v1933, %v1940
        %1943 = vrot.lane.b32.xlu0 %v1937, 8
        %v1944 = vpop.permute.xlu0 %1943
        %1947 = vrot.lane.b32.xlu0 %v1939, 16
        %v1948 = vpop.permute.xlu0 %1947
        %1951 = vrot.lane.b32.xlu0 %v1941, 24
        %v1952 = vpop.permute.xlu0 %1951
        %v1954 = vsel %vm1094, %v1935, %v1944
        %v1955 = vsel %vm307, %v1954, %v1948
        %vm1956 = vcmask 195584
        %v1957 = vsel %vm1956, %v1955, %v1952
        %v1958 = vpack.c.bf16 %v1957, %v1957
        %v1959 = vperm.slane %v346, 0
        %v1964 = vunpack.c.l.b16 %v339
        %v1965 = vunpack.c.l.b16 %v340
        %v1966 = vunpack.c.l.b16 %v341
        %v1967 = vunpack.c.l.b16 %v342
        %v1968 = vpack.c.b16 %v1965, %v1964
        %v1969 = vpack.c.b16 %v1967, %v1966
        %v1973 = vsel %vm361, %v1958, 0
        %1975 = vmatpush.bf16.msra.mxu0 0
        %1976 = vmatpush.bf16.msra.mxu0 0
        %1977 = vmatpush.bf16.msra.mxu0 0
        %1978 = vmatpush.bf16.msra.mxu0 0
        %1979 = vmatpush.bf16.msra.mxu0 0
        %1980 = vmatpush.bf16.msra.mxu0 0
        %1981 = vmatpush.bf16.msra.mxu0 %v1969
        %1982 = vmatpush.bf16.msra.mxu0 %v1968
        %1983 = vmatmul.bf16.gmra.mxu0 %v1973
        %v1984 = vpop.f32.mrf.mxu0
        %v1985 = vadd.f32 %v1959, %v1984
        %v1986 = vpop.f32.mrf.mxu0
        %1987 = vdwg.mxu0
        %v1988 = vadd.f32 %v326, %v1985
        %v1989 = vsel %vm361, %v1988, 0.0
        %1990 = vadd.xlane.f32.xlu0 %v1989
        %v1991 = vpop.xlane.xlu0 %1990
        %v1992 = vrcp.pop 32.0
        %v1993 = vmul.f32 32.0, %v1992
        %v1994 = vsub.f32 1.0, %v1993
        %v1995 = vmul.f32 %v1992, %v1994
        %v1996 = vadd.f32 %v1992, %v1995
        %vm1997 = vweird.f32 %v1992
        %v1998 = vsel %vm1997, %v1992, %v1996
        %v1999 = vmul.f32 %v1991, %v1998
        %v2000 = vsub.f32 %v1988, %v1999
        %v2001 = vmul.f32 %v2000, %v2000
        %v2002 = vsel %vm361, %v2001, 0.0
        %2003 = vadd.xlane.f32.xlu0 %v2002
        %v2004 = vpop.xlane.xlu0 %2003
        %v2005 = vmul.f32 %v2004, %v1998
        %v2006 = vadd.f32 %v2005, 1e-05
        %v2007 = vrsqrt.pop %v2006
        %v2008 = vmul.f32 %v2007, %v2006
        %v2009 = vmul.f32 %v2008, %v2007
        %v2010 = vmul.f32 0.5, %v2009
        %v2011 = vsub.f32 1.5, %v2010
        %v2012 = vmul.f32 %v2007, %v2011
        %vm2013 = vweird.f32 %v2006
        %vm2014 = vweird.f32 %v2007
        %vm2015 = vmor %vm2013, %vm2014
        %v2016 = vsel %vm2015, %v2007, %v2012
        %v2017 = vmul.f32 %v2000, %v2016
        %v2018 = vperm.slane %v293, 0
        %v2019 = vmul.f32 %v2017, %v2018
        %v2020 = vperm.slane %v294, 0
        %v2021 = vadd.f32 %v2019, %v2020
        %v2022 = vld [vmem:[%s287] sm:$0xff]
        %v2023 = vld [vmem:[%s3 + $0x98] sm:$0x1]
        %v2024 = vld [vmem:[%s3 + $0xa0] sm:$0x1]
        %v2025 = vsel %vm361, %v2022, 0.0
        %2026 = vadd.xlane.f32.xlu0 %v2025
        %v2027 = vpop.xlane.xlu0 %2026
        %v2028 = vmul.f32 %v2027, %v1998
        %v2029 = vsub.f32 %v2022, %v2028
        %v2030 = vmul.f32 %v2029, %v2029
        %v2031 = vsel %vm361, %v2030, 0.0
        %2032 = vadd.xlane.f32.xlu0 %v2031
        %v2033 = vpop.xlane.xlu0 %2032
        %v2034 = vmul.f32 %v2033, %v1998
        %v2035 = vadd.f32 %v2034, 1e-05
        %v2036 = vrsqrt.pop %v2035
        %v2037 = vmul.f32 %v2036, %v2035
        %v2038 = vmul.f32 %v2037, %v2036
        %v2039 = vmul.f32 0.5, %v2038
        %v2040 = vsub.f32 1.5, %v2039
        %v2041 = vmul.f32 %v2036, %v2040
        %vm2042 = vweird.f32 %v2035
        %vm2043 = vweird.f32 %v2036
        %vm2044 = vmor %vm2042, %vm2043
        %v2045 = vsel %vm2044, %v2036, %v2041
        %v2046 = vmul.f32 %v2029, %v2045
        %v2047 = vperm.slane %v2023, 0
        %v2048 = vmul.f32 %v2046, %v2047
        %v2049 = vperm.slane %v2024, 0
        %v2050 = vadd.f32 %v2048, %v2049
        %v2051 = vld [vmem:[%s241] sm:$0x1]
        %v2052 = vsub.f32 1.0, %v2051
        %v2053 = vmul.f32 %v2052, -1e+09
        %v2054 = vld [vmem:[#allocation5 + $0x48] sm:$0xf]
        %v2055 = vld [vmem:[#allocation5 + $0x4c] sm:$0xf]
        %v2056 = vld [vmem:[#allocation5 + $0x50] sm:$0xf]
        %v2057 = vld [vmem:[#allocation5 + $0x54] sm:$0xf]
        %v2058 = vld [vmem:[#allocation5 + $0x58] sm:$0xf]
        %v2059 = vld [vmem:[#allocation5 + $0x5c] sm:$0xf]
        %v2060 = vld [vmem:[#allocation5 + $0x60] sm:$0xf]
        %v2061 = vld [vmem:[#allocation5 + $0x64] sm:$0xf]
        %v2062 = vld [vmem:[#allocation5 + $0x68] sm:$0xf]
        %v2063 = vld [vmem:[#allocation5 + $0x6c] sm:$0xf]
        %v2064 = vld [vmem:[#allocation5 + $0x70] sm:$0xf]
        %v2065 = vld [vmem:[#allocation5 + $0x74] sm:$0xf]
        %v2066 = vld [vmem:[#allocation5 + $0x78] sm:$0xf]
        %v2067 = vld [vmem:[#allocation5 + $0x7c] sm:$0xf]
        %v2068 = vld [vmem:[#allocation5 + $0x80] sm:$0xf]
        %v2069 = vld [vmem:[#allocation5 + $0x84] sm:$0xf]
        %v2070 = vld [vmem:[%s3 + $0x28] sm:$0x1]
        %v2071 = vld [vmem:[%s3 + $0x30] sm:$0x1]
        %v2072 = vld [vmem:[%s3 + $0x38] sm:$0x1]
        %v2073 = vld [vmem:[%s3 + $0x40] sm:$0x1]
        %v2074 = vpack.c.bf16 %v2050, %v2050
        %v2075 = vperm.slane %v2070, 0
        %v2080 = vunpack.c.l.b16 %v2054
        %v2081 = vunpack.c.l.b16 %v2055
        %v2082 = vunpack.c.l.b16 %v2056
        %v2083 = vunpack.c.l.b16 %v2057
        %v2084 = vpack.c.b16 %v2081, %v2080
        %v2085 = vpack.c.b16 %v2083, %v2082
        %v2089 = vsel %vm361, %v2074, 0
        %2091 = vmatpush.bf16.msra.mxu0 0
        %2092 = vmatpush.bf16.msra.mxu0 0
        %2093 = vmatpush.bf16.msra.mxu0 0
        %2094 = vmatpush.bf16.msra.mxu0 0
        %2095 = vmatpush.bf16.msra.mxu0 0
        %2096 = vmatpush.bf16.msra.mxu0 0
        %2097 = vmatpush.bf16.msra.mxu0 %v2085
        %2098 = vmatpush.bf16.msra.mxu0 %v2084
        %2099 = vmatmul.bf16.gmra.mxu0 %v2089
        %v2100 = vpop.f32.mrf.mxu0
        %v2101 = vadd.f32 %v2075, %v2100
        %v2102 = vpop.f32.mrf.mxu0
        %2103 = vdwg.mxu0
        %2105 = vrot.lane.b32.xlu0 %v2101, 120
        %v2106 = vpop.permute.xlu0 %2105
        %2108 = vrot.lane.b32.xlu0 %v2101, 112
        %v2109 = vpop.permute.xlu0 %2108
        %2111 = vrot.lane.b32.xlu0 %v2101, 104
        %v2112 = vpop.permute.xlu0 %2111
        %v2114 = vrot.slane %v2109, 4
        %v2115 = vsel %vm389, %v2114, %v2101
        %v2116 = vrot.slane %v2101, 4
        %v2117 = vsel %vm389, %v2109, %v2116
        %v2119 = vunpack.c.l.s4 1983009808
        %v2120 = vunpack.c.0.s8 %v2119
        %v2121 = vperm.slane %v2115, %v2120
        %v2123 = vunpack.c.l.s4 1983009808
        %v2124 = vunpack.c.0.s8 %v2123
        %v2125 = vperm.slane %v2117, %v2124
        %v2126 = vrot.slane %v2112, 4
        %v2127 = vsel %vm389, %v2126, %v2106
        %v2128 = vrot.slane %v2106, 4
        %v2129 = vsel %vm389, %v2112, %v2128
        %v2131 = vunpack.c.l.s4 1983009808
        %v2132 = vunpack.c.0.s8 %v2131
        %v2133 = vperm.slane %v2127, %v2132
        %v2135 = vunpack.c.l.s4 1983009808
        %v2136 = vunpack.c.0.s8 %v2135
        %v2137 = vperm.slane %v2129, %v2136
        %v2138 = vrot.slane %v2133, 4
        %v2139 = vsel %vm389, %v2138, %v2121
        %v2140 = vrot.slane %v2121, 4
        %v2141 = vsel %vm389, %v2133, %v2140
        %v2143 = vunpack.c.l.s4 1934713408
        %v2144 = vunpack.c.0.s8 %v2143
        %v2145 = vperm.slane %v2139, %v2144
        %v2147 = vunpack.c.l.s4 1934713408
        %v2148 = vunpack.c.0.s8 %v2147
        %v2149 = vperm.slane %v2141, %v2148
        %v2150 = vrot.slane %v2137, 4
        %v2151 = vsel %vm389, %v2150, %v2125
        %v2152 = vrot.slane %v2125, 4
        %v2153 = vsel %vm389, %v2137, %v2152
        %v2155 = vunpack.c.l.s4 1934713408
        %v2156 = vunpack.c.0.s8 %v2155
        %v2157 = vperm.slane %v2151, %v2156
        %v2159 = vunpack.c.l.s4 1934713408
        %v2160 = vunpack.c.0.s8 %v2159
        %v2161 = vperm.slane %v2153, %v2160
        %v2162 = vrot.slane %v2145, 4
        %v2163 = vsel %vm389, 0.0, %v2162
        %v2164 = vrot.slane %v2149, 4
        %v2165 = vsel %vm389, 0.0, %v2164
        %v2166 = vrot.slane %v2157, 4
        %v2167 = vsel %vm389, 0.0, %v2166
        %v2168 = vrot.slane %v2161, 4
        %v2169 = vsel %vm389, 0.0, %v2168
        %v2170 = vperm.slane %v2071, 0
        %v2175 = vunpack.c.l.b16 %v2058
        %v2176 = vunpack.c.l.b16 %v2059
        %v2177 = vunpack.c.l.b16 %v2060
        %v2178 = vunpack.c.l.b16 %v2061
        %v2179 = vpack.c.b16 %v2176, %v2175
        %v2180 = vpack.c.b16 %v2178, %v2177
        %2183 = vmatpush.bf16.msra.mxu0 0
        %2184 = vmatpush.bf16.msra.mxu0 0
        %2185 = vmatpush.bf16.msra.mxu0 0
        %2186 = vmatpush.bf16.msra.mxu0 0
        %2187 = vmatpush.bf16.msra.mxu0 0
        %2188 = vmatpush.bf16.msra.mxu0 0
        %2189 = vmatpush.bf16.msra.mxu0 %v2180
        %2190 = vmatpush.bf16.msra.mxu0 %v2179
        %2191 = vmatmul.bf16.gmra.mxu0 %v2089
        %v2192 = vpop.f32.mrf.mxu0
        %v2193 = vadd.f32 %v2170, %v2192
        %v2194 = vpop.f32.mrf.mxu0
        %2195 = vdwg.mxu0
        %2197 = vrot.lane.b32.xlu0 %v2193, 120
        %v2198 = vpop.permute.xlu0 %2197
        %2200 = vrot.lane.b32.xlu0 %v2193, 112
        %v2201 = vpop.permute.xlu0 %2200
        %2203 = vrot.lane.b32.xlu0 %v2193, 104
        %v2204 = vpop.permute.xlu0 %2203
        %v2206 = vrot.slane %v2201, 4
        %v2207 = vsel %vm389, %v2206, %v2193
        %v2208 = vrot.slane %v2193, 4
        %v2209 = vsel %vm389, %v2201, %v2208
        %v2211 = vunpack.c.l.s4 1983009808
        %v2212 = vunpack.c.0.s8 %v2211
        %v2213 = vperm.slane %v2207, %v2212
        %v2215 = vunpack.c.l.s4 1983009808
        %v2216 = vunpack.c.0.s8 %v2215
        %v2217 = vperm.slane %v2209, %v2216
        %v2218 = vrot.slane %v2204, 4
        %v2219 = vsel %vm389, %v2218, %v2198
        %v2220 = vrot.slane %v2198, 4
        %v2221 = vsel %vm389, %v2204, %v2220
        %v2223 = vunpack.c.l.s4 1983009808
        %v2224 = vunpack.c.0.s8 %v2223
        %v2225 = vperm.slane %v2219, %v2224
        %v2227 = vunpack.c.l.s4 1983009808
        %v2228 = vunpack.c.0.s8 %v2227
        %v2229 = vperm.slane %v2221, %v2228
        %v2230 = vrot.slane %v2225, 4
        %v2231 = vsel %vm389, %v2230, %v2213
        %v2232 = vrot.slane %v2213, 4
        %v2233 = vsel %vm389, %v2225, %v2232
        %v2235 = vunpack.c.l.s4 1934713408
        %v2236 = vunpack.c.0.s8 %v2235
        %v2237 = vperm.slane %v2231, %v2236
        %v2239 = vunpack.c.l.s4 1934713408
        %v2240 = vunpack.c.0.s8 %v2239
        %v2241 = vperm.slane %v2233, %v2240
        %v2242 = vrot.slane %v2229, 4
        %v2243 = vsel %vm389, %v2242, %v2217
        %v2244 = vrot.slane %v2217, 4
        %v2245 = vsel %vm389, %v2229, %v2244
        %v2247 = vunpack.c.l.s4 1934713408
        %v2248 = vunpack.c.0.s8 %v2247
        %v2249 = vperm.slane %v2243, %v2248
        %v2251 = vunpack.c.l.s4 1934713408
        %v2252 = vunpack.c.0.s8 %v2251
        %v2253 = vperm.slane %v2245, %v2252
        %v2254 = vrot.slane %v2237, 4
        %v2255 = vsel %vm389, 0.0, %v2254
        %v2256 = vrot.slane %v2241, 4
        %v2257 = vsel %vm389, 0.0, %v2256
        %v2258 = vrot.slane %v2249, 4
        %v2259 = vsel %vm389, 0.0, %v2258
        %v2260 = vrot.slane %v2253, 4
        %v2261 = vsel %vm389, 0.0, %v2260
        %v2262 = vperm.slane %v2072, 0
        %v2267 = vunpack.c.l.b16 %v2062
        %v2268 = vunpack.c.l.b16 %v2063
        %v2269 = vunpack.c.l.b16 %v2064
        %v2270 = vunpack.c.l.b16 %v2065
        %v2271 = vpack.c.b16 %v2268, %v2267
        %v2272 = vpack.c.b16 %v2270, %v2269
        %2275 = vmatpush.bf16.msra.mxu0 0
        %2276 = vmatpush.bf16.msra.mxu0 0
        %2277 = vmatpush.bf16.msra.mxu0 0
        %2278 = vmatpush.bf16.msra.mxu0 0
        %2279 = vmatpush.bf16.msra.mxu0 0
        %2280 = vmatpush.bf16.msra.mxu0 0
        %2281 = vmatpush.bf16.msra.mxu0 %v2272
        %2282 = vmatpush.bf16.msra.mxu0 %v2271
        %2283 = vmatmul.bf16.gmra.mxu0 %v2089
        %v2284 = vpop.f32.mrf.mxu0
        %v2285 = vadd.f32 %v2262, %v2284
        %v2286 = vpop.f32.mrf.mxu0
        %2287 = vdwg.mxu0
        %2289 = vrot.lane.b32.xlu0 %v2285, 120
        %v2290 = vpop.permute.xlu0 %2289
        %2292 = vrot.lane.b32.xlu0 %v2285, 112
        %v2293 = vpop.permute.xlu0 %2292
        %2295 = vrot.lane.b32.xlu0 %v2285, 104
        %v2296 = vpop.permute.xlu0 %2295
        %v2298 = vrot.slane %v2293, 4
        %v2299 = vsel %vm389, %v2298, %v2285
        %v2300 = vrot.slane %v2285, 4
        %v2301 = vsel %vm389, %v2293, %v2300
        %v2303 = vunpack.c.l.s4 1983009808
        %v2304 = vunpack.c.0.s8 %v2303
        %v2305 = vperm.slane %v2299, %v2304
        %v2307 = vunpack.c.l.s4 1983009808
        %v2308 = vunpack.c.0.s8 %v2307
        %v2309 = vperm.slane %v2301, %v2308
        %v2310 = vrot.slane %v2296, 4
        %v2311 = vsel %vm389, %v2310, %v2290
        %v2312 = vrot.slane %v2290, 4
        %v2313 = vsel %vm389, %v2296, %v2312
        %v2315 = vunpack.c.l.s4 1983009808
        %v2316 = vunpack.c.0.s8 %v2315
        %v2317 = vperm.slane %v2311, %v2316
        %v2319 = vunpack.c.l.s4 1983009808
        %v2320 = vunpack.c.0.s8 %v2319
        %v2321 = vperm.slane %v2313, %v2320
        %v2322 = vrot.slane %v2317, 4
        %v2323 = vsel %vm389, %v2322, %v2305
        %v2324 = vrot.slane %v2305, 4
        %v2325 = vsel %vm389, %v2317, %v2324
        %v2327 = vunpack.c.l.s4 1934713408
        %v2328 = vunpack.c.0.s8 %v2327
        %v2329 = vperm.slane %v2323, %v2328
        %v2331 = vunpack.c.l.s4 1934713408
        %v2332 = vunpack.c.0.s8 %v2331
        %v2333 = vperm.slane %v2325, %v2332
        %v2334 = vrot.slane %v2321, 4
        %v2335 = vsel %vm389, %v2334, %v2309
        %v2336 = vrot.slane %v2309, 4
        %v2337 = vsel %vm389, %v2321, %v2336
        %v2339 = vunpack.c.l.s4 1934713408
        %v2340 = vunpack.c.0.s8 %v2339
        %v2341 = vperm.slane %v2335, %v2340
        %v2343 = vunpack.c.l.s4 1934713408
        %v2344 = vunpack.c.0.s8 %v2343
        %v2345 = vperm.slane %v2337, %v2344
        %v2346 = vrot.slane %v2329, 4
        %v2347 = vsel %vm389, 0.0, %v2346
        %v2348 = vrot.slane %v2333, 4
        %v2349 = vsel %vm389, 0.0, %v2348
        %v2350 = vrot.slane %v2341, 4
        %v2351 = vsel %vm389, 0.0, %v2350
        %v2352 = vrot.slane %v2345, 4
        %v2353 = vsel %vm389, 0.0, %v2352
        %v2354 = vpack.c.bf16 %v2145, %v2145
        %v2355 = vpack.c.bf16 %v2163, %v2163
        %v2356 = vpack.c.bf16 %v2149, %v2149
        %v2357 = vpack.c.bf16 %v2165, %v2165
        %v2358 = vpack.c.bf16 %v2157, %v2157
        %v2359 = vpack.c.bf16 %v2167, %v2167
        %v2360 = vpack.c.bf16 %v2161, %v2161
        %v2361 = vpack.c.bf16 %v2169, %v2169
        %v2362 = vpack.c.bf16 %v2237, %v2237
        %v2363 = vpack.c.bf16 %v2255, %v2255
        %v2364 = vpack.c.bf16 %v2241, %v2241
        %v2365 = vpack.c.bf16 %v2257, %v2257
        %v2366 = vpack.c.bf16 %v2249, %v2249
        %v2367 = vpack.c.bf16 %v2259, %v2259
        %v2368 = vpack.c.bf16 %v2253, %v2253
        %v2369 = vpack.c.bf16 %v2261, %v2261
        %v2370 = vrot.slane %v2358, 4
        %v2371 = vsel %vm646, %v2370, %v2354
        %v2373 = vunpack.c.l.s4 1983009808
        %v2374 = vunpack.c.0.s8 %v2373
        %v2375 = vperm.slane %v2371, %v2374
        %v2376 = vrot.slane %v2360, 4
        %v2377 = vsel %vm646, %v2376, %v2356
        %v2379 = vunpack.c.l.s4 1983009808
        %v2380 = vunpack.c.0.s8 %v2379
        %v2381 = vperm.slane %v2377, %v2380
        %v2382 = vrot.slane %v2381, 4
        %v2383 = vsel %vm646, %v2382, %v2375
        %v2385 = vunpack.c.l.s4 1934713408
        %v2386 = vunpack.c.0.s8 %v2385
        %v2387 = vperm.slane %v2383, %v2386
        %v2388 = vrot.slane %v2387, 4
        %v2389 = vsel %vm646, 0, %v2388
        %v2390 = vrot.slane %v2359, 4
        %v2391 = vsel %vm646, %v2390, %v2355
        %v2393 = vunpack.c.l.s4 1983009808
        %v2394 = vunpack.c.0.s8 %v2393
        %v2395 = vperm.slane %v2391, %v2394
        %v2396 = vrot.slane %v2361, 4
        %v2397 = vsel %vm646, %v2396, %v2357
        %v2399 = vunpack.c.l.s4 1983009808
        %v2400 = vunpack.c.0.s8 %v2399
        %v2401 = vperm.slane %v2397, %v2400
        %v2402 = vrot.slane %v2401, 4
        %v2403 = vsel %vm646, %v2402, %v2395
        %v2405 = vunpack.c.l.s4 1934713408
        %v2406 = vunpack.c.0.s8 %v2405
        %v2407 = vperm.slane %v2403, %v2406
        %v2408 = vrot.slane %v2407, 4
        %v2409 = vsel %vm646, 0, %v2408
        %v2412 = vpack.i.b16 %v2407, %v2387
        %v2413 = vshrl.u32 %v2387, 16
        %v2414 = vshrl.u32 %v2407, 16
        %v2415 = vpack.i.b16 %v2414, %v2413
        %v2418 = vpack.i.b16 %v2409, %v2389
        %v2419 = vshrl.u32 %v2389, 16
        %v2420 = vshrl.u32 %v2409, 16
        %v2421 = vpack.i.b16 %v2420, %v2419
        %2422 = vxpose.xlu0.c.b16.start [1/8] %v2362, 128
        %2423 = vxpose.xlu0.c.b16.cont [2/8] 0, 128
        %2424 = vxpose.xlu0.c.b16.cont [3/8] 0, 128
        %2425 = vxpose.xlu0.c.b16.cont [4/8] 0, 128
        %2426 = vxpose.xlu0.c.b16.cont [5/8] 0, 128
        %2427 = vxpose.xlu0.c.b16.cont [6/8] 0, 128
        %2428 = vxpose.xlu0.c.b16.cont [7/8] 0, 128
        %2429 = vxpose.xlu0.c.b16.end [8/8] 0, 128
        %v2430 = vpop.trf.xlu0
        %v2431 = vpop.trf.xlu0
        %v2432 = vpop.trf.xlu0
        %v2433 = vpop.trf.xlu0
        %v2434 = vpop.trf.xlu0
        %v2435 = vpop.trf.xlu0
        %v2436 = vpop.trf.xlu0
        %v2437 = vpop.trf.xlu0
        %2438 = vxpose.xlu0.c.b16.start [1/8] %v2363, 128
        %2439 = vxpose.xlu0.c.b16.cont [2/8] 0, 128
        %2440 = vxpose.xlu0.c.b16.cont [3/8] 0, 128
        %2441 = vxpose.xlu0.c.b16.cont [4/8] 0, 128
        %2442 = vxpose.xlu0.c.b16.cont [5/8] 0, 128
        %2443 = vxpose.xlu0.c.b16.cont [6/8] 0, 128
        %2444 = vxpose.xlu0.c.b16.cont [7/8] 0, 128
        %2445 = vxpose.xlu0.c.b16.end [8/8] 0, 128
        %v2446 = vpop.trf.xlu0
        %v2447 = vpop.trf.xlu0
        %v2448 = vpop.trf.xlu0
        %v2449 = vpop.trf.xlu0
        %v2450 = vpop.trf.xlu0
        %v2451 = vpop.trf.xlu0
        %v2452 = vpop.trf.xlu0
        %v2453 = vpop.trf.xlu0
        %2454 = vxpose.xlu0.c.b16.start [1/8] %v2364, 128
        %2455 = vxpose.xlu0.c.b16.cont [2/8] 0, 128
        %2456 = vxpose.xlu0.c.b16.cont [3/8] 0, 128
        %2457 = vxpose.xlu0.c.b16.cont [4/8] 0, 128
        %2458 = vxpose.xlu0.c.b16.cont [5/8] 0, 128
        %2459 = vxpose.xlu0.c.b16.cont [6/8] 0, 128
        %2460 = vxpose.xlu0.c.b16.cont [7/8] 0, 128
        %2461 = vxpose.xlu0.c.b16.end [8/8] 0, 128
        %v2462 = vpop.trf.xlu0
        %v2463 = vpop.trf.xlu0
        %v2464 = vpop.trf.xlu0
        %v2465 = vpop.trf.xlu0
        %v2466 = vpop.trf.xlu0
        %v2467 = vpop.trf.xlu0
        %v2468 = vpop.trf.xlu0
        %v2469 = vpop.trf.xlu0
        %2470 = vxpose.xlu0.c.b16.start [1/8] %v2365, 128
        %2471 = vxpose.xlu0.c.b16.cont [2/8] 0, 128
        %2472 = vxpose.xlu0.c.b16.cont [3/8] 0, 128
        %2473 = vxpose.xlu0.c.b16.cont [4/8] 0, 128
        %2474 = vxpose.xlu0.c.b16.cont [5/8] 0, 128
        %2475 = vxpose.xlu0.c.b16.cont [6/8] 0, 128
        %2476 = vxpose.xlu0.c.b16.cont [7/8] 0, 128
        %2477 = vxpose.xlu0.c.b16.end [8/8] 0, 128
        %v2478 = vpop.trf.xlu0
        %v2479 = vpop.trf.xlu0
        %v2480 = vpop.trf.xlu0
        %v2481 = vpop.trf.xlu0
        %v2482 = vpop.trf.xlu0
        %v2483 = vpop.trf.xlu0
        %v2484 = vpop.trf.xlu0
        %v2485 = vpop.trf.xlu0
        %2486 = vxpose.xlu0.c.b16.start [1/8] %v2366, 128
        %2487 = vxpose.xlu0.c.b16.cont [2/8] 0, 128
        %2488 = vxpose.xlu0.c.b16.cont [3/8] 0, 128
        %2489 = vxpose.xlu0.c.b16.cont [4/8] 0, 128
        %2490 = vxpose.xlu0.c.b16.cont [5/8] 0, 128
        %2491 = vxpose.xlu0.c.b16.cont [6/8] 0, 128
        %2492 = vxpose.xlu0.c.b16.cont [7/8] 0, 128
        %2493 = vxpose.xlu0.c.b16.end [8/8] 0, 128
        %v2494 = vpop.trf.xlu0
        %v2495 = vpop.trf.xlu0
        %v2496 = vpop.trf.xlu0
        %v2497 = vpop.trf.xlu0
        %v2498 = vpop.trf.xlu0
        %v2499 = vpop.trf.xlu0
        %v2500 = vpop.trf.xlu0
        %v2501 = vpop.trf.xlu0
        %2502 = vxpose.xlu0.c.b16.start [1/8] %v2367, 128
        %2503 = vxpose.xlu0.c.b16.cont [2/8] 0, 128
        %2504 = vxpose.xlu0.c.b16.cont [3/8] 0, 128
        %2505 = vxpose.xlu0.c.b16.cont [4/8] 0, 128
        %2506 = vxpose.xlu0.c.b16.cont [5/8] 0, 128
        %2507 = vxpose.xlu0.c.b16.cont [6/8] 0, 128
        %2508 = vxpose.xlu0.c.b16.cont [7/8] 0, 128
        %2509 = vxpose.xlu0.c.b16.end [8/8] 0, 128
        %v2510 = vpop.trf.xlu0
        %v2511 = vpop.trf.xlu0
        %v2512 = vpop.trf.xlu0
        %v2513 = vpop.trf.xlu0
        %v2514 = vpop.trf.xlu0
        %v2515 = vpop.trf.xlu0
        %v2516 = vpop.trf.xlu0
        %v2517 = vpop.trf.xlu0
        %2518 = vxpose.xlu0.c.b16.start [1/8] %v2368, 128
        %2519 = vxpose.xlu0.c.b16.cont [2/8] 0, 128
        %2520 = vxpose.xlu0.c.b16.cont [3/8] 0, 128
        %2521 = vxpose.xlu0.c.b16.cont [4/8] 0, 128
        %2522 = vxpose.xlu0.c.b16.cont [5/8] 0, 128
        %2523 = vxpose.xlu0.c.b16.cont [6/8] 0, 128
        %2524 = vxpose.xlu0.c.b16.cont [7/8] 0, 128
        %2525 = vxpose.xlu0.c.b16.end [8/8] 0, 128
        %v2526 = vpop.trf.xlu0
        %v2527 = vpop.trf.xlu0
        %v2528 = vpop.trf.xlu0
        %v2529 = vpop.trf.xlu0
        %v2530 = vpop.trf.xlu0
        %v2531 = vpop.trf.xlu0
        %v2532 = vpop.trf.xlu0
        %v2533 = vpop.trf.xlu0
        %2534 = vxpose.xlu0.c.b16.start [1/8] %v2369, 128
        %2535 = vxpose.xlu0.c.b16.cont [2/8] 0, 128
        %2536 = vxpose.xlu0.c.b16.cont [3/8] 0, 128
        %2537 = vxpose.xlu0.c.b16.cont [4/8] 0, 128
        %2538 = vxpose.xlu0.c.b16.cont [5/8] 0, 128
        %2539 = vxpose.xlu0.c.b16.cont [6/8] 0, 128
        %2540 = vxpose.xlu0.c.b16.cont [7/8] 0, 128
        %2541 = vxpose.xlu0.c.b16.end [8/8] 0, 128
        %v2542 = vpop.trf.xlu0
        %v2543 = vpop.trf.xlu0
        %v2544 = vpop.trf.xlu0
        %v2545 = vpop.trf.xlu0
        %v2546 = vpop.trf.xlu0
        %v2547 = vpop.trf.xlu0
        %v2548 = vpop.trf.xlu0
        %v2549 = vpop.trf.xlu0
        %v2550 = vrot.slane %v2494, 4
        %v2551 = vsel %vm646, %v2550, %v2430
        %v2553 = vunpack.c.l.s4 1983009808
        %v2554 = vunpack.c.0.s8 %v2553
        %v2555 = vperm.slane %v2551, %v2554
        %v2556 = vrot.slane %v2526, 4
        %v2557 = vsel %vm646, %v2556, %v2462
        %v2559 = vunpack.c.l.s4 1983009808
        %v2560 = vunpack.c.0.s8 %v2559
        %v2561 = vperm.slane %v2557, %v2560
        %v2562 = vrot.slane %v2561, 4
        %v2563 = vsel %vm646, %v2562, %v2555
        %v2564 = vrot.slane %v2555, 4
        %v2565 = vsel %vm646, %v2561, %v2564
        %v2567 = vunpack.c.l.s4 1934713408
        %v2568 = vunpack.c.0.s8 %v2567
        %v2569 = vperm.slane %v2563, %v2568
        %v2571 = vunpack.c.l.s4 1934713408
        %v2572 = vunpack.c.0.s8 %v2571
        %v2573 = vperm.slane %v2565, %v2572
        %v2574 = vrot.slane %v2569, 4
        %v2575 = vsel %vm646, 0, %v2574
        %v2576 = vrot.slane %v2573, 4
        %v2577 = vsel %vm646, 0, %v2576
        %v2578 = vrot.slane %v2510, 4
        %v2579 = vsel %vm646, %v2578, %v2446
        %v2581 = vunpack.c.l.s4 1983009808
        %v2582 = vunpack.c.0.s8 %v2581
        %v2583 = vperm.slane %v2579, %v2582
        %v2584 = vrot.slane %v2542, 4
        %v2585 = vsel %vm646, %v2584, %v2478
        %v2587 = vunpack.c.l.s4 1983009808
        %v2588 = vunpack.c.0.s8 %v2587
        %v2589 = vperm.slane %v2585, %v2588
        %v2590 = vrot.slane %v2589, 4
        %v2591 = vsel %vm646, %v2590, %v2583
        %v2592 = vrot.slane %v2583, 4
        %v2593 = vsel %vm646, %v2589, %v2592
        %v2595 = vunpack.c.l.s4 1934713408
        %v2596 = vunpack.c.0.s8 %v2595
        %v2597 = vperm.slane %v2591, %v2596
        %v2599 = vunpack.c.l.s4 1934713408
        %v2600 = vunpack.c.0.s8 %v2599
        %v2601 = vperm.slane %v2593, %v2600
        %v2602 = vrot.slane %v2597, 4
        %v2603 = vsel %vm646, 0, %v2602
        %v2604 = vrot.slane %v2601, 4
        %v2605 = vsel %vm646, 0, %v2604
        %v2608 = vpack.i.b16 %v2597, %v2569
        %v2610 = vshrl.u32 %v2569, 16
        %v2611 = vshrl.u32 %v2597, 16
        %v2612 = vpack.i.b16 %v2611, %v2610
        %v2616 = vpack.i.b16 %v2603, %v2575
        %v2618 = vshrl.u32 %v2575, 16
        %v2619 = vshrl.u32 %v2603, 16
        %v2620 = vpack.i.b16 %v2619, %v2618
        %v2624 = vpack.i.b16 %v2601, %v2573
        %v2626 = vshrl.u32 %v2573, 16
        %v2627 = vshrl.u32 %v2601, 16
        %v2628 = vpack.i.b16 %v2627, %v2626
        %v2632 = vpack.i.b16 %v2605, %v2577
        %v2634 = vshrl.u32 %v2577, 16
        %v2635 = vshrl.u32 %v2605, 16
        %v2636 = vpack.i.b16 %v2635, %v2634
        %2638 = vxpose.xlu0.c.b16.start [1/8] %v2608, 128
        %2639 = vxpose.xlu0.c.b16.cont [2/8] 0, 128
        %2640 = vxpose.xlu0.c.b16.cont [3/8] 0, 128
        %2641 = vxpose.xlu0.c.b16.cont [4/8] 0, 128
        %2642 = vxpose.xlu0.c.b16.cont [5/8] 0, 128
        %2643 = vxpose.xlu0.c.b16.cont [6/8] 0, 128
        %2644 = vxpose.xlu0.c.b16.cont [7/8] 0, 128
        %2645 = vxpose.xlu0.c.b16.end [8/8] 0, 128
        %v2646 = vpop.trf.xlu0
        %v2647 = vpop.trf.xlu0
        %v2648 = vpop.trf.xlu0
        %v2649 = vpop.trf.xlu0
        %v2650 = vpop.trf.xlu0
        %v2651 = vpop.trf.xlu0
        %v2652 = vpop.trf.xlu0
        %v2653 = vpop.trf.xlu0
        %2654 = vxpose.xlu0.c.b16.start [1/8] %v2612, 128
        %2655 = vxpose.xlu0.c.b16.cont [2/8] 0, 128
        %2656 = vxpose.xlu0.c.b16.cont [3/8] 0, 128
        %2657 = vxpose.xlu0.c.b16.cont [4/8] 0, 128
        %2658 = vxpose.xlu0.c.b16.cont [5/8] 0, 128
        %2659 = vxpose.xlu0.c.b16.cont [6/8] 0, 128
        %2660 = vxpose.xlu0.c.b16.cont [7/8] 0, 128
        %2661 = vxpose.xlu0.c.b16.end [8/8] 0, 128
        %v2662 = vpop.trf.xlu0
        %v2663 = vpop.trf.xlu0
        %v2664 = vpop.trf.xlu0
        %v2665 = vpop.trf.xlu0
        %v2666 = vpop.trf.xlu0
        %v2667 = vpop.trf.xlu0
        %v2668 = vpop.trf.xlu0
        %v2669 = vpop.trf.xlu0
        %2670 = vxpose.xlu0.c.b16.start [1/8] %v2616, 128
        %2671 = vxpose.xlu0.c.b16.cont [2/8] 0, 128
        %2672 = vxpose.xlu0.c.b16.cont [3/8] 0, 128
        %2673 = vxpose.xlu0.c.b16.cont [4/8] 0, 128
        %2674 = vxpose.xlu0.c.b16.cont [5/8] 0, 128
        %2675 = vxpose.xlu0.c.b16.cont [6/8] 0, 128
        %2676 = vxpose.xlu0.c.b16.cont [7/8] 0, 128
        %2677 = vxpose.xlu0.c.b16.end [8/8] 0, 128
        %v2678 = vpop.trf.xlu0
        %v2679 = vpop.trf.xlu0
        %v2680 = vpop.trf.xlu0
        %v2681 = vpop.trf.xlu0
        %v2682 = vpop.trf.xlu0
        %v2683 = vpop.trf.xlu0
        %v2684 = vpop.trf.xlu0
        %v2685 = vpop.trf.xlu0
        %2686 = vxpose.xlu0.c.b16.start [1/8] %v2620, 128
        %2687 = vxpose.xlu0.c.b16.cont [2/8] 0, 128
        %2688 = vxpose.xlu0.c.b16.cont [3/8] 0, 128
        %2689 = vxpose.xlu0.c.b16.cont [4/8] 0, 128
        %2690 = vxpose.xlu0.c.b16.cont [5/8] 0, 128
        %2691 = vxpose.xlu0.c.b16.cont [6/8] 0, 128
        %2692 = vxpose.xlu0.c.b16.cont [7/8] 0, 128
        %2693 = vxpose.xlu0.c.b16.end [8/8] 0, 128
        %v2694 = vpop.trf.xlu0
        %v2695 = vpop.trf.xlu0
        %v2696 = vpop.trf.xlu0
        %v2697 = vpop.trf.xlu0
        %v2698 = vpop.trf.xlu0
        %v2699 = vpop.trf.xlu0
        %v2700 = vpop.trf.xlu0
        %v2701 = vpop.trf.xlu0
        %2702 = vxpose.xlu0.c.b16.start [1/8] %v2624, 128
        %2703 = vxpose.xlu0.c.b16.cont [2/8] 0, 128
        %2704 = vxpose.xlu0.c.b16.cont [3/8] 0, 128
        %2705 = vxpose.xlu0.c.b16.cont [4/8] 0, 128
        %2706 = vxpose.xlu0.c.b16.cont [5/8] 0, 128
        %2707 = vxpose.xlu0.c.b16.cont [6/8] 0, 128
        %2708 = vxpose.xlu0.c.b16.cont [7/8] 0, 128
        %2709 = vxpose.xlu0.c.b16.end [8/8] 0, 128
        %v2710 = vpop.trf.xlu0
        %v2711 = vpop.trf.xlu0
        %v2712 = vpop.trf.xlu0
        %v2713 = vpop.trf.xlu0
        %v2714 = vpop.trf.xlu0
        %v2715 = vpop.trf.xlu0
        %v2716 = vpop.trf.xlu0
        %v2717 = vpop.trf.xlu0
        %2718 = vxpose.xlu0.c.b16.start [1/8] %v2628, 128
        %2719 = vxpose.xlu0.c.b16.cont [2/8] 0, 128
        %2720 = vxpose.xlu0.c.b16.cont [3/8] 0, 128
        %2721 = vxpose.xlu0.c.b16.cont [4/8] 0, 128
        %2722 = vxpose.xlu0.c.b16.cont [5/8] 0, 128
        %2723 = vxpose.xlu0.c.b16.cont [6/8] 0, 128
        %2724 = vxpose.xlu0.c.b16.cont [7/8] 0, 128
        %2725 = vxpose.xlu0.c.b16.end [8/8] 0, 128
        %v2726 = vpop.trf.xlu0
        %v2727 = vpop.trf.xlu0
        %v2728 = vpop.trf.xlu0
        %v2729 = vpop.trf.xlu0
        %v2730 = vpop.trf.xlu0
        %v2731 = vpop.trf.xlu0
        %v2732 = vpop.trf.xlu0
        %v2733 = vpop.trf.xlu0
        %2734 = vxpose.xlu0.c.b16.start [1/8] %v2632, 128
        %2735 = vxpose.xlu0.c.b16.cont [2/8] 0, 128
        %2736 = vxpose.xlu0.c.b16.cont [3/8] 0, 128
        %2737 = vxpose.xlu0.c.b16.cont [4/8] 0, 128
        %2738 = vxpose.xlu0.c.b16.cont [5/8] 0, 128
        %2739 = vxpose.xlu0.c.b16.cont [6/8] 0, 128
        %2740 = vxpose.xlu0.c.b16.cont [7/8] 0, 128
        %2741 = vxpose.xlu0.c.b16.end [8/8] 0, 128
        %v2742 = vpop.trf.xlu0
        %v2743 = vpop.trf.xlu0
        %v2744 = vpop.trf.xlu0
        %v2745 = vpop.trf.xlu0
        %v2746 = vpop.trf.xlu0
        %v2747 = vpop.trf.xlu0
        %v2748 = vpop.trf.xlu0
        %v2749 = vpop.trf.xlu0
        %2750 = vxpose.xlu0.c.b16.start [1/8] %v2636, 128
        %2751 = vxpose.xlu0.c.b16.cont [2/8] 0, 128
        %2752 = vxpose.xlu0.c.b16.cont [3/8] 0, 128
        %2753 = vxpose.xlu0.c.b16.cont [4/8] 0, 128
        %2754 = vxpose.xlu0.c.b16.cont [5/8] 0, 128
        %2755 = vxpose.xlu0.c.b16.cont [6/8] 0, 128
        %2756 = vxpose.xlu0.c.b16.cont [7/8] 0, 128
        %2757 = vxpose.xlu0.c.b16.end [8/8] 0, 128
        %v2758 = vpop.trf.xlu0
        %v2759 = vpop.trf.xlu0
        %v2760 = vpop.trf.xlu0
        %v2761 = vpop.trf.xlu0
        %v2762 = vpop.trf.xlu0
        %v2763 = vpop.trf.xlu0
        %v2764 = vpop.trf.xlu0
        %v2765 = vpop.trf.xlu0
        %v2766 = vrot.slane %v2710, 4
        %v2767 = vsel %vm646, %v2766, %v2646
        %v2769 = vunpack.c.l.s4 1983009808
        %v2770 = vunpack.c.0.s8 %v2769
        %v2771 = vperm.slane %v2767, %v2770
        %v2772 = vrot.slane %v2742, 4
        %v2773 = vsel %vm646, %v2772, %v2678
        %v2775 = vunpack.c.l.s4 1983009808
        %v2776 = vunpack.c.0.s8 %v2775
        %v2777 = vperm.slane %v2773, %v2776
        %v2778 = vrot.slane %v2777, 4
        %v2779 = vsel %vm646, %v2778, %v2771
        %v2781 = vunpack.c.l.s4 1934713408
        %v2782 = vunpack.c.0.s8 %v2781
        %v2783 = vperm.slane %v2779, %v2782
        %v2784 = vrot.slane %v2783, 4
        %v2785 = vsel %vm646, 0, %v2784
        %v2786 = vrot.slane %v2726, 4
        %v2787 = vsel %vm646, %v2786, %v2662
        %v2789 = vunpack.c.l.s4 1983009808
        %v2790 = vunpack.c.0.s8 %v2789
        %v2791 = vperm.slane %v2787, %v2790
        %v2792 = vrot.slane %v2758, 4
        %v2793 = vsel %vm646, %v2792, %v2694
        %v2795 = vunpack.c.l.s4 1983009808
        %v2796 = vunpack.c.0.s8 %v2795
        %v2797 = vperm.slane %v2793, %v2796
        %v2798 = vrot.slane %v2797, 4
        %v2799 = vsel %vm646, %v2798, %v2791
        %v2801 = vunpack.c.l.s4 1934713408
        %v2802 = vunpack.c.0.s8 %v2801
        %v2803 = vperm.slane %v2799, %v2802
        %v2804 = vrot.slane %v2803, 4
        %v2805 = vsel %vm646, 0, %v2804
        %v2808 = vpack.i.b16 %v2803, %v2783
        %v2809 = vshrl.u32 %v2783, 16
        %v2810 = vshrl.u32 %v2803, 16
        %v2811 = vpack.i.b16 %v2810, %v2809
        %v2814 = vpack.i.b16 %v2805, %v2785
        %v2815 = vshrl.u32 %v2785, 16
        %v2816 = vshrl.u32 %v2805, 16
        %v2817 = vpack.i.b16 %v2816, %v2815
        %v2819 = vsel %vm1094, %v2412, 0
        %v2822 = vsel %vm1098, %v2808, 0
        %2824 = vmatpush.bf16.msra.mxu0 0
        %2825 = vmatpush.bf16.msra.mxu0 0
        %2826 = vmatpush.bf16.msra.mxu0 0
        %2827 = vmatpush.bf16.msra.mxu0 0
        %2828 = vmatpush.bf16.msra.mxu0 0
        %2829 = vmatpush.bf16.msra.mxu0 0
        %2830 = vmatpush.bf16.msra.mxu0 0
        %2831 = vmatpush.bf16.msra.mxu0 %v2822
        %2832 = vmatmul.bf16.gmra.mxu0 %v2819
        %v2833 = vpop.f32.mrf.mxu0
        %v2834 = vadd.f32 0.0, %v2833
        %v2835 = vpop.f32.mrf.mxu0
        %2836 = vdwg.mxu0
        %v2838 = vsel %vm1094, %v2415, 0
        %v2841 = vsel %vm1098, %v2811, 0
        %2843 = vmatpush.bf16.msra.mxu0 0
        %2844 = vmatpush.bf16.msra.mxu0 0
        %2845 = vmatpush.bf16.msra.mxu0 0
        %2846 = vmatpush.bf16.msra.mxu0 0
        %2847 = vmatpush.bf16.msra.mxu0 0
        %2848 = vmatpush.bf16.msra.mxu0 0
        %2849 = vmatpush.bf16.msra.mxu0 0
        %2850 = vmatpush.bf16.msra.mxu0 %v2841
        %2851 = vmatmul.bf16.gmra.mxu0 %v2838
        %v2852 = vpop.f32.mrf.mxu0
        %v2853 = vadd.f32 0.0, %v2852
        %v2854 = vpop.f32.mrf.mxu0
        %2855 = vdwg.mxu0
        %v2857 = vsel %vm1094, %v2418, 0
        %v2860 = vsel %vm1098, %v2814, 0
        %2862 = vmatpush.bf16.msra.mxu0 0
        %2863 = vmatpush.bf16.msra.mxu0 0
        %2864 = vmatpush.bf16.msra.mxu0 0
        %2865 = vmatpush.bf16.msra.mxu0 0
        %2866 = vmatpush.bf16.msra.mxu0 0
        %2867 = vmatpush.bf16.msra.mxu0 0
        %2868 = vmatpush.bf16.msra.mxu0 0
        %2869 = vmatpush.bf16.msra.mxu0 %v2860
        %2870 = vmatmul.bf16.gmra.mxu0 %v2857
        %v2871 = vpop.f32.mrf.mxu0
        %v2872 = vadd.f32 0.0, %v2871
        %v2873 = vpop.f32.mrf.mxu0
        %2874 = vdwg.mxu0
        %v2876 = vsel %vm1094, %v2421, 0
        %v2879 = vsel %vm1098, %v2817, 0
        %2881 = vmatpush.bf16.msra.mxu0 0
        %2882 = vmatpush.bf16.msra.mxu0 0
        %2883 = vmatpush.bf16.msra.mxu0 0
        %2884 = vmatpush.bf16.msra.mxu0 0
        %2885 = vmatpush.bf16.msra.mxu0 0
        %2886 = vmatpush.bf16.msra.mxu0 0
        %2887 = vmatpush.bf16.msra.mxu0 0
        %2888 = vmatpush.bf16.msra.mxu0 %v2879
        %2889 = vmatmul.bf16.gmra.mxu0 %v2876
        %v2890 = vpop.f32.mrf.mxu0
        %v2891 = vadd.f32 0.0, %v2890
        %v2892 = vpop.f32.mrf.mxu0
        %2893 = vdwg.mxu0
        %v2894 = vmul.f32 %v2834, 0.35355338
        %v2895 = vmul.f32 %v2853, 0.35355338
        %v2896 = vmul.f32 %v2872, 0.35355338
        %v2897 = vmul.f32 %v2891, 0.35355338
        %v2899 = vperm.slane %v2053, 0
        %v2901 = vadd.f32 %v2894, %v2899
        %v2902 = vadd.f32 %v2895, %v2899
        %v2903 = vadd.f32 %v2896, %v2899
        %v2904 = vadd.f32 %v2897, %v2899
        %v2905 = vsel %vm1094, %v2901, -inf
        %2906 = vmax.xlane.f32.xlu0 %v2905
        %v2907 = vpop.xlane.xlu0 %2906
        %v2908 = vsel %vm1094, %v2902, -inf
        %2909 = vmax.xlane.f32.xlu0 %v2908
        %v2910 = vpop.xlane.xlu0 %2909
        %v2911 = vsel %vm1094, %v2903, -inf
        %2912 = vmax.xlane.f32.xlu0 %v2911
        %v2913 = vpop.xlane.xlu0 %2912
        %v2914 = vsel %vm1094, %v2904, -inf
        %2915 = vmax.xlane.f32.xlu0 %v2914
        %v2916 = vpop.xlane.xlu0 %2915
        %v2917 = vsub.f32 %v2901, %v2907
        %v2918 = vsub.f32 %v2902, %v2910
        %v2919 = vsub.f32 %v2903, %v2913
        %v2920 = vsub.f32 %v2904, %v2916
        %v2921 = vmul.f32 %v2917, 1.442695
        %v2922 = vpow.pop %v2921
        %v2923 = vmul.f32 %v2918, 1.442695
        %v2924 = vpow.pop %v2923
        %v2925 = vmul.f32 %v2919, 1.442695
        %v2926 = vpow.pop %v2925
        %v2927 = vmul.f32 %v2920, 1.442695
        %v2928 = vpow.pop %v2927
        %v2929 = vsel %vm1094, %v2922, 0.0
        %2930 = vadd.xlane.f32.xlu0 %v2929
        %v2931 = vpop.xlane.xlu0 %2930
        %v2932 = vsel %vm1094, %v2924, 0.0
        %2933 = vadd.xlane.f32.xlu0 %v2932
        %v2934 = vpop.xlane.xlu0 %2933
        %v2935 = vsel %vm1094, %v2926, 0.0
        %2936 = vadd.xlane.f32.xlu0 %v2935
        %v2937 = vpop.xlane.xlu0 %2936
        %v2938 = vsel %vm1094, %v2928, 0.0
        %2939 = vadd.xlane.f32.xlu0 %v2938
        %v2940 = vpop.xlane.xlu0 %2939
        %v2941 = vrcp.pop %v2931
        %v2942 = vrcp.pop %v2934
        %v2943 = vrcp.pop %v2937
        %v2944 = vrcp.pop %v2940
        %v2945 = vmul.f32 %v2922, %v2941
        %v2946 = vmul.f32 %v2924, %v2942
        %v2947 = vmul.f32 %v2926, %v2943
        %v2948 = vmul.f32 %v2928, %v2944
        %v2949 = vpack.c.bf16 %v2945, %v2945
        %v2950 = vpack.c.bf16 %v2946, %v2946
        %v2951 = vpack.c.bf16 %v2947, %v2947
        %v2952 = vpack.c.bf16 %v2948, %v2948
        %v2953 = vpack.c.bf16 %v2329, %v2329
        %v2954 = vpack.c.bf16 %v2347, %v2347
        %v2955 = vpack.c.bf16 %v2333, %v2333
        %v2956 = vpack.c.bf16 %v2349, %v2349
        %v2957 = vpack.c.bf16 %v2341, %v2341
        %v2958 = vpack.c.bf16 %v2351, %v2351
        %v2959 = vpack.c.bf16 %v2345, %v2345
        %v2960 = vpack.c.bf16 %v2353, %v2353
        %2961 = vxpose.xlu0.c.b16.start [1/8] %v2953, 128
        %2962 = vxpose.xlu0.c.b16.cont [2/8] 0, 128
        %2963 = vxpose.xlu0.c.b16.cont [3/8] 0, 128
        %2964 = vxpose.xlu0.c.b16.cont [4/8] 0, 128
        %2965 = vxpose.xlu0.c.b16.cont [5/8] 0, 128
        %2966 = vxpose.xlu0.c.b16.cont [6/8] 0, 128
        %2967 = vxpose.xlu0.c.b16.cont [7/8] 0, 128
        %2968 = vxpose.xlu0.c.b16.end [8/8] 0, 128
        %v2969 = vpop.trf.xlu0
        %v2970 = vpop.trf.xlu0
        %v2971 = vpop.trf.xlu0
        %v2972 = vpop.trf.xlu0
        %v2973 = vpop.trf.xlu0
        %v2974 = vpop.trf.xlu0
        %v2975 = vpop.trf.xlu0
        %v2976 = vpop.trf.xlu0
        %2977 = vxpose.xlu0.c.b16.start [1/8] %v2954, 128
        %2978 = vxpose.xlu0.c.b16.cont [2/8] 0, 128
        %2979 = vxpose.xlu0.c.b16.cont [3/8] 0, 128
        %2980 = vxpose.xlu0.c.b16.cont [4/8] 0, 128
        %2981 = vxpose.xlu0.c.b16.cont [5/8] 0, 128
        %2982 = vxpose.xlu0.c.b16.cont [6/8] 0, 128
        %2983 = vxpose.xlu0.c.b16.cont [7/8] 0, 128
        %2984 = vxpose.xlu0.c.b16.end [8/8] 0, 128
        %v2985 = vpop.trf.xlu0
        %v2986 = vpop.trf.xlu0
        %v2987 = vpop.trf.xlu0
        %v2988 = vpop.trf.xlu0
        %v2989 = vpop.trf.xlu0
        %v2990 = vpop.trf.xlu0
        %v2991 = vpop.trf.xlu0
        %v2992 = vpop.trf.xlu0
        %2993 = vxpose.xlu0.c.b16.start [1/8] %v2955, 128
        %2994 = vxpose.xlu0.c.b16.cont [2/8] 0, 128
        %2995 = vxpose.xlu0.c.b16.cont [3/8] 0, 128
        %2996 = vxpose.xlu0.c.b16.cont [4/8] 0, 128
        %2997 = vxpose.xlu0.c.b16.cont [5/8] 0, 128
        %2998 = vxpose.xlu0.c.b16.cont [6/8] 0, 128
        %2999 = vxpose.xlu0.c.b16.cont [7/8] 0, 128
        %3000 = vxpose.xlu0.c.b16.end [8/8] 0, 128
        %v3001 = vpop.trf.xlu0
        %v3002 = vpop.trf.xlu0
        %v3003 = vpop.trf.xlu0
        %v3004 = vpop.trf.xlu0
        %v3005 = vpop.trf.xlu0
        %v3006 = vpop.trf.xlu0
        %v3007 = vpop.trf.xlu0
        %v3008 = vpop.trf.xlu0
        %3009 = vxpose.xlu0.c.b16.start [1/8] %v2956, 128
        %3010 = vxpose.xlu0.c.b16.cont [2/8] 0, 128
        %3011 = vxpose.xlu0.c.b16.cont [3/8] 0, 128
        %3012 = vxpose.xlu0.c.b16.cont [4/8] 0, 128
        %3013 = vxpose.xlu0.c.b16.cont [5/8] 0, 128
        %3014 = vxpose.xlu0.c.b16.cont [6/8] 0, 128
        %3015 = vxpose.xlu0.c.b16.cont [7/8] 0, 128
        %3016 = vxpose.xlu0.c.b16.end [8/8] 0, 128
        %v3017 = vpop.trf.xlu0
        %v3018 = vpop.trf.xlu0
        %v3019 = vpop.trf.xlu0
        %v3020 = vpop.trf.xlu0
        %v3021 = vpop.trf.xlu0
        %v3022 = vpop.trf.xlu0
        %v3023 = vpop.trf.xlu0
        %v3024 = vpop.trf.xlu0
        %3025 = vxpose.xlu0.c.b16.start [1/8] %v2957, 128
        %3026 = vxpose.xlu0.c.b16.cont [2/8] 0, 128
        %3027 = vxpose.xlu0.c.b16.cont [3/8] 0, 128
        %3028 = vxpose.xlu0.c.b16.cont [4/8] 0, 128
        %3029 = vxpose.xlu0.c.b16.cont [5/8] 0, 128
        %3030 = vxpose.xlu0.c.b16.cont [6/8] 0, 128
        %3031 = vxpose.xlu0.c.b16.cont [7/8] 0, 128
        %3032 = vxpose.xlu0.c.b16.end [8/8] 0, 128
        %v3033 = vpop.trf.xlu0
        %v3034 = vpop.trf.xlu0
        %v3035 = vpop.trf.xlu0
        %v3036 = vpop.trf.xlu0
        %v3037 = vpop.trf.xlu0
        %v3038 = vpop.trf.xlu0
        %v3039 = vpop.trf.xlu0
        %v3040 = vpop.trf.xlu0
        %3041 = vxpose.xlu0.c.b16.start [1/8] %v2958, 128
        %3042 = vxpose.xlu0.c.b16.cont [2/8] 0, 128
        %3043 = vxpose.xlu0.c.b16.cont [3/8] 0, 128
        %3044 = vxpose.xlu0.c.b16.cont [4/8] 0, 128
        %3045 = vxpose.xlu0.c.b16.cont [5/8] 0, 128
        %3046 = vxpose.xlu0.c.b16.cont [6/8] 0, 128
        %3047 = vxpose.xlu0.c.b16.cont [7/8] 0, 128
        %3048 = vxpose.xlu0.c.b16.end [8/8] 0, 128
        %v3049 = vpop.trf.xlu0
        %v3050 = vpop.trf.xlu0
        %v3051 = vpop.trf.xlu0
        %v3052 = vpop.trf.xlu0
        %v3053 = vpop.trf.xlu0
        %v3054 = vpop.trf.xlu0
        %v3055 = vpop.trf.xlu0
        %v3056 = vpop.trf.xlu0
        %3057 = vxpose.xlu0.c.b16.start [1/8] %v2959, 128
        %3058 = vxpose.xlu0.c.b16.cont [2/8] 0, 128
        %3059 = vxpose.xlu0.c.b16.cont [3/8] 0, 128
        %3060 = vxpose.xlu0.c.b16.cont [4/8] 0, 128
        %3061 = vxpose.xlu0.c.b16.cont [5/8] 0, 128
        %3062 = vxpose.xlu0.c.b16.cont [6/8] 0, 128
        %3063 = vxpose.xlu0.c.b16.cont [7/8] 0, 128
        %3064 = vxpose.xlu0.c.b16.end [8/8] 0, 128
        %v3065 = vpop.trf.xlu0
        %v3066 = vpop.trf.xlu0
        %v3067 = vpop.trf.xlu0
        %v3068 = vpop.trf.xlu0
        %v3069 = vpop.trf.xlu0
        %v3070 = vpop.trf.xlu0
        %v3071 = vpop.trf.xlu0
        %v3072 = vpop.trf.xlu0
        %3073 = vxpose.xlu0.c.b16.start [1/8] %v2960, 128
        %3074 = vxpose.xlu0.c.b16.cont [2/8] 0, 128
        %3075 = vxpose.xlu0.c.b16.cont [3/8] 0, 128
        %3076 = vxpose.xlu0.c.b16.cont [4/8] 0, 128
        %3077 = vxpose.xlu0.c.b16.cont [5/8] 0, 128
        %3078 = vxpose.xlu0.c.b16.cont [6/8] 0, 128
        %3079 = vxpose.xlu0.c.b16.cont [7/8] 0, 128
        %3080 = vxpose.xlu0.c.b16.end [8/8] 0, 128
        %v3081 = vpop.trf.xlu0
        %v3082 = vpop.trf.xlu0
        %v3083 = vpop.trf.xlu0
        %v3084 = vpop.trf.xlu0
        %v3085 = vpop.trf.xlu0
        %v3086 = vpop.trf.xlu0
        %v3087 = vpop.trf.xlu0
        %v3088 = vpop.trf.xlu0
        %v3089 = vrot.slane %v3033, 4
        %v3090 = vsel %vm646, %v3089, %v2969
        %v3092 = vunpack.c.l.s4 1983009808
        %v3093 = vunpack.c.0.s8 %v3092
        %v3094 = vperm.slane %v3090, %v3093
        %v3095 = vrot.slane %v3065, 4
        %v3096 = vsel %vm646, %v3095, %v3001
        %v3098 = vunpack.c.l.s4 1983009808
        %v3099 = vunpack.c.0.s8 %v3098
        %v3100 = vperm.slane %v3096, %v3099
        %v3101 = vrot.slane %v3100, 4
        %v3102 = vsel %vm646, %v3101, %v3094
        %v3103 = vrot.slane %v3094, 4
        %v3104 = vsel %vm646, %v3100, %v3103
        %v3106 = vunpack.c.l.s4 1934713408
        %v3107 = vunpack.c.0.s8 %v3106
        %v3108 = vperm.slane %v3102, %v3107
        %v3110 = vunpack.c.l.s4 1934713408
        %v3111 = vunpack.c.0.s8 %v3110
        %v3112 = vperm.slane %v3104, %v3111
        %v3113 = vrot.slane %v3108, 4
        %v3114 = vsel %vm646, 0, %v3113
        %v3115 = vrot.slane %v3112, 4
        %v3116 = vsel %vm646, 0, %v3115
        %v3117 = vrot.slane %v3049, 4
        %v3118 = vsel %vm646, %v3117, %v2985
        %v3120 = vunpack.c.l.s4 1983009808
        %v3121 = vunpack.c.0.s8 %v3120
        %v3122 = vperm.slane %v3118, %v3121
        %v3123 = vrot.slane %v3081, 4
        %v3124 = vsel %vm646, %v3123, %v3017
        %v3126 = vunpack.c.l.s4 1983009808
        %v3127 = vunpack.c.0.s8 %v3126
        %v3128 = vperm.slane %v3124, %v3127
        %v3129 = vrot.slane %v3128, 4
        %v3130 = vsel %vm646, %v3129, %v3122
        %v3131 = vrot.slane %v3122, 4
        %v3132 = vsel %vm646, %v3128, %v3131
        %v3134 = vunpack.c.l.s4 1934713408
        %v3135 = vunpack.c.0.s8 %v3134
        %v3136 = vperm.slane %v3130, %v3135
        %v3138 = vunpack.c.l.s4 1934713408
        %v3139 = vunpack.c.0.s8 %v3138
        %v3140 = vperm.slane %v3132, %v3139
        %v3141 = vrot.slane %v3136, 4
        %v3142 = vsel %vm646, 0, %v3141
        %v3143 = vrot.slane %v3140, 4
        %v3144 = vsel %vm646, 0, %v3143
        %v3147 = vpack.i.b16 %v3136, %v3108
        %v3149 = vshrl.u32 %v3108, 16
        %v3150 = vshrl.u32 %v3136, 16
        %v3151 = vpack.i.b16 %v3150, %v3149
        %v3155 = vpack.i.b16 %v3142, %v3114
        %v3157 = vshrl.u32 %v3114, 16
        %v3158 = vshrl.u32 %v3142, 16
        %v3159 = vpack.i.b16 %v3158, %v3157
        %v3163 = vpack.i.b16 %v3140, %v3112
        %v3165 = vshrl.u32 %v3112, 16
        %v3166 = vshrl.u32 %v3140, 16
        %v3167 = vpack.i.b16 %v3166, %v3165
        %v3171 = vpack.i.b16 %v3144, %v3116
        %v3173 = vshrl.u32 %v3116, 16
        %v3174 = vshrl.u32 %v3144, 16
        %v3175 = vpack.i.b16 %v3174, %v3173
        %3177 = vxpose.xlu0.c.b16.start [1/8] %v3147, 128
        %3178 = vxpose.xlu0.c.b16.cont [2/8] 0, 128
        %3179 = vxpose.xlu0.c.b16.cont [3/8] 0, 128
        %3180 = vxpose.xlu0.c.b16.cont [4/8] 0, 128
        %3181 = vxpose.xlu0.c.b16.cont [5/8] 0, 128
        %3182 = vxpose.xlu0.c.b16.cont [6/8] 0, 128
        %3183 = vxpose.xlu0.c.b16.cont [7/8] 0, 128
        %3184 = vxpose.xlu0.c.b16.end [8/8] 0, 128
        %v3185 = vpop.trf.xlu0
        %v3186 = vpop.trf.xlu0
        %v3187 = vpop.trf.xlu0
        %v3188 = vpop.trf.xlu0
        %v3189 = vpop.trf.xlu0
        %v3190 = vpop.trf.xlu0
        %v3191 = vpop.trf.xlu0
        %v3192 = vpop.trf.xlu0
        %3193 = vxpose.xlu0.c.b16.start [1/8] %v3151, 128
        %3194 = vxpose.xlu0.c.b16.cont [2/8] 0, 128
        %3195 = vxpose.xlu0.c.b16.cont [3/8] 0, 128
        %3196 = vxpose.xlu0.c.b16.cont [4/8] 0, 128
        %3197 = vxpose.xlu0.c.b16.cont [5/8] 0, 128
        %3198 = vxpose.xlu0.c.b16.cont [6/8] 0, 128
        %3199 = vxpose.xlu0.c.b16.cont [7/8] 0, 128
        %3200 = vxpose.xlu0.c.b16.end [8/8] 0, 128
        %v3201 = vpop.trf.xlu0
        %v3202 = vpop.trf.xlu0
        %v3203 = vpop.trf.xlu0
        %v3204 = vpop.trf.xlu0
        %v3205 = vpop.trf.xlu0
        %v3206 = vpop.trf.xlu0
        %v3207 = vpop.trf.xlu0
        %v3208 = vpop.trf.xlu0
        %3209 = vxpose.xlu0.c.b16.start [1/8] %v3155, 128
        %3210 = vxpose.xlu0.c.b16.cont [2/8] 0, 128
        %3211 = vxpose.xlu0.c.b16.cont [3/8] 0, 128
        %3212 = vxpose.xlu0.c.b16.cont [4/8] 0, 128
        %3213 = vxpose.xlu0.c.b16.cont [5/8] 0, 128
        %3214 = vxpose.xlu0.c.b16.cont [6/8] 0, 128
        %3215 = vxpose.xlu0.c.b16.cont [7/8] 0, 128
        %3216 = vxpose.xlu0.c.b16.end [8/8] 0, 128
        %v3217 = vpop.trf.xlu0
        %v3218 = vpop.trf.xlu0
        %v3219 = vpop.trf.xlu0
        %v3220 = vpop.trf.xlu0
        %v3221 = vpop.trf.xlu0
        %v3222 = vpop.trf.xlu0
        %v3223 = vpop.trf.xlu0
        %v3224 = vpop.trf.xlu0
        %3225 = vxpose.xlu0.c.b16.start [1/8] %v3159, 128
        %3226 = vxpose.xlu0.c.b16.cont [2/8] 0, 128
        %3227 = vxpose.xlu0.c.b16.cont [3/8] 0, 128
        %3228 = vxpose.xlu0.c.b16.cont [4/8] 0, 128
        %3229 = vxpose.xlu0.c.b16.cont [5/8] 0, 128
        %3230 = vxpose.xlu0.c.b16.cont [6/8] 0, 128
        %3231 = vxpose.xlu0.c.b16.cont [7/8] 0, 128
        %3232 = vxpose.xlu0.c.b16.end [8/8] 0, 128
        %v3233 = vpop.trf.xlu0
        %v3234 = vpop.trf.xlu0
        %v3235 = vpop.trf.xlu0
        %v3236 = vpop.trf.xlu0
        %v3237 = vpop.trf.xlu0
        %v3238 = vpop.trf.xlu0
        %v3239 = vpop.trf.xlu0
        %v3240 = vpop.trf.xlu0
        %3241 = vxpose.xlu0.c.b16.start [1/8] %v3163, 128
        %3242 = vxpose.xlu0.c.b16.cont [2/8] 0, 128
        %3243 = vxpose.xlu0.c.b16.cont [3/8] 0, 128
        %3244 = vxpose.xlu0.c.b16.cont [4/8] 0, 128
        %3245 = vxpose.xlu0.c.b16.cont [5/8] 0, 128
        %3246 = vxpose.xlu0.c.b16.cont [6/8] 0, 128
        %3247 = vxpose.xlu0.c.b16.cont [7/8] 0, 128
        %3248 = vxpose.xlu0.c.b16.end [8/8] 0, 128
        %v3249 = vpop.trf.xlu0
        %v3250 = vpop.trf.xlu0
        %v3251 = vpop.trf.xlu0
        %v3252 = vpop.trf.xlu0
        %v3253 = vpop.trf.xlu0
        %v3254 = vpop.trf.xlu0
        %v3255 = vpop.trf.xlu0
        %v3256 = vpop.trf.xlu0
        %3257 = vxpose.xlu0.c.b16.start [1/8] %v3167, 128
        %3258 = vxpose.xlu0.c.b16.cont [2/8] 0, 128
        %3259 = vxpose.xlu0.c.b16.cont [3/8] 0, 128
        %3260 = vxpose.xlu0.c.b16.cont [4/8] 0, 128
        %3261 = vxpose.xlu0.c.b16.cont [5/8] 0, 128
        %3262 = vxpose.xlu0.c.b16.cont [6/8] 0, 128
        %3263 = vxpose.xlu0.c.b16.cont [7/8] 0, 128
        %3264 = vxpose.xlu0.c.b16.end [8/8] 0, 128
        %v3265 = vpop.trf.xlu0
        %v3266 = vpop.trf.xlu0
        %v3267 = vpop.trf.xlu0
        %v3268 = vpop.trf.xlu0
        %v3269 = vpop.trf.xlu0
        %v3270 = vpop.trf.xlu0
        %v3271 = vpop.trf.xlu0
        %v3272 = vpop.trf.xlu0
        %3273 = vxpose.xlu0.c.b16.start [1/8] %v3171, 128
        %3274 = vxpose.xlu0.c.b16.cont [2/8] 0, 128
        %3275 = vxpose.xlu0.c.b16.cont [3/8] 0, 128
        %3276 = vxpose.xlu0.c.b16.cont [4/8] 0, 128
        %3277 = vxpose.xlu0.c.b16.cont [5/8] 0, 128
        %3278 = vxpose.xlu0.c.b16.cont [6/8] 0, 128
        %3279 = vxpose.xlu0.c.b16.cont [7/8] 0, 128
        %3280 = vxpose.xlu0.c.b16.end [8/8] 0, 128
        %v3281 = vpop.trf.xlu0
        %v3282 = vpop.trf.xlu0
        %v3283 = vpop.trf.xlu0
        %v3284 = vpop.trf.xlu0
        %v3285 = vpop.trf.xlu0
        %v3286 = vpop.trf.xlu0
        %v3287 = vpop.trf.xlu0
        %v3288 = vpop.trf.xlu0
        %3289 = vxpose.xlu0.c.b16.start [1/8] %v3175, 128
        %3290 = vxpose.xlu0.c.b16.cont [2/8] 0, 128
        %3291 = vxpose.xlu0.c.b16.cont [3/8] 0, 128
        %3292 = vxpose.xlu0.c.b16.cont [4/8] 0, 128
        %3293 = vxpose.xlu0.c.b16.cont [5/8] 0, 128
        %3294 = vxpose.xlu0.c.b16.cont [6/8] 0, 128
        %3295 = vxpose.xlu0.c.b16.cont [7/8] 0, 128
        %3296 = vxpose.xlu0.c.b16.end [8/8] 0, 128
        %v3297 = vpop.trf.xlu0
        %v3298 = vpop.trf.xlu0
        %v3299 = vpop.trf.xlu0
        %v3300 = vpop.trf.xlu0
        %v3301 = vpop.trf.xlu0
        %v3302 = vpop.trf.xlu0
        %v3303 = vpop.trf.xlu0
        %v3304 = vpop.trf.xlu0
        %v3305 = vrot.slane %v3249, 4
        %v3306 = vsel %vm646, %v3305, %v3185
        %v3308 = vunpack.c.l.s4 1983009808
        %v3309 = vunpack.c.0.s8 %v3308
        %v3310 = vperm.slane %v3306, %v3309
        %v3311 = vrot.slane %v3281, 4
        %v3312 = vsel %vm646, %v3311, %v3217
        %v3314 = vunpack.c.l.s4 1983009808
        %v3315 = vunpack.c.0.s8 %v3314
        %v3316 = vperm.slane %v3312, %v3315
        %v3317 = vrot.slane %v3316, 4
        %v3318 = vsel %vm646, %v3317, %v3310
        %v3320 = vunpack.c.l.s4 1934713408
        %v3321 = vunpack.c.0.s8 %v3320
        %v3322 = vperm.slane %v3318, %v3321
        %v3323 = vrot.slane %v3322, 4
        %v3324 = vsel %vm646, 0, %v3323
        %v3325 = vrot.slane %v3265, 4
        %v3326 = vsel %vm646, %v3325, %v3201
        %v3328 = vunpack.c.l.s4 1983009808
        %v3329 = vunpack.c.0.s8 %v3328
        %v3330 = vperm.slane %v3326, %v3329
        %v3331 = vrot.slane %v3297, 4
        %v3332 = vsel %vm646, %v3331, %v3233
        %v3334 = vunpack.c.l.s4 1983009808
        %v3335 = vunpack.c.0.s8 %v3334
        %v3336 = vperm.slane %v3332, %v3335
        %v3337 = vrot.slane %v3336, 4
        %v3338 = vsel %vm646, %v3337, %v3330
        %v3340 = vunpack.c.l.s4 1934713408
        %v3341 = vunpack.c.0.s8 %v3340
        %v3342 = vperm.slane %v3338, %v3341
        %v3343 = vrot.slane %v3342, 4
        %v3344 = vsel %vm646, 0, %v3343
        %v3347 = vpack.i.b16 %v3342, %v3322
        %v3348 = vshrl.u32 %v3322, 16
        %v3349 = vshrl.u32 %v3342, 16
        %v3350 = vpack.i.b16 %v3349, %v3348
        %v3353 = vpack.i.b16 %v3344, %v3324
        %v3354 = vshrl.u32 %v3324, 16
        %v3355 = vshrl.u32 %v3344, 16
        %v3356 = vpack.i.b16 %v3355, %v3354
        %v3358 = vsel %vm1094, %v3347, 0
        %v3361 = vsel %vm1094, %v2949, 0
        %3363 = vmatpush.bf16.xpose.msra.mxu0 0
        %3364 = vmatpush.bf16.xpose.msra.mxu0 0
        %3365 = vmatpush.bf16.xpose.msra.mxu0 0
        %3366 = vmatpush.bf16.xpose.msra.mxu0 0
        %3367 = vmatpush.bf16.xpose.msra.mxu0 0
        %3368 = vmatpush.bf16.xpose.msra.mxu0 0
        %3369 = vmatpush.bf16.xpose.msra.mxu0 0
        %3370 = vmatpush.bf16.xpose.msra.mxu0 %v3361
        %3371 = vmatmul.bf16.gmra.mxu0 %v3358
        %v3372 = vpop.f32.mrf.mxu0
        %v3373 = vadd.f32 0.0, %v3372
        %v3374 = vpop.f32.mrf.mxu0
        %3375 = vdwg.mxu0
        %v3377 = vsel %vm1094, %v3350, 0
        %v3380 = vsel %vm1094, %v2950, 0
        %3382 = vmatpush.bf16.xpose.msra.mxu0 0
        %3383 = vmatpush.bf16.xpose.msra.mxu0 0
        %3384 = vmatpush.bf16.xpose.msra.mxu0 0
        %3385 = vmatpush.bf16.xpose.msra.mxu0 0
        %3386 = vmatpush.bf16.xpose.msra.mxu0 0
        %3387 = vmatpush.bf16.xpose.msra.mxu0 0
        %3388 = vmatpush.bf16.xpose.msra.mxu0 0
        %3389 = vmatpush.bf16.xpose.msra.mxu0 %v3380
        %3390 = vmatmul.bf16.gmra.mxu0 %v3377
        %v3391 = vpop.f32.mrf.mxu0
        %v3392 = vadd.f32 0.0, %v3391
        %v3393 = vpop.f32.mrf.mxu0
        %3394 = vdwg.mxu0
        %v3396 = vsel %vm1094, %v3353, 0
        %v3399 = vsel %vm1094, %v2951, 0
        %3401 = vmatpush.bf16.xpose.msra.mxu0 0
        %3402 = vmatpush.bf16.xpose.msra.mxu0 0
        %3403 = vmatpush.bf16.xpose.msra.mxu0 0
        %3404 = vmatpush.bf16.xpose.msra.mxu0 0
        %3405 = vmatpush.bf16.xpose.msra.mxu0 0
        %3406 = vmatpush.bf16.xpose.msra.mxu0 0
        %3407 = vmatpush.bf16.xpose.msra.mxu0 0
        %3408 = vmatpush.bf16.xpose.msra.mxu0 %v3399
        %3409 = vmatmul.bf16.gmra.mxu0 %v3396
        %v3410 = vpop.f32.mrf.mxu0
        %v3411 = vadd.f32 0.0, %v3410
        %v3412 = vpop.f32.mrf.mxu0
        %3413 = vdwg.mxu0
        %v3415 = vsel %vm1094, %v3356, 0
        %v3418 = vsel %vm1094, %v2952, 0
        %3420 = vmatpush.bf16.xpose.msra.mxu0 0
        %3421 = vmatpush.bf16.xpose.msra.mxu0 0
        %3422 = vmatpush.bf16.xpose.msra.mxu0 0
        %3423 = vmatpush.bf16.xpose.msra.mxu0 0
        %3424 = vmatpush.bf16.xpose.msra.mxu0 0
        %3425 = vmatpush.bf16.xpose.msra.mxu0 0
        %3426 = vmatpush.bf16.xpose.msra.mxu0 0
        %3427 = vmatpush.bf16.xpose.msra.mxu0 %v3418
        %3428 = vmatmul.bf16.gmra.mxu0 %v3415
        %v3429 = vpop.f32.mrf.mxu0
        %v3430 = vadd.f32 0.0, %v3429
        %v3431 = vpop.f32.mrf.mxu0
        %3432 = vdwg.mxu0
        %3433 = vxpose.xlu0.b32.start [1/16] %v3373, 128
        %3434 = vxpose.xlu0.b32.cont [2/16] 0.0, 128
        %3435 = vxpose.xlu0.b32.cont [3/16] 0.0, 128
        %3436 = vxpose.xlu0.b32.cont [4/16] 0.0, 128
        %3437 = vxpose.xlu0.b32.cont [5/16] 0.0, 128
        %3438 = vxpose.xlu0.b32.cont [6/16] 0.0, 128
        %3439 = vxpose.xlu0.b32.cont [7/16] 0.0, 128
        %3440 = vxpose.xlu0.b32.cont [8/16] 0.0, 128
        %3441 = vxpose.xlu0.b32.cont [9/16] 0.0, 128
        %3442 = vxpose.xlu0.b32.cont [10/16] 0.0, 128
        %3443 = vxpose.xlu0.b32.cont [11/16] 0.0, 128
        %3444 = vxpose.xlu0.b32.cont [12/16] 0.0, 128
        %3445 = vxpose.xlu0.b32.cont [13/16] 0.0, 128
        %3446 = vxpose.xlu0.b32.cont [14/16] 0.0, 128
        %3447 = vxpose.xlu0.b32.cont [15/16] 0.0, 128
        %3448 = vxpose.xlu0.b32.end [16/16] 0.0, 128
        %v3449 = vpop.trf.xlu0
        %v3450 = vpop.trf.xlu0
        %v3451 = vpop.trf.xlu0
        %v3452 = vpop.trf.xlu0
        %v3453 = vpop.trf.xlu0
        %v3454 = vpop.trf.xlu0
        %v3455 = vpop.trf.xlu0
        %v3456 = vpop.trf.xlu0
        %v3457 = vpop.trf.xlu0
        %v3458 = vpop.trf.xlu0
        %v3459 = vpop.trf.xlu0
        %v3460 = vpop.trf.xlu0
        %v3461 = vpop.trf.xlu0
        %v3462 = vpop.trf.xlu0
        %v3463 = vpop.trf.xlu0
        %v3464 = vpop.trf.xlu0
        %3465 = vxpose.xlu0.b32.start [1/16] %v3392, 128
        %3466 = vxpose.xlu0.b32.cont [2/16] 0.0, 128
        %3467 = vxpose.xlu0.b32.cont [3/16] 0.0, 128
        %3468 = vxpose.xlu0.b32.cont [4/16] 0.0, 128
        %3469 = vxpose.xlu0.b32.cont [5/16] 0.0, 128
        %3470 = vxpose.xlu0.b32.cont [6/16] 0.0, 128
        %3471 = vxpose.xlu0.b32.cont [7/16] 0.0, 128
        %3472 = vxpose.xlu0.b32.cont [8/16] 0.0, 128
        %3473 = vxpose.xlu0.b32.cont [9/16] 0.0, 128
        %3474 = vxpose.xlu0.b32.cont [10/16] 0.0, 128
        %3475 = vxpose.xlu0.b32.cont [11/16] 0.0, 128
        %3476 = vxpose.xlu0.b32.cont [12/16] 0.0, 128
        %3477 = vxpose.xlu0.b32.cont [13/16] 0.0, 128
        %3478 = vxpose.xlu0.b32.cont [14/16] 0.0, 128
        %3479 = vxpose.xlu0.b32.cont [15/16] 0.0, 128
        %3480 = vxpose.xlu0.b32.end [16/16] 0.0, 128
        %v3481 = vpop.trf.xlu0
        %v3482 = vpop.trf.xlu0
        %v3483 = vpop.trf.xlu0
        %v3484 = vpop.trf.xlu0
        %v3485 = vpop.trf.xlu0
        %v3486 = vpop.trf.xlu0
        %v3487 = vpop.trf.xlu0
        %v3488 = vpop.trf.xlu0
        %v3489 = vpop.trf.xlu0
        %v3490 = vpop.trf.xlu0
        %v3491 = vpop.trf.xlu0
        %v3492 = vpop.trf.xlu0
        %v3493 = vpop.trf.xlu0
        %v3494 = vpop.trf.xlu0
        %v3495 = vpop.trf.xlu0
        %v3496 = vpop.trf.xlu0
        %3497 = vxpose.xlu0.b32.start [1/16] %v3411, 128
        %3498 = vxpose.xlu0.b32.cont [2/16] 0.0, 128
        %3499 = vxpose.xlu0.b32.cont [3/16] 0.0, 128
        %3500 = vxpose.xlu0.b32.cont [4/16] 0.0, 128
        %3501 = vxpose.xlu0.b32.cont [5/16] 0.0, 128
        %3502 = vxpose.xlu0.b32.cont [6/16] 0.0, 128
        %3503 = vxpose.xlu0.b32.cont [7/16] 0.0, 128
        %3504 = vxpose.xlu0.b32.cont [8/16] 0.0, 128
        %3505 = vxpose.xlu0.b32.cont [9/16] 0.0, 128
        %3506 = vxpose.xlu0.b32.cont [10/16] 0.0, 128
        %3507 = vxpose.xlu0.b32.cont [11/16] 0.0, 128
        %3508 = vxpose.xlu0.b32.cont [12/16] 0.0, 128
        %3509 = vxpose.xlu0.b32.cont [13/16] 0.0, 128
        %3510 = vxpose.xlu0.b32.cont [14/16] 0.0, 128
        %3511 = vxpose.xlu0.b32.cont [15/16] 0.0, 128
        %3512 = vxpose.xlu0.b32.end [16/16] 0.0, 128
        %v3513 = vpop.trf.xlu0
        %v3514 = vpop.trf.xlu0
        %v3515 = vpop.trf.xlu0
        %v3516 = vpop.trf.xlu0
        %v3517 = vpop.trf.xlu0
        %v3518 = vpop.trf.xlu0
        %v3519 = vpop.trf.xlu0
        %v3520 = vpop.trf.xlu0
        %v3521 = vpop.trf.xlu0
        %v3522 = vpop.trf.xlu0
        %v3523 = vpop.trf.xlu0
        %v3524 = vpop.trf.xlu0
        %v3525 = vpop.trf.xlu0
        %v3526 = vpop.trf.xlu0
        %v3527 = vpop.trf.xlu0
        %v3528 = vpop.trf.xlu0
        %3529 = vxpose.xlu0.b32.start [1/16] %v3430, 128
        %3530 = vxpose.xlu0.b32.cont [2/16] 0.0, 128
        %3531 = vxpose.xlu0.b32.cont [3/16] 0.0, 128
        %3532 = vxpose.xlu0.b32.cont [4/16] 0.0, 128
        %3533 = vxpose.xlu0.b32.cont [5/16] 0.0, 128
        %3534 = vxpose.xlu0.b32.cont [6/16] 0.0, 128
        %3535 = vxpose.xlu0.b32.cont [7/16] 0.0, 128
        %3536 = vxpose.xlu0.b32.cont [8/16] 0.0, 128
        %3537 = vxpose.xlu0.b32.cont [9/16] 0.0, 128
        %3538 = vxpose.xlu0.b32.cont [10/16] 0.0, 128
        %3539 = vxpose.xlu0.b32.cont [11/16] 0.0, 128
        %3540 = vxpose.xlu0.b32.cont [12/16] 0.0, 128
        %3541 = vxpose.xlu0.b32.cont [13/16] 0.0, 128
        %3542 = vxpose.xlu0.b32.cont [14/16] 0.0, 128
        %3543 = vxpose.xlu0.b32.cont [15/16] 0.0, 128
        %3544 = vxpose.xlu0.b32.end [16/16] 0.0, 128
        %v3545 = vpop.trf.xlu0
        %v3546 = vpop.trf.xlu0
        %v3547 = vpop.trf.xlu0
        %v3548 = vpop.trf.xlu0
        %v3549 = vpop.trf.xlu0
        %v3550 = vpop.trf.xlu0
        %v3551 = vpop.trf.xlu0
        %v3552 = vpop.trf.xlu0
        %v3553 = vpop.trf.xlu0
        %v3554 = vpop.trf.xlu0
        %v3555 = vpop.trf.xlu0
        %v3556 = vpop.trf.xlu0
        %v3557 = vpop.trf.xlu0
        %v3558 = vpop.trf.xlu0
        %v3559 = vpop.trf.xlu0
        %v3560 = vpop.trf.xlu0
        %v3561 = vrot.slane %v3513, 4
        %v3562 = vsel %vm389, %v3561, %v3449
        %v3563 = vrot.slane %v3449, 4
        %v3564 = vsel %vm389, %v3513, %v3563
        %v3566 = vunpack.c.l.s4 1983009808
        %v3567 = vunpack.c.0.s8 %v3566
        %v3568 = vperm.slane %v3562, %v3567
        %v3570 = vunpack.c.l.s4 1983009808
        %v3571 = vunpack.c.0.s8 %v3570
        %v3572 = vperm.slane %v3564, %v3571
        %v3573 = vrot.slane %v3545, 4
        %v3574 = vsel %vm389, %v3573, %v3481
        %v3575 = vrot.slane %v3481, 4
        %v3576 = vsel %vm389, %v3545, %v3575
        %v3578 = vunpack.c.l.s4 1983009808
        %v3579 = vunpack.c.0.s8 %v3578
        %v3580 = vperm.slane %v3574, %v3579
        %v3582 = vunpack.c.l.s4 1983009808
        %v3583 = vunpack.c.0.s8 %v3582
        %v3584 = vperm.slane %v3576, %v3583
        %v3585 = vrot.slane %v3580, 4
        %v3586 = vsel %vm389, %v3585, %v3568
        %v3587 = vrot.slane %v3568, 4
        %v3588 = vsel %vm389, %v3580, %v3587
        %v3590 = vunpack.c.l.s4 1934713408
        %v3591 = vunpack.c.0.s8 %v3590
        %v3592 = vperm.slane %v3586, %v3591
        %v3594 = vunpack.c.l.s4 1934713408
        %v3595 = vunpack.c.0.s8 %v3594
        %v3596 = vperm.slane %v3588, %v3595
        %v3597 = vrot.slane %v3584, 4
        %v3598 = vsel %vm389, %v3597, %v3572
        %v3599 = vrot.slane %v3572, 4
        %v3600 = vsel %vm389, %v3584, %v3599
        %v3602 = vunpack.c.l.s4 1934713408
        %v3603 = vunpack.c.0.s8 %v3602
        %v3604 = vperm.slane %v3598, %v3603
        %v3606 = vunpack.c.l.s4 1934713408
        %v3607 = vunpack.c.0.s8 %v3606
        %v3608 = vperm.slane %v3600, %v3607
        %v3609 = vrot.slane %v3592, 4
        %v3610 = vsel %vm389, 0.0, %v3609
        %v3611 = vrot.slane %v3596, 4
        %v3612 = vsel %vm389, 0.0, %v3611
        %v3613 = vrot.slane %v3604, 4
        %v3614 = vsel %vm389, 0.0, %v3613
        %v3615 = vrot.slane %v3608, 4
        %v3616 = vsel %vm389, 0.0, %v3615
        %v3617 = vsel %vm389, %v3611, %v3592
        %v3619 = vunpack.c.l.s4 1983009808
        %v3620 = vunpack.c.0.s8 %v3619
        %v3621 = vperm.slane %v3617, %v3620
        %v3622 = vrot.slane %v3612, 4
        %v3623 = vsel %vm389, %v3622, %v3610
        %v3625 = vunpack.c.l.s4 1983009808
        %v3626 = vunpack.c.0.s8 %v3625
        %v3627 = vperm.slane %v3623, %v3626
        %v3628 = vsel %vm389, %v3615, %v3604
        %v3630 = vunpack.c.l.s4 1983009808
        %v3631 = vunpack.c.0.s8 %v3630
        %v3632 = vperm.slane %v3628, %v3631
        %v3633 = vrot.slane %v3616, 4
        %v3634 = vsel %vm389, %v3633, %v3614
        %v3636 = vunpack.c.l.s4 1983009808
        %v3637 = vunpack.c.0.s8 %v3636
        %v3638 = vperm.slane %v3634, %v3637
        %v3639 = vrot.slane %v3627, 4
        %v3640 = vsel %vm389, %v3639, %v3621
        %v3641 = vrot.slane %v3621, 4
        %v3642 = vsel %vm389, %v3627, %v3641
        %v3644 = vunpack.c.l.s4 1934713408
        %v3645 = vunpack.c.0.s8 %v3644
        %v3646 = vperm.slane %v3640, %v3645
        %v3648 = vunpack.c.l.s4 1934713408
        %v3649 = vunpack.c.0.s8 %v3648
        %v3650 = vperm.slane %v3642, %v3649
        %v3651 = vrot.slane %v3638, 4
        %v3652 = vsel %vm389, %v3651, %v3632
        %v3653 = vrot.slane %v3632, 4
        %v3654 = vsel %vm389, %v3638, %v3653
        %v3656 = vunpack.c.l.s4 1934713408
        %v3657 = vunpack.c.0.s8 %v3656
        %v3658 = vperm.slane %v3652, %v3657
        %v3660 = vunpack.c.l.s4 1934713408
        %v3661 = vunpack.c.0.s8 %v3660
        %v3662 = vperm.slane %v3654, %v3661
        %v3663 = vrot.slane %v3658, 4
        %v3664 = vsel %vm389, %v3663, %v3646
        %v3665 = vrot.slane %v3646, 4
        %v3666 = vsel %vm389, %v3658, %v3665
        %v3667 = vrot.slane %v3662, 4
        %v3668 = vsel %vm389, %v3667, %v3650
        %v3669 = vrot.slane %v3650, 4
        %v3670 = vsel %vm389, %v3662, %v3669
        %3672 = vrot.lane.b32.xlu0 %v3666, 8
        %v3673 = vpop.permute.xlu0 %3672
        %3676 = vrot.lane.b32.xlu0 %v3668, 16
        %v3677 = vpop.permute.xlu0 %3676
        %3680 = vrot.lane.b32.xlu0 %v3670, 24
        %v3681 = vpop.permute.xlu0 %3680
        %v3683 = vsel %vm1094, %v3664, %v3673
        %v3684 = vsel %vm307, %v3683, %v3677
        %v3685 = vsel %vm1956, %v3684, %v3681
        %v3686 = vpack.c.bf16 %v3685, %v3685
        %v3687 = vperm.slane %v2073, 0
        %v3692 = vunpack.c.l.b16 %v2066
        %v3693 = vunpack.c.l.b16 %v2067
        %v3694 = vunpack.c.l.b16 %v2068
        %v3695 = vunpack.c.l.b16 %v2069
        %v3696 = vpack.c.b16 %v3693, %v3692
        %v3697 = vpack.c.b16 %v3695, %v3694
        %v3701 = vsel %vm361, %v3686, 0
        %3703 = vmatpush.bf16.msra.mxu0 0
        %3704 = vmatpush.bf16.msra.mxu0 0
        %3705 = vmatpush.bf16.msra.mxu0 0
        %3706 = vmatpush.bf16.msra.mxu0 0
        %3707 = vmatpush.bf16.msra.mxu0 0
        %3708 = vmatpush.bf16.msra.mxu0 0
        %3709 = vmatpush.bf16.msra.mxu0 %v3697
        %3710 = vmatpush.bf16.msra.mxu0 %v3696
        %3711 = vmatmul.bf16.gmra.mxu0 %v3701
        %v3712 = vpop.f32.mrf.mxu0
        %v3713 = vadd.f32 %v3687, %v3712
        %v3714 = vpop.f32.mrf.mxu0
        %3715 = vdwg.mxu0
        %v3716 = vadd.f32 %v2050, %v3713
        %v3717 = vld [vmem:[%s3 + $0xa8] sm:$0x1]
        %v3718 = vld [vmem:[%s3 + $0xb0] sm:$0x1]
        %v3719 = vsel %vm361, %v3716, 0.0
        %3720 = vadd.xlane.f32.xlu0 %v3719
        %v3721 = vpop.xlane.xlu0 %3720
        %v3722 = vmul.f32 %v3721, %v1998
        %v3723 = vsub.f32 %v3716, %v3722
        %v3724 = vmul.f32 %v3723, %v3723
        %v3725 = vsel %vm361, %v3724, 0.0
        %3726 = vadd.xlane.f32.xlu0 %v3725
        %v3727 = vpop.xlane.xlu0 %3726
        %v3728 = vmul.f32 %v3727, %v1998
        %v3729 = vadd.f32 %v3728, 1e-05
        %v3730 = vrsqrt.pop %v3729
        %v3731 = vmul.f32 %v3730, %v3729
        %v3732 = vmul.f32 %v3731, %v3730
        %v3733 = vmul.f32 0.5, %v3732
        %v3734 = vsub.f32 1.5, %v3733
        %v3735 = vmul.f32 %v3730, %v3734
        %vm3736 = vweird.f32 %v3729
        %vm3737 = vweird.f32 %v3730
        %vm3738 = vmor %vm3736, %vm3737
        %v3739 = vsel %vm3738, %v3730, %v3735
        %v3740 = vmul.f32 %v3723, %v3739
        %v3741 = vperm.slane %v3717, 0
        %v3742 = vmul.f32 %v3740, %v3741
        %v3743 = vperm.slane %v3718, 0
        %v3744 = vadd.f32 %v3742, %v3743
        %v3745 = vld [vmem:[#allocation5 + $0x108] sm:$0xf]
        %v3746 = vld [vmem:[#allocation5 + $0x10c] sm:$0xf]
        %v3747 = vld [vmem:[#allocation5 + $0x110] sm:$0xf]
        %v3748 = vld [vmem:[#allocation5 + $0x114] sm:$0xf]
        %v3749 = vld [vmem:[%s3 + $0xc8] sm:$0x1]
        %v3750 = vpack.c.bf16 %v3744, %v3744
        %v3751 = vperm.slane %v3749, 0
        %v3756 = vunpack.c.l.b16 %v3745
        %v3757 = vunpack.c.l.b16 %v3746
        %v3758 = vunpack.c.l.b16 %v3747
        %v3759 = vunpack.c.l.b16 %v3748
        %v3760 = vpack.c.b16 %v3757, %v3756
        %v3761 = vpack.c.b16 %v3759, %v3758
        %v3765 = vsel %vm361, %v3750, 0
        %3767 = vmatpush.bf16.msra.mxu0 0
        %3768 = vmatpush.bf16.msra.mxu0 0
        %3769 = vmatpush.bf16.msra.mxu0 0
        %3770 = vmatpush.bf16.msra.mxu0 0
        %3771 = vmatpush.bf16.msra.mxu0 0
        %3772 = vmatpush.bf16.msra.mxu0 0
        %3773 = vmatpush.bf16.msra.mxu0 %v3761
        %3774 = vmatpush.bf16.msra.mxu0 %v3760
        %3775 = vmatmul.bf16.gmra.mxu0 %v3765
        %v3776 = vpop.f32.mrf.mxu0
        %v3777 = vadd.f32 %v3751, %v3776
        %v3778 = vpop.f32.mrf.mxu0
        %3779 = vdwg.mxu0
        %v3780 = vmul.f32 %v3777, %v3777
        %v3781 = vmul.f32 %v3777, %v3780
        %v3782 = vmul.f32 %v3781, 0.044715
        %v3783 = vadd.f32 %v3777, %v3782
        %v3784 = vmul.f32 %v3783, 0.7978846
        %v3785 = vtanh.pop %v3784
        %v3786 = vadd.f32 %v3785, 1.0
        %v3787 = vmul.f32 %v3786, 0.5
        %v3788 = vmul.f32 %v3777, %v3787
        %v3789 = vld [vmem:[#allocation5 + $0x118] sm:$0xf]
        %v3790 = vld [vmem:[#allocation5 + $0x11c] sm:$0xf]
        %v3791 = vld [vmem:[#allocation5 + $0x120] sm:$0xf]
        %v3792 = vld [vmem:[#allocation5 + $0x124] sm:$0xf]
        %v3793 = vld [vmem:[#allocation5 + $0x128] sm:$0xf]
        %v3794 = vld [vmem:[#allocation5 + $0x12c] sm:$0xf]
        %v3795 = vld [vmem:[#allocation5 + $0x130] sm:$0xf]
        %v3796 = vld [vmem:[#allocation5 + $0x134] sm:$0xf]
        %v3797 = vld [vmem:[%s3 + $0xd0] sm:$0x1]
        %v3798 = vpack.c.bf16 %v3788, %v3788
        %v3799 = vperm.slane %v3797, 0
        %v3808 = vunpack.c.l.b16 %v3789
        %v3809 = vunpack.c.l.b16 %v3790
        %v3810 = vunpack.c.l.b16 %v3791
        %v3811 = vunpack.c.l.b16 %v3792
        %v3812 = vunpack.c.l.b16 %v3793
        %v3813 = vunpack.c.l.b16 %v3794
        %v3814 = vunpack.c.l.b16 %v3795
        %v3815 = vunpack.c.l.b16 %v3796
        %v3816 = vpack.c.b16 %v3809, %v3808
        %v3817 = vpack.c.b16 %v3811, %v3810
        %v3818 = vpack.c.b16 %v3813, %v3812
        %v3819 = vpack.c.b16 %v3815, %v3814
        %vm3824 = vcmask 523264
        %v3826 = vsel %vm3824, %v3798, 0
        %3828 = vmatpush.bf16.msra.mxu0 0
        %3829 = vmatpush.bf16.msra.mxu0 0
        %3830 = vmatpush.bf16.msra.mxu0 0
        %3831 = vmatpush.bf16.msra.mxu0 0
        %3832 = vmatpush.bf16.msra.mxu0 %v3819
        %3833 = vmatpush.bf16.msra.mxu0 %v3818
        %3834 = vmatpush.bf16.msra.mxu0 %v3817
        %3835 = vmatpush.bf16.msra.mxu0 %v3816
        %3836 = vmatmul.bf16.gmra.mxu0 %v3826
        %v3837 = vpop.f32.mrf.mxu0
        %v3838 = vadd.f32 %v3799, %v3837
        %v3839 = vpop.f32.mrf.mxu0
        %3840 = vdwg.mxu0
        %v3841 = vadd.f32 %v3744, %v3838
        %v3842 = vld [vmem:[%s3 + $0xb8] sm:$0x1]
        %v3843 = vld [vmem:[%s3 + $0xc0] sm:$0x1]
        %v3844 = vsel %vm361, %v3841, 0.0
        %3845 = vadd.xlane.f32.xlu0 %v3844
        %v3846 = vpop.xlane.xlu0 %3845
        %v3847 = vmul.f32 %v3846, %v1998
        %v3848 = vsub.f32 %v3841, %v3847
        %v3849 = vmul.f32 %v3848, %v3848
        %v3850 = vsel %vm361, %v3849, 0.0
        %3851 = vadd.xlane.f32.xlu0 %v3850
        %v3852 = vpop.xlane.xlu0 %3851
        %v3853 = vmul.f32 %v3852, %v1998
        %v3854 = vadd.f32 %v3853, 1e-05
        %v3855 = vrsqrt.pop %v3854
        %v3856 = vmul.f32 %v3855, %v3854
        %v3857 = vmul.f32 %v3856, %v3855
        %v3858 = vmul.f32 0.5, %v3857
        %v3859 = vsub.f32 1.5, %v3858
        %v3860 = vmul.f32 %v3855, %v3859
        %vm3861 = vweird.f32 %v3854
        %vm3862 = vweird.f32 %v3855
        %vm3863 = vmor %vm3861, %vm3862
        %v3864 = vsel %vm3863, %v3855, %v3860
        %v3865 = vmul.f32 %v3848, %v3864
        %v3866 = vperm.slane %v3842, 0
        %v3867 = vmul.f32 %v3865, %v3866
        %v3868 = vperm.slane %v3843, 0
        %v3869 = vadd.f32 %v3867, %v3868
        %v3870 = vmul.f32 %v3869, %v291
        %v3871 = vadd.f32 %v3870, %v292
        %v3872 = vadd.f32 %v3869, %v3871
        %v3873 = vpack.c.bf16 %v2021, %v2021
        %v3874 = vpack.c.bf16 %v3872, %v3872
        %v3876 = vsel %vm361, %v3873, 0
        %v3879 = vsel %vm361, %v3874, 0
        %3881 = vmatpush.bf16.xpose.msra.mxu0 0
        %3882 = vmatpush.bf16.xpose.msra.mxu0 0
        %3883 = vmatpush.bf16.xpose.msra.mxu0 0
        %3884 = vmatpush.bf16.xpose.msra.mxu0 0
        %3885 = vmatpush.bf16.xpose.msra.mxu0 0
        %3886 = vmatpush.bf16.xpose.msra.mxu0 0
        %3887 = vmatpush.bf16.xpose.msra.mxu0 0
        %3888 = vmatpush.bf16.xpose.msra.mxu0 %v3879
        %3889 = vmatmul.bf16.gmra.mxu0 %v3876
        %v3890 = vpop.f32.mrf.mxu0
        %v3891 = vadd.f32 0.0, %v3890
        %v3892 = vpop.f32.mrf.mxu0
        %3893 = vdwg.mxu0
        %v3894 = vsel %vm1094, %v3891, -inf
        %3895 = vmax.xlane.f32.xlu0 %v3894
        %v3896 = vpop.xlane.xlu0 %3895
        %v3897 = vsub.f32 %v3891, %v3896
        %v3898 = vmul.f32 %v3897, 1.442695
        %v3899 = vpow.pop %v3898
        %v3900 = vsel %vm1094, %v3899, 0.0
        %3901 = vadd.xlane.f32.xlu0 %v3900
        %v3902 = vpop.xlane.xlu0 %3901
        %v3903 = vrcp.pop %v3902
        %v3904 = vmul.f32 %v3899, %v3903
        %v3905 = vpack.c.bf16 %v3904, %v3904
        %v3907 = vsel %vm1094, %v3905, 0
        %v3909 = vsel %vm1098, %v3874, 0
        %3911 = vmatpush.bf16.msra.mxu0 0
        %3912 = vmatpush.bf16.msra.mxu0 0
        %3913 = vmatpush.bf16.msra.mxu0 0
        %3914 = vmatpush.bf16.msra.mxu0 0
        %3915 = vmatpush.bf16.msra.mxu0 0
        %3916 = vmatpush.bf16.msra.mxu0 0
        %3917 = vmatpush.bf16.msra.mxu0 0
        %3918 = vmatpush.bf16.msra.mxu0 %v3909
        %3919 = vmatmul.bf16.gmra.mxu0 %v3907
        %v3920 = vpop.f32.mrf.mxu0
        %v3921 = vadd.f32 0.0, %v3920
        %v3922 = vpop.f32.mrf.mxu0
        %3923 = vdwg.mxu0
        %3924 = vmatpush.bf16.xpose.msra.mxu0 0
        %3925 = vmatpush.bf16.xpose.msra.mxu0 0
        %3926 = vmatpush.bf16.xpose.msra.mxu0 0
        %3927 = vmatpush.bf16.xpose.msra.mxu0 0
        %3928 = vmatpush.bf16.xpose.msra.mxu0 0
        %3929 = vmatpush.bf16.xpose.msra.mxu0 0
        %3930 = vmatpush.bf16.xpose.msra.mxu0 0
        %3931 = vmatpush.bf16.xpose.msra.mxu0 %v3876
        %3932 = vmatmul.bf16.gmra.mxu0 %v3879
        %v3933 = vpop.f32.mrf.mxu0
        %v3934 = vadd.f32 0.0, %v3933
        %v3935 = vpop.f32.mrf.mxu0
        %3936 = vdwg.mxu0
        %v3937 = vsel %vm1094, %v3934, -inf
        %3938 = vmax.xlane.f32.xlu0 %v3937
        %v3939 = vpop.xlane.xlu0 %3938
        %v3940 = vsub.f32 %v3934, %v3939
        %v3941 = vmul.f32 %v3940, 1.442695
        %v3942 = vpow.pop %v3941
        %v3943 = vsel %vm1094, %v3942, 0.0
        %3944 = vadd.xlane.f32.xlu0 %v3943
        %v3945 = vpop.xlane.xlu0 %3944
        %v3946 = vrcp.pop %v3945
        %v3947 = vmul.f32 %v3942, %v3946
        %v3948 = vpack.c.bf16 %v3947, %v3947
        %v3950 = vsel %vm1094, %v3948, 0
        %v3952 = vsel %vm1098, %v3873, 0
        %3954 = vmatpush.bf16.msra.mxu0 0
        %3955 = vmatpush.bf16.msra.mxu0 0
        %3956 = vmatpush.bf16.msra.mxu0 0
        %3957 = vmatpush.bf16.msra.mxu0 0
        %3958 = vmatpush.bf16.msra.mxu0 0
        %3959 = vmatpush.bf16.msra.mxu0 0
        %3960 = vmatpush.bf16.msra.mxu0 0
        %3961 = vmatpush.bf16.msra.mxu0 %v3952
        %3962 = vmatmul.bf16.gmra.mxu0 %v3950
        %v3963 = vpop.f32.mrf.mxu0
        %v3964 = vadd.f32 0.0, %v3963
        %v3965 = vpop.f32.mrf.mxu0
        %3966 = vdwg.mxu0
        %v3967 = vsub.f32 %v2021, %v3921
        %v3968 = vmul.f32 %v2021, %v3921
        %3970 = vrot.lane.b32.xlu0 %v3921, 32
        %v3971 = vpop.permute.xlu0 %3970
        %3974 = vrot.lane.b32.xlu0 %v3967, 64
        %v3975 = vpop.permute.xlu0 %3974
        %3978 = vrot.lane.b32.xlu0 %v3968, 96
        %v3979 = vpop.permute.xlu0 %3978
        %v3981 = vsel %vm361, %v2021, %v3971
        %v3982 = vsel %vm3824, %v3981, %v3975
        %vm3983 = vcmask 785408
        %v3984 = vsel %vm3983, %v3982, %v3979
        %v3985 = vsub.f32 %v3872, %v3964
        %v3986 = vmul.f32 %v3872, %v3964
        %3988 = vrot.lane.b32.xlu0 %v3964, 32
        %v3989 = vpop.permute.xlu0 %3988
        %3992 = vrot.lane.b32.xlu0 %v3985, 64
        %v3993 = vpop.permute.xlu0 %3992
        %3996 = vrot.lane.b32.xlu0 %v3986, 96
        %v3997 = vpop.permute.xlu0 %3996
        %v3999 = vsel %vm361, %v3872, %v3989
        %v4000 = vsel %vm3824, %v3999, %v3993
        %v4001 = vsel %vm3983, %v4000, %v3997
        %v4002 = vld [vmem:[#allocation5 + $0x138] sm:$0xf]
        %v4003 = vld [vmem:[#allocation5 + $0x13c] sm:$0xf]
        %v4004 = vld [vmem:[#allocation5 + $0x140] sm:$0xf]
        %v4005 = vld [vmem:[#allocation5 + $0x144] sm:$0xf]
        %v4006 = vld [vmem:[#allocation5 + $0x148] sm:$0xf]
        %v4007 = vld [vmem:[#allocation5 + $0x14c] sm:$0xf]
        %v4008 = vld [vmem:[#allocation5 + $0x150] sm:$0xf]
        %v4009 = vld [vmem:[#allocation5 + $0x154] sm:$0xf]
        %v4010 = vld [vmem:[#allocation5 + $0x158] sm:$0xf]
        %v4011 = vld [vmem:[#allocation5 + $0x15c] sm:$0xf]
        %v4012 = vld [vmem:[#allocation5 + $0x160] sm:$0xf]
        %v4013 = vld [vmem:[#allocation5 + $0x164] sm:$0xf]
        %v4014 = vld [vmem:[#allocation5 + $0x168] sm:$0xf]
        %v4015 = vld [vmem:[#allocation5 + $0x16c] sm:$0xf]
        %v4016 = vld [vmem:[#allocation5 + $0x170] sm:$0xf]
        %v4017 = vld [vmem:[#allocation5 + $0x174] sm:$0xf]
        %v4018 = vld [vmem:[%s3 + $0xd8] sm:$0x1]
        %v4019 = vpack.c.bf16 %v4001, %v3984
        %v4020 = vperm.slane %v4018, 0
        %v4037 = vunpack.c.l.b16 %v4002
        %v4038 = vunpack.c.l.b16 %v4003
        %v4039 = vunpack.c.l.b16 %v4004
        %v4040 = vunpack.c.l.b16 %v4005
        %v4041 = vunpack.c.l.b16 %v4006
        %v4042 = vunpack.c.l.b16 %v4007
        %v4043 = vunpack.c.l.b16 %v4008
        %v4044 = vunpack.c.l.b16 %v4009
        %v4045 = vunpack.c.l.b16 %v4010
        %v4046 = vunpack.c.l.b16 %v4011
        %v4047 = vunpack.c.l.b16 %v4012
        %v4048 = vunpack.c.l.b16 %v4013
        %v4049 = vunpack.c.l.b16 %v4014
        %v4050 = vunpack.c.l.b16 %v4015
        %v4051 = vunpack.c.l.b16 %v4016
        %v4052 = vunpack.c.l.b16 %v4017
        %v4053 = vpack.c.b16 %v4038, %v4037
        %v4054 = vpack.c.b16 %v4040, %v4039
        %v4055 = vpack.c.b16 %v4042, %v4041
        %v4056 = vpack.c.b16 %v4044, %v4043
        %v4057 = vpack.c.b16 %v4046, %v4045
        %v4058 = vpack.c.b16 %v4048, %v4047
        %v4059 = vpack.c.b16 %v4050, %v4049
        %v4060 = vpack.c.b16 %v4052, %v4051
        %4069 = vmatpush.bf16.msra.mxu0 %v4060
        %4070 = vmatpush.bf16.msra.mxu0 %v4059
        %4071 = vmatpush.bf16.msra.mxu0 %v4058
        %4072 = vmatpush.bf16.msra.mxu0 %v4057
        %4073 = vmatpush.bf16.msra.mxu0 %v4056
        %4074 = vmatpush.bf16.msra.mxu0 %v4055
        %4075 = vmatpush.bf16.msra.mxu0 %v4054
        %4076 = vmatpush.bf16.msra.mxu0 %v4053
        %4077 = vmatmul.bf16.gmra.mxu0 %v4019
        %v4078 = vpop.f32.mrf.mxu0
        %v4079 = vadd.f32 %v4020, %v4078
        %v4080 = vpop.f32.mrf.mxu0
        %v4081 = vadd.f32 %v4020, %v4080
        %4082 = vdwg.mxu0
        %v4083 = vmax.f32 %v4079, 0.0
        %v4084 = vmax.f32 %v4081, 0.0
        %v4085 = vld [vmem:[#allocation5 + $0x178] sm:$0xf]
        %v4086 = vld [vmem:[#allocation5 + $0x17c] sm:$0xf]
        %v4087 = vld [vmem:[#allocation5 + $0x180] sm:$0xf]
        %v4088 = vld [vmem:[#allocation5 + $0x184] sm:$0xf]
        %v4089 = vld [vmem:[#allocation5 + $0x188] sm:$0xf]
        %v4090 = vld [vmem:[#allocation5 + $0x18c] sm:$0xf]
        %v4091 = vld [vmem:[#allocation5 + $0x190] sm:$0xf]
        %v4092 = vld [vmem:[#allocation5 + $0x194] sm:$0xf]
        %v4093 = vld [vmem:[%s3 + $0xe0] sm:$0x1]
        %v4094 = vpack.c.bf16 %v4084, %v4083
        %v4095 = vperm.slane %v4093, 0
        %v4104 = vunpack.c.l.b16 %v4085
        %v4105 = vunpack.c.l.b16 %v4086
        %v4106 = vunpack.c.l.b16 %v4087
        %v4107 = vunpack.c.l.b16 %v4088
        %v4108 = vunpack.c.l.b16 %v4089
        %v4109 = vunpack.c.l.b16 %v4090
        %v4110 = vunpack.c.l.b16 %v4091
        %v4111 = vunpack.c.l.b16 %v4092
        %v4112 = vpack.c.b16 %v4105, %v4104
        %v4113 = vpack.c.b16 %v4107, %v4106
        %v4114 = vpack.c.b16 %v4109, %v4108
        %v4115 = vpack.c.b16 %v4111, %v4110
        %v4121 = vsel %vm3824, %v4094, 0
        %4123 = vmatpush.bf16.msra.mxu0 0
        %4124 = vmatpush.bf16.msra.mxu0 0
        %4125 = vmatpush.bf16.msra.mxu0 0
        %4126 = vmatpush.bf16.msra.mxu0 0
        %4127 = vmatpush.bf16.msra.mxu0 %v4115
        %4128 = vmatpush.bf16.msra.mxu0 %v4114
        %4129 = vmatpush.bf16.msra.mxu0 %v4113
        %4130 = vmatpush.bf16.msra.mxu0 %v4112
        %4131 = vmatmul.bf16.gmra.mxu0 %v4121
        %v4132 = vpop.f32.mrf.mxu0
        %v4133 = vadd.f32 %v4095, %v4132
        %v4134 = vpop.f32.mrf.mxu0
        %v4135 = vadd.f32 %v4095, %v4134
        %4136 = vdwg.mxu0
        %v4137 = vmax.f32 %v4133, 0.0
        %v4138 = vmax.f32 %v4135, 0.0
        %v4139 = vmul.f32 %v4137, %v289
        %v4140 = vadd.f32 %v4139, %v290
        %v4141 = vld [vmem:[#allocation5 + $0x88] sm:$0xf]
        %v4142 = vld [vmem:[#allocation5 + $0x8c] sm:$0xf]
        %v4143 = vld [vmem:[#allocation5 + $0x90] sm:$0xf]
        %v4144 = vld [vmem:[#allocation5 + $0x94] sm:$0xf]
        %v4145 = vld [vmem:[#allocation5 + $0x98] sm:$0xf]
        %v4146 = vld [vmem:[#allocation5 + $0x9c] sm:$0xf]
        %v4147 = vld [vmem:[#allocation5 + $0xa0] sm:$0xf]
        %v4148 = vld [vmem:[#allocation5 + $0xa4] sm:$0xf]
        %v4149 = vld [vmem:[#allocation5 + $0xa8] sm:$0xf]
        %v4150 = vld [vmem:[#allocation5 + $0xac] sm:$0xf]
        %v4151 = vld [vmem:[#allocation5 + $0xb0] sm:$0xf]
        %v4152 = vld [vmem:[#allocation5 + $0xb4] sm:$0xf]
        %v4153 = vld [vmem:[#allocation5 + $0xb8] sm:$0xf]
        %v4154 = vld [vmem:[#allocation5 + $0xbc] sm:$0xf]
        %v4155 = vld [vmem:[#allocation5 + $0xc0] sm:$0xf]
        %v4156 = vld [vmem:[#allocation5 + $0xc4] sm:$0xf]
        %v4157 = vld [vmem:[%s3 + $0x48] sm:$0x1]
        %v4158 = vld [vmem:[%s3 + $0x50] sm:$0x1]
        %v4159 = vld [vmem:[%s3 + $0x58] sm:$0x1]
        %v4160 = vld [vmem:[%s3 + $0x60] sm:$0x1]
        %v4161 = vpack.c.bf16 %v4140, %v4140
        %v4162 = vperm.slane %v4157, 0
        %v4167 = vunpack.c.l.b16 %v4141
        %v4168 = vunpack.c.l.b16 %v4142
        %v4169 = vunpack.c.l.b16 %v4143
        %v4170 = vunpack.c.l.b16 %v4144
        %v4171 = vpack.c.b16 %v4168, %v4167
        %v4172 = vpack.c.b16 %v4170, %v4169
        %v4176 = vsel %vm361, %v4161, 0
        %4178 = vmatpush.bf16.msra.mxu0 0
        %4179 = vmatpush.bf16.msra.mxu0 0
        %4180 = vmatpush.bf16.msra.mxu0 0
        %4181 = vmatpush.bf16.msra.mxu0 0
        %4182 = vmatpush.bf16.msra.mxu0 0
        %4183 = vmatpush.bf16.msra.mxu0 0
        %4184 = vmatpush.bf16.msra.mxu0 %v4172
        %4185 = vmatpush.bf16.msra.mxu0 %v4171
        %4186 = vmatmul.bf16.gmra.mxu0 %v4176
        %v4187 = vpop.f32.mrf.mxu0
        %v4188 = vadd.f32 %v4162, %v4187
        %v4189 = vpop.f32.mrf.mxu0
        %4190 = vdwg.mxu0
        %4192 = vrot.lane.b32.xlu0 %v4188, 120
        %v4193 = vpop.permute.xlu0 %4192
        %4195 = vrot.lane.b32.xlu0 %v4188, 112
        %v4196 = vpop.permute.xlu0 %4195
        %4198 = vrot.lane.b32.xlu0 %v4188, 104
        %v4199 = vpop.permute.xlu0 %4198
        %v4201 = vrot.slane %v4196, 4
        %v4202 = vsel %vm389, %v4201, %v4188
        %v4203 = vrot.slane %v4188, 4
        %v4204 = vsel %vm389, %v4196, %v4203
        %v4206 = vunpack.c.l.s4 1983009808
        %v4207 = vunpack.c.0.s8 %v4206
        %v4208 = vperm.slane %v4202, %v4207
        %v4210 = vunpack.c.l.s4 1983009808
        %v4211 = vunpack.c.0.s8 %v4210
        %v4212 = vperm.slane %v4204, %v4211
        %v4213 = vrot.slane %v4199, 4
        %v4214 = vsel %vm389, %v4213, %v4193
        %v4215 = vrot.slane %v4193, 4
        %v4216 = vsel %vm389, %v4199, %v4215
        %v4218 = vunpack.c.l.s4 1983009808
        %v4219 = vunpack.c.0.s8 %v4218
        %v4220 = vperm.slane %v4214, %v4219
        %v4222 = vunpack.c.l.s4 1983009808
        %v4223 = vunpack.c.0.s8 %v4222
        %v4224 = vperm.slane %v4216, %v4223
        %v4225 = vrot.slane %v4220, 4
        %v4226 = vsel %vm389, %v4225, %v4208
        %v4227 = vrot.slane %v4208, 4
        %v4228 = vsel %vm389, %v4220, %v4227
        %v4230 = vunpack.c.l.s4 1934713408
        %v4231 = vunpack.c.0.s8 %v4230
        %v4232 = vperm.slane %v4226, %v4231
        %v4234 = vunpack.c.l.s4 1934713408
        %v4235 = vunpack.c.0.s8 %v4234
        %v4236 = vperm.slane %v4228, %v4235
        %v4237 = vrot.slane %v4224, 4
        %v4238 = vsel %vm389, %v4237, %v4212
        %v4239 = vrot.slane %v4212, 4
        %v4240 = vsel %vm389, %v4224, %v4239
        %v4242 = vunpack.c.l.s4 1934713408
        %v4243 = vunpack.c.0.s8 %v4242
        %v4244 = vperm.slane %v4238, %v4243
        %v4246 = vunpack.c.l.s4 1934713408
        %v4247 = vunpack.c.0.s8 %v4246
        %v4248 = vperm.slane %v4240, %v4247
        %v4249 = vrot.slane %v4232, 4
        %v4250 = vsel %vm389, 0.0, %v4249
        %v4251 = vrot.slane %v4236, 4
        %v4252 = vsel %vm389, 0.0, %v4251
        %v4253 = vrot.slane %v4244, 4
        %v4254 = vsel %vm389, 0.0, %v4253
        %v4255 = vrot.slane %v4248, 4
        %v4256 = vsel %vm389, 0.0, %v4255
        %v4257 = vperm.slane %v4158, 0
        %v4262 = vunpack.c.l.b16 %v4145
        %v4263 = vunpack.c.l.b16 %v4146
        %v4264 = vunpack.c.l.b16 %v4147
        %v4265 = vunpack.c.l.b16 %v4148
        %v4266 = vpack.c.b16 %v4263, %v4262
        %v4267 = vpack.c.b16 %v4265, %v4264
        %4270 = vmatpush.bf16.msra.mxu0 0
        %4271 = vmatpush.bf16.msra.mxu0 0
        %4272 = vmatpush.bf16.msra.mxu0 0
        %4273 = vmatpush.bf16.msra.mxu0 0
        %4274 = vmatpush.bf16.msra.mxu0 0
        %4275 = vmatpush.bf16.msra.mxu0 0
        %4276 = vmatpush.bf16.msra.mxu0 %v4267
        %4277 = vmatpush.bf16.msra.mxu0 %v4266
        %4278 = vmatmul.bf16.gmra.mxu0 %v4176
        %v4279 = vpop.f32.mrf.mxu0
        %v4280 = vadd.f32 %v4257, %v4279
        %v4281 = vpop.f32.mrf.mxu0
        %4282 = vdwg.mxu0
        %4284 = vrot.lane.b32.xlu0 %v4280, 120
        %v4285 = vpop.permute.xlu0 %4284
        %4287 = vrot.lane.b32.xlu0 %v4280, 112
        %v4288 = vpop.permute.xlu0 %4287
        %4290 = vrot.lane.b32.xlu0 %v4280, 104
        %v4291 = vpop.permute.xlu0 %4290
        %v4293 = vrot.slane %v4288, 4
        %v4294 = vsel %vm389, %v4293, %v4280
        %v4295 = vrot.slane %v4280, 4
        %v4296 = vsel %vm389, %v4288, %v4295
        %v4298 = vunpack.c.l.s4 1983009808
        %v4299 = vunpack.c.0.s8 %v4298
        %v4300 = vperm.slane %v4294, %v4299
        %v4302 = vunpack.c.l.s4 1983009808
        %v4303 = vunpack.c.0.s8 %v4302
        %v4304 = vperm.slane %v4296, %v4303
        %v4305 = vrot.slane %v4291, 4
        %v4306 = vsel %vm389, %v4305, %v4285
        %v4307 = vrot.slane %v4285, 4
        %v4308 = vsel %vm389, %v4291, %v4307
        %v4310 = vunpack.c.l.s4 1983009808
        %v4311 = vunpack.c.0.s8 %v4310
        %v4312 = vperm.slane %v4306, %v4311
        %v4314 = vunpack.c.l.s4 1983009808
        %v4315 = vunpack.c.0.s8 %v4314
        %v4316 = vperm.slane %v4308, %v4315
        %v4317 = vrot.slane %v4312, 4
        %v4318 = vsel %vm389, %v4317, %v4300
        %v4319 = vrot.slane %v4300, 4
        %v4320 = vsel %vm389, %v4312, %v4319
        %v4322 = vunpack.c.l.s4 1934713408
        %v4323 = vunpack.c.0.s8 %v4322
        %v4324 = vperm.slane %v4318, %v4323
        %v4326 = vunpack.c.l.s4 1934713408
        %v4327 = vunpack.c.0.s8 %v4326
        %v4328 = vperm.slane %v4320, %v4327
        %v4329 = vrot.slane %v4316, 4
        %v4330 = vsel %vm389, %v4329, %v4304
        %v4331 = vrot.slane %v4304, 4
        %v4332 = vsel %vm389, %v4316, %v4331
        %v4334 = vunpack.c.l.s4 1934713408
        %v4335 = vunpack.c.0.s8 %v4334
        %v4336 = vperm.slane %v4330, %v4335
        %v4338 = vunpack.c.l.s4 1934713408
        %v4339 = vunpack.c.0.s8 %v4338
        %v4340 = vperm.slane %v4332, %v4339
        %v4341 = vrot.slane %v4324, 4
        %v4342 = vsel %vm389, 0.0, %v4341
        %v4343 = vrot.slane %v4328, 4
        %v4344 = vsel %vm389, 0.0, %v4343
        %v4345 = vrot.slane %v4336, 4
        %v4346 = vsel %vm389, 0.0, %v4345
        %v4347 = vrot.slane %v4340, 4
        %v4348 = vsel %vm389, 0.0, %v4347
        %v4349 = vperm.slane %v4159, 0
        %v4354 = vunpack.c.l.b16 %v4149
        %v4355 = vunpack.c.l.b16 %v4150
        %v4356 = vunpack.c.l.b16 %v4151
        %v4357 = vunpack.c.l.b16 %v4152
        %v4358 = vpack.c.b16 %v4355, %v4354
        %v4359 = vpack.c.b16 %v4357, %v4356
        %4362 = vmatpush.bf16.msra.mxu0 0
        %4363 = vmatpush.bf16.msra.mxu0 0
        %4364 = vmatpush.bf16.msra.mxu0 0
        %4365 = vmatpush.bf16.msra.mxu0 0
        %4366 = vmatpush.bf16.msra.mxu0 0
        %4367 = vmatpush.bf16.msra.mxu0 0
        %4368 = vmatpush.bf16.msra.mxu0 %v4359
        %4369 = vmatpush.bf16.msra.mxu0 %v4358
        %4370 = vmatmul.bf16.gmra.mxu0 %v4176
        %v4371 = vpop.f32.mrf.mxu0
        %v4372 = vadd.f32 %v4349, %v4371
        %v4373 = vpop.f32.mrf.mxu0
        %4374 = vdwg.mxu0
        %4376 = vrot.lane.b32.xlu0 %v4372, 120
        %v4377 = vpop.permute.xlu0 %4376
        %4379 = vrot.lane.b32.xlu0 %v4372, 112
        %v4380 = vpop.permute.xlu0 %4379
        %4382 = vrot.lane.b32.xlu0 %v4372, 104
        %v4383 = vpop.permute.xlu0 %4382
        %v4385 = vrot.slane %v4380, 4
        %v4386 = vsel %vm389, %v4385, %v4372
        %v4387 = vrot.slane %v4372, 4
        %v4388 = vsel %vm389, %v4380, %v4387
        %v4390 = vunpack.c.l.s4 1983009808
        %v4391 = vunpack.c.0.s8 %v4390
        %v4392 = vperm.slane %v4386, %v4391
        %v4394 = vunpack.c.l.s4 1983009808
        %v4395 = vunpack.c.0.s8 %v4394
        %v4396 = vperm.slane %v4388, %v4395
        %v4397 = vrot.slane %v4383, 4
        %v4398 = vsel %vm389, %v4397, %v4377
        %v4399 = vrot.slane %v4377, 4
        %v4400 = vsel %vm389, %v4383, %v4399
        %v4402 = vunpack.c.l.s4 1983009808
        %v4403 = vunpack.c.0.s8 %v4402
        %v4404 = vperm.slane %v4398, %v4403
        %v4406 = vunpack.c.l.s4 1983009808
        %v4407 = vunpack.c.0.s8 %v4406
        %v4408 = vperm.slane %v4400, %v4407
        %v4409 = vrot.slane %v4404, 4
        %v4410 = vsel %vm389, %v4409, %v4392
        %v4411 = vrot.slane %v4392, 4
        %v4412 = vsel %vm389, %v4404, %v4411
        %v4414 = vunpack.c.l.s4 1934713408
        %v4415 = vunpack.c.0.s8 %v4414
        %v4416 = vperm.slane %v4410, %v4415
        %v4418 = vunpack.c.l.s4 1934713408
        %v4419 = vunpack.c.0.s8 %v4418
        %v4420 = vperm.slane %v4412, %v4419
        %v4421 = vrot.slane %v4408, 4
        %v4422 = vsel %vm389, %v4421, %v4396
        %v4423 = vrot.slane %v4396, 4
        %v4424 = vsel %vm389, %v4408, %v4423
        %v4426 = vunpack.c.l.s4 1934713408
        %v4427 = vunpack.c.0.s8 %v4426
        %v4428 = vperm.slane %v4422, %v4427
        %v4430 = vunpack.c.l.s4 1934713408
        %v4431 = vunpack.c.0.s8 %v4430
        %v4432 = vperm.slane %v4424, %v4431
        %v4433 = vrot.slane %v4416, 4
        %v4434 = vsel %vm389, 0.0, %v4433
        %v4435 = vrot.slane %v4420, 4
        %v4436 = vsel %vm389, 0.0, %v4435
        %v4437 = vrot.slane %v4428, 4
        %v4438 = vsel %vm389, 0.0, %v4437
        %v4439 = vrot.slane %v4432, 4
        %v4440 = vsel %vm389, 0.0, %v4439
        %v4441 = vpack.c.bf16 %v4232, %v4232
        %v4442 = vpack.c.bf16 %v4250, %v4250
        %v4443 = vpack.c.bf16 %v4236, %v4236
        %v4444 = vpack.c.bf16 %v4252, %v4252
        %v4445 = vpack.c.bf16 %v4244, %v4244
        %v4446 = vpack.c.bf16 %v4254, %v4254
        %v4447 = vpack.c.bf16 %v4248, %v4248
        %v4448 = vpack.c.bf16 %v4256, %v4256
        %v4449 = vpack.c.bf16 %v4324, %v4324
        %v4450 = vpack.c.bf16 %v4342, %v4342
        %v4451 = vpack.c.bf16 %v4328, %v4328
        %v4452 = vpack.c.bf16 %v4344, %v4344
        %v4453 = vpack.c.bf16 %v4336, %v4336
        %v4454 = vpack.c.bf16 %v4346, %v4346
        %v4455 = vpack.c.bf16 %v4340, %v4340
        %v4456 = vpack.c.bf16 %v4348, %v4348
        %v4457 = vrot.slane %v4445, 4
        %v4458 = vsel %vm646, %v4457, %v4441
        %v4460 = vunpack.c.l.s4 1983009808
        %v4461 = vunpack.c.0.s8 %v4460
        %v4462 = vperm.slane %v4458, %v4461
        %v4463 = vrot.slane %v4447, 4
        %v4464 = vsel %vm646, %v4463, %v4443
        %v4466 = vunpack.c.l.s4 1983009808
        %v4467 = vunpack.c.0.s8 %v4466
        %v4468 = vperm.slane %v4464, %v4467
        %v4469 = vrot.slane %v4468, 4
        %v4470 = vsel %vm646, %v4469, %v4462
        %v4472 = vunpack.c.l.s4 1934713408
        %v4473 = vunpack.c.0.s8 %v4472
        %v4474 = vperm.slane %v4470, %v4473
        %v4475 = vrot.slane %v4474, 4
        %v4476 = vsel %vm646, 0, %v4475
        %v4477 = vrot.slane %v4446, 4
        %v4478 = vsel %vm646, %v4477, %v4442
        %v4480 = vunpack.c.l.s4 1983009808
        %v4481 = vunpack.c.0.s8 %v4480
        %v4482 = vperm.slane %v4478, %v4481
        %v4483 = vrot.slane %v4448, 4
        %v4484 = vsel %vm646, %v4483, %v4444
        %v4486 = vunpack.c.l.s4 1983009808
        %v4487 = vunpack.c.0.s8 %v4486
        %v4488 = vperm.slane %v4484, %v4487
        %v4489 = vrot.slane %v4488, 4
        %v4490 = vsel %vm646, %v4489, %v4482
        %v4492 = vunpack.c.l.s4 1934713408
        %v4493 = vunpack.c.0.s8 %v4492
        %v4494 = vperm.slane %v4490, %v4493
        %v4495 = vrot.slane %v4494, 4
        %v4496 = vsel %vm646, 0, %v4495
        %v4499 = vpack.i.b16 %v4494, %v4474
        %v4500 = vshrl.u32 %v4474, 16
        %v4501 = vshrl.u32 %v4494, 16
        %v4502 = vpack.i.b16 %v4501, %v4500
        %v4505 = vpack.i.b16 %v4496, %v4476
        %v4506 = vshrl.u32 %v4476, 16
        %v4507 = vshrl.u32 %v4496, 16
        %v4508 = vpack.i.b16 %v4507, %v4506
        %4509 = vxpose.xlu0.c.b16.start [1/8] %v4449, 128
        %4510 = vxpose.xlu0.c.b16.cont [2/8] 0, 128
        %4511 = vxpose.xlu0.c.b16.cont [3/8] 0, 128
        %4512 = vxpose.xlu0.c.b16.cont [4/8] 0, 128
        %4513 = vxpose.xlu0.c.b16.cont [5/8] 0, 128
        %4514 = vxpose.xlu0.c.b16.cont [6/8] 0, 128
        %4515 = vxpose.xlu0.c.b16.cont [7/8] 0, 128
        %4516 = vxpose.xlu0.c.b16.end [8/8] 0, 128
        %v4517 = vpop.trf.xlu0
        %v4518 = vpop.trf.xlu0
        %v4519 = vpop.trf.xlu0
        %v4520 = vpop.trf.xlu0
        %v4521 = vpop.trf.xlu0
        %v4522 = vpop.trf.xlu0
        %v4523 = vpop.trf.xlu0
        %v4524 = vpop.trf.xlu0
        %4525 = vxpose.xlu0.c.b16.start [1/8] %v4450, 128
        %4526 = vxpose.xlu0.c.b16.cont [2/8] 0, 128
        %4527 = vxpose.xlu0.c.b16.cont [3/8] 0, 128
        %4528 = vxpose.xlu0.c.b16.cont [4/8] 0, 128
        %4529 = vxpose.xlu0.c.b16.cont [5/8] 0, 128
        %4530 = vxpose.xlu0.c.b16.cont [6/8] 0, 128
        %4531 = vxpose.xlu0.c.b16.cont [7/8] 0, 128
        %4532 = vxpose.xlu0.c.b16.end [8/8] 0, 128
        %v4533 = vpop.trf.xlu0
        %v4534 = vpop.trf.xlu0
        %v4535 = vpop.trf.xlu0
        %v4536 = vpop.trf.xlu0
        %v4537 = vpop.trf.xlu0
        %v4538 = vpop.trf.xlu0
        %v4539 = vpop.trf.xlu0
        %v4540 = vpop.trf.xlu0
        %4541 = vxpose.xlu0.c.b16.start [1/8] %v4451, 128
        %4542 = vxpose.xlu0.c.b16.cont [2/8] 0, 128
        %4543 = vxpose.xlu0.c.b16.cont [3/8] 0, 128
        %4544 = vxpose.xlu0.c.b16.cont [4/8] 0, 128
        %4545 = vxpose.xlu0.c.b16.cont [5/8] 0, 128
        %4546 = vxpose.xlu0.c.b16.cont [6/8] 0, 128
        %4547 = vxpose.xlu0.c.b16.cont [7/8] 0, 128
        %4548 = vxpose.xlu0.c.b16.end [8/8] 0, 128
        %v4549 = vpop.trf.xlu0
        %v4550 = vpop.trf.xlu0
        %v4551 = vpop.trf.xlu0
        %v4552 = vpop.trf.xlu0
        %v4553 = vpop.trf.xlu0
        %v4554 = vpop.trf.xlu0
        %v4555 = vpop.trf.xlu0
        %v4556 = vpop.trf.xlu0
        %4557 = vxpose.xlu0.c.b16.start [1/8] %v4452, 128
        %4558 = vxpose.xlu0.c.b16.cont [2/8] 0, 128
        %4559 = vxpose.xlu0.c.b16.cont [3/8] 0, 128
        %4560 = vxpose.xlu0.c.b16.cont [4/8] 0, 128
        %4561 = vxpose.xlu0.c.b16.cont [5/8] 0, 128
        %4562 = vxpose.xlu0.c.b16.cont [6/8] 0, 128
        %4563 = vxpose.xlu0.c.b16.cont [7/8] 0, 128
        %4564 = vxpose.xlu0.c.b16.end [8/8] 0, 128
        %v4565 = vpop.trf.xlu0
        %v4566 = vpop.trf.xlu0
        %v4567 = vpop.trf.xlu0
        %v4568 = vpop.trf.xlu0
        %v4569 = vpop.trf.xlu0
        %v4570 = vpop.trf.xlu0
        %v4571 = vpop.trf.xlu0
        %v4572 = vpop.trf.xlu0
        %4573 = vxpose.xlu0.c.b16.start [1/8] %v4453, 128
        %4574 = vxpose.xlu0.c.b16.cont [2/8] 0, 128
        %4575 = vxpose.xlu0.c.b16.cont [3/8] 0, 128
        %4576 = vxpose.xlu0.c.b16.cont [4/8] 0, 128
        %4577 = vxpose.xlu0.c.b16.cont [5/8] 0, 128
        %4578 = vxpose.xlu0.c.b16.cont [6/8] 0, 128
        %4579 = vxpose.xlu0.c.b16.cont [7/8] 0, 128
        %4580 = vxpose.xlu0.c.b16.end [8/8] 0, 128
        %v4581 = vpop.trf.xlu0
        %v4582 = vpop.trf.xlu0
        %v4583 = vpop.trf.xlu0
        %v4584 = vpop.trf.xlu0
        %v4585 = vpop.trf.xlu0
        %v4586 = vpop.trf.xlu0
        %v4587 = vpop.trf.xlu0
        %v4588 = vpop.trf.xlu0
        %4589 = vxpose.xlu0.c.b16.start [1/8] %v4454, 128
        %4590 = vxpose.xlu0.c.b16.cont [2/8] 0, 128
        %4591 = vxpose.xlu0.c.b16.cont [3/8] 0, 128
        %4592 = vxpose.xlu0.c.b16.cont [4/8] 0, 128
        %4593 = vxpose.xlu0.c.b16.cont [5/8] 0, 128
        %4594 = vxpose.xlu0.c.b16.cont [6/8] 0, 128
        %4595 = vxpose.xlu0.c.b16.cont [7/8] 0, 128
        %4596 = vxpose.xlu0.c.b16.end [8/8] 0, 128
        %v4597 = vpop.trf.xlu0
        %v4598 = vpop.trf.xlu0
        %v4599 = vpop.trf.xlu0
        %v4600 = vpop.trf.xlu0
        %v4601 = vpop.trf.xlu0
        %v4602 = vpop.trf.xlu0
        %v4603 = vpop.trf.xlu0
        %v4604 = vpop.trf.xlu0
        %4605 = vxpose.xlu0.c.b16.start [1/8] %v4455, 128
        %4606 = vxpose.xlu0.c.b16.cont [2/8] 0, 128
        %4607 = vxpose.xlu0.c.b16.cont [3/8] 0, 128
        %4608 = vxpose.xlu0.c.b16.cont [4/8] 0, 128
        %4609 = vxpose.xlu0.c.b16.cont [5/8] 0, 128
        %4610 = vxpose.xlu0.c.b16.cont [6/8] 0, 128
        %4611 = vxpose.xlu0.c.b16.cont [7/8] 0, 128
        %4612 = vxpose.xlu0.c.b16.end [8/8] 0, 128
        %v4613 = vpop.trf.xlu0
        %v4614 = vpop.trf.xlu0
        %v4615 = vpop.trf.xlu0
        %v4616 = vpop.trf.xlu0
        %v4617 = vpop.trf.xlu0
        %v4618 = vpop.trf.xlu0
        %v4619 = vpop.trf.xlu0
        %v4620 = vpop.trf.xlu0
        %4621 = vxpose.xlu0.c.b16.start [1/8] %v4456, 128
        %4622 = vxpose.xlu0.c.b16.cont [2/8] 0, 128
        %4623 = vxpose.xlu0.c.b16.cont [3/8] 0, 128
        %4624 = vxpose.xlu0.c.b16.cont [4/8] 0, 128
        %4625 = vxpose.xlu0.c.b16.cont [5/8] 0, 128
        %4626 = vxpose.xlu0.c.b16.cont [6/8] 0, 128
        %4627 = vxpose.xlu0.c.b16.cont [7/8] 0, 128
        %4628 = vxpose.xlu0.c.b16.end [8/8] 0, 128
        %v4629 = vpop.trf.xlu0
        %v4630 = vpop.trf.xlu0
        %v4631 = vpop.trf.xlu0
        %v4632 = vpop.trf.xlu0
        %v4633 = vpop.trf.xlu0
        %v4634 = vpop.trf.xlu0
        %v4635 = vpop.trf.xlu0
        %v4636 = vpop.trf.xlu0
        %v4637 = vrot.slane %v4581, 4
        %v4638 = vsel %vm646, %v4637, %v4517
        %v4640 = vunpack.c.l.s4 1983009808
        %v4641 = vunpack.c.0.s8 %v4640
        %v4642 = vperm.slane %v4638, %v4641
        %v4643 = vrot.slane %v4613, 4
        %v4644 = vsel %vm646, %v4643, %v4549
        %v4646 = vunpack.c.l.s4 1983009808
        %v4647 = vunpack.c.0.s8 %v4646
        %v4648 = vperm.slane %v4644, %v4647
        %v4649 = vrot.slane %v4648, 4
        %v4650 = vsel %vm646, %v4649, %v4642
        %v4651 = vrot.slane %v4642, 4
        %v4652 = vsel %vm646, %v4648, %v4651
        %v4654 = vunpack.c.l.s4 1934713408
        %v4655 = vunpack.c.0.s8 %v4654
        %v4656 = vperm.slane %v4650, %v4655
        %v4658 = vunpack.c.l.s4 1934713408
        %v4659 = vunpack.c.0.s8 %v4658
        %v4660 = vperm.slane %v4652, %v4659
        %v4661 = vrot.slane %v4656, 4
        %v4662 = vsel %vm646, 0, %v4661
        %v4663 = vrot.slane %v4660, 4
        %v4664 = vsel %vm646, 0, %v4663
        %v4665 = vrot.slane %v4597, 4
        %v4666 = vsel %vm646, %v4665, %v4533
        %v4668 = vunpack.c.l.s4 1983009808
        %v4669 = vunpack.c.0.s8 %v4668
        %v4670 = vperm.slane %v4666, %v4669
        %v4671 = vrot.slane %v4629, 4
        %v4672 = vsel %vm646, %v4671, %v4565
        %v4674 = vunpack.c.l.s4 1983009808
        %v4675 = vunpack.c.0.s8 %v4674
        %v4676 = vperm.slane %v4672, %v4675
        %v4677 = vrot.slane %v4676, 4
        %v4678 = vsel %vm646, %v4677, %v4670
        %v4679 = vrot.slane %v4670, 4
        %v4680 = vsel %vm646, %v4676, %v4679
        %v4682 = vunpack.c.l.s4 1934713408
        %v4683 = vunpack.c.0.s8 %v4682
        %v4684 = vperm.slane %v4678, %v4683
        %v4686 = vunpack.c.l.s4 1934713408
        %v4687 = vunpack.c.0.s8 %v4686
        %v4688 = vperm.slane %v4680, %v4687
        %v4689 = vrot.slane %v4684, 4
        %v4690 = vsel %vm646, 0, %v4689
        %v4691 = vrot.slane %v4688, 4
        %v4692 = vsel %vm646, 0, %v4691
        %v4695 = vpack.i.b16 %v4684, %v4656
        %v4697 = vshrl.u32 %v4656, 16
        %v4698 = vshrl.u32 %v4684, 16
        %v4699 = vpack.i.b16 %v4698, %v4697
        %v4703 = vpack.i.b16 %v4690, %v4662
        %v4705 = vshrl.u32 %v4662, 16
        %v4706 = vshrl.u32 %v4690, 16
        %v4707 = vpack.i.b16 %v4706, %v4705
        %v4711 = vpack.i.b16 %v4688, %v4660
        %v4713 = vshrl.u32 %v4660, 16
        %v4714 = vshrl.u32 %v4688, 16
        %v4715 = vpack.i.b16 %v4714, %v4713
        %v4719 = vpack.i.b16 %v4692, %v4664
        %v4721 = vshrl.u32 %v4664, 16
        %v4722 = vshrl.u32 %v4692, 16
        %v4723 = vpack.i.b16 %v4722, %v4721
        %4725 = vxpose.xlu0.c.b16.start [1/8] %v4695, 128
        %4726 = vxpose.xlu0.c.b16.cont [2/8] 0, 128
        %4727 = vxpose.xlu0.c.b16.cont [3/8] 0, 128
        %4728 = vxpose.xlu0.c.b16.cont [4/8] 0, 128
        %4729 = vxpose.xlu0.c.b16.cont [5/8] 0, 128
        %4730 = vxpose.xlu0.c.b16.cont [6/8] 0, 128
        %4731 = vxpose.xlu0.c.b16.cont [7/8] 0, 128
        %4732 = vxpose.xlu0.c.b16.end [8/8] 0, 128
        %v4733 = vpop.trf.xlu0
        %v4734 = vpop.trf.xlu0
        %v4735 = vpop.trf.xlu0
        %v4736 = vpop.trf.xlu0
        %v4737 = vpop.trf.xlu0
        %v4738 = vpop.trf.xlu0
        %v4739 = vpop.trf.xlu0
        %v4740 = vpop.trf.xlu0
        %4741 = vxpose.xlu0.c.b16.start [1/8] %v4699, 128
        %4742 = vxpose.xlu0.c.b16.cont [2/8] 0, 128
        %4743 = vxpose.xlu0.c.b16.cont [3/8] 0, 128
        %4744 = vxpose.xlu0.c.b16.cont [4/8] 0, 128
        %4745 = vxpose.xlu0.c.b16.cont [5/8] 0, 128
        %4746 = vxpose.xlu0.c.b16.cont [6/8] 0, 128
        %4747 = vxpose.xlu0.c.b16.cont [7/8] 0, 128
        %4748 = vxpose.xlu0.c.b16.end [8/8] 0, 128
        %v4749 = vpop.trf.xlu0
        %v4750 = vpop.trf.xlu0
        %v4751 = vpop.trf.xlu0
        %v4752 = vpop.trf.xlu0
        %v4753 = vpop.trf.xlu0
        %v4754 = vpop.trf.xlu0
        %v4755 = vpop.trf.xlu0
        %v4756 = vpop.trf.xlu0
        %4757 = vxpose.xlu0.c.b16.start [1/8] %v4703, 128
        %4758 = vxpose.xlu0.c.b16.cont [2/8] 0, 128
        %4759 = vxpose.xlu0.c.b16.cont [3/8] 0, 128
        %4760 = vxpose.xlu0.c.b16.cont [4/8] 0, 128
        %4761 = vxpose.xlu0.c.b16.cont [5/8] 0, 128
        %4762 = vxpose.xlu0.c.b16.cont [6/8] 0, 128
        %4763 = vxpose.xlu0.c.b16.cont [7/8] 0, 128
        %4764 = vxpose.xlu0.c.b16.end [8/8] 0, 128
        %v4765 = vpop.trf.xlu0
        %v4766 = vpop.trf.xlu0
        %v4767 = vpop.trf.xlu0
        %v4768 = vpop.trf.xlu0
        %v4769 = vpop.trf.xlu0
        %v4770 = vpop.trf.xlu0
        %v4771 = vpop.trf.xlu0
        %v4772 = vpop.trf.xlu0
        %4773 = vxpose.xlu0.c.b16.start [1/8] %v4707, 128
        %4774 = vxpose.xlu0.c.b16.cont [2/8] 0, 128
        %4775 = vxpose.xlu0.c.b16.cont [3/8] 0, 128
        %4776 = vxpose.xlu0.c.b16.cont [4/8] 0, 128
        %4777 = vxpose.xlu0.c.b16.cont [5/8] 0, 128
        %4778 = vxpose.xlu0.c.b16.cont [6/8] 0, 128
        %4779 = vxpose.xlu0.c.b16.cont [7/8] 0, 128
        %4780 = vxpose.xlu0.c.b16.end [8/8] 0, 128
        %v4781 = vpop.trf.xlu0
        %v4782 = vpop.trf.xlu0
        %v4783 = vpop.trf.xlu0
        %v4784 = vpop.trf.xlu0
        %v4785 = vpop.trf.xlu0
        %v4786 = vpop.trf.xlu0
        %v4787 = vpop.trf.xlu0
        %v4788 = vpop.trf.xlu0
        %4789 = vxpose.xlu0.c.b16.start [1/8] %v4711, 128
        %4790 = vxpose.xlu0.c.b16.cont [2/8] 0, 128
        %4791 = vxpose.xlu0.c.b16.cont [3/8] 0, 128
        %4792 = vxpose.xlu0.c.b16.cont [4/8] 0, 128
        %4793 = vxpose.xlu0.c.b16.cont [5/8] 0, 128
        %4794 = vxpose.xlu0.c.b16.cont [6/8] 0, 128
        %4795 = vxpose.xlu0.c.b16.cont [7/8] 0, 128
        %4796 = vxpose.xlu0.c.b16.end [8/8] 0, 128
        %v4797 = vpop.trf.xlu0
        %v4798 = vpop.trf.xlu0
        %v4799 = vpop.trf.xlu0
        %v4800 = vpop.trf.xlu0
        %v4801 = vpop.trf.xlu0
        %v4802 = vpop.trf.xlu0
        %v4803 = vpop.trf.xlu0
        %v4804 = vpop.trf.xlu0
        %4805 = vxpose.xlu0.c.b16.start [1/8] %v4715, 128
        %4806 = vxpose.xlu0.c.b16.cont [2/8] 0, 128
        %4807 = vxpose.xlu0.c.b16.cont [3/8] 0, 128
        %4808 = vxpose.xlu0.c.b16.cont [4/8] 0, 128
        %4809 = vxpose.xlu0.c.b16.cont [5/8] 0, 128
        %4810 = vxpose.xlu0.c.b16.cont [6/8] 0, 128
        %4811 = vxpose.xlu0.c.b16.cont [7/8] 0, 128
        %4812 = vxpose.xlu0.c.b16.end [8/8] 0, 128
        %v4813 = vpop.trf.xlu0
        %v4814 = vpop.trf.xlu0
        %v4815 = vpop.trf.xlu0
        %v4816 = vpop.trf.xlu0
        %v4817 = vpop.trf.xlu0
        %v4818 = vpop.trf.xlu0
        %v4819 = vpop.trf.xlu0
        %v4820 = vpop.trf.xlu0
        %4821 = vxpose.xlu0.c.b16.start [1/8] %v4719, 128
        %4822 = vxpose.xlu0.c.b16.cont [2/8] 0, 128
        %4823 = vxpose.xlu0.c.b16.cont [3/8] 0, 128
        %4824 = vxpose.xlu0.c.b16.cont [4/8] 0, 128
        %4825 = vxpose.xlu0.c.b16.cont [5/8] 0, 128
        %4826 = vxpose.xlu0.c.b16.cont [6/8] 0, 128
        %4827 = vxpose.xlu0.c.b16.cont [7/8] 0, 128
        %4828 = vxpose.xlu0.c.b16.end [8/8] 0, 128
        %v4829 = vpop.trf.xlu0
        %v4830 = vpop.trf.xlu0
        %v4831 = vpop.trf.xlu0
        %v4832 = vpop.trf.xlu0
        %v4833 = vpop.trf.xlu0
        %v4834 = vpop.trf.xlu0
        %v4835 = vpop.trf.xlu0
        %v4836 = vpop.trf.xlu0
        %4837 = vxpose.xlu0.c.b16.start [1/8] %v4723, 128
        %4838 = vxpose.xlu0.c.b16.cont [2/8] 0, 128
        %4839 = vxpose.xlu0.c.b16.cont [3/8] 0, 128
        %4840 = vxpose.xlu0.c.b16.cont [4/8] 0, 128
        %4841 = vxpose.xlu0.c.b16.cont [5/8] 0, 128
        %4842 = vxpose.xlu0.c.b16.cont [6/8] 0, 128
        %4843 = vxpose.xlu0.c.b16.cont [7/8] 0, 128
        %4844 = vxpose.xlu0.c.b16.end [8/8] 0, 128
        %v4845 = vpop.trf.xlu0
        %v4846 = vpop.trf.xlu0
        %v4847 = vpop.trf.xlu0
        %v4848 = vpop.trf.xlu0
        %v4849 = vpop.trf.xlu0
        %v4850 = vpop.trf.xlu0
        %v4851 = vpop.trf.xlu0
        %v4852 = vpop.trf.xlu0
        %v4853 = vrot.slane %v4797, 4
        %v4854 = vsel %vm646, %v4853, %v4733
        %v4856 = vunpack.c.l.s4 1983009808
        %v4857 = vunpack.c.0.s8 %v4856
        %v4858 = vperm.slane %v4854, %v4857
        %v4859 = vrot.slane %v4829, 4
        %v4860 = vsel %vm646, %v4859, %v4765
        %v4862 = vunpack.c.l.s4 1983009808
        %v4863 = vunpack.c.0.s8 %v4862
        %v4864 = vperm.slane %v4860, %v4863
        %v4865 = vrot.slane %v4864, 4
        %v4866 = vsel %vm646, %v4865, %v4858
        %v4868 = vunpack.c.l.s4 1934713408
        %v4869 = vunpack.c.0.s8 %v4868
        %v4870 = vperm.slane %v4866, %v4869
        %v4871 = vrot.slane %v4870, 4
        %v4872 = vsel %vm646, 0, %v4871
        %v4873 = vrot.slane %v4813, 4
        %v4874 = vsel %vm646, %v4873, %v4749
        %v4876 = vunpack.c.l.s4 1983009808
        %v4877 = vunpack.c.0.s8 %v4876
        %v4878 = vperm.slane %v4874, %v4877
        %v4879 = vrot.slane %v4845, 4
        %v4880 = vsel %vm646, %v4879, %v4781
        %v4882 = vunpack.c.l.s4 1983009808
        %v4883 = vunpack.c.0.s8 %v4882
        %v4884 = vperm.slane %v4880, %v4883
        %v4885 = vrot.slane %v4884, 4
        %v4886 = vsel %vm646, %v4885, %v4878
        %v4888 = vunpack.c.l.s4 1934713408
        %v4889 = vunpack.c.0.s8 %v4888
        %v4890 = vperm.slane %v4886, %v4889
        %v4891 = vrot.slane %v4890, 4
        %v4892 = vsel %vm646, 0, %v4891
        %v4895 = vpack.i.b16 %v4890, %v4870
        %v4896 = vshrl.u32 %v4870, 16
        %v4897 = vshrl.u32 %v4890, 16
        %v4898 = vpack.i.b16 %v4897, %v4896
        %v4901 = vpack.i.b16 %v4892, %v4872
        %v4902 = vshrl.u32 %v4872, 16
        %v4903 = vshrl.u32 %v4892, 16
        %v4904 = vpack.i.b16 %v4903, %v4902
        %v4906 = vsel %vm1094, %v4499, 0
        %v4909 = vsel %vm1098, %v4895, 0
        %4911 = vmatpush.bf16.msra.mxu0 0
        %4912 = vmatpush.bf16.msra.mxu0 0
        %4913 = vmatpush.bf16.msra.mxu0 0
        %4914 = vmatpush.bf16.msra.mxu0 0
        %4915 = vmatpush.bf16.msra.mxu0 0
        %4916 = vmatpush.bf16.msra.mxu0 0
        %4917 = vmatpush.bf16.msra.mxu0 0
        %4918 = vmatpush.bf16.msra.mxu0 %v4909
        %4919 = vmatmul.bf16.gmra.mxu0 %v4906
        %v4920 = vpop.f32.mrf.mxu0
        %v4921 = vadd.f32 0.0, %v4920
        %v4922 = vpop.f32.mrf.mxu0
        %4923 = vdwg.mxu0
        %v4925 = vsel %vm1094, %v4502, 0
        %v4928 = vsel %vm1098, %v4898, 0
        %4930 = vmatpush.bf16.msra.mxu0 0
        %4931 = vmatpush.bf16.msra.mxu0 0
        %4932 = vmatpush.bf16.msra.mxu0 0
        %4933 = vmatpush.bf16.msra.mxu0 0
        %4934 = vmatpush.bf16.msra.mxu0 0
        %4935 = vmatpush.bf16.msra.mxu0 0
        %4936 = vmatpush.bf16.msra.mxu0 0
        %4937 = vmatpush.bf16.msra.mxu0 %v4928
        %4938 = vmatmul.bf16.gmra.mxu0 %v4925
        %v4939 = vpop.f32.mrf.mxu0
        %v4940 = vadd.f32 0.0, %v4939
        %v4941 = vpop.f32.mrf.mxu0
        %4942 = vdwg.mxu0
        %v4944 = vsel %vm1094, %v4505, 0
        %v4947 = vsel %vm1098, %v4901, 0
        %4949 = vmatpush.bf16.msra.mxu0 0
        %4950 = vmatpush.bf16.msra.mxu0 0
        %4951 = vmatpush.bf16.msra.mxu0 0
        %4952 = vmatpush.bf16.msra.mxu0 0
        %4953 = vmatpush.bf16.msra.mxu0 0
        %4954 = vmatpush.bf16.msra.mxu0 0
        %4955 = vmatpush.bf16.msra.mxu0 0
        %4956 = vmatpush.bf16.msra.mxu0 %v4947
        %4957 = vmatmul.bf16.gmra.mxu0 %v4944
        %v4958 = vpop.f32.mrf.mxu0
        %v4959 = vadd.f32 0.0, %v4958
        %v4960 = vpop.f32.mrf.mxu0
        %4961 = vdwg.mxu0
        %v4963 = vsel %vm1094, %v4508, 0
        %v4966 = vsel %vm1098, %v4904, 0
        %4968 = vmatpush.bf16.msra.mxu0 0
        %4969 = vmatpush.bf16.msra.mxu0 0
        %4970 = vmatpush.bf16.msra.mxu0 0
        %4971 = vmatpush.bf16.msra.mxu0 0
        %4972 = vmatpush.bf16.msra.mxu0 0
        %4973 = vmatpush.bf16.msra.mxu0 0
        %4974 = vmatpush.bf16.msra.mxu0 0
        %4975 = vmatpush.bf16.msra.mxu0 %v4966
        %4976 = vmatmul.bf16.gmra.mxu0 %v4963
        %v4977 = vpop.f32.mrf.mxu0
        %v4978 = vadd.f32 0.0, %v4977
        %v4979 = vpop.f32.mrf.mxu0
        %4980 = vdwg.mxu0
        %v4981 = vmul.f32 %v4921, 0.35355338
        %v4982 = vmul.f32 %v4940, 0.35355338
        %v4983 = vmul.f32 %v4959, 0.35355338
        %v4984 = vmul.f32 %v4978, 0.35355338
        %v4985 = vsel %vm1094, %v4981, -inf
        %4986 = vmax.xlane.f32.xlu0 %v4985
        %v4987 = vpop.xlane.xlu0 %4986
        %v4988 = vsel %vm1094, %v4982, -inf
        %4989 = vmax.xlane.f32.xlu0 %v4988
        %v4990 = vpop.xlane.xlu0 %4989
        %v4991 = vsel %vm1094, %v4983, -inf
        %4992 = vmax.xlane.f32.xlu0 %v4991
        %v4993 = vpop.xlane.xlu0 %4992
        %v4994 = vsel %vm1094, %v4984, -inf
        %4995 = vmax.xlane.f32.xlu0 %v4994
        %v4996 = vpop.xlane.xlu0 %4995
        %v4997 = vsub.f32 %v4981, %v4987
        %v4998 = vsub.f32 %v4982, %v4990
        %v4999 = vsub.f32 %v4983, %v4993
        %v5000 = vsub.f32 %v4984, %v4996
        %v5001 = vmul.f32 %v4997, 1.442695
        %v5002 = vpow.pop %v5001
        %v5003 = vmul.f32 %v4998, 1.442695
        %v5004 = vpow.pop %v5003
        %v5005 = vmul.f32 %v4999, 1.442695
        %v5006 = vpow.pop %v5005
        %v5007 = vmul.f32 %v5000, 1.442695
        %v5008 = vpow.pop %v5007
        %v5009 = vsel %vm1094, %v5002, 0.0
        %5010 = vadd.xlane.f32.xlu0 %v5009
        %v5011 = vpop.xlane.xlu0 %5010
        %v5012 = vsel %vm1094, %v5004, 0.0
        %5013 = vadd.xlane.f32.xlu0 %v5012
        %v5014 = vpop.xlane.xlu0 %5013
        %v5015 = vsel %vm1094, %v5006, 0.0
        %5016 = vadd.xlane.f32.xlu0 %v5015
        %v5017 = vpop.xlane.xlu0 %5016
        %v5018 = vsel %vm1094, %v5008, 0.0
        %5019 = vadd.xlane.f32.xlu0 %v5018
        %v5020 = vpop.xlane.xlu0 %5019
        %v5021 = vrcp.pop %v5011
        %v5022 = vrcp.pop %v5014
        %v5023 = vrcp.pop %v5017
        %v5024 = vrcp.pop %v5020
        %v5025 = vmul.f32 %v5002, %v5021
        %v5026 = vmul.f32 %v5004, %v5022
        %v5027 = vmul.f32 %v5006, %v5023
        %v5028 = vmul.f32 %v5008, %v5024
        %v5029 = vpack.c.bf16 %v5025, %v5025
        %v5030 = vpack.c.bf16 %v5026, %v5026
        %v5031 = vpack.c.bf16 %v5027, %v5027
        %v5032 = vpack.c.bf16 %v5028, %v5028
        %v5033 = vpack.c.bf16 %v4416, %v4416
        %v5034 = vpack.c.bf16 %v4434, %v4434
        %v5035 = vpack.c.bf16 %v4420, %v4420
        %v5036 = vpack.c.bf16 %v4436, %v4436
        %v5037 = vpack.c.bf16 %v4428, %v4428
        %v5038 = vpack.c.bf16 %v4438, %v4438
        %v5039 = vpack.c.bf16 %v4432, %v4432
        %v5040 = vpack.c.bf16 %v4440, %v4440
        %5041 = vxpose.xlu0.c.b16.start [1/8] %v5033, 128
        %5042 = vxpose.xlu0.c.b16.cont [2/8] 0, 128
        %5043 = vxpose.xlu0.c.b16.cont [3/8] 0, 128
        %5044 = vxpose.xlu0.c.b16.cont [4/8] 0, 128
        %5045 = vxpose.xlu0.c.b16.cont [5/8] 0, 128
        %5046 = vxpose.xlu0.c.b16.cont [6/8] 0, 128
        %5047 = vxpose.xlu0.c.b16.cont [7/8] 0, 128
        %5048 = vxpose.xlu0.c.b16.end [8/8] 0, 128
        %v5049 = vpop.trf.xlu0
        %v5050 = vpop.trf.xlu0
        %v5051 = vpop.trf.xlu0
        %v5052 = vpop.trf.xlu0
        %v5053 = vpop.trf.xlu0
        %v5054 = vpop.trf.xlu0
        %v5055 = vpop.trf.xlu0
        %v5056 = vpop.trf.xlu0
        %5057 = vxpose.xlu0.c.b16.start [1/8] %v5034, 128
        %5058 = vxpose.xlu0.c.b16.cont [2/8] 0, 128
        %5059 = vxpose.xlu0.c.b16.cont [3/8] 0, 128
        %5060 = vxpose.xlu0.c.b16.cont [4/8] 0, 128
        %5061 = vxpose.xlu0.c.b16.cont [5/8] 0, 128
        %5062 = vxpose.xlu0.c.b16.cont [6/8] 0, 128
        %5063 = vxpose.xlu0.c.b16.cont [7/8] 0, 128
        %5064 = vxpose.xlu0.c.b16.end [8/8] 0, 128
        %v5065 = vpop.trf.xlu0
        %v5066 = vpop.trf.xlu0
        %v5067 = vpop.trf.xlu0
        %v5068 = vpop.trf.xlu0
        %v5069 = vpop.trf.xlu0
        %v5070 = vpop.trf.xlu0
        %v5071 = vpop.trf.xlu0
        %v5072 = vpop.trf.xlu0
        %5073 = vxpose.xlu0.c.b16.start [1/8] %v5035, 128
        %5074 = vxpose.xlu0.c.b16.cont [2/8] 0, 128
        %5075 = vxpose.xlu0.c.b16.cont [3/8] 0, 128
        %5076 = vxpose.xlu0.c.b16.cont [4/8] 0, 128
        %5077 = vxpose.xlu0.c.b16.cont [5/8] 0, 128
        %5078 = vxpose.xlu0.c.b16.cont [6/8] 0, 128
        %5079 = vxpose.xlu0.c.b16.cont [7/8] 0, 128
        %5080 = vxpose.xlu0.c.b16.end [8/8] 0, 128
        %v5081 = vpop.trf.xlu0
        %v5082 = vpop.trf.xlu0
        %v5083 = vpop.trf.xlu0
        %v5084 = vpop.trf.xlu0
        %v5085 = vpop.trf.xlu0
        %v5086 = vpop.trf.xlu0
        %v5087 = vpop.trf.xlu0
        %v5088 = vpop.trf.xlu0
        %5089 = vxpose.xlu0.c.b16.start [1/8] %v5036, 128
        %5090 = vxpose.xlu0.c.b16.cont [2/8] 0, 128
        %5091 = vxpose.xlu0.c.b16.cont [3/8] 0, 128
        %5092 = vxpose.xlu0.c.b16.cont [4/8] 0, 128
        %5093 = vxpose.xlu0.c.b16.cont [5/8] 0, 128
        %5094 = vxpose.xlu0.c.b16.cont [6/8] 0, 128
        %5095 = vxpose.xlu0.c.b16.cont [7/8] 0, 128
        %5096 = vxpose.xlu0.c.b16.end [8/8] 0, 128
        %v5097 = vpop.trf.xlu0
        %v5098 = vpop.trf.xlu0
        %v5099 = vpop.trf.xlu0
        %v5100 = vpop.trf.xlu0
        %v5101 = vpop.trf.xlu0
        %v5102 = vpop.trf.xlu0
        %v5103 = vpop.trf.xlu0
        %v5104 = vpop.trf.xlu0
        %5105 = vxpose.xlu0.c.b16.start [1/8] %v5037, 128
        %5106 = vxpose.xlu0.c.b16.cont [2/8] 0, 128
        %5107 = vxpose.xlu0.c.b16.cont [3/8] 0, 128
        %5108 = vxpose.xlu0.c.b16.cont [4/8] 0, 128
        %5109 = vxpose.xlu0.c.b16.cont [5/8] 0, 128
        %5110 = vxpose.xlu0.c.b16.cont [6/8] 0, 128
        %5111 = vxpose.xlu0.c.b16.cont [7/8] 0, 128
        %5112 = vxpose.xlu0.c.b16.end [8/8] 0, 128
        %v5113 = vpop.trf.xlu0
        %v5114 = vpop.trf.xlu0
        %v5115 = vpop.trf.xlu0
        %v5116 = vpop.trf.xlu0
        %v5117 = vpop.trf.xlu0
        %v5118 = vpop.trf.xlu0
        %v5119 = vpop.trf.xlu0
        %v5120 = vpop.trf.xlu0
        %5121 = vxpose.xlu0.c.b16.start [1/8] %v5038, 128
        %5122 = vxpose.xlu0.c.b16.cont [2/8] 0, 128
        %5123 = vxpose.xlu0.c.b16.cont [3/8] 0, 128
        %5124 = vxpose.xlu0.c.b16.cont [4/8] 0, 128
        %5125 = vxpose.xlu0.c.b16.cont [5/8] 0, 128
        %5126 = vxpose.xlu0.c.b16.cont [6/8] 0, 128
        %5127 = vxpose.xlu0.c.b16.cont [7/8] 0, 128
        %5128 = vxpose.xlu0.c.b16.end [8/8] 0, 128
        %v5129 = vpop.trf.xlu0
        %v5130 = vpop.trf.xlu0
        %v5131 = vpop.trf.xlu0
        %v5132 = vpop.trf.xlu0
        %v5133 = vpop.trf.xlu0
        %v5134 = vpop.trf.xlu0
        %v5135 = vpop.trf.xlu0
        %v5136 = vpop.trf.xlu0
        %5137 = vxpose.xlu0.c.b16.start [1/8] %v5039, 128
        %5138 = vxpose.xlu0.c.b16.cont [2/8] 0, 128
        %5139 = vxpose.xlu0.c.b16.cont [3/8] 0, 128
        %5140 = vxpose.xlu0.c.b16.cont [4/8] 0, 128
        %5141 = vxpose.xlu0.c.b16.cont [5/8] 0, 128
        %5142 = vxpose.xlu0.c.b16.cont [6/8] 0, 128
        %5143 = vxpose.xlu0.c.b16.cont [7/8] 0, 128
        %5144 = vxpose.xlu0.c.b16.end [8/8] 0, 128
        %v5145 = vpop.trf.xlu0
        %v5146 = vpop.trf.xlu0
        %v5147 = vpop.trf.xlu0
        %v5148 = vpop.trf.xlu0
        %v5149 = vpop.trf.xlu0
        %v5150 = vpop.trf.xlu0
        %v5151 = vpop.trf.xlu0
        %v5152 = vpop.trf.xlu0
        %5153 = vxpose.xlu0.c.b16.start [1/8] %v5040, 128
        %5154 = vxpose.xlu0.c.b16.cont [2/8] 0, 128
        %5155 = vxpose.xlu0.c.b16.cont [3/8] 0, 128
        %5156 = vxpose.xlu0.c.b16.cont [4/8] 0, 128
        %5157 = vxpose.xlu0.c.b16.cont [5/8] 0, 128
        %5158 = vxpose.xlu0.c.b16.cont [6/8] 0, 128
        %5159 = vxpose.xlu0.c.b16.cont [7/8] 0, 128
        %5160 = vxpose.xlu0.c.b16.end [8/8] 0, 128
        %v5161 = vpop.trf.xlu0
        %v5162 = vpop.trf.xlu0
        %v5163 = vpop.trf.xlu0
        %v5164 = vpop.trf.xlu0
        %v5165 = vpop.trf.xlu0
        %v5166 = vpop.trf.xlu0
        %v5167 = vpop.trf.xlu0
        %v5168 = vpop.trf.xlu0
        %v5169 = vrot.slane %v5113, 4
        %v5170 = vsel %vm646, %v5169, %v5049
        %v5172 = vunpack.c.l.s4 1983009808
        %v5173 = vunpack.c.0.s8 %v5172
        %v5174 = vperm.slane %v5170, %v5173
        %v5175 = vrot.slane %v5145, 4
        %v5176 = vsel %vm646, %v5175, %v5081
        %v5178 = vunpack.c.l.s4 1983009808
        %v5179 = vunpack.c.0.s8 %v5178
        %v5180 = vperm.slane %v5176, %v5179
        %v5181 = vrot.slane %v5180, 4
        %v5182 = vsel %vm646, %v5181, %v5174
        %v5183 = vrot.slane %v5174, 4
        %v5184 = vsel %vm646, %v5180, %v5183
        %v5186 = vunpack.c.l.s4 1934713408
        %v5187 = vunpack.c.0.s8 %v5186
        %v5188 = vperm.slane %v5182, %v5187
        %v5190 = vunpack.c.l.s4 1934713408
        %v5191 = vunpack.c.0.s8 %v5190
        %v5192 = vperm.slane %v5184, %v5191
        %v5193 = vrot.slane %v5188, 4
        %v5194 = vsel %vm646, 0, %v5193
        %v5195 = vrot.slane %v5192, 4
        %v5196 = vsel %vm646, 0, %v5195
        %v5197 = vrot.slane %v5129, 4
        %v5198 = vsel %vm646, %v5197, %v5065
        %v5200 = vunpack.c.l.s4 1983009808
        %v5201 = vunpack.c.0.s8 %v5200
        %v5202 = vperm.slane %v5198, %v5201
        %v5203 = vrot.slane %v5161, 4
        %v5204 = vsel %vm646, %v5203, %v5097
        %v5206 = vunpack.c.l.s4 1983009808
        %v5207 = vunpack.c.0.s8 %v5206
        %v5208 = vperm.slane %v5204, %v5207
        %v5209 = vrot.slane %v5208, 4
        %v5210 = vsel %vm646, %v5209, %v5202
        %v5211 = vrot.slane %v5202, 4
        %v5212 = vsel %vm646, %v5208, %v5211
        %v5214 = vunpack.c.l.s4 1934713408
        %v5215 = vunpack.c.0.s8 %v5214
        %v5216 = vperm.slane %v5210, %v5215
        %v5218 = vunpack.c.l.s4 1934713408
        %v5219 = vunpack.c.0.s8 %v5218
        %v5220 = vperm.slane %v5212, %v5219
        %v5221 = vrot.slane %v5216, 4
        %v5222 = vsel %vm646, 0, %v5221
        %v5223 = vrot.slane %v5220, 4
        %v5224 = vsel %vm646, 0, %v5223
        %v5227 = vpack.i.b16 %v5216, %v5188
        %v5229 = vshrl.u32 %v5188, 16
        %v5230 = vshrl.u32 %v5216, 16
        %v5231 = vpack.i.b16 %v5230, %v5229
        %v5235 = vpack.i.b16 %v5222, %v5194
        %v5237 = vshrl.u32 %v5194, 16
        %v5238 = vshrl.u32 %v5222, 16
        %v5239 = vpack.i.b16 %v5238, %v5237
        %v5243 = vpack.i.b16 %v5220, %v5192
        %v5245 = vshrl.u32 %v5192, 16
        %v5246 = vshrl.u32 %v5220, 16
        %v5247 = vpack.i.b16 %v5246, %v5245
        %v5251 = vpack.i.b16 %v5224, %v5196
        %v5253 = vshrl.u32 %v5196, 16
        %v5254 = vshrl.u32 %v5224, 16
        %v5255 = vpack.i.b16 %v5254, %v5253
        %5257 = vxpose.xlu0.c.b16.start [1/8] %v5227, 128
        %5258 = vxpose.xlu0.c.b16.cont [2/8] 0, 128
        %5259 = vxpose.xlu0.c.b16.cont [3/8] 0, 128
        %5260 = vxpose.xlu0.c.b16.cont [4/8] 0, 128
        %5261 = vxpose.xlu0.c.b16.cont [5/8] 0, 128
        %5262 = vxpose.xlu0.c.b16.cont [6/8] 0, 128
        %5263 = vxpose.xlu0.c.b16.cont [7/8] 0, 128
        %5264 = vxpose.xlu0.c.b16.end [8/8] 0, 128
        %v5265 = vpop.trf.xlu0
        %v5266 = vpop.trf.xlu0
        %v5267 = vpop.trf.xlu0
        %v5268 = vpop.trf.xlu0
        %v5269 = vpop.trf.xlu0
        %v5270 = vpop.trf.xlu0
        %v5271 = vpop.trf.xlu0
        %v5272 = vpop.trf.xlu0
        %5273 = vxpose.xlu0.c.b16.start [1/8] %v5231, 128
        %5274 = vxpose.xlu0.c.b16.cont [2/8] 0, 128
        %5275 = vxpose.xlu0.c.b16.cont [3/8] 0, 128
        %5276 = vxpose.xlu0.c.b16.cont [4/8] 0, 128
        %5277 = vxpose.xlu0.c.b16.cont [5/8] 0, 128
        %5278 = vxpose.xlu0.c.b16.cont [6/8] 0, 128
        %5279 = vxpose.xlu0.c.b16.cont [7/8] 0, 128
        %5280 = vxpose.xlu0.c.b16.end [8/8] 0, 128
        %v5281 = vpop.trf.xlu0
        %v5282 = vpop.trf.xlu0
        %v5283 = vpop.trf.xlu0
        %v5284 = vpop.trf.xlu0
        %v5285 = vpop.trf.xlu0
        %v5286 = vpop.trf.xlu0
        %v5287 = vpop.trf.xlu0
        %v5288 = vpop.trf.xlu0
        %5289 = vxpose.xlu0.c.b16.start [1/8] %v5235, 128
        %5290 = vxpose.xlu0.c.b16.cont [2/8] 0, 128
        %5291 = vxpose.xlu0.c.b16.cont [3/8] 0, 128
        %5292 = vxpose.xlu0.c.b16.cont [4/8] 0, 128
        %5293 = vxpose.xlu0.c.b16.cont [5/8] 0, 128
        %5294 = vxpose.xlu0.c.b16.cont [6/8] 0, 128
        %5295 = vxpose.xlu0.c.b16.cont [7/8] 0, 128
        %5296 = vxpose.xlu0.c.b16.end [8/8] 0, 128
        %v5297 = vpop.trf.xlu0
        %v5298 = vpop.trf.xlu0
        %v5299 = vpop.trf.xlu0
        %v5300 = vpop.trf.xlu0
        %v5301 = vpop.trf.xlu0
        %v5302 = vpop.trf.xlu0
        %v5303 = vpop.trf.xlu0
        %v5304 = vpop.trf.xlu0
        %5305 = vxpose.xlu0.c.b16.start [1/8] %v5239, 128
        %5306 = vxpose.xlu0.c.b16.cont [2/8] 0, 128
        %5307 = vxpose.xlu0.c.b16.cont [3/8] 0, 128
        %5308 = vxpose.xlu0.c.b16.cont [4/8] 0, 128
        %5309 = vxpose.xlu0.c.b16.cont [5/8] 0, 128
        %5310 = vxpose.xlu0.c.b16.cont [6/8] 0, 128
        %5311 = vxpose.xlu0.c.b16.cont [7/8] 0, 128
        %5312 = vxpose.xlu0.c.b16.end [8/8] 0, 128
        %v5313 = vpop.trf.xlu0
        %v5314 = vpop.trf.xlu0
        %v5315 = vpop.trf.xlu0
        %v5316 = vpop.trf.xlu0
        %v5317 = vpop.trf.xlu0
        %v5318 = vpop.trf.xlu0
        %v5319 = vpop.trf.xlu0
        %v5320 = vpop.trf.xlu0
        %5321 = vxpose.xlu0.c.b16.start [1/8] %v5243, 128
        %5322 = vxpose.xlu0.c.b16.cont [2/8] 0, 128
        %5323 = vxpose.xlu0.c.b16.cont [3/8] 0, 128
        %5324 = vxpose.xlu0.c.b16.cont [4/8] 0, 128
        %5325 = vxpose.xlu0.c.b16.cont [5/8] 0, 128
        %5326 = vxpose.xlu0.c.b16.cont [6/8] 0, 128
        %5327 = vxpose.xlu0.c.b16.cont [7/8] 0, 128
        %5328 = vxpose.xlu0.c.b16.end [8/8] 0, 128
        %v5329 = vpop.trf.xlu0
        %v5330 = vpop.trf.xlu0
        %v5331 = vpop.trf.xlu0
        %v5332 = vpop.trf.xlu0
        %v5333 = vpop.trf.xlu0
        %v5334 = vpop.trf.xlu0
        %v5335 = vpop.trf.xlu0
        %v5336 = vpop.trf.xlu0
        %5337 = vxpose.xlu0.c.b16.start [1/8] %v5247, 128
        %5338 = vxpose.xlu0.c.b16.cont [2/8] 0, 128
        %5339 = vxpose.xlu0.c.b16.cont [3/8] 0, 128
        %5340 = vxpose.xlu0.c.b16.cont [4/8] 0, 128
        %5341 = vxpose.xlu0.c.b16.cont [5/8] 0, 128
        %5342 = vxpose.xlu0.c.b16.cont [6/8] 0, 128
        %5343 = vxpose.xlu0.c.b16.cont [7/8] 0, 128
        %5344 = vxpose.xlu0.c.b16.end [8/8] 0, 128
        %v5345 = vpop.trf.xlu0
        %v5346 = vpop.trf.xlu0
        %v5347 = vpop.trf.xlu0
        %v5348 = vpop.trf.xlu0
        %v5349 = vpop.trf.xlu0
        %v5350 = vpop.trf.xlu0
        %v5351 = vpop.trf.xlu0
        %v5352 = vpop.trf.xlu0
        %5353 = vxpose.xlu0.c.b16.start [1/8] %v5251, 128
        %5354 = vxpose.xlu0.c.b16.cont [2/8] 0, 128
        %5355 = vxpose.xlu0.c.b16.cont [3/8] 0, 128
        %5356 = vxpose.xlu0.c.b16.cont [4/8] 0, 128
        %5357 = vxpose.xlu0.c.b16.cont [5/8] 0, 128
        %5358 = vxpose.xlu0.c.b16.cont [6/8] 0, 128
        %5359 = vxpose.xlu0.c.b16.cont [7/8] 0, 128
        %5360 = vxpose.xlu0.c.b16.end [8/8] 0, 128
        %v5361 = vpop.trf.xlu0
        %v5362 = vpop.trf.xlu0
        %v5363 = vpop.trf.xlu0
        %v5364 = vpop.trf.xlu0
        %v5365 = vpop.trf.xlu0
        %v5366 = vpop.trf.xlu0
        %v5367 = vpop.trf.xlu0
        %v5368 = vpop.trf.xlu0
        %5369 = vxpose.xlu0.c.b16.start [1/8] %v5255, 128
        %5370 = vxpose.xlu0.c.b16.cont [2/8] 0, 128
        %5371 = vxpose.xlu0.c.b16.cont [3/8] 0, 128
        %5372 = vxpose.xlu0.c.b16.cont [4/8] 0, 128
        %5373 = vxpose.xlu0.c.b16.cont [5/8] 0, 128
        %5374 = vxpose.xlu0.c.b16.cont [6/8] 0, 128
        %5375 = vxpose.xlu0.c.b16.cont [7/8] 0, 128
        %5376 = vxpose.xlu0.c.b16.end [8/8] 0, 128
        %v5377 = vpop.trf.xlu0
        %v5378 = vpop.trf.xlu0
        %v5379 = vpop.trf.xlu0
        %v5380 = vpop.trf.xlu0
        %v5381 = vpop.trf.xlu0
        %v5382 = vpop.trf.xlu0
        %v5383 = vpop.trf.xlu0
        %v5384 = vpop.trf.xlu0
        %v5385 = vrot.slane %v5329, 4
        %v5386 = vsel %vm646, %v5385, %v5265
        %v5388 = vunpack.c.l.s4 1983009808
        %v5389 = vunpack.c.0.s8 %v5388
        %v5390 = vperm.slane %v5386, %v5389
        %v5391 = vrot.slane %v5361, 4
        %v5392 = vsel %vm646, %v5391, %v5297
        %v5394 = vunpack.c.l.s4 1983009808
        %v5395 = vunpack.c.0.s8 %v5394
        %v5396 = vperm.slane %v5392, %v5395
        %v5397 = vrot.slane %v5396, 4
        %v5398 = vsel %vm646, %v5397, %v5390
        %v5400 = vunpack.c.l.s4 1934713408
        %v5401 = vunpack.c.0.s8 %v5400
        %v5402 = vperm.slane %v5398, %v5401
        %v5403 = vrot.slane %v5402, 4
        %v5404 = vsel %vm646, 0, %v5403
        %v5405 = vrot.slane %v5345, 4
        %v5406 = vsel %vm646, %v5405, %v5281
        %v5408 = vunpack.c.l.s4 1983009808
        %v5409 = vunpack.c.0.s8 %v5408
        %v5410 = vperm.slane %v5406, %v5409
        %v5411 = vrot.slane %v5377, 4
        %v5412 = vsel %vm646, %v5411, %v5313
        %v5414 = vunpack.c.l.s4 1983009808
        %v5415 = vunpack.c.0.s8 %v5414
        %v5416 = vperm.slane %v5412, %v5415
        %v5417 = vrot.slane %v5416, 4
        %v5418 = vsel %vm646, %v5417, %v5410
        %v5420 = vunpack.c.l.s4 1934713408
        %v5421 = vunpack.c.0.s8 %v5420
        %v5422 = vperm.slane %v5418, %v5421
        %v5423 = vrot.slane %v5422, 4
        %v5424 = vsel %vm646, 0, %v5423
        %v5427 = vpack.i.b16 %v5422, %v5402
        %v5428 = vshrl.u32 %v5402, 16
        %v5429 = vshrl.u32 %v5422, 16
        %v5430 = vpack.i.b16 %v5429, %v5428
        %v5433 = vpack.i.b16 %v5424, %v5404
        %v5434 = vshrl.u32 %v5404, 16
        %v5435 = vshrl.u32 %v5424, 16
        %v5436 = vpack.i.b16 %v5435, %v5434
        %v5438 = vsel %vm1094, %v5427, 0
        %v5441 = vsel %vm1094, %v5029, 0
        %5443 = vmatpush.bf16.xpose.msra.mxu0 0
        %5444 = vmatpush.bf16.xpose.msra.mxu0 0
        %5445 = vmatpush.bf16.xpose.msra.mxu0 0
        %5446 = vmatpush.bf16.xpose.msra.mxu0 0
        %5447 = vmatpush.bf16.xpose.msra.mxu0 0
        %5448 = vmatpush.bf16.xpose.msra.mxu0 0
        %5449 = vmatpush.bf16.xpose.msra.mxu0 0
        %5450 = vmatpush.bf16.xpose.msra.mxu0 %v5441
        %5451 = vmatmul.bf16.gmra.mxu0 %v5438
        %v5452 = vpop.f32.mrf.mxu0
        %v5453 = vadd.f32 0.0, %v5452
        %v5454 = vpop.f32.mrf.mxu0
        %5455 = vdwg.mxu0
        %v5457 = vsel %vm1094, %v5430, 0
        %v5460 = vsel %vm1094, %v5030, 0
        %5462 = vmatpush.bf16.xpose.msra.mxu0 0
        %5463 = vmatpush.bf16.xpose.msra.mxu0 0
        %5464 = vmatpush.bf16.xpose.msra.mxu0 0
        %5465 = vmatpush.bf16.xpose.msra.mxu0 0
        %5466 = vmatpush.bf16.xpose.msra.mxu0 0
        %5467 = vmatpush.bf16.xpose.msra.mxu0 0
        %5468 = vmatpush.bf16.xpose.msra.mxu0 0
        %5469 = vmatpush.bf16.xpose.msra.mxu0 %v5460
        %5470 = vmatmul.bf16.gmra.mxu0 %v5457
        %v5471 = vpop.f32.mrf.mxu0
        %v5472 = vadd.f32 0.0, %v5471
        %v5473 = vpop.f32.mrf.mxu0
        %5474 = vdwg.mxu0
        %v5476 = vsel %vm1094, %v5433, 0
        %v5479 = vsel %vm1094, %v5031, 0
        %5481 = vmatpush.bf16.xpose.msra.mxu0 0
        %5482 = vmatpush.bf16.xpose.msra.mxu0 0
        %5483 = vmatpush.bf16.xpose.msra.mxu0 0
        %5484 = vmatpush.bf16.xpose.msra.mxu0 0
        %5485 = vmatpush.bf16.xpose.msra.mxu0 0
        %5486 = vmatpush.bf16.xpose.msra.mxu0 0
        %5487 = vmatpush.bf16.xpose.msra.mxu0 0
        %5488 = vmatpush.bf16.xpose.msra.mxu0 %v5479
        %5489 = vmatmul.bf16.gmra.mxu0 %v5476
        %v5490 = vpop.f32.mrf.mxu0
        %v5491 = vadd.f32 0.0, %v5490
        %v5492 = vpop.f32.mrf.mxu0
        %5493 = vdwg.mxu0
        %v5495 = vsel %vm1094, %v5436, 0
        %v5498 = vsel %vm1094, %v5032, 0
        %5500 = vmatpush.bf16.xpose.msra.mxu0 0
        %5501 = vmatpush.bf16.xpose.msra.mxu0 0
        %5502 = vmatpush.bf16.xpose.msra.mxu0 0
        %5503 = vmatpush.bf16.xpose.msra.mxu0 0
        %5504 = vmatpush.bf16.xpose.msra.mxu0 0
        %5505 = vmatpush.bf16.xpose.msra.mxu0 0
        %5506 = vmatpush.bf16.xpose.msra.mxu0 0
        %5507 = vmatpush.bf16.xpose.msra.mxu0 %v5498
        %5508 = vmatmul.bf16.gmra.mxu0 %v5495
        %v5509 = vpop.f32.mrf.mxu0
        %v5510 = vadd.f32 0.0, %v5509
        %v5511 = vpop.f32.mrf.mxu0
        %5512 = vdwg.mxu0
        %5513 = vxpose.xlu0.b32.start [1/16] %v5453, 128
        %5514 = vxpose.xlu0.b32.cont [2/16] 0.0, 128
        %5515 = vxpose.xlu0.b32.cont [3/16] 0.0, 128
        %5516 = vxpose.xlu0.b32.cont [4/16] 0.0, 128
        %5517 = vxpose.xlu0.b32.cont [5/16] 0.0, 128
        %5518 = vxpose.xlu0.b32.cont [6/16] 0.0, 128
        %5519 = vxpose.xlu0.b32.cont [7/16] 0.0, 128
        %5520 = vxpose.xlu0.b32.cont [8/16] 0.0, 128
        %5521 = vxpose.xlu0.b32.cont [9/16] 0.0, 128
        %5522 = vxpose.xlu0.b32.cont [10/16] 0.0, 128
        %5523 = vxpose.xlu0.b32.cont [11/16] 0.0, 128
        %5524 = vxpose.xlu0.b32.cont [12/16] 0.0, 128
        %5525 = vxpose.xlu0.b32.cont [13/16] 0.0, 128
        %5526 = vxpose.xlu0.b32.cont [14/16] 0.0, 128
        %5527 = vxpose.xlu0.b32.cont [15/16] 0.0, 128
        %5528 = vxpose.xlu0.b32.end [16/16] 0.0, 128
        %v5529 = vpop.trf.xlu0
        %v5530 = vpop.trf.xlu0
        %v5531 = vpop.trf.xlu0
        %v5532 = vpop.trf.xlu0
        %v5533 = vpop.trf.xlu0
        %v5534 = vpop.trf.xlu0
        %v5535 = vpop.trf.xlu0
        %v5536 = vpop.trf.xlu0
        %v5537 = vpop.trf.xlu0
        %v5538 = vpop.trf.xlu0
        %v5539 = vpop.trf.xlu0
        %v5540 = vpop.trf.xlu0
        %v5541 = vpop.trf.xlu0
        %v5542 = vpop.trf.xlu0
        %v5543 = vpop.trf.xlu0
        %v5544 = vpop.trf.xlu0
        %5545 = vxpose.xlu0.b32.start [1/16] %v5472, 128
        %5546 = vxpose.xlu0.b32.cont [2/16] 0.0, 128
        %5547 = vxpose.xlu0.b32.cont [3/16] 0.0, 128
        %5548 = vxpose.xlu0.b32.cont [4/16] 0.0, 128
        %5549 = vxpose.xlu0.b32.cont [5/16] 0.0, 128
        %5550 = vxpose.xlu0.b32.cont [6/16] 0.0, 128
        %5551 = vxpose.xlu0.b32.cont [7/16] 0.0, 128
        %5552 = vxpose.xlu0.b32.cont [8/16] 0.0, 128
        %5553 = vxpose.xlu0.b32.cont [9/16] 0.0, 128
        %5554 = vxpose.xlu0.b32.cont [10/16] 0.0, 128
        %5555 = vxpose.xlu0.b32.cont [11/16] 0.0, 128
        %5556 = vxpose.xlu0.b32.cont [12/16] 0.0, 128
        %5557 = vxpose.xlu0.b32.cont [13/16] 0.0, 128
        %5558 = vxpose.xlu0.b32.cont [14/16] 0.0, 128
        %5559 = vxpose.xlu0.b32.cont [15/16] 0.0, 128
        %5560 = vxpose.xlu0.b32.end [16/16] 0.0, 128
        %v5561 = vpop.trf.xlu0
        %v5562 = vpop.trf.xlu0
        %v5563 = vpop.trf.xlu0
        %v5564 = vpop.trf.xlu0
        %v5565 = vpop.trf.xlu0
        %v5566 = vpop.trf.xlu0
        %v5567 = vpop.trf.xlu0
        %v5568 = vpop.trf.xlu0
        %v5569 = vpop.trf.xlu0
        %v5570 = vpop.trf.xlu0
        %v5571 = vpop.trf.xlu0
        %v5572 = vpop.trf.xlu0
        %v5573 = vpop.trf.xlu0
        %v5574 = vpop.trf.xlu0
        %v5575 = vpop.trf.xlu0
        %v5576 = vpop.trf.xlu0
        %5577 = vxpose.xlu0.b32.start [1/16] %v5491, 128
        %5578 = vxpose.xlu0.b32.cont [2/16] 0.0, 128
        %5579 = vxpose.xlu0.b32.cont [3/16] 0.0, 128
        %5580 = vxpose.xlu0.b32.cont [4/16] 0.0, 128
        %5581 = vxpose.xlu0.b32.cont [5/16] 0.0, 128
        %5582 = vxpose.xlu0.b32.cont [6/16] 0.0, 128
        %5583 = vxpose.xlu0.b32.cont [7/16] 0.0, 128
        %5584 = vxpose.xlu0.b32.cont [8/16] 0.0, 128
        %5585 = vxpose.xlu0.b32.cont [9/16] 0.0, 128
        %5586 = vxpose.xlu0.b32.cont [10/16] 0.0, 128
        %5587 = vxpose.xlu0.b32.cont [11/16] 0.0, 128
        %5588 = vxpose.xlu0.b32.cont [12/16] 0.0, 128
        %5589 = vxpose.xlu0.b32.cont [13/16] 0.0, 128
        %5590 = vxpose.xlu0.b32.cont [14/16] 0.0, 128
        %5591 = vxpose.xlu0.b32.cont [15/16] 0.0, 128
        %5592 = vxpose.xlu0.b32.end [16/16] 0.0, 128
        %v5593 = vpop.trf.xlu0
        %v5594 = vpop.trf.xlu0
        %v5595 = vpop.trf.xlu0
        %v5596 = vpop.trf.xlu0
        %v5597 = vpop.trf.xlu0
        %v5598 = vpop.trf.xlu0
        %v5599 = vpop.trf.xlu0
        %v5600 = vpop.trf.xlu0
        %v5601 = vpop.trf.xlu0
        %v5602 = vpop.trf.xlu0
        %v5603 = vpop.trf.xlu0
        %v5604 = vpop.trf.xlu0
        %v5605 = vpop.trf.xlu0
        %v5606 = vpop.trf.xlu0
        %v5607 = vpop.trf.xlu0
        %v5608 = vpop.trf.xlu0
        %5609 = vxpose.xlu0.b32.start [1/16] %v5510, 128
        %5610 = vxpose.xlu0.b32.cont [2/16] 0.0, 128
        %5611 = vxpose.xlu0.b32.cont [3/16] 0.0, 128
        %5612 = vxpose.xlu0.b32.cont [4/16] 0.0, 128
        %5613 = vxpose.xlu0.b32.cont [5/16] 0.0, 128
        %5614 = vxpose.xlu0.b32.cont [6/16] 0.0, 128
        %5615 = vxpose.xlu0.b32.cont [7/16] 0.0, 128
        %5616 = vxpose.xlu0.b32.cont [8/16] 0.0, 128
        %5617 = vxpose.xlu0.b32.cont [9/16] 0.0, 128
        %5618 = vxpose.xlu0.b32.cont [10/16] 0.0, 128
        %5619 = vxpose.xlu0.b32.cont [11/16] 0.0, 128
        %5620 = vxpose.xlu0.b32.cont [12/16] 0.0, 128
        %5621 = vxpose.xlu0.b32.cont [13/16] 0.0, 128
        %5622 = vxpose.xlu0.b32.cont [14/16] 0.0, 128
        %5623 = vxpose.xlu0.b32.cont [15/16] 0.0, 128
        %5624 = vxpose.xlu0.b32.end [16/16] 0.0, 128
        %v5625 = vpop.trf.xlu0
        %v5626 = vpop.trf.xlu0
        %v5627 = vpop.trf.xlu0
        %v5628 = vpop.trf.xlu0
        %v5629 = vpop.trf.xlu0
        %v5630 = vpop.trf.xlu0
        %v5631 = vpop.trf.xlu0
        %v5632 = vpop.trf.xlu0
        %v5633 = vpop.trf.xlu0
        %v5634 = vpop.trf.xlu0
        %v5635 = vpop.trf.xlu0
        %v5636 = vpop.trf.xlu0
        %v5637 = vpop.trf.xlu0
        %v5638 = vpop.trf.xlu0
        %v5639 = vpop.trf.xlu0
        %v5640 = vpop.trf.xlu0
        %v5641 = vrot.slane %v5593, 4
        %v5642 = vsel %vm389, %v5641, %v5529
        %v5643 = vrot.slane %v5529, 4
        %v5644 = vsel %vm389, %v5593, %v5643
        %v5646 = vunpack.c.l.s4 1983009808
        %v5647 = vunpack.c.0.s8 %v5646
        %v5648 = vperm.slane %v5642, %v5647
        %v5650 = vunpack.c.l.s4 1983009808
        %v5651 = vunpack.c.0.s8 %v5650
        %v5652 = vperm.slane %v5644, %v5651
        %v5653 = vrot.slane %v5625, 4
        %v5654 = vsel %vm389, %v5653, %v5561
        %v5655 = vrot.slane %v5561, 4
        %v5656 = vsel %vm389, %v5625, %v5655
        %v5658 = vunpack.c.l.s4 1983009808
        %v5659 = vunpack.c.0.s8 %v5658
        %v5660 = vperm.slane %v5654, %v5659
        %v5662 = vunpack.c.l.s4 1983009808
        %v5663 = vunpack.c.0.s8 %v5662
        %v5664 = vperm.slane %v5656, %v5663
        %v5665 = vrot.slane %v5660, 4
        %v5666 = vsel %vm389, %v5665, %v5648
        %v5667 = vrot.slane %v5648, 4
        %v5668 = vsel %vm389, %v5660, %v5667
        %v5670 = vunpack.c.l.s4 1934713408
        %v5671 = vunpack.c.0.s8 %v5670
        %v5672 = vperm.slane %v5666, %v5671
        %v5674 = vunpack.c.l.s4 1934713408
        %v5675 = vunpack.c.0.s8 %v5674
        %v5676 = vperm.slane %v5668, %v5675
        %v5677 = vrot.slane %v5664, 4
        %v5678 = vsel %vm389, %v5677, %v5652
        %v5679 = vrot.slane %v5652, 4
        %v5680 = vsel %vm389, %v5664, %v5679
        %v5682 = vunpack.c.l.s4 1934713408
        %v5683 = vunpack.c.0.s8 %v5682
        %v5684 = vperm.slane %v5678, %v5683
        %v5686 = vunpack.c.l.s4 1934713408
        %v5687 = vunpack.c.0.s8 %v5686
        %v5688 = vperm.slane %v5680, %v5687
        %v5689 = vrot.slane %v5672, 4
        %v5690 = vsel %vm389, 0.0, %v5689
        %v5691 = vrot.slane %v5676, 4
        %v5692 = vsel %vm389, 0.0, %v5691
        %v5693 = vrot.slane %v5684, 4
        %v5694 = vsel %vm389, 0.0, %v5693
        %v5695 = vrot.slane %v5688, 4
        %v5696 = vsel %vm389, 0.0, %v5695
        %v5697 = vsel %vm389, %v5691, %v5672
        %v5699 = vunpack.c.l.s4 1983009808
        %v5700 = vunpack.c.0.s8 %v5699
        %v5701 = vperm.slane %v5697, %v5700
        %v5702 = vrot.slane %v5692, 4
        %v5703 = vsel %vm389, %v5702, %v5690
        %v5705 = vunpack.c.l.s4 1983009808
        %v5706 = vunpack.c.0.s8 %v5705
        %v5707 = vperm.slane %v5703, %v5706
        %v5708 = vsel %vm389, %v5695, %v5684
        %v5710 = vunpack.c.l.s4 1983009808
        %v5711 = vunpack.c.0.s8 %v5710
        %v5712 = vperm.slane %v5708, %v5711
        %v5713 = vrot.slane %v5696, 4
        %v5714 = vsel %vm389, %v5713, %v5694
        %v5716 = vunpack.c.l.s4 1983009808
        %v5717 = vunpack.c.0.s8 %v5716
        %v5718 = vperm.slane %v5714, %v5717
        %v5719 = vrot.slane %v5707, 4
        %v5720 = vsel %vm389, %v5719, %v5701
        %v5721 = vrot.slane %v5701, 4
        %v5722 = vsel %vm389, %v5707, %v5721
        %v5724 = vunpack.c.l.s4 1934713408
        %v5725 = vunpack.c.0.s8 %v5724
        %v5726 = vperm.slane %v5720, %v5725
        %v5728 = vunpack.c.l.s4 1934713408
        %v5729 = vunpack.c.0.s8 %v5728
        %v5730 = vperm.slane %v5722, %v5729
        %v5731 = vrot.slane %v5718, 4
        %v5732 = vsel %vm389, %v5731, %v5712
        %v5733 = vrot.slane %v5712, 4
        %v5734 = vsel %vm389, %v5718, %v5733
        %v5736 = vunpack.c.l.s4 1934713408
        %v5737 = vunpack.c.0.s8 %v5736
        %v5738 = vperm.slane %v5732, %v5737
        %v5740 = vunpack.c.l.s4 1934713408
        %v5741 = vunpack.c.0.s8 %v5740
        %v5742 = vperm.slane %v5734, %v5741
        %v5743 = vrot.slane %v5738, 4
        %v5744 = vsel %vm389, %v5743, %v5726
        %v5745 = vrot.slane %v5726, 4
        %v5746 = vsel %vm389, %v5738, %v5745
        %v5747 = vrot.slane %v5742, 4
        %v5748 = vsel %vm389, %v5747, %v5730
        %v5749 = vrot.slane %v5730, 4
        %v5750 = vsel %vm389, %v5742, %v5749
        %5752 = vrot.lane.b32.xlu0 %v5746, 8
        %v5753 = vpop.permute.xlu0 %5752
        %5756 = vrot.lane.b32.xlu0 %v5748, 16
        %v5757 = vpop.permute.xlu0 %5756
        %5760 = vrot.lane.b32.xlu0 %v5750, 24
        %v5761 = vpop.permute.xlu0 %5760
        %v5763 = vsel %vm1094, %v5744, %v5753
        %v5764 = vsel %vm307, %v5763, %v5757
        %v5765 = vsel %vm1956, %v5764, %v5761
        %v5766 = vpack.c.bf16 %v5765, %v5765
        %v5767 = vperm.slane %v4160, 0
        %v5772 = vunpack.c.l.b16 %v4153
        %v5773 = vunpack.c.l.b16 %v4154
        %v5774 = vunpack.c.l.b16 %v4155
        %v5775 = vunpack.c.l.b16 %v4156
        %v5776 = vpack.c.b16 %v5773, %v5772
        %v5777 = vpack.c.b16 %v5775, %v5774
        %v5781 = vsel %vm361, %v5766, 0
        %5783 = vmatpush.bf16.msra.mxu0 0
        %5784 = vmatpush.bf16.msra.mxu0 0
        %5785 = vmatpush.bf16.msra.mxu0 0
        %5786 = vmatpush.bf16.msra.mxu0 0
        %5787 = vmatpush.bf16.msra.mxu0 0
        %5788 = vmatpush.bf16.msra.mxu0 0
        %5789 = vmatpush.bf16.msra.mxu0 %v5777
        %5790 = vmatpush.bf16.msra.mxu0 %v5776
        %5791 = vmatmul.bf16.gmra.mxu0 %v5781
        %v5792 = vpop.f32.mrf.mxu0
        %v5793 = vadd.f32 %v5767, %v5792
        %v5794 = vpop.f32.mrf.mxu0
        %5795 = vdwg.mxu0
        %v5796 = vadd.f32 %v4140, %v5793
        %v5797 = vsel %vm361, %v5796, 0.0
        %5798 = vadd.xlane.f32.xlu0 %v5797
        %v5799 = vpop.xlane.xlu0 %5798
        %v5800 = vmul.f32 %v5799, %v1998
        %v5801 = vsub.f32 %v5796, %v5800
        %v5802 = vmul.f32 %v5801, %v5801
        %v5803 = vsel %vm361, %v5802, 0.0
        %5804 = vadd.xlane.f32.xlu0 %v5803
        %v5805 = vpop.xlane.xlu0 %5804
        %v5806 = vmul.f32 %v5805, %v1998
        %v5807 = vadd.f32 %v5806, 1e-05
        %v5808 = vrsqrt.pop %v5807
        %v5809 = vmul.f32 %v5808, %v5807
        %v5810 = vmul.f32 %v5809, %v5808
        %v5811 = vmul.f32 0.5, %v5810
        %v5812 = vsub.f32 1.5, %v5811
        %v5813 = vmul.f32 %v5808, %v5812
        %vm5814 = vweird.f32 %v5807
        %vm5815 = vweird.f32 %v5808
        %vm5816 = vmor %vm5814, %vm5815
        %v5817 = vsel %vm5816, %v5808, %v5813
        %v5818 = vmul.f32 %v5801, %v5817
        %v5819 = vmul.f32 %v5818, %v2018
        %v5820 = vadd.f32 %v5819, %v2020
        %v5821 = vsel %vm361, %v5820, 0.0
        %v5822 = vrot.slane %v5821, 4
        %v5823 = vadd.f32 %v5821, %v5822
        %v5824 = vrot.slane %v5823, 2
        %v5825 = vadd.f32 %v5823, %v5824
        %v5826 = vrot.slane %v5825, 1
        %v5827 = vadd.f32 %v5825, %v5826
        %v5828 = vrcp.pop 8.0
        %v5829 = vmul.f32 8.0, %v5828
        %v5830 = vsub.f32 1.0, %v5829
        %v5831 = vmul.f32 %v5828, %v5830
        %v5832 = vadd.f32 %v5828, %v5831
        %vm5833 = vweird.f32 %v5828
        %v5834 = vsel %vm5833, %v5828, %v5832
        %v5835 = vmul.f32 %v5827, %v5834
        %v5836 = vsel %vm361, %v5820, -inf
        %v5837 = vrot.slane %v5836, 4
        %v5838 = vmax.f32 %v5836, %v5837
        %v5839 = vrot.slane %v5838, 2
        %v5840 = vmax.f32 %v5838, %v5839
        %v5841 = vrot.slane %v5840, 1
        %v5842 = vmax.f32 %v5840, %v5841
        %5844 = vrot.lane.b32.xlu0 %v5842, 32
        %v5845 = vpop.permute.xlu0 %5844
        %v5847 = vsel %vm361, %v5835, %v5845
        %v5848 = vmul.f32 %v4138, %v291
        %v5849 = vadd.f32 %v5848, %v292
        %v5850 = vld [vmem:[#allocation5 + $0xc8] sm:$0xf]
        %v5851 = vld [vmem:[#allocation5 + $0xcc] sm:$0xf]
        %v5852 = vld [vmem:[#allocation5 + $0xd0] sm:$0xf]
        %v5853 = vld [vmem:[#allocation5 + $0xd4] sm:$0xf]
        %v5854 = vld [vmem:[#allocation5 + $0xd8] sm:$0xf]
        %v5855 = vld [vmem:[#allocation5 + $0xdc] sm:$0xf]
        %v5856 = vld [vmem:[#allocation5 + $0xe0] sm:$0xf]
        %v5857 = vld [vmem:[#allocation5 + $0xe4] sm:$0xf]
        %v5858 = vld [vmem:[#allocation5 + $0xe8] sm:$0xf]
        %v5859 = vld [vmem:[#allocation5 + $0xec] sm:$0xf]
        %v5860 = vld [vmem:[#allocation5 + $0xf0] sm:$0xf]
        %v5861 = vld [vmem:[#allocation5 + $0xf4] sm:$0xf]
        %v5862 = vld [vmem:[#allocation5 + $0xf8] sm:$0xf]
        %v5863 = vld [vmem:[#allocation5 + $0xfc] sm:$0xf]
        %v5864 = vld [vmem:[#allocation5 + $0x100] sm:$0xf]
        %v5865 = vld [vmem:[#allocation5 + $0x104] sm:$0xf]
        %v5866 = vld [vmem:[%s3 + $0x68] sm:$0x1]
        %v5867 = vld [vmem:[%s3 + $0x70] sm:$0x1]
        %v5868 = vld [vmem:[%s3 + $0x78] sm:$0x1]
        %v5869 = vld [vmem:[%s3 + $0x80] sm:$0x1]
        %v5870 = vpack.c.bf16 %v5849, %v5849
        %v5871 = vperm.slane %v5866, 0
        %v5876 = vunpack.c.l.b16 %v5850
        %v5877 = vunpack.c.l.b16 %v5851
        %v5878 = vunpack.c.l.b16 %v5852
        %v5879 = vunpack.c.l.b16 %v5853
        %v5880 = vpack.c.b16 %v5877, %v5876
        %v5881 = vpack.c.b16 %v5879, %v5878
        %v5885 = vsel %vm361, %v5870, 0
        %5887 = vmatpush.bf16.msra.mxu0 0
        %5888 = vmatpush.bf16.msra.mxu0 0
        %5889 = vmatpush.bf16.msra.mxu0 0
        %5890 = vmatpush.bf16.msra.mxu0 0
        %5891 = vmatpush.bf16.msra.mxu0 0
        %5892 = vmatpush.bf16.msra.mxu0 0
        %5893 = vmatpush.bf16.msra.mxu0 %v5881
        %5894 = vmatpush.bf16.msra.mxu0 %v5880
        %5895 = vmatmul.bf16.gmra.mxu0 %v5885
        %v5896 = vpop.f32.mrf.mxu0
        %v5897 = vadd.f32 %v5871, %v5896
        %v5898 = vpop.f32.mrf.mxu0
        %5899 = vdwg.mxu0
        %5901 = vrot.lane.b32.xlu0 %v5897, 120
        %v5902 = vpop.permute.xlu0 %5901
        %5904 = vrot.lane.b32.xlu0 %v5897, 112
        %v5905 = vpop.permute.xlu0 %5904
        %5907 = vrot.lane.b32.xlu0 %v5897, 104
        %v5908 = vpop.permute.xlu0 %5907
        %v5910 = vrot.slane %v5905, 4
        %v5911 = vsel %vm389, %v5910, %v5897
        %v5912 = vrot.slane %v5897, 4
        %v5913 = vsel %vm389, %v5905, %v5912
        %v5915 = vunpack.c.l.s4 1983009808
        %v5916 = vunpack.c.0.s8 %v5915
        %v5917 = vperm.slane %v5911, %v5916
        %v5919 = vunpack.c.l.s4 1983009808
        %v5920 = vunpack.c.0.s8 %v5919
        %v5921 = vperm.slane %v5913, %v5920
        %v5922 = vrot.slane %v5908, 4
        %v5923 = vsel %vm389, %v5922, %v5902
        %v5924 = vrot.slane %v5902, 4
        %v5925 = vsel %vm389, %v5908, %v5924
        %v5927 = vunpack.c.l.s4 1983009808
        %v5928 = vunpack.c.0.s8 %v5927
        %v5929 = vperm.slane %v5923, %v5928
        %v5931 = vunpack.c.l.s4 1983009808
        %v5932 = vunpack.c.0.s8 %v5931
        %v5933 = vperm.slane %v5925, %v5932
        %v5934 = vrot.slane %v5929, 4
        %v5935 = vsel %vm389, %v5934, %v5917
        %v5936 = vrot.slane %v5917, 4
        %v5937 = vsel %vm389, %v5929, %v5936
        %v5939 = vunpack.c.l.s4 1934713408
        %v5940 = vunpack.c.0.s8 %v5939
        %v5941 = vperm.slane %v5935, %v5940
        %v5943 = vunpack.c.l.s4 1934713408
        %v5944 = vunpack.c.0.s8 %v5943
        %v5945 = vperm.slane %v5937, %v5944
        %v5946 = vrot.slane %v5933, 4
        %v5947 = vsel %vm389, %v5946, %v5921
        %v5948 = vrot.slane %v5921, 4
        %v5949 = vsel %vm389, %v5933, %v5948
        %v5951 = vunpack.c.l.s4 1934713408
        %v5952 = vunpack.c.0.s8 %v5951
        %v5953 = vperm.slane %v5947, %v5952
        %v5955 = vunpack.c.l.s4 1934713408
        %v5956 = vunpack.c.0.s8 %v5955
        %v5957 = vperm.slane %v5949, %v5956
        %v5958 = vrot.slane %v5941, 4
        %v5959 = vsel %vm389, 0.0, %v5958
        %v5960 = vrot.slane %v5945, 4
        %v5961 = vsel %vm389, 0.0, %v5960
        %v5962 = vrot.slane %v5953, 4
        %v5963 = vsel %vm389, 0.0, %v5962
        %v5964 = vrot.slane %v5957, 4
        %v5965 = vsel %vm389, 0.0, %v5964
        %v5966 = vperm.slane %v5867, 0
        %v5971 = vunpack.c.l.b16 %v5854
        %v5972 = vunpack.c.l.b16 %v5855
        %v5973 = vunpack.c.l.b16 %v5856
        %v5974 = vunpack.c.l.b16 %v5857
        %v5975 = vpack.c.b16 %v5972, %v5971
        %v5976 = vpack.c.b16 %v5974, %v5973
        %5979 = vmatpush.bf16.msra.mxu0 0
        %5980 = vmatpush.bf16.msra.mxu0 0
        %5981 = vmatpush.bf16.msra.mxu0 0
        %5982 = vmatpush.bf16.msra.mxu0 0
        %5983 = vmatpush.bf16.msra.mxu0 0
        %5984 = vmatpush.bf16.msra.mxu0 0
        %5985 = vmatpush.bf16.msra.mxu0 %v5976
        %5986 = vmatpush.bf16.msra.mxu0 %v5975
        %5987 = vmatmul.bf16.gmra.mxu0 %v5885
        %v5988 = vpop.f32.mrf.mxu0
        %v5989 = vadd.f32 %v5966, %v5988
        %v5990 = vpop.f32.mrf.mxu0
        %5991 = vdwg.mxu0
        %5993 = vrot.lane.b32.xlu0 %v5989, 120
        %v5994 = vpop.permute.xlu0 %5993
        %5996 = vrot.lane.b32.xlu0 %v5989, 112
        %v5997 = vpop.permute.xlu0 %5996
        %5999 = vrot.lane.b32.xlu0 %v5989, 104
        %v6000 = vpop.permute.xlu0 %5999
        %v6002 = vrot.slane %v5997, 4
        %v6003 = vsel %vm389, %v6002, %v5989
        %v6004 = vrot.slane %v5989, 4
        %v6005 = vsel %vm389, %v5997, %v6004
        %v6007 = vunpack.c.l.s4 1983009808
        %v6008 = vunpack.c.0.s8 %v6007
        %v6009 = vperm.slane %v6003, %v6008
        %v6011 = vunpack.c.l.s4 1983009808
        %v6012 = vunpack.c.0.s8 %v6011
        %v6013 = vperm.slane %v6005, %v6012
        %v6014 = vrot.slane %v6000, 4
        %v6015 = vsel %vm389, %v6014, %v5994
        %v6016 = vrot.slane %v5994, 4
        %v6017 = vsel %vm389, %v6000, %v6016
        %v6019 = vunpack.c.l.s4 1983009808
        %v6020 = vunpack.c.0.s8 %v6019
        %v6021 = vperm.slane %v6015, %v6020
        %v6023 = vunpack.c.l.s4 1983009808
        %v6024 = vunpack.c.0.s8 %v6023
        %v6025 = vperm.slane %v6017, %v6024
        %v6026 = vrot.slane %v6021, 4
        %v6027 = vsel %vm389, %v6026, %v6009
        %v6028 = vrot.slane %v6009, 4
        %v6029 = vsel %vm389, %v6021, %v6028
        %v6031 = vunpack.c.l.s4 1934713408
        %v6032 = vunpack.c.0.s8 %v6031
        %v6033 = vperm.slane %v6027, %v6032
        %v6035 = vunpack.c.l.s4 1934713408
        %v6036 = vunpack.c.0.s8 %v6035
        %v6037 = vperm.slane %v6029, %v6036
        %v6038 = vrot.slane %v6025, 4
        %v6039 = vsel %vm389, %v6038, %v6013
        %v6040 = vrot.slane %v6013, 4
        %v6041 = vsel %vm389, %v6025, %v6040
        %v6043 = vunpack.c.l.s4 1934713408
        %v6044 = vunpack.c.0.s8 %v6043
        %v6045 = vperm.slane %v6039, %v6044
        %v6047 = vunpack.c.l.s4 1934713408
        %v6048 = vunpack.c.0.s8 %v6047
        %v6049 = vperm.slane %v6041, %v6048
        %v6050 = vrot.slane %v6033, 4
        %v6051 = vsel %vm389, 0.0, %v6050
        %v6052 = vrot.slane %v6037, 4
        %v6053 = vsel %vm389, 0.0, %v6052
        %v6054 = vrot.slane %v6045, 4
        %v6055 = vsel %vm389, 0.0, %v6054
        %v6056 = vrot.slane %v6049, 4
        %v6057 = vsel %vm389, 0.0, %v6056
        %v6058 = vperm.slane %v5868, 0
        %v6063 = vunpack.c.l.b16 %v5858
        %v6064 = vunpack.c.l.b16 %v5859
        %v6065 = vunpack.c.l.b16 %v5860
        %v6066 = vunpack.c.l.b16 %v5861
        %v6067 = vpack.c.b16 %v6064, %v6063
        %v6068 = vpack.c.b16 %v6066, %v6065
        %6071 = vmatpush.bf16.msra.mxu0 0
        %6072 = vmatpush.bf16.msra.mxu0 0
        %6073 = vmatpush.bf16.msra.mxu0 0
        %6074 = vmatpush.bf16.msra.mxu0 0
        %6075 = vmatpush.bf16.msra.mxu0 0
        %6076 = vmatpush.bf16.msra.mxu0 0
        %6077 = vmatpush.bf16.msra.mxu0 %v6068
        %6078 = vmatpush.bf16.msra.mxu0 %v6067
        %6079 = vmatmul.bf16.gmra.mxu0 %v5885
        %v6080 = vpop.f32.mrf.mxu0
        %v6081 = vadd.f32 %v6058, %v6080
        %v6082 = vpop.f32.mrf.mxu0
        %6083 = vdwg.mxu0
        %6085 = vrot.lane.b32.xlu0 %v6081, 120
        %v6086 = vpop.permute.xlu0 %6085
        %6088 = vrot.lane.b32.xlu0 %v6081, 112
        %v6089 = vpop.permute.xlu0 %6088
        %6091 = vrot.lane.b32.xlu0 %v6081, 104
        %v6092 = vpop.permute.xlu0 %6091
        %v6094 = vrot.slane %v6089, 4
        %v6095 = vsel %vm389, %v6094, %v6081
        %v6096 = vrot.slane %v6081, 4
        %v6097 = vsel %vm389, %v6089, %v6096
        %v6099 = vunpack.c.l.s4 1983009808
        %v6100 = vunpack.c.0.s8 %v6099
        %v6101 = vperm.slane %v6095, %v6100
        %v6103 = vunpack.c.l.s4 1983009808
        %v6104 = vunpack.c.0.s8 %v6103
        %v6105 = vperm.slane %v6097, %v6104
        %v6106 = vrot.slane %v6092, 4
        %v6107 = vsel %vm389, %v6106, %v6086
        %v6108 = vrot.slane %v6086, 4
        %v6109 = vsel %vm389, %v6092, %v6108
        %v6111 = vunpack.c.l.s4 1983009808
        %v6112 = vunpack.c.0.s8 %v6111
        %v6113 = vperm.slane %v6107, %v6112
        %v6115 = vunpack.c.l.s4 1983009808
        %v6116 = vunpack.c.0.s8 %v6115
        %v6117 = vperm.slane %v6109, %v6116
        %v6118 = vrot.slane %v6113, 4
        %v6119 = vsel %vm389, %v6118, %v6101
        %v6120 = vrot.slane %v6101, 4
        %v6121 = vsel %vm389, %v6113, %v6120
        %v6123 = vunpack.c.l.s4 1934713408
        %v6124 = vunpack.c.0.s8 %v6123
        %v6125 = vperm.slane %v6119, %v6124
        %v6127 = vunpack.c.l.s4 1934713408
        %v6128 = vunpack.c.0.s8 %v6127
        %v6129 = vperm.slane %v6121, %v6128
        %v6130 = vrot.slane %v6117, 4
        %v6131 = vsel %vm389, %v6130, %v6105
        %v6132 = vrot.slane %v6105, 4
        %v6133 = vsel %vm389, %v6117, %v6132
        %v6135 = vunpack.c.l.s4 1934713408
        %v6136 = vunpack.c.0.s8 %v6135
        %v6137 = vperm.slane %v6131, %v6136
        %v6139 = vunpack.c.l.s4 1934713408
        %v6140 = vunpack.c.0.s8 %v6139
        %v6141 = vperm.slane %v6133, %v6140
        %v6142 = vrot.slane %v6125, 4
        %v6143 = vsel %vm389, 0.0, %v6142
        %v6144 = vrot.slane %v6129, 4
        %v6145 = vsel %vm389, 0.0, %v6144
        %v6146 = vrot.slane %v6137, 4
        %v6147 = vsel %vm389, 0.0, %v6146
        %v6148 = vrot.slane %v6141, 4
        %v6149 = vsel %vm389, 0.0, %v6148
        %v6150 = vpack.c.bf16 %v5941, %v5941
        %v6151 = vpack.c.bf16 %v5959, %v5959
        %v6152 = vpack.c.bf16 %v5945, %v5945
        %v6153 = vpack.c.bf16 %v5961, %v5961
        %v6154 = vpack.c.bf16 %v5953, %v5953
        %v6155 = vpack.c.bf16 %v5963, %v5963
        %v6156 = vpack.c.bf16 %v5957, %v5957
        %v6157 = vpack.c.bf16 %v5965, %v5965
        %v6158 = vpack.c.bf16 %v6033, %v6033
        %v6159 = vpack.c.bf16 %v6051, %v6051
        %v6160 = vpack.c.bf16 %v6037, %v6037
        %v6161 = vpack.c.bf16 %v6053, %v6053
        %v6162 = vpack.c.bf16 %v6045, %v6045
        %v6163 = vpack.c.bf16 %v6055, %v6055
        %v6164 = vpack.c.bf16 %v6049, %v6049
        %v6165 = vpack.c.bf16 %v6057, %v6057
        %v6166 = vrot.slane %v6154, 4
        %v6167 = vsel %vm646, %v6166, %v6150
        %v6169 = vunpack.c.l.s4 1983009808
        %v6170 = vunpack.c.0.s8 %v6169
        %v6171 = vperm.slane %v6167, %v6170
        %v6172 = vrot.slane %v6156, 4
        %v6173 = vsel %vm646, %v6172, %v6152
        %v6175 = vunpack.c.l.s4 1983009808
        %v6176 = vunpack.c.0.s8 %v6175
        %v6177 = vperm.slane %v6173, %v6176
        %v6178 = vrot.slane %v6177, 4
        %v6179 = vsel %vm646, %v6178, %v6171
        %v6181 = vunpack.c.l.s4 1934713408
        %v6182 = vunpack.c.0.s8 %v6181
        %v6183 = vperm.slane %v6179, %v6182
        %v6184 = vrot.slane %v6183, 4
        %v6185 = vsel %vm646, 0, %v6184
        %v6186 = vrot.slane %v6155, 4
        %v6187 = vsel %vm646, %v6186, %v6151
        %v6189 = vunpack.c.l.s4 1983009808
        %v6190 = vunpack.c.0.s8 %v6189
        %v6191 = vperm.slane %v6187, %v6190
        %v6192 = vrot.slane %v6157, 4
        %v6193 = vsel %vm646, %v6192, %v6153
        %v6195 = vunpack.c.l.s4 1983009808
        %v6196 = vunpack.c.0.s8 %v6195
        %v6197 = vperm.slane %v6193, %v6196
        %v6198 = vrot.slane %v6197, 4
        %v6199 = vsel %vm646, %v6198, %v6191
        %v6201 = vunpack.c.l.s4 1934713408
        %v6202 = vunpack.c.0.s8 %v6201
        %v6203 = vperm.slane %v6199, %v6202
        %v6204 = vrot.slane %v6203, 4
        %v6205 = vsel %vm646, 0, %v6204
        %v6208 = vpack.i.b16 %v6203, %v6183
        %v6209 = vshrl.u32 %v6183, 16
        %v6210 = vshrl.u32 %v6203, 16
        %v6211 = vpack.i.b16 %v6210, %v6209
        %v6214 = vpack.i.b16 %v6205, %v6185
        %v6215 = vshrl.u32 %v6185, 16
        %v6216 = vshrl.u32 %v6205, 16
        %v6217 = vpack.i.b16 %v6216, %v6215
        %6218 = vxpose.xlu0.c.b16.start [1/8] %v6158, 128
        %6219 = vxpose.xlu0.c.b16.cont [2/8] 0, 128
        %6220 = vxpose.xlu0.c.b16.cont [3/8] 0, 128
        %6221 = vxpose.xlu0.c.b16.cont [4/8] 0, 128
        %6222 = vxpose.xlu0.c.b16.cont [5/8] 0, 128
        %6223 = vxpose.xlu0.c.b16.cont [6/8] 0, 128
        %6224 = vxpose.xlu0.c.b16.cont [7/8] 0, 128
        %6225 = vxpose.xlu0.c.b16.end [8/8] 0, 128
        %v6226 = vpop.trf.xlu0
        %v6227 = vpop.trf.xlu0
        %v6228 = vpop.trf.xlu0
        %v6229 = vpop.trf.xlu0
        %v6230 = vpop.trf.xlu0
        %v6231 = vpop.trf.xlu0
        %v6232 = vpop.trf.xlu0
        %v6233 = vpop.trf.xlu0
        %6234 = vxpose.xlu0.c.b16.start [1/8] %v6159, 128
        %6235 = vxpose.xlu0.c.b16.cont [2/8] 0, 128
        %6236 = vxpose.xlu0.c.b16.cont [3/8] 0, 128
        %6237 = vxpose.xlu0.c.b16.cont [4/8] 0, 128
        %6238 = vxpose.xlu0.c.b16.cont [5/8] 0, 128
        %6239 = vxpose.xlu0.c.b16.cont [6/8] 0, 128
        %6240 = vxpose.xlu0.c.b16.cont [7/8] 0, 128
        %6241 = vxpose.xlu0.c.b16.end [8/8] 0, 128
        %v6242 = vpop.trf.xlu0
        %v6243 = vpop.trf.xlu0
        %v6244 = vpop.trf.xlu0
        %v6245 = vpop.trf.xlu0
        %v6246 = vpop.trf.xlu0
        %v6247 = vpop.trf.xlu0
        %v6248 = vpop.trf.xlu0
        %v6249 = vpop.trf.xlu0
        %6250 = vxpose.xlu0.c.b16.start [1/8] %v6160, 128
        %6251 = vxpose.xlu0.c.b16.cont [2/8] 0, 128
        %6252 = vxpose.xlu0.c.b16.cont [3/8] 0, 128
        %6253 = vxpose.xlu0.c.b16.cont [4/8] 0, 128
        %6254 = vxpose.xlu0.c.b16.cont [5/8] 0, 128
        %6255 = vxpose.xlu0.c.b16.cont [6/8] 0, 128
        %6256 = vxpose.xlu0.c.b16.cont [7/8] 0, 128
        %6257 = vxpose.xlu0.c.b16.end [8/8] 0, 128
        %v6258 = vpop.trf.xlu0
        %v6259 = vpop.trf.xlu0
        %v6260 = vpop.trf.xlu0
        %v6261 = vpop.trf.xlu0
        %v6262 = vpop.trf.xlu0
        %v6263 = vpop.trf.xlu0
        %v6264 = vpop.trf.xlu0
        %v6265 = vpop.trf.xlu0
        %6266 = vxpose.xlu0.c.b16.start [1/8] %v6161, 128
        %6267 = vxpose.xlu0.c.b16.cont [2/8] 0, 128
        %6268 = vxpose.xlu0.c.b16.cont [3/8] 0, 128
        %6269 = vxpose.xlu0.c.b16.cont [4/8] 0, 128
        %6270 = vxpose.xlu0.c.b16.cont [5/8] 0, 128
        %6271 = vxpose.xlu0.c.b16.cont [6/8] 0, 128
        %6272 = vxpose.xlu0.c.b16.cont [7/8] 0, 128
        %6273 = vxpose.xlu0.c.b16.end [8/8] 0, 128
        %v6274 = vpop.trf.xlu0
        %v6275 = vpop.trf.xlu0
        %v6276 = vpop.trf.xlu0
        %v6277 = vpop.trf.xlu0
        %v6278 = vpop.trf.xlu0
        %v6279 = vpop.trf.xlu0
        %v6280 = vpop.trf.xlu0
        %v6281 = vpop.trf.xlu0
        %6282 = vxpose.xlu0.c.b16.start [1/8] %v6162, 128
        %6283 = vxpose.xlu0.c.b16.cont [2/8] 0, 128
        %6284 = vxpose.xlu0.c.b16.cont [3/8] 0, 128
        %6285 = vxpose.xlu0.c.b16.cont [4/8] 0, 128
        %6286 = vxpose.xlu0.c.b16.cont [5/8] 0, 128
        %6287 = vxpose.xlu0.c.b16.cont [6/8] 0, 128
        %6288 = vxpose.xlu0.c.b16.cont [7/8] 0, 128
        %6289 = vxpose.xlu0.c.b16.end [8/8] 0, 128
        %v6290 = vpop.trf.xlu0
        %v6291 = vpop.trf.xlu0
        %v6292 = vpop.trf.xlu0
        %v6293 = vpop.trf.xlu0
        %v6294 = vpop.trf.xlu0
        %v6295 = vpop.trf.xlu0
        %v6296 = vpop.trf.xlu0
        %v6297 = vpop.trf.xlu0
        %6298 = vxpose.xlu0.c.b16.start [1/8] %v6163, 128
        %6299 = vxpose.xlu0.c.b16.cont [2/8] 0, 128
        %6300 = vxpose.xlu0.c.b16.cont [3/8] 0, 128
        %6301 = vxpose.xlu0.c.b16.cont [4/8] 0, 128
        %6302 = vxpose.xlu0.c.b16.cont [5/8] 0, 128
        %6303 = vxpose.xlu0.c.b16.cont [6/8] 0, 128
        %6304 = vxpose.xlu0.c.b16.cont [7/8] 0, 128
        %6305 = vxpose.xlu0.c.b16.end [8/8] 0, 128
        %v6306 = vpop.trf.xlu0
        %v6307 = vpop.trf.xlu0
        %v6308 = vpop.trf.xlu0
        %v6309 = vpop.trf.xlu0
        %v6310 = vpop.trf.xlu0
        %v6311 = vpop.trf.xlu0
        %v6312 = vpop.trf.xlu0
        %v6313 = vpop.trf.xlu0
        %6314 = vxpose.xlu0.c.b16.start [1/8] %v6164, 128
        %6315 = vxpose.xlu0.c.b16.cont [2/8] 0, 128
        %6316 = vxpose.xlu0.c.b16.cont [3/8] 0, 128
        %6317 = vxpose.xlu0.c.b16.cont [4/8] 0, 128
        %6318 = vxpose.xlu0.c.b16.cont [5/8] 0, 128
        %6319 = vxpose.xlu0.c.b16.cont [6/8] 0, 128
        %6320 = vxpose.xlu0.c.b16.cont [7/8] 0, 128
        %6321 = vxpose.xlu0.c.b16.end [8/8] 0, 128
        %v6322 = vpop.trf.xlu0
        %v6323 = vpop.trf.xlu0
        %v6324 = vpop.trf.xlu0
        %v6325 = vpop.trf.xlu0
        %v6326 = vpop.trf.xlu0
        %v6327 = vpop.trf.xlu0
        %v6328 = vpop.trf.xlu0
        %v6329 = vpop.trf.xlu0
        %6330 = vxpose.xlu0.c.b16.start [1/8] %v6165, 128
        %6331 = vxpose.xlu0.c.b16.cont [2/8] 0, 128
        %6332 = vxpose.xlu0.c.b16.cont [3/8] 0, 128
        %6333 = vxpose.xlu0.c.b16.cont [4/8] 0, 128
        %6334 = vxpose.xlu0.c.b16.cont [5/8] 0, 128
        %6335 = vxpose.xlu0.c.b16.cont [6/8] 0, 128
        %6336 = vxpose.xlu0.c.b16.cont [7/8] 0, 128
        %6337 = vxpose.xlu0.c.b16.end [8/8] 0, 128
        %v6338 = vpop.trf.xlu0
        %v6339 = vpop.trf.xlu0
        %v6340 = vpop.trf.xlu0
        %v6341 = vpop.trf.xlu0
        %v6342 = vpop.trf.xlu0
        %v6343 = vpop.trf.xlu0
        %v6344 = vpop.trf.xlu0
        %v6345 = vpop.trf.xlu0
        %v6346 = vrot.slane %v6290, 4
        %v6347 = vsel %vm646, %v6346, %v6226
        %v6349 = vunpack.c.l.s4 1983009808
        %v6350 = vunpack.c.0.s8 %v6349
        %v6351 = vperm.slane %v6347, %v6350
        %v6352 = vrot.slane %v6322, 4
        %v6353 = vsel %vm646, %v6352, %v6258
        %v6355 = vunpack.c.l.s4 1983009808
        %v6356 = vunpack.c.0.s8 %v6355
        %v6357 = vperm.slane %v6353, %v6356
        %v6358 = vrot.slane %v6357, 4
        %v6359 = vsel %vm646, %v6358, %v6351
        %v6360 = vrot.slane %v6351, 4
        %v6361 = vsel %vm646, %v6357, %v6360
        %v6363 = vunpack.c.l.s4 1934713408
        %v6364 = vunpack.c.0.s8 %v6363
        %v6365 = vperm.slane %v6359, %v6364
        %v6367 = vunpack.c.l.s4 1934713408
        %v6368 = vunpack.c.0.s8 %v6367
        %v6369 = vperm.slane %v6361, %v6368
        %v6370 = vrot.slane %v6365, 4
        %v6371 = vsel %vm646, 0, %v6370
        %v6372 = vrot.slane %v6369, 4
        %v6373 = vsel %vm646, 0, %v6372
        %v6374 = vrot.slane %v6306, 4
        %v6375 = vsel %vm646, %v6374, %v6242
        %v6377 = vunpack.c.l.s4 1983009808
        %v6378 = vunpack.c.0.s8 %v6377
        %v6379 = vperm.slane %v6375, %v6378
        %v6380 = vrot.slane %v6338, 4
        %v6381 = vsel %vm646, %v6380, %v6274
        %v6383 = vunpack.c.l.s4 1983009808
        %v6384 = vunpack.c.0.s8 %v6383
        %v6385 = vperm.slane %v6381, %v6384
        %v6386 = vrot.slane %v6385, 4
        %v6387 = vsel %vm646, %v6386, %v6379
        %v6388 = vrot.slane %v6379, 4
        %v6389 = vsel %vm646, %v6385, %v6388
        %v6391 = vunpack.c.l.s4 1934713408
        %v6392 = vunpack.c.0.s8 %v6391
        %v6393 = vperm.slane %v6387, %v6392
        %v6395 = vunpack.c.l.s4 1934713408
        %v6396 = vunpack.c.0.s8 %v6395
        %v6397 = vperm.slane %v6389, %v6396
        %v6398 = vrot.slane %v6393, 4
        %v6399 = vsel %vm646, 0, %v6398
        %v6400 = vrot.slane %v6397, 4
        %v6401 = vsel %vm646, 0, %v6400
        %v6404 = vpack.i.b16 %v6393, %v6365
        %v6406 = vshrl.u32 %v6365, 16
        %v6407 = vshrl.u32 %v6393, 16
        %v6408 = vpack.i.b16 %v6407, %v6406
        %v6412 = vpack.i.b16 %v6399, %v6371
        %v6414 = vshrl.u32 %v6371, 16
        %v6415 = vshrl.u32 %v6399, 16
        %v6416 = vpack.i.b16 %v6415, %v6414
        %v6420 = vpack.i.b16 %v6397, %v6369
        %v6422 = vshrl.u32 %v6369, 16
        %v6423 = vshrl.u32 %v6397, 16
        %v6424 = vpack.i.b16 %v6423, %v6422
        %v6428 = vpack.i.b16 %v6401, %v6373
        %v6430 = vshrl.u32 %v6373, 16
        %v6431 = vshrl.u32 %v6401, 16
        %v6432 = vpack.i.b16 %v6431, %v6430
        %6434 = vxpose.xlu0.c.b16.start [1/8] %v6404, 128
        %6435 = vxpose.xlu0.c.b16.cont [2/8] 0, 128
        %6436 = vxpose.xlu0.c.b16.cont [3/8] 0, 128
        %6437 = vxpose.xlu0.c.b16.cont [4/8] 0, 128
        %6438 = vxpose.xlu0.c.b16.cont [5/8] 0, 128
        %6439 = vxpose.xlu0.c.b16.cont [6/8] 0, 128
        %6440 = vxpose.xlu0.c.b16.cont [7/8] 0, 128
        %6441 = vxpose.xlu0.c.b16.end [8/8] 0, 128
        %v6442 = vpop.trf.xlu0
        %v6443 = vpop.trf.xlu0
        %v6444 = vpop.trf.xlu0
        %v6445 = vpop.trf.xlu0
        %v6446 = vpop.trf.xlu0
        %v6447 = vpop.trf.xlu0
        %v6448 = vpop.trf.xlu0
        %v6449 = vpop.trf.xlu0
        %6450 = vxpose.xlu0.c.b16.start [1/8] %v6408, 128
        %6451 = vxpose.xlu0.c.b16.cont [2/8] 0, 128
        %6452 = vxpose.xlu0.c.b16.cont [3/8] 0, 128
        %6453 = vxpose.xlu0.c.b16.cont [4/8] 0, 128
        %6454 = vxpose.xlu0.c.b16.cont [5/8] 0, 128
        %6455 = vxpose.xlu0.c.b16.cont [6/8] 0, 128
        %6456 = vxpose.xlu0.c.b16.cont [7/8] 0, 128
        %6457 = vxpose.xlu0.c.b16.end [8/8] 0, 128
        %v6458 = vpop.trf.xlu0
        %v6459 = vpop.trf.xlu0
        %v6460 = vpop.trf.xlu0
        %v6461 = vpop.trf.xlu0
        %v6462 = vpop.trf.xlu0
        %v6463 = vpop.trf.xlu0
        %v6464 = vpop.trf.xlu0
        %v6465 = vpop.trf.xlu0
        %6466 = vxpose.xlu0.c.b16.start [1/8] %v6412, 128
        %6467 = vxpose.xlu0.c.b16.cont [2/8] 0, 128
        %6468 = vxpose.xlu0.c.b16.cont [3/8] 0, 128
        %6469 = vxpose.xlu0.c.b16.cont [4/8] 0, 128
        %6470 = vxpose.xlu0.c.b16.cont [5/8] 0, 128
        %6471 = vxpose.xlu0.c.b16.cont [6/8] 0, 128
        %6472 = vxpose.xlu0.c.b16.cont [7/8] 0, 128
        %6473 = vxpose.xlu0.c.b16.end [8/8] 0, 128
        %v6474 = vpop.trf.xlu0
        %v6475 = vpop.trf.xlu0
        %v6476 = vpop.trf.xlu0
        %v6477 = vpop.trf.xlu0
        %v6478 = vpop.trf.xlu0
        %v6479 = vpop.trf.xlu0
        %v6480 = vpop.trf.xlu0
        %v6481 = vpop.trf.xlu0
        %6482 = vxpose.xlu0.c.b16.start [1/8] %v6416, 128
        %6483 = vxpose.xlu0.c.b16.cont [2/8] 0, 128
        %6484 = vxpose.xlu0.c.b16.cont [3/8] 0, 128
        %6485 = vxpose.xlu0.c.b16.cont [4/8] 0, 128
        %6486 = vxpose.xlu0.c.b16.cont [5/8] 0, 128
        %6487 = vxpose.xlu0.c.b16.cont [6/8] 0, 128
        %6488 = vxpose.xlu0.c.b16.cont [7/8] 0, 128
        %6489 = vxpose.xlu0.c.b16.end [8/8] 0, 128
        %v6490 = vpop.trf.xlu0
        %v6491 = vpop.trf.xlu0
        %v6492 = vpop.trf.xlu0
        %v6493 = vpop.trf.xlu0
        %v6494 = vpop.trf.xlu0
        %v6495 = vpop.trf.xlu0
        %v6496 = vpop.trf.xlu0
        %v6497 = vpop.trf.xlu0
        %6498 = vxpose.xlu0.c.b16.start [1/8] %v6420, 128
        %6499 = vxpose.xlu0.c.b16.cont [2/8] 0, 128
        %6500 = vxpose.xlu0.c.b16.cont [3/8] 0, 128
        %6501 = vxpose.xlu0.c.b16.cont [4/8] 0, 128
        %6502 = vxpose.xlu0.c.b16.cont [5/8] 0, 128
        %6503 = vxpose.xlu0.c.b16.cont [6/8] 0, 128
        %6504 = vxpose.xlu0.c.b16.cont [7/8] 0, 128
        %6505 = vxpose.xlu0.c.b16.end [8/8] 0, 128
        %v6506 = vpop.trf.xlu0
        %v6507 = vpop.trf.xlu0
        %v6508 = vpop.trf.xlu0
        %v6509 = vpop.trf.xlu0
        %v6510 = vpop.trf.xlu0
        %v6511 = vpop.trf.xlu0
        %v6512 = vpop.trf.xlu0
        %v6513 = vpop.trf.xlu0
        %6514 = vxpose.xlu0.c.b16.start [1/8] %v6424, 128
        %6515 = vxpose.xlu0.c.b16.cont [2/8] 0, 128
        %6516 = vxpose.xlu0.c.b16.cont [3/8] 0, 128
        %6517 = vxpose.xlu0.c.b16.cont [4/8] 0, 128
        %6518 = vxpose.xlu0.c.b16.cont [5/8] 0, 128
        %6519 = vxpose.xlu0.c.b16.cont [6/8] 0, 128
        %6520 = vxpose.xlu0.c.b16.cont [7/8] 0, 128
        %6521 = vxpose.xlu0.c.b16.end [8/8] 0, 128
        %v6522 = vpop.trf.xlu0
        %v6523 = vpop.trf.xlu0
        %v6524 = vpop.trf.xlu0
        %v6525 = vpop.trf.xlu0
        %v6526 = vpop.trf.xlu0
        %v6527 = vpop.trf.xlu0
        %v6528 = vpop.trf.xlu0
        %v6529 = vpop.trf.xlu0
        %6530 = vxpose.xlu0.c.b16.start [1/8] %v6428, 128
        %6531 = vxpose.xlu0.c.b16.cont [2/8] 0, 128
        %6532 = vxpose.xlu0.c.b16.cont [3/8] 0, 128
        %6533 = vxpose.xlu0.c.b16.cont [4/8] 0, 128
        %6534 = vxpose.xlu0.c.b16.cont [5/8] 0, 128
        %6535 = vxpose.xlu0.c.b16.cont [6/8] 0, 128
        %6536 = vxpose.xlu0.c.b16.cont [7/8] 0, 128
        %6537 = vxpose.xlu0.c.b16.end [8/8] 0, 128
        %v6538 = vpop.trf.xlu0
        %v6539 = vpop.trf.xlu0
        %v6540 = vpop.trf.xlu0
        %v6541 = vpop.trf.xlu0
        %v6542 = vpop.trf.xlu0
        %v6543 = vpop.trf.xlu0
        %v6544 = vpop.trf.xlu0
        %v6545 = vpop.trf.xlu0
        %6546 = vxpose.xlu0.c.b16.start [1/8] %v6432, 128
        %6547 = vxpose.xlu0.c.b16.cont [2/8] 0, 128
        %6548 = vxpose.xlu0.c.b16.cont [3/8] 0, 128
        %6549 = vxpose.xlu0.c.b16.cont [4/8] 0, 128
        %6550 = vxpose.xlu0.c.b16.cont [5/8] 0, 128
        %6551 = vxpose.xlu0.c.b16.cont [6/8] 0, 128
        %6552 = vxpose.xlu0.c.b16.cont [7/8] 0, 128
        %6553 = vxpose.xlu0.c.b16.end [8/8] 0, 128
        %v6554 = vpop.trf.xlu0
        %v6555 = vpop.trf.xlu0
        %v6556 = vpop.trf.xlu0
        %v6557 = vpop.trf.xlu0
        %v6558 = vpop.trf.xlu0
        %v6559 = vpop.trf.xlu0
        %v6560 = vpop.trf.xlu0
        %v6561 = vpop.trf.xlu0
        %v6562 = vrot.slane %v6506, 4
        %v6563 = vsel %vm646, %v6562, %v6442
        %v6565 = vunpack.c.l.s4 1983009808
        %v6566 = vunpack.c.0.s8 %v6565
        %v6567 = vperm.slane %v6563, %v6566
        %v6568 = vrot.slane %v6538, 4
        %v6569 = vsel %vm646, %v6568, %v6474
        %v6571 = vunpack.c.l.s4 1983009808
        %v6572 = vunpack.c.0.s8 %v6571
        %v6573 = vperm.slane %v6569, %v6572
        %v6574 = vrot.slane %v6573, 4
        %v6575 = vsel %vm646, %v6574, %v6567
        %v6577 = vunpack.c.l.s4 1934713408
        %v6578 = vunpack.c.0.s8 %v6577
        %v6579 = vperm.slane %v6575, %v6578
        %v6580 = vrot.slane %v6579, 4
        %v6581 = vsel %vm646, 0, %v6580
        %v6582 = vrot.slane %v6522, 4
        %v6583 = vsel %vm646, %v6582, %v6458
        %v6585 = vunpack.c.l.s4 1983009808
        %v6586 = vunpack.c.0.s8 %v6585
        %v6587 = vperm.slane %v6583, %v6586
        %v6588 = vrot.slane %v6554, 4
        %v6589 = vsel %vm646, %v6588, %v6490
        %v6591 = vunpack.c.l.s4 1983009808
        %v6592 = vunpack.c.0.s8 %v6591
        %v6593 = vperm.slane %v6589, %v6592
        %v6594 = vrot.slane %v6593, 4
        %v6595 = vsel %vm646, %v6594, %v6587
        %v6597 = vunpack.c.l.s4 1934713408
        %v6598 = vunpack.c.0.s8 %v6597
        %v6599 = vperm.slane %v6595, %v6598
        %v6600 = vrot.slane %v6599, 4
        %v6601 = vsel %vm646, 0, %v6600
        %v6604 = vpack.i.b16 %v6599, %v6579
        %v6605 = vshrl.u32 %v6579, 16
        %v6606 = vshrl.u32 %v6599, 16
        %v6607 = vpack.i.b16 %v6606, %v6605
        %v6610 = vpack.i.b16 %v6601, %v6581
        %v6611 = vshrl.u32 %v6581, 16
        %v6612 = vshrl.u32 %v6601, 16
        %v6613 = vpack.i.b16 %v6612, %v6611
        %v6615 = vsel %vm1094, %v6208, 0
        %v6618 = vsel %vm1098, %v6604, 0
        %6620 = vmatpush.bf16.msra.mxu0 0
        %6621 = vmatpush.bf16.msra.mxu0 0
        %6622 = vmatpush.bf16.msra.mxu0 0
        %6623 = vmatpush.bf16.msra.mxu0 0
        %6624 = vmatpush.bf16.msra.mxu0 0
        %6625 = vmatpush.bf16.msra.mxu0 0
        %6626 = vmatpush.bf16.msra.mxu0 0
        %6627 = vmatpush.bf16.msra.mxu0 %v6618
        %6628 = vmatmul.bf16.gmra.mxu0 %v6615
        %v6629 = vpop.f32.mrf.mxu0
        %v6630 = vadd.f32 0.0, %v6629
        %v6631 = vpop.f32.mrf.mxu0
        %6632 = vdwg.mxu0
        %v6634 = vsel %vm1094, %v6211, 0
        %v6637 = vsel %vm1098, %v6607, 0
        %6639 = vmatpush.bf16.msra.mxu0 0
        %6640 = vmatpush.bf16.msra.mxu0 0
        %6641 = vmatpush.bf16.msra.mxu0 0
        %6642 = vmatpush.bf16.msra.mxu0 0
        %6643 = vmatpush.bf16.msra.mxu0 0
        %6644 = vmatpush.bf16.msra.mxu0 0
        %6645 = vmatpush.bf16.msra.mxu0 0
        %6646 = vmatpush.bf16.msra.mxu0 %v6637
        %6647 = vmatmul.bf16.gmra.mxu0 %v6634
        %v6648 = vpop.f32.mrf.mxu0
        %v6649 = vadd.f32 0.0, %v6648
        %v6650 = vpop.f32.mrf.mxu0
        %6651 = vdwg.mxu0
        %v6653 = vsel %vm1094, %v6214, 0
        %v6656 = vsel %vm1098, %v6610, 0
        %6658 = vmatpush.bf16.msra.mxu0 0
        %6659 = vmatpush.bf16.msra.mxu0 0
        %6660 = vmatpush.bf16.msra.mxu0 0
        %6661 = vmatpush.bf16.msra.mxu0 0
        %6662 = vmatpush.bf16.msra.mxu0 0
        %6663 = vmatpush.bf16.msra.mxu0 0
        %6664 = vmatpush.bf16.msra.mxu0 0
        %6665 = vmatpush.bf16.msra.mxu0 %v6656
        %6666 = vmatmul.bf16.gmra.mxu0 %v6653
        %v6667 = vpop.f32.mrf.mxu0
        %v6668 = vadd.f32 0.0, %v6667
        %v6669 = vpop.f32.mrf.mxu0
        %6670 = vdwg.mxu0
        %v6672 = vsel %vm1094, %v6217, 0
        %v6675 = vsel %vm1098, %v6613, 0
        %6677 = vmatpush.bf16.msra.mxu0 0
        %6678 = vmatpush.bf16.msra.mxu0 0
        %6679 = vmatpush.bf16.msra.mxu0 0
        %6680 = vmatpush.bf16.msra.mxu0 0
        %6681 = vmatpush.bf16.msra.mxu0 0
        %6682 = vmatpush.bf16.msra.mxu0 0
        %6683 = vmatpush.bf16.msra.mxu0 0
        %6684 = vmatpush.bf16.msra.mxu0 %v6675
        %6685 = vmatmul.bf16.gmra.mxu0 %v6672
        %v6686 = vpop.f32.mrf.mxu0
        %v6687 = vadd.f32 0.0, %v6686
        %v6688 = vpop.f32.mrf.mxu0
        %6689 = vdwg.mxu0
        %v6690 = vmul.f32 %v6630, 0.35355338
        %v6691 = vmul.f32 %v6649, 0.35355338
        %v6692 = vmul.f32 %v6668, 0.35355338
        %v6693 = vmul.f32 %v6687, 0.35355338
        %v6694 = vsel %vm1094, %v6690, -inf
        %6695 = vmax.xlane.f32.xlu0 %v6694
        %v6696 = vpop.xlane.xlu0 %6695
        %v6697 = vsel %vm1094, %v6691, -inf
        %6698 = vmax.xlane.f32.xlu0 %v6697
        %v6699 = vpop.xlane.xlu0 %6698
        %v6700 = vsel %vm1094, %v6692, -inf
        %6701 = vmax.xlane.f32.xlu0 %v6700
        %v6702 = vpop.xlane.xlu0 %6701
        %v6703 = vsel %vm1094, %v6693, -inf
        %6704 = vmax.xlane.f32.xlu0 %v6703
        %v6705 = vpop.xlane.xlu0 %6704
        %v6706 = vsub.f32 %v6690, %v6696
        %v6707 = vsub.f32 %v6691, %v6699
        %v6708 = vsub.f32 %v6692, %v6702
        %v6709 = vsub.f32 %v6693, %v6705
        %v6710 = vmul.f32 %v6706, 1.442695
        %v6711 = vpow.pop %v6710
        %v6712 = vmul.f32 %v6707, 1.442695
        %v6713 = vpow.pop %v6712
        %v6714 = vmul.f32 %v6708, 1.442695
        %v6715 = vpow.pop %v6714
        %v6716 = vmul.f32 %v6709, 1.442695
        %v6717 = vpow.pop %v6716
        %v6718 = vsel %vm1094, %v6711, 0.0
        %6719 = vadd.xlane.f32.xlu0 %v6718
        %v6720 = vpop.xlane.xlu0 %6719
        %v6721 = vsel %vm1094, %v6713, 0.0
        %6722 = vadd.xlane.f32.xlu0 %v6721
        %v6723 = vpop.xlane.xlu0 %6722
        %v6724 = vsel %vm1094, %v6715, 0.0
        %6725 = vadd.xlane.f32.xlu0 %v6724
        %v6726 = vpop.xlane.xlu0 %6725
        %v6727 = vsel %vm1094, %v6717, 0.0
        %6728 = vadd.xlane.f32.xlu0 %v6727
        %v6729 = vpop.xlane.xlu0 %6728
        %v6730 = vrcp.pop %v6720
        %v6731 = vrcp.pop %v6723
        %v6732 = vrcp.pop %v6726
        %v6733 = vrcp.pop %v6729
        %v6734 = vmul.f32 %v6711, %v6730
        %v6735 = vmul.f32 %v6713, %v6731
        %v6736 = vmul.f32 %v6715, %v6732
        %v6737 = vmul.f32 %v6717, %v6733
        %v6738 = vpack.c.bf16 %v6734, %v6734
        %v6739 = vpack.c.bf16 %v6735, %v6735
        %v6740 = vpack.c.bf16 %v6736, %v6736
        %v6741 = vpack.c.bf16 %v6737, %v6737
        %v6742 = vpack.c.bf16 %v6125, %v6125
        %v6743 = vpack.c.bf16 %v6143, %v6143
        %v6744 = vpack.c.bf16 %v6129, %v6129
        %v6745 = vpack.c.bf16 %v6145, %v6145
        %v6746 = vpack.c.bf16 %v6137, %v6137
        %v6747 = vpack.c.bf16 %v6147, %v6147
        %v6748 = vpack.c.bf16 %v6141, %v6141
        %v6749 = vpack.c.bf16 %v6149, %v6149
        %6750 = vxpose.xlu0.c.b16.start [1/8] %v6742, 128
        %6751 = vxpose.xlu0.c.b16.cont [2/8] 0, 128
        %6752 = vxpose.xlu0.c.b16.cont [3/8] 0, 128
        %6753 = vxpose.xlu0.c.b16.cont [4/8] 0, 128
        %6754 = vxpose.xlu0.c.b16.cont [5/8] 0, 128
        %6755 = vxpose.xlu0.c.b16.cont [6/8] 0, 128
        %6756 = vxpose.xlu0.c.b16.cont [7/8] 0, 128
        %6757 = vxpose.xlu0.c.b16.end [8/8] 0, 128
        %v6758 = vpop.trf.xlu0
        %v6759 = vpop.trf.xlu0
        %v6760 = vpop.trf.xlu0
        %v6761 = vpop.trf.xlu0
        %v6762 = vpop.trf.xlu0
        %v6763 = vpop.trf.xlu0
        %v6764 = vpop.trf.xlu0
        %v6765 = vpop.trf.xlu0
        %6766 = vxpose.xlu0.c.b16.start [1/8] %v6743, 128
        %6767 = vxpose.xlu0.c.b16.cont [2/8] 0, 128
        %6768 = vxpose.xlu0.c.b16.cont [3/8] 0, 128
        %6769 = vxpose.xlu0.c.b16.cont [4/8] 0, 128
        %6770 = vxpose.xlu0.c.b16.cont [5/8] 0, 128
        %6771 = vxpose.xlu0.c.b16.cont [6/8] 0, 128
        %6772 = vxpose.xlu0.c.b16.cont [7/8] 0, 128
        %6773 = vxpose.xlu0.c.b16.end [8/8] 0, 128
        %v6774 = vpop.trf.xlu0
        %v6775 = vpop.trf.xlu0
        %v6776 = vpop.trf.xlu0
        %v6777 = vpop.trf.xlu0
        %v6778 = vpop.trf.xlu0
        %v6779 = vpop.trf.xlu0
        %v6780 = vpop.trf.xlu0
        %v6781 = vpop.trf.xlu0
        %6782 = vxpose.xlu0.c.b16.start [1/8] %v6744, 128
        %6783 = vxpose.xlu0.c.b16.cont [2/8] 0, 128
        %6784 = vxpose.xlu0.c.b16.cont [3/8] 0, 128
        %6785 = vxpose.xlu0.c.b16.cont [4/8] 0, 128
        %6786 = vxpose.xlu0.c.b16.cont [5/8] 0, 128
        %6787 = vxpose.xlu0.c.b16.cont [6/8] 0, 128
        %6788 = vxpose.xlu0.c.b16.cont [7/8] 0, 128
        %6789 = vxpose.xlu0.c.b16.end [8/8] 0, 128
        %v6790 = vpop.trf.xlu0
        %v6791 = vpop.trf.xlu0
        %v6792 = vpop.trf.xlu0
        %v6793 = vpop.trf.xlu0
        %v6794 = vpop.trf.xlu0
        %v6795 = vpop.trf.xlu0
        %v6796 = vpop.trf.xlu0
        %v6797 = vpop.trf.xlu0
        %6798 = vxpose.xlu0.c.b16.start [1/8] %v6745, 128
        %6799 = vxpose.xlu0.c.b16.cont [2/8] 0, 128
        %6800 = vxpose.xlu0.c.b16.cont [3/8] 0, 128
        %6801 = vxpose.xlu0.c.b16.cont [4/8] 0, 128
        %6802 = vxpose.xlu0.c.b16.cont [5/8] 0, 128
        %6803 = vxpose.xlu0.c.b16.cont [6/8] 0, 128
        %6804 = vxpose.xlu0.c.b16.cont [7/8] 0, 128
        %6805 = vxpose.xlu0.c.b16.end [8/8] 0, 128
        %v6806 = vpop.trf.xlu0
        %v6807 = vpop.trf.xlu0
        %v6808 = vpop.trf.xlu0
        %v6809 = vpop.trf.xlu0
        %v6810 = vpop.trf.xlu0
        %v6811 = vpop.trf.xlu0
        %v6812 = vpop.trf.xlu0
        %v6813 = vpop.trf.xlu0
        %6814 = vxpose.xlu0.c.b16.start [1/8] %v6746, 128
        %6815 = vxpose.xlu0.c.b16.cont [2/8] 0, 128
        %6816 = vxpose.xlu0.c.b16.cont [3/8] 0, 128
        %6817 = vxpose.xlu0.c.b16.cont [4/8] 0, 128
        %6818 = vxpose.xlu0.c.b16.cont [5/8] 0, 128
        %6819 = vxpose.xlu0.c.b16.cont [6/8] 0, 128
        %6820 = vxpose.xlu0.c.b16.cont [7/8] 0, 128
        %6821 = vxpose.xlu0.c.b16.end [8/8] 0, 128
        %v6822 = vpop.trf.xlu0
        %v6823 = vpop.trf.xlu0
        %v6824 = vpop.trf.xlu0
        %v6825 = vpop.trf.xlu0
        %v6826 = vpop.trf.xlu0
        %v6827 = vpop.trf.xlu0
        %v6828 = vpop.trf.xlu0
        %v6829 = vpop.trf.xlu0
        %6830 = vxpose.xlu0.c.b16.start [1/8] %v6747, 128
        %6831 = vxpose.xlu0.c.b16.cont [2/8] 0, 128
        %6832 = vxpose.xlu0.c.b16.cont [3/8] 0, 128
        %6833 = vxpose.xlu0.c.b16.cont [4/8] 0, 128
        %6834 = vxpose.xlu0.c.b16.cont [5/8] 0, 128
        %6835 = vxpose.xlu0.c.b16.cont [6/8] 0, 128
        %6836 = vxpose.xlu0.c.b16.cont [7/8] 0, 128
        %6837 = vxpose.xlu0.c.b16.end [8/8] 0, 128
        %v6838 = vpop.trf.xlu0
        %v6839 = vpop.trf.xlu0
        %v6840 = vpop.trf.xlu0
        %v6841 = vpop.trf.xlu0
        %v6842 = vpop.trf.xlu0
        %v6843 = vpop.trf.xlu0
        %v6844 = vpop.trf.xlu0
        %v6845 = vpop.trf.xlu0
        %6846 = vxpose.xlu0.c.b16.start [1/8] %v6748, 128
        %6847 = vxpose.xlu0.c.b16.cont [2/8] 0, 128
        %6848 = vxpose.xlu0.c.b16.cont [3/8] 0, 128
        %6849 = vxpose.xlu0.c.b16.cont [4/8] 0, 128
        %6850 = vxpose.xlu0.c.b16.cont [5/8] 0, 128
        %6851 = vxpose.xlu0.c.b16.cont [6/8] 0, 128
        %6852 = vxpose.xlu0.c.b16.cont [7/8] 0, 128
        %6853 = vxpose.xlu0.c.b16.end [8/8] 0, 128
        %v6854 = vpop.trf.xlu0
        %v6855 = vpop.trf.xlu0
        %v6856 = vpop.trf.xlu0
        %v6857 = vpop.trf.xlu0
        %v6858 = vpop.trf.xlu0
        %v6859 = vpop.trf.xlu0
        %v6860 = vpop.trf.xlu0
        %v6861 = vpop.trf.xlu0
        %6862 = vxpose.xlu0.c.b16.start [1/8] %v6749, 128
        %6863 = vxpose.xlu0.c.b16.cont [2/8] 0, 128
        %6864 = vxpose.xlu0.c.b16.cont [3/8] 0, 128
        %6865 = vxpose.xlu0.c.b16.cont [4/8] 0, 128
        %6866 = vxpose.xlu0.c.b16.cont [5/8] 0, 128
        %6867 = vxpose.xlu0.c.b16.cont [6/8] 0, 128
        %6868 = vxpose.xlu0.c.b16.cont [7/8] 0, 128
        %6869 = vxpose.xlu0.c.b16.end [8/8] 0, 128
        %v6870 = vpop.trf.xlu0
        %v6871 = vpop.trf.xlu0
        %v6872 = vpop.trf.xlu0
        %v6873 = vpop.trf.xlu0
        %v6874 = vpop.trf.xlu0
        %v6875 = vpop.trf.xlu0
        %v6876 = vpop.trf.xlu0
        %v6877 = vpop.trf.xlu0
        %v6878 = vrot.slane %v6822, 4
        %v6879 = vsel %vm646, %v6878, %v6758
        %v6881 = vunpack.c.l.s4 1983009808
        %v6882 = vunpack.c.0.s8 %v6881
        %v6883 = vperm.slane %v6879, %v6882
        %v6884 = vrot.slane %v6854, 4
        %v6885 = vsel %vm646, %v6884, %v6790
        %v6887 = vunpack.c.l.s4 1983009808
        %v6888 = vunpack.c.0.s8 %v6887
        %v6889 = vperm.slane %v6885, %v6888
        %v6890 = vrot.slane %v6889, 4
        %v6891 = vsel %vm646, %v6890, %v6883
        %v6892 = vrot.slane %v6883, 4
        %v6893 = vsel %vm646, %v6889, %v6892
        %v6895 = vunpack.c.l.s4 1934713408
        %v6896 = vunpack.c.0.s8 %v6895
        %v6897 = vperm.slane %v6891, %v6896
        %v6899 = vunpack.c.l.s4 1934713408
        %v6900 = vunpack.c.0.s8 %v6899
        %v6901 = vperm.slane %v6893, %v6900
        %v6902 = vrot.slane %v6897, 4
        %v6903 = vsel %vm646, 0, %v6902
        %v6904 = vrot.slane %v6901, 4
        %v6905 = vsel %vm646, 0, %v6904
        %v6906 = vrot.slane %v6838, 4
        %v6907 = vsel %vm646, %v6906, %v6774
        %v6909 = vunpack.c.l.s4 1983009808
        %v6910 = vunpack.c.0.s8 %v6909
        %v6911 = vperm.slane %v6907, %v6910
        %v6912 = vrot.slane %v6870, 4
        %v6913 = vsel %vm646, %v6912, %v6806
        %v6915 = vunpack.c.l.s4 1983009808
        %v6916 = vunpack.c.0.s8 %v6915
        %v6917 = vperm.slane %v6913, %v6916
        %v6918 = vrot.slane %v6917, 4
        %v6919 = vsel %vm646, %v6918, %v6911
        %v6920 = vrot.slane %v6911, 4
        %v6921 = vsel %vm646, %v6917, %v6920
        %v6923 = vunpack.c.l.s4 1934713408
        %v6924 = vunpack.c.0.s8 %v6923
        %v6925 = vperm.slane %v6919, %v6924
        %v6927 = vunpack.c.l.s4 1934713408
        %v6928 = vunpack.c.0.s8 %v6927
        %v6929 = vperm.slane %v6921, %v6928
        %v6930 = vrot.slane %v6925, 4
        %v6931 = vsel %vm646, 0, %v6930
        %v6932 = vrot.slane %v6929, 4
        %v6933 = vsel %vm646, 0, %v6932
        %v6936 = vpack.i.b16 %v6925, %v6897
        %v6938 = vshrl.u32 %v6897, 16
        %v6939 = vshrl.u32 %v6925, 16
        %v6940 = vpack.i.b16 %v6939, %v6938
        %v6944 = vpack.i.b16 %v6931, %v6903
        %v6946 = vshrl.u32 %v6903, 16
        %v6947 = vshrl.u32 %v6931, 16
        %v6948 = vpack.i.b16 %v6947, %v6946
        %v6952 = vpack.i.b16 %v6929, %v6901
        %v6954 = vshrl.u32 %v6901, 16
        %v6955 = vshrl.u32 %v6929, 16
        %v6956 = vpack.i.b16 %v6955, %v6954
        %v6960 = vpack.i.b16 %v6933, %v6905
        %v6962 = vshrl.u32 %v6905, 16
        %v6963 = vshrl.u32 %v6933, 16
        %v6964 = vpack.i.b16 %v6963, %v6962
        %6966 = vxpose.xlu0.c.b16.start [1/8] %v6936, 128
        %6967 = vxpose.xlu0.c.b16.cont [2/8] 0, 128
        %6968 = vxpose.xlu0.c.b16.cont [3/8] 0, 128
        %6969 = vxpose.xlu0.c.b16.cont [4/8] 0, 128
        %6970 = vxpose.xlu0.c.b16.cont [5/8] 0, 128
        %6971 = vxpose.xlu0.c.b16.cont [6/8] 0, 128
        %6972 = vxpose.xlu0.c.b16.cont [7/8] 0, 128
        %6973 = vxpose.xlu0.c.b16.end [8/8] 0, 128
        %v6974 = vpop.trf.xlu0
        %v6975 = vpop.trf.xlu0
        %v6976 = vpop.trf.xlu0
        %v6977 = vpop.trf.xlu0
        %v6978 = vpop.trf.xlu0
        %v6979 = vpop.trf.xlu0
        %v6980 = vpop.trf.xlu0
        %v6981 = vpop.trf.xlu0
        %6982 = vxpose.xlu0.c.b16.start [1/8] %v6940, 128
        %6983 = vxpose.xlu0.c.b16.cont [2/8] 0, 128
        %6984 = vxpose.xlu0.c.b16.cont [3/8] 0, 128
        %6985 = vxpose.xlu0.c.b16.cont [4/8] 0, 128
        %6986 = vxpose.xlu0.c.b16.cont [5/8] 0, 128
        %6987 = vxpose.xlu0.c.b16.cont [6/8] 0, 128
        %6988 = vxpose.xlu0.c.b16.cont [7/8] 0, 128
        %6989 = vxpose.xlu0.c.b16.end [8/8] 0, 128
        %v6990 = vpop.trf.xlu0
        %v6991 = vpop.trf.xlu0
        %v6992 = vpop.trf.xlu0
        %v6993 = vpop.trf.xlu0
        %v6994 = vpop.trf.xlu0
        %v6995 = vpop.trf.xlu0
        %v6996 = vpop.trf.xlu0
        %v6997 = vpop.trf.xlu0
        %6998 = vxpose.xlu0.c.b16.start [1/8] %v6944, 128
        %6999 = vxpose.xlu0.c.b16.cont [2/8] 0, 128
        %7000 = vxpose.xlu0.c.b16.cont [3/8] 0, 128
        %7001 = vxpose.xlu0.c.b16.cont [4/8] 0, 128
        %7002 = vxpose.xlu0.c.b16.cont [5/8] 0, 128
        %7003 = vxpose.xlu0.c.b16.cont [6/8] 0, 128
        %7004 = vxpose.xlu0.c.b16.cont [7/8] 0, 128
        %7005 = vxpose.xlu0.c.b16.end [8/8] 0, 128
        %v7006 = vpop.trf.xlu0
        %v7007 = vpop.trf.xlu0
        %v7008 = vpop.trf.xlu0
        %v7009 = vpop.trf.xlu0
        %v7010 = vpop.trf.xlu0
        %v7011 = vpop.trf.xlu0
        %v7012 = vpop.trf.xlu0
        %v7013 = vpop.trf.xlu0
        %7014 = vxpose.xlu0.c.b16.start [1/8] %v6948, 128
        %7015 = vxpose.xlu0.c.b16.cont [2/8] 0, 128
        %7016 = vxpose.xlu0.c.b16.cont [3/8] 0, 128
        %7017 = vxpose.xlu0.c.b16.cont [4/8] 0, 128
        %7018 = vxpose.xlu0.c.b16.cont [5/8] 0, 128
        %7019 = vxpose.xlu0.c.b16.cont [6/8] 0, 128
        %7020 = vxpose.xlu0.c.b16.cont [7/8] 0, 128
        %7021 = vxpose.xlu0.c.b16.end [8/8] 0, 128
        %v7022 = vpop.trf.xlu0
        %v7023 = vpop.trf.xlu0
        %v7024 = vpop.trf.xlu0
        %v7025 = vpop.trf.xlu0
        %v7026 = vpop.trf.xlu0
        %v7027 = vpop.trf.xlu0
        %v7028 = vpop.trf.xlu0
        %v7029 = vpop.trf.xlu0
        %7030 = vxpose.xlu0.c.b16.start [1/8] %v6952, 128
        %7031 = vxpose.xlu0.c.b16.cont [2/8] 0, 128
        %7032 = vxpose.xlu0.c.b16.cont [3/8] 0, 128
        %7033 = vxpose.xlu0.c.b16.cont [4/8] 0, 128
        %7034 = vxpose.xlu0.c.b16.cont [5/8] 0, 128
        %7035 = vxpose.xlu0.c.b16.cont [6/8] 0, 128
        %7036 = vxpose.xlu0.c.b16.cont [7/8] 0, 128
        %7037 = vxpose.xlu0.c.b16.end [8/8] 0, 128
        %v7038 = vpop.trf.xlu0
        %v7039 = vpop.trf.xlu0
        %v7040 = vpop.trf.xlu0
        %v7041 = vpop.trf.xlu0
        %v7042 = vpop.trf.xlu0
        %v7043 = vpop.trf.xlu0
        %v7044 = vpop.trf.xlu0
        %v7045 = vpop.trf.xlu0
        %7046 = vxpose.xlu0.c.b16.start [1/8] %v6956, 128
        %7047 = vxpose.xlu0.c.b16.cont [2/8] 0, 128
        %7048 = vxpose.xlu0.c.b16.cont [3/8] 0, 128
        %7049 = vxpose.xlu0.c.b16.cont [4/8] 0, 128
        %7050 = vxpose.xlu0.c.b16.cont [5/8] 0, 128
        %7051 = vxpose.xlu0.c.b16.cont [6/8] 0, 128
        %7052 = vxpose.xlu0.c.b16.cont [7/8] 0, 128
        %7053 = vxpose.xlu0.c.b16.end [8/8] 0, 128
        %v7054 = vpop.trf.xlu0
        %v7055 = vpop.trf.xlu0
        %v7056 = vpop.trf.xlu0
        %v7057 = vpop.trf.xlu0
        %v7058 = vpop.trf.xlu0
        %v7059 = vpop.trf.xlu0
        %v7060 = vpop.trf.xlu0
        %v7061 = vpop.trf.xlu0
        %7062 = vxpose.xlu0.c.b16.start [1/8] %v6960, 128
        %7063 = vxpose.xlu0.c.b16.cont [2/8] 0, 128
        %7064 = vxpose.xlu0.c.b16.cont [3/8] 0, 128
        %7065 = vxpose.xlu0.c.b16.cont [4/8] 0, 128
        %7066 = vxpose.xlu0.c.b16.cont [5/8] 0, 128
        %7067 = vxpose.xlu0.c.b16.cont [6/8] 0, 128
        %7068 = vxpose.xlu0.c.b16.cont [7/8] 0, 128
        %7069 = vxpose.xlu0.c.b16.end [8/8] 0, 128
        %v7070 = vpop.trf.xlu0
        %v7071 = vpop.trf.xlu0
        %v7072 = vpop.trf.xlu0
        %v7073 = vpop.trf.xlu0
        %v7074 = vpop.trf.xlu0
        %v7075 = vpop.trf.xlu0
        %v7076 = vpop.trf.xlu0
        %v7077 = vpop.trf.xlu0
        %7078 = vxpose.xlu0.c.b16.start [1/8] %v6964, 128
        %7079 = vxpose.xlu0.c.b16.cont [2/8] 0, 128
        %7080 = vxpose.xlu0.c.b16.cont [3/8] 0, 128
        %7081 = vxpose.xlu0.c.b16.cont [4/8] 0, 128
        %7082 = vxpose.xlu0.c.b16.cont [5/8] 0, 128
        %7083 = vxpose.xlu0.c.b16.cont [6/8] 0, 128
        %7084 = vxpose.xlu0.c.b16.cont [7/8] 0, 128
        %7085 = vxpose.xlu0.c.b16.end [8/8] 0, 128
        %v7086 = vpop.trf.xlu0
        %v7087 = vpop.trf.xlu0
        %v7088 = vpop.trf.xlu0
        %v7089 = vpop.trf.xlu0
        %v7090 = vpop.trf.xlu0
        %v7091 = vpop.trf.xlu0
        %v7092 = vpop.trf.xlu0
        %v7093 = vpop.trf.xlu0
        %v7094 = vrot.slane %v7038, 4
        %v7095 = vsel %vm646, %v7094, %v6974
        %v7097 = vunpack.c.l.s4 1983009808
        %v7098 = vunpack.c.0.s8 %v7097
        %v7099 = vperm.slane %v7095, %v7098
        %v7100 = vrot.slane %v7070, 4
        %v7101 = vsel %vm646, %v7100, %v7006
        %v7103 = vunpack.c.l.s4 1983009808
        %v7104 = vunpack.c.0.s8 %v7103
        %v7105 = vperm.slane %v7101, %v7104
        %v7106 = vrot.slane %v7105, 4
        %v7107 = vsel %vm646, %v7106, %v7099
        %v7109 = vunpack.c.l.s4 1934713408
        %v7110 = vunpack.c.0.s8 %v7109
        %v7111 = vperm.slane %v7107, %v7110
        %v7112 = vrot.slane %v7111, 4
        %v7113 = vsel %vm646, 0, %v7112
        %v7114 = vrot.slane %v7054, 4
        %v7115 = vsel %vm646, %v7114, %v6990
        %v7117 = vunpack.c.l.s4 1983009808
        %v7118 = vunpack.c.0.s8 %v7117
        %v7119 = vperm.slane %v7115, %v7118
        %v7120 = vrot.slane %v7086, 4
        %v7121 = vsel %vm646, %v7120, %v7022
        %v7123 = vunpack.c.l.s4 1983009808
        %v7124 = vunpack.c.0.s8 %v7123
        %v7125 = vperm.slane %v7121, %v7124
        %v7126 = vrot.slane %v7125, 4
        %v7127 = vsel %vm646, %v7126, %v7119
        %v7129 = vunpack.c.l.s4 1934713408
        %v7130 = vunpack.c.0.s8 %v7129
        %v7131 = vperm.slane %v7127, %v7130
        %v7132 = vrot.slane %v7131, 4
        %v7133 = vsel %vm646, 0, %v7132
        %v7136 = vpack.i.b16 %v7131, %v7111
        %v7137 = vshrl.u32 %v7111, 16
        %v7138 = vshrl.u32 %v7131, 16
        %v7139 = vpack.i.b16 %v7138, %v7137
        %v7142 = vpack.i.b16 %v7133, %v7113
        %v7143 = vshrl.u32 %v7113, 16
        %v7144 = vshrl.u32 %v7133, 16
        %v7145 = vpack.i.b16 %v7144, %v7143
        %v7147 = vsel %vm1094, %v7136, 0
        %v7150 = vsel %vm1094, %v6738, 0
        %7152 = vmatpush.bf16.xpose.msra.mxu0 0
        %7153 = vmatpush.bf16.xpose.msra.mxu0 0
        %7154 = vmatpush.bf16.xpose.msra.mxu0 0
        %7155 = vmatpush.bf16.xpose.msra.mxu0 0
        %7156 = vmatpush.bf16.xpose.msra.mxu0 0
        %7157 = vmatpush.bf16.xpose.msra.mxu0 0
        %7158 = vmatpush.bf16.xpose.msra.mxu0 0
        %7159 = vmatpush.bf16.xpose.msra.mxu0 %v7150
        %7160 = vmatmul.bf16.gmra.mxu0 %v7147
        %v7161 = vpop.f32.mrf.mxu0
        %v7162 = vadd.f32 0.0, %v7161
        %v7163 = vpop.f32.mrf.mxu0
        %7164 = vdwg.mxu0
        %v7166 = vsel %vm1094, %v7139, 0
        %v7169 = vsel %vm1094, %v6739, 0
        %7171 = vmatpush.bf16.xpose.msra.mxu0 0
        %7172 = vmatpush.bf16.xpose.msra.mxu0 0
        %7173 = vmatpush.bf16.xpose.msra.mxu0 0
        %7174 = vmatpush.bf16.xpose.msra.mxu0 0
        %7175 = vmatpush.bf16.xpose.msra.mxu0 0
        %7176 = vmatpush.bf16.xpose.msra.mxu0 0
        %7177 = vmatpush.bf16.xpose.msra.mxu0 0
        %7178 = vmatpush.bf16.xpose.msra.mxu0 %v7169
        %7179 = vmatmul.bf16.gmra.mxu0 %v7166
        %v7180 = vpop.f32.mrf.mxu0
        %v7181 = vadd.f32 0.0, %v7180
        %v7182 = vpop.f32.mrf.mxu0
        %7183 = vdwg.mxu0
        %v7185 = vsel %vm1094, %v7142, 0
        %v7188 = vsel %vm1094, %v6740, 0
        %7190 = vmatpush.bf16.xpose.msra.mxu0 0
        %7191 = vmatpush.bf16.xpose.msra.mxu0 0
        %7192 = vmatpush.bf16.xpose.msra.mxu0 0
        %7193 = vmatpush.bf16.xpose.msra.mxu0 0
        %7194 = vmatpush.bf16.xpose.msra.mxu0 0
        %7195 = vmatpush.bf16.xpose.msra.mxu0 0
        %7196 = vmatpush.bf16.xpose.msra.mxu0 0
        %7197 = vmatpush.bf16.xpose.msra.mxu0 %v7188
        %7198 = vmatmul.bf16.gmra.mxu0 %v7185
        %v7199 = vpop.f32.mrf.mxu0
        %v7200 = vadd.f32 0.0, %v7199
        %v7201 = vpop.f32.mrf.mxu0
        %7202 = vdwg.mxu0
        %v7204 = vsel %vm1094, %v7145, 0
        %v7207 = vsel %vm1094, %v6741, 0
        %7209 = vmatpush.bf16.xpose.msra.mxu0 0
        %7210 = vmatpush.bf16.xpose.msra.mxu0 0
        %7211 = vmatpush.bf16.xpose.msra.mxu0 0
        %7212 = vmatpush.bf16.xpose.msra.mxu0 0
        %7213 = vmatpush.bf16.xpose.msra.mxu0 0
        %7214 = vmatpush.bf16.xpose.msra.mxu0 0
        %7215 = vmatpush.bf16.xpose.msra.mxu0 0
        %7216 = vmatpush.bf16.xpose.msra.mxu0 %v7207
        %7217 = vmatmul.bf16.gmra.mxu0 %v7204
        %v7218 = vpop.f32.mrf.mxu0
        %v7219 = vadd.f32 0.0, %v7218
        %v7220 = vpop.f32.mrf.mxu0
        %7221 = vdwg.mxu0
        %7222 = vxpose.xlu0.b32.start [1/16] %v7162, 128
        %7223 = vxpose.xlu0.b32.cont [2/16] 0.0, 128
        %7224 = vxpose.xlu0.b32.cont [3/16] 0.0, 128
        %7225 = vxpose.xlu0.b32.cont [4/16] 0.0, 128
        %7226 = vxpose.xlu0.b32.cont [5/16] 0.0, 128
        %7227 = vxpose.xlu0.b32.cont [6/16] 0.0, 128
        %7228 = vxpose.xlu0.b32.cont [7/16] 0.0, 128
        %7229 = vxpose.xlu0.b32.cont [8/16] 0.0, 128
        %7230 = vxpose.xlu0.b32.cont [9/16] 0.0, 128
        %7231 = vxpose.xlu0.b32.cont [10/16] 0.0, 128
        %7232 = vxpose.xlu0.b32.cont [11/16] 0.0, 128
        %7233 = vxpose.xlu0.b32.cont [12/16] 0.0, 128
        %7234 = vxpose.xlu0.b32.cont [13/16] 0.0, 128
        %7235 = vxpose.xlu0.b32.cont [14/16] 0.0, 128
        %7236 = vxpose.xlu0.b32.cont [15/16] 0.0, 128
        %7237 = vxpose.xlu0.b32.end [16/16] 0.0, 128
        %v7238 = vpop.trf.xlu0
        %v7239 = vpop.trf.xlu0
        %v7240 = vpop.trf.xlu0
        %v7241 = vpop.trf.xlu0
        %v7242 = vpop.trf.xlu0
        %v7243 = vpop.trf.xlu0
        %v7244 = vpop.trf.xlu0
        %v7245 = vpop.trf.xlu0
        %v7246 = vpop.trf.xlu0
        %v7247 = vpop.trf.xlu0
        %v7248 = vpop.trf.xlu0
        %v7249 = vpop.trf.xlu0
        %v7250 = vpop.trf.xlu0
        %v7251 = vpop.trf.xlu0
        %v7252 = vpop.trf.xlu0
        %v7253 = vpop.trf.xlu0
        %7254 = vxpose.xlu0.b32.start [1/16] %v7181, 128
        %7255 = vxpose.xlu0.b32.cont [2/16] 0.0, 128
        %7256 = vxpose.xlu0.b32.cont [3/16] 0.0, 128
        %7257 = vxpose.xlu0.b32.cont [4/16] 0.0, 128
        %7258 = vxpose.xlu0.b32.cont [5/16] 0.0, 128
        %7259 = vxpose.xlu0.b32.cont [6/16] 0.0, 128
        %7260 = vxpose.xlu0.b32.cont [7/16] 0.0, 128
        %7261 = vxpose.xlu0.b32.cont [8/16] 0.0, 128
        %7262 = vxpose.xlu0.b32.cont [9/16] 0.0, 128
        %7263 = vxpose.xlu0.b32.cont [10/16] 0.0, 128
        %7264 = vxpose.xlu0.b32.cont [11/16] 0.0, 128
        %7265 = vxpose.xlu0.b32.cont [12/16] 0.0, 128
        %7266 = vxpose.xlu0.b32.cont [13/16] 0.0, 128
        %7267 = vxpose.xlu0.b32.cont [14/16] 0.0, 128
        %7268 = vxpose.xlu0.b32.cont [15/16] 0.0, 128
        %7269 = vxpose.xlu0.b32.end [16/16] 0.0, 128
        %v7270 = vpop.trf.xlu0
        %v7271 = vpop.trf.xlu0
        %v7272 = vpop.trf.xlu0
        %v7273 = vpop.trf.xlu0
        %v7274 = vpop.trf.xlu0
        %v7275 = vpop.trf.xlu0
        %v7276 = vpop.trf.xlu0
        %v7277 = vpop.trf.xlu0
        %v7278 = vpop.trf.xlu0
        %v7279 = vpop.trf.xlu0
        %v7280 = vpop.trf.xlu0
        %v7281 = vpop.trf.xlu0
        %v7282 = vpop.trf.xlu0
        %v7283 = vpop.trf.xlu0
        %v7284 = vpop.trf.xlu0
        %v7285 = vpop.trf.xlu0
        %7286 = vxpose.xlu0.b32.start [1/16] %v7200, 128
        %7287 = vxpose.xlu0.b32.cont [2/16] 0.0, 128
        %7288 = vxpose.xlu0.b32.cont [3/16] 0.0, 128
        %7289 = vxpose.xlu0.b32.cont [4/16] 0.0, 128
        %7290 = vxpose.xlu0.b32.cont [5/16] 0.0, 128
        %7291 = vxpose.xlu0.b32.cont [6/16] 0.0, 128
        %7292 = vxpose.xlu0.b32.cont [7/16] 0.0, 128
        %7293 = vxpose.xlu0.b32.cont [8/16] 0.0, 128
        %7294 = vxpose.xlu0.b32.cont [9/16] 0.0, 128
        %7295 = vxpose.xlu0.b32.cont [10/16] 0.0, 128
        %7296 = vxpose.xlu0.b32.cont [11/16] 0.0, 128
        %7297 = vxpose.xlu0.b32.cont [12/16] 0.0, 128
        %7298 = vxpose.xlu0.b32.cont [13/16] 0.0, 128
        %7299 = vxpose.xlu0.b32.cont [14/16] 0.0, 128
        %7300 = vxpose.xlu0.b32.cont [15/16] 0.0, 128
        %7301 = vxpose.xlu0.b32.end [16/16] 0.0, 128
        %v7302 = vpop.trf.xlu0
        %v7303 = vpop.trf.xlu0
        %v7304 = vpop.trf.xlu0
        %v7305 = vpop.trf.xlu0
        %v7306 = vpop.trf.xlu0
        %v7307 = vpop.trf.xlu0
        %v7308 = vpop.trf.xlu0
        %v7309 = vpop.trf.xlu0
        %v7310 = vpop.trf.xlu0
        %v7311 = vpop.trf.xlu0
        %v7312 = vpop.trf.xlu0
        %v7313 = vpop.trf.xlu0
        %v7314 = vpop.trf.xlu0
        %v7315 = vpop.trf.xlu0
        %v7316 = vpop.trf.xlu0
        %v7317 = vpop.trf.xlu0
        %7318 = vxpose.xlu0.b32.start [1/16] %v7219, 128
        %7319 = vxpose.xlu0.b32.cont [2/16] 0.0, 128
        %7320 = vxpose.xlu0.b32.cont [3/16] 0.0, 128
        %7321 = vxpose.xlu0.b32.cont [4/16] 0.0, 128
        %7322 = vxpose.xlu0.b32.cont [5/16] 0.0, 128
        %7323 = vxpose.xlu0.b32.cont [6/16] 0.0, 128
        %7324 = vxpose.xlu0.b32.cont [7/16] 0.0, 128
        %7325 = vxpose.xlu0.b32.cont [8/16] 0.0, 128
        %7326 = vxpose.xlu0.b32.cont [9/16] 0.0, 128
        %7327 = vxpose.xlu0.b32.cont [10/16] 0.0, 128
        %7328 = vxpose.xlu0.b32.cont [11/16] 0.0, 128
        %7329 = vxpose.xlu0.b32.cont [12/16] 0.0, 128
        %7330 = vxpose.xlu0.b32.cont [13/16] 0.0, 128
        %7331 = vxpose.xlu0.b32.cont [14/16] 0.0, 128
        %7332 = vxpose.xlu0.b32.cont [15/16] 0.0, 128
        %7333 = vxpose.xlu0.b32.end [16/16] 0.0, 128
        %v7334 = vpop.trf.xlu0
        %v7335 = vpop.trf.xlu0
        %v7336 = vpop.trf.xlu0
        %v7337 = vpop.trf.xlu0
        %v7338 = vpop.trf.xlu0
        %v7339 = vpop.trf.xlu0
        %v7340 = vpop.trf.xlu0
        %v7341 = vpop.trf.xlu0
        %v7342 = vpop.trf.xlu0
        %v7343 = vpop.trf.xlu0
        %v7344 = vpop.trf.xlu0
        %v7345 = vpop.trf.xlu0
        %v7346 = vpop.trf.xlu0
        %v7347 = vpop.trf.xlu0
        %v7348 = vpop.trf.xlu0
        %v7349 = vpop.trf.xlu0
        %v7350 = vrot.slane %v7302, 4
        %v7351 = vsel %vm389, %v7350, %v7238
        %v7352 = vrot.slane %v7238, 4
        %v7353 = vsel %vm389, %v7302, %v7352
        %v7355 = vunpack.c.l.s4 1983009808
        %v7356 = vunpack.c.0.s8 %v7355
        %v7357 = vperm.slane %v7351, %v7356
        %v7359 = vunpack.c.l.s4 1983009808
        %v7360 = vunpack.c.0.s8 %v7359
        %v7361 = vperm.slane %v7353, %v7360
        %v7362 = vrot.slane %v7334, 4
        %v7363 = vsel %vm389, %v7362, %v7270
        %v7364 = vrot.slane %v7270, 4
        %v7365 = vsel %vm389, %v7334, %v7364
        %v7367 = vunpack.c.l.s4 1983009808
        %v7368 = vunpack.c.0.s8 %v7367
        %v7369 = vperm.slane %v7363, %v7368
        %v7371 = vunpack.c.l.s4 1983009808
        %v7372 = vunpack.c.0.s8 %v7371
        %v7373 = vperm.slane %v7365, %v7372
        %v7374 = vrot.slane %v7369, 4
        %v7375 = vsel %vm389, %v7374, %v7357
        %v7376 = vrot.slane %v7357, 4
        %v7377 = vsel %vm389, %v7369, %v7376
        %v7379 = vunpack.c.l.s4 1934713408
        %v7380 = vunpack.c.0.s8 %v7379
        %v7381 = vperm.slane %v7375, %v7380
        %v7383 = vunpack.c.l.s4 1934713408
        %v7384 = vunpack.c.0.s8 %v7383
        %v7385 = vperm.slane %v7377, %v7384
        %v7386 = vrot.slane %v7373, 4
        %v7387 = vsel %vm389, %v7386, %v7361
        %v7388 = vrot.slane %v7361, 4
        %v7389 = vsel %vm389, %v7373, %v7388
        %v7391 = vunpack.c.l.s4 1934713408
        %v7392 = vunpack.c.0.s8 %v7391
        %v7393 = vperm.slane %v7387, %v7392
        %v7395 = vunpack.c.l.s4 1934713408
        %v7396 = vunpack.c.0.s8 %v7395
        %v7397 = vperm.slane %v7389, %v7396
        %v7398 = vrot.slane %v7381, 4
        %v7399 = vsel %vm389, 0.0, %v7398
        %v7400 = vrot.slane %v7385, 4
        %v7401 = vsel %vm389, 0.0, %v7400
        %v7402 = vrot.slane %v7393, 4
        %v7403 = vsel %vm389, 0.0, %v7402
        %v7404 = vrot.slane %v7397, 4
        %v7405 = vsel %vm389, 0.0, %v7404
        %v7406 = vsel %vm389, %v7400, %v7381
        %v7408 = vunpack.c.l.s4 1983009808
        %v7409 = vunpack.c.0.s8 %v7408
        %v7410 = vperm.slane %v7406, %v7409
        %v7411 = vrot.slane %v7401, 4
        %v7412 = vsel %vm389, %v7411, %v7399
        %v7414 = vunpack.c.l.s4 1983009808
        %v7415 = vunpack.c.0.s8 %v7414
        %v7416 = vperm.slane %v7412, %v7415
        %v7417 = vsel %vm389, %v7404, %v7393
        %v7419 = vunpack.c.l.s4 1983009808
        %v7420 = vunpack.c.0.s8 %v7419
        %v7421 = vperm.slane %v7417, %v7420
        %v7422 = vrot.slane %v7405, 4
        %v7423 = vsel %vm389, %v7422, %v7403
        %v7425 = vunpack.c.l.s4 1983009808
        %v7426 = vunpack.c.0.s8 %v7425
        %v7427 = vperm.slane %v7423, %v7426
        %v7428 = vrot.slane %v7416, 4
        %v7429 = vsel %vm389, %v7428, %v7410
        %v7430 = vrot.slane %v7410, 4
        %v7431 = vsel %vm389, %v7416, %v7430
        %v7433 = vunpack.c.l.s4 1934713408
        %v7434 = vunpack.c.0.s8 %v7433
        %v7435 = vperm.slane %v7429, %v7434
        %v7437 = vunpack.c.l.s4 1934713408
        %v7438 = vunpack.c.0.s8 %v7437
        %v7439 = vperm.slane %v7431, %v7438
        %v7440 = vrot.slane %v7427, 4
        %v7441 = vsel %vm389, %v7440, %v7421
        %v7442 = vrot.slane %v7421, 4
        %v7443 = vsel %vm389, %v7427, %v7442
        %v7445 = vunpack.c.l.s4 1934713408
        %v7446 = vunpack.c.0.s8 %v7445
        %v7447 = vperm.slane %v7441, %v7446
        %v7449 = vunpack.c.l.s4 1934713408
        %v7450 = vunpack.c.0.s8 %v7449
        %v7451 = vperm.slane %v7443, %v7450
        %v7452 = vrot.slane %v7447, 4
        %v7453 = vsel %vm389, %v7452, %v7435
        %v7454 = vrot.slane %v7435, 4
        %v7455 = vsel %vm389, %v7447, %v7454
        %v7456 = vrot.slane %v7451, 4
        %v7457 = vsel %vm389, %v7456, %v7439
        %v7458 = vrot.slane %v7439, 4
        %v7459 = vsel %vm389, %v7451, %v7458
        %7461 = vrot.lane.b32.xlu0 %v7455, 8
        %v7462 = vpop.permute.xlu0 %7461
        %7465 = vrot.lane.b32.xlu0 %v7457, 16
        %v7466 = vpop.permute.xlu0 %7465
        %7469 = vrot.lane.b32.xlu0 %v7459, 24
        %v7470 = vpop.permute.xlu0 %7469
        %v7472 = vsel %vm1094, %v7453, %v7462
        %v7473 = vsel %vm307, %v7472, %v7466
        %v7474 = vsel %vm1956, %v7473, %v7470
        %v7475 = vpack.c.bf16 %v7474, %v7474
        %v7476 = vperm.slane %v5869, 0
        %v7481 = vunpack.c.l.b16 %v5862
        %v7482 = vunpack.c.l.b16 %v5863
        %v7483 = vunpack.c.l.b16 %v5864
        %v7484 = vunpack.c.l.b16 %v5865
        %v7485 = vpack.c.b16 %v7482, %v7481
        %v7486 = vpack.c.b16 %v7484, %v7483
        %v7490 = vsel %vm361, %v7475, 0
        %7492 = vmatpush.bf16.msra.mxu0 0
        %7493 = vmatpush.bf16.msra.mxu0 0
        %7494 = vmatpush.bf16.msra.mxu0 0
        %7495 = vmatpush.bf16.msra.mxu0 0
        %7496 = vmatpush.bf16.msra.mxu0 0
        %7497 = vmatpush.bf16.msra.mxu0 0
        %7498 = vmatpush.bf16.msra.mxu0 %v7486
        %7499 = vmatpush.bf16.msra.mxu0 %v7485
        %7500 = vmatmul.bf16.gmra.mxu0 %v7490
        %v7501 = vpop.f32.mrf.mxu0
        %v7502 = vadd.f32 %v7476, %v7501
        %v7503 = vpop.f32.mrf.mxu0
        %7504 = vdwg.mxu0
        %v7505 = vadd.f32 %v5849, %v7502
        %v7506 = vsel %vm361, %v7505, 0.0
        %7507 = vadd.xlane.f32.xlu0 %v7506
        %v7508 = vpop.xlane.xlu0 %7507
        %v7509 = vmul.f32 %v7508, %v1998
        %v7510 = vsub.f32 %v7505, %v7509
        %v7511 = vmul.f32 %v7510, %v7510
        %v7512 = vsel %vm361, %v7511, 0.0
        %7513 = vadd.xlane.f32.xlu0 %v7512
        %v7514 = vpop.xlane.xlu0 %7513
        %v7515 = vmul.f32 %v7514, %v1998
        %v7516 = vadd.f32 %v7515, 1e-05
        %v7517 = vrsqrt.pop %v7516
        %v7518 = vmul.f32 %v7517, %v7516
        %v7519 = vmul.f32 %v7518, %v7517
        %v7520 = vmul.f32 0.5, %v7519
        %v7521 = vsub.f32 1.5, %v7520
        %v7522 = vmul.f32 %v7517, %v7521
        %vm7523 = vweird.f32 %v7516
        %vm7524 = vweird.f32 %v7517
        %vm7525 = vmor %vm7523, %vm7524
        %v7526 = vsel %vm7525, %v7517, %v7522
        %v7527 = vmul.f32 %v7510, %v7526
        %v7528 = vmul.f32 %v7527, %v2018
        %v7529 = vadd.f32 %v7528, %v2020
        %v7530 = vsel %vm361, %v7529, 0.0
        %v7531 = vrot.slane %v7530, 4
        %v7532 = vadd.f32 %v7530, %v7531
        %v7533 = vrot.slane %v7532, 2
        %v7534 = vadd.f32 %v7532, %v7533
        %v7535 = vrot.slane %v7534, 1
        %v7536 = vadd.f32 %v7534, %v7535
        %v7537 = vmul.f32 %v7536, %v5834
        %v7538 = vsel %vm361, %v7529, -inf
        %v7539 = vrot.slane %v7538, 4
        %v7540 = vmax.f32 %v7538, %v7539
        %v7541 = vrot.slane %v7540, 2
        %v7542 = vmax.f32 %v7540, %v7541
        %v7543 = vrot.slane %v7542, 1
        %v7544 = vmax.f32 %v7542, %v7543
        %7546 = vrot.lane.b32.xlu0 %v7544, 32
        %v7547 = vpop.permute.xlu0 %7546
        %v7549 = vsel %vm361, %v7537, %v7547
        %7551 = vrot.lane.b32.xlu0 %v7549, 64
        %v7552 = vpop.permute.xlu0 %7551
        %v7554 = vsel %vm3824, %v5847, %v7552
        %v7555 = vld [vmem:[#allocation5 + $0x198] sm:$0xf]
        %v7556 = vld [vmem:[#allocation5 + $0x19c] sm:$0xf]
        %v7557 = vld [vmem:[#allocation5 + $0x1a0] sm:$0xf]
        %v7558 = vld [vmem:[#allocation5 + $0x1a4] sm:$0xf]
        %v7559 = vld [vmem:[#allocation5 + $0x1a8] sm:$0xf]
        %v7560 = vld [vmem:[#allocation5 + $0x1ac] sm:$0xf]
        %v7561 = vld [vmem:[#allocation5 + $0x1b0] sm:$0xf]
        %v7562 = vld [vmem:[#allocation5 + $0x1b4] sm:$0xf]
        %v7563 = vld [vmem:[#allocation5 + $0x1b8] sm:$0xf]
        %v7564 = vld [vmem:[#allocation5 + $0x1bc] sm:$0xf]
        %v7565 = vld [vmem:[#allocation5 + $0x1c0] sm:$0xf]
        %v7566 = vld [vmem:[#allocation5 + $0x1c4] sm:$0xf]
        %v7567 = vld [vmem:[#allocation5 + $0x1c8] sm:$0xf]
        %v7568 = vld [vmem:[#allocation5 + $0x1cc] sm:$0xf]
        %v7569 = vld [vmem:[#allocation5 + $0x1d0] sm:$0xf]
        %v7570 = vld [vmem:[#allocation5 + $0x1d4] sm:$0xf]
        %v7571 = vld [vmem:[%s3 + $0xe8] sm:$0x1]
        %v7572 = vpack.c.bf16 %v7554, %v7554
        %v7589 = vunpack.c.l.b16 %v7555
        %v7590 = vunpack.c.l.b16 %v7556
        %v7591 = vunpack.c.l.b16 %v7557
        %v7592 = vunpack.c.l.b16 %v7558
        %v7593 = vunpack.c.l.b16 %v7559
        %v7594 = vunpack.c.l.b16 %v7560
        %v7595 = vunpack.c.l.b16 %v7561
        %v7596 = vunpack.c.l.b16 %v7562
        %v7597 = vunpack.c.l.b16 %v7563
        %v7598 = vunpack.c.l.b16 %v7564
        %v7599 = vunpack.c.l.b16 %v7565
        %v7600 = vunpack.c.l.b16 %v7566
        %v7601 = vunpack.c.l.b16 %v7567
        %v7602 = vunpack.c.l.b16 %v7568
        %v7603 = vunpack.c.l.b16 %v7569
        %v7604 = vunpack.c.l.b16 %v7570
        %v7605 = vpack.c.b16 %v7590, %v7589
        %v7606 = vpack.c.b16 %v7592, %v7591
        %v7607 = vpack.c.b16 %v7594, %v7593
        %v7608 = vpack.c.b16 %v7596, %v7595
        %v7609 = vpack.c.b16 %v7598, %v7597
        %v7610 = vpack.c.b16 %v7600, %v7599
        %v7611 = vpack.c.b16 %v7602, %v7601
        %v7612 = vpack.c.b16 %v7604, %v7603
        %7621 = vmatpush.bf16.msra.mxu0 %v7612
        %7622 = vmatpush.bf16.msra.mxu0 %v7611
        %7623 = vmatpush.bf16.msra.mxu0 %v7610
        %7624 = vmatpush.bf16.msra.mxu0 %v7609
        %7625 = vmatpush.bf16.msra.mxu0 %v7608
        %7626 = vmatpush.bf16.msra.mxu0 %v7607
        %7627 = vmatpush.bf16.msra.mxu0 %v7606
        %7628 = vmatpush.bf16.msra.mxu0 %v7605
        %7629 = vmatmul.bf16.gmra.mxu0 %v7572
        %v7630 = vpop.f32.mrf.mxu0
        %v7631 = vadd.f32 %v7571, %v7630
        %v7632 = vpop.f32.mrf.mxu0
        %7633 = vdwg.mxu0
        %v7634 = vmax.f32 %v7631, 0.0
        %v7635 = vld [vmem:[#allocation5 + $0x1d8] sm:$0xf]
        %v7636 = vld [vmem:[#allocation5 + $0x1dc] sm:$0xf]
        %v7637 = vld [vmem:[#allocation5 + $0x1e0] sm:$0xf]
        %v7638 = vld [vmem:[#allocation5 + $0x1e4] sm:$0xf]
        %v7639 = vld [vmem:[%s3 + $0xf0] sm:$0x1]
        %v7640 = vpack.c.bf16 %v7634, %v7634
        %v7645 = vunpack.c.l.b16 %v7635
        %v7646 = vunpack.c.l.b16 %v7636
        %v7647 = vunpack.c.l.b16 %v7637
        %v7648 = vunpack.c.l.b16 %v7638
        %v7649 = vpack.c.b16 %v7646, %v7645
        %v7650 = vpack.c.b16 %v7648, %v7647
        %v7654 = vsel %vm361, %v7640, 0
        %7656 = vmatpush.bf16.msra.mxu0 0
        %7657 = vmatpush.bf16.msra.mxu0 0
        %7658 = vmatpush.bf16.msra.mxu0 0
        %7659 = vmatpush.bf16.msra.mxu0 0
        %7660 = vmatpush.bf16.msra.mxu0 0
        %7661 = vmatpush.bf16.msra.mxu0 0
        %7662 = vmatpush.bf16.msra.mxu0 %v7650
        %7663 = vmatpush.bf16.msra.mxu0 %v7649
        %7664 = vmatmul.bf16.gmra.mxu0 %v7654
        %v7665 = vpop.f32.mrf.mxu0
        %v7666 = vadd.f32 %v7639, %v7665
        %v7667 = vpop.f32.mrf.mxu0
        %7668 = vdwg.mxu0
        %7669 = vst [vmem:[%s279] sm:$0x1] %v7666
        %s7670 = sand.u32 %s151, 1
        %s7671 = scalar_lea.sflag [#allocation4], %s7670
        %s7672 = sand.u32 %s151, 1
        %s7673 = scalar_lea.vmem [#allocation7], %s7672
        // Predicated region
        $region49: #{forward.1} parent=39 // pred_check
          %p7674 = pneg %p161
        $region50: #{forward.1} parent=39 // pred_check_branch
          %7676 = sbr.rel (%p7674) target = $region52
        $region51: #{forward.1} parent=39 // pred_region
          %7678 = vsyncadd %s7671, 0
          %s7679 = scalar_lea.hbm %s5, %s23
          %s7681 = sshll.u32 %s7673, 4
          %s7682 = int_to_ptr.vmem [resolvable:$true] %s7681
          %s7683 = sshll.u32 %s7679, 4
          %s7684 = int_to_ptr.hbm [resolvable:$true] %s7683
          %7686 = dma.vmem_to_hbm [thread:$0]  %s7682, 16, %s7684, %s7671
        $region52: #{forward.1} parent=39 // pred_fallthru
          _
      $region40: #{forward.1} parent=5 // pred_fallthru
        _
      %p7687 = scmp.le.s32.totalorder 2, %s18
      // Predicated region
      $region53: #{forward.1} parent=5 // pred_check
        %p7688 = pneg %p7687
      $region54: #{forward.1} parent=5 // pred_check_branch
        %7690 = sbr.rel (%p7688) target = $region56
      $region55: #{forward.1} parent=5 // pred_region
        %s7691 = ssub.s32 %s18, 2
        // Predicated region
        $region57: #{forward.1} parent=55 // pred_check
          %p7692 = pneg %p167
        $region58: #{forward.1} parent=55 // pred_check_branch
          %7694 = sbr.rel (%p7692) target = $region60
        $region59: #{forward.1} parent=55 // pred_region
          %s7695 = sand.u32 %s152, 1
          %s7696 = scalar_lea.sflag [#allocation4], %s7695
          %s7697 = sand.u32 %s152, 1
          %s7698 = scalar_lea.vmem [#allocation7], %s7697
          %7700 = dma.done %s7696, 16
        $region60: #{forward.1} parent=55 // pred_fallthru
          _
      $region56: #{forward.1} parent=5 // pred_fallthru
        _
    $region6: #{forward.1} parent=1 // loop_footer
      %s22 = sadd.s32 1, %s18
    $region7: #{forward.1} parent=1 // loop_footer_branch
      %17 = sbr.rel target = $region3
    $region8: #{forward.1} parent=1 // loop_exit
      _
    %7701 = vsyncpa [#allocation3], 1
    %s7702 = scalar_lea.sflag [#allocation3], 1
    %7703 = vsyncpa %s7702, 1
    %7704 = vsyncpa [#allocation6], 1
    %7705 = vsyncpa [#allocation4], 1
    %s7706 = scalar_lea.sflag [#allocation4], 1
    %7707 = vsyncpa %s7706, 1

</llo_original>
